<compile_context>
chip_gen: v7x
topology: tpu7x:2x2x1
jax: 0.10.0
libtpu: 0.0.40
codegen_flags: <defaults>
</compile_context>

<pallas_src>
import functools

import jax
import jax.numpy as jnp
from jax import lax
from jax.experimental import pallas as pl
from jax.experimental.pallas import tpu as pltpu

LN_EPS = 1e-5          # nn.LayerNorm default
_NEG_INF = -1e30       # additive mask for cross-batch attention blocks


# --------------------------------------------------------------------------------------
# In-kernel math helpers
# --------------------------------------------------------------------------------------
def _erf_poly(x, approx):
    # Abramowitz & Stegun 7.1.26 rational approximation, |err| < 1.5e-7.
    a1, a2, a3, a4, a5 = 0.254829592, -0.284496736, 1.421413741, -1.453152027, 1.061405429
    p = 0.3275911
    ax = jnp.abs(x)
    t = pl.reciprocal(1.0 + p * ax, approx=approx)   # EUP when approx=True
    poly = ((((a5 * t + a4) * t + a3) * t + a2) * t + a1) * t
    y = 1.0 - poly * jnp.exp(-ax * ax)
    return jnp.where(x >= 0, y, -y)


def _gelu(x, approx):
    # nn.GELU() default = exact (erf-based) GELU
    return 0.5 * x * (1.0 + _erf_poly(x * 0.7071067811865476, approx))


def _layer_norm(x, gamma, beta):
    mean = jnp.mean(x, axis=-1, keepdims=True)
    var = jnp.mean(jnp.square(x - mean), axis=-1, keepdims=True)
    return (x - mean) * lax.rsqrt(var + LN_EPS) * gamma + beta


def _block_diag_bias(Bt, Lq, Lk):
    """(Bt*Lq, Bt*Lk) additive bias: 0 inside same-batch blocks, -1e30 elsewhere."""
    if Bt == 1:
        return None
    rows, cols = Bt * Lq, Bt * Lk
    r = lax.broadcasted_iota(jnp.int32, (rows, cols), 0)
    c = lax.broadcasted_iota(jnp.int32, (rows, cols), 1)
    same = jnp.zeros((rows, cols), dtype=jnp.bool_)
    for b in range(Bt):  # static unroll; avoids integer-division lowering
        same = same | ((r >= b * Lq) & (r < (b + 1) * Lq)
                       & (c >= b * Lk) & (c < (b + 1) * Lk))
    return jnp.where(same, 0.0, _NEG_INF).astype(jnp.float32)


def _attend(q2, k2, v2, ctx_ref, bias, num_heads, cd, approx):
    """Packed-batch multi-head attention.

    q2: (Bt*Lq, E) f32, k2/v2: (Bt*Lk, E) f32.  Cross-batch interactions are removed
    with a block-diagonal additive bias, so one (Bt*Lq, Bt*Lk) score matmul per head
    replaces Bt tiny matmuls.  Contraction is over the head dim of both operands, so
    no K^T is materialized.  Head contexts go into lane slices of the f32 VMEM
    scratch ctx_ref (no concatenate).
    """
    E = q2.shape[-1]
    dh = E // num_heads
    scale = 1.0 / (dh ** 0.5)
    for h in range(num_heads):                        # static unroll over heads
        sl = slice(h * dh, (h + 1) * dh)
        s = lax.dot_general(q2[:, sl].astype(cd), k2[:, sl].astype(cd),
                            (((1,), (1,)), ((), ())),
                            preferred_element_type=jnp.float32)   # (Rq, Rk)
        s = s * scale
        if bias is not None:
            s = s + bias
        s = s - jnp.max(s, axis=-1, keepdims=True)
        p = jnp.exp(s)
        p = p * pl.reciprocal(jnp.sum(p, axis=-1, keepdims=True), approx=approx)
        ctx_ref[:, sl] = jnp.dot(p.astype(cd), v2[:, sl].astype(cd),
                                 preferred_element_type=jnp.float32)
    return ctx_ref[...]


# --------------------------------------------------------------------------------------
# Fused kernel
# --------------------------------------------------------------------------------------
def _qformer_kernel(q_ref, enc_ref, *refs, num_heads, fused_qkv, compute_dtype, approx):
    *p, out_ref, ctx_ref = refs
    if fused_qkv:
        (c_wq, c_bq, c_wkv, c_bkv, c_wo, c_bo,
         s_wqkv, s_bqkv, s_wo, s_bo,
         ln1_g, ln1_b, ln2_g, ln2_b, ln3_g, ln3_b,
         m_w1, m_b1, m_w2, m_b2) = p
    else:
        (c_wq, c_bq, c_wk, c_bk, c_wv, c_bv, c_wo, c_bo,
         s_wq, s_bq, s_wk, s_bk, s_wv, s_bv, s_wo, s_bo,
         ln1_g, ln1_b, ln2_g, ln2_b, ln3_g, ln3_b,
         m_w1, m_b1, m_w2, m_b2) = p

    Bt, Lq, Dq = q_ref.shape
    _, Le, De = enc_ref.shape
    cd = compute_dtype

    # Flatten the batch tile: projections / MLP / LayerNorm are batch-independent,
    # so the MXU sees M = Bt*Lq rows per pass.
    x = q_ref[...].reshape(Bt * Lq, Dq).astype(jnp.float32)
    enc = enc_ref[...].reshape(Bt * Le, De)

    bias_c = _block_diag_bias(Bt, Lq, Le)
    bias_s = _block_diag_bias(Bt, Lq, Lq)

    def mm(a, w, b):
        # bf16 (or f32) MXU operands, f32 accumulation, f32 bias.
        out = jnp.dot(a.astype(cd), w[...], preferred_element_type=jnp.float32)
        return out + b[...]

    # ---- cross-attention + residual + norm1 ----
    q = mm(x, c_wq, c_bq)
    if fused_qkv:
        kv = mm(enc, c_wkv, c_bkv)
        ck, cv = kv[:, :Dq], kv[:, Dq:]
    else:
        ck = mm(enc, c_wk, c_bk)
        cv = mm(enc, c_wv, c_bv)
    ctx = _attend(q, ck, cv, ctx_ref, bias_c, num_heads, cd, approx)
    attn = mm(ctx, c_wo, c_bo)
    x = _layer_norm(x + attn, ln1_g[...], ln1_b[...])

    # ---- self-attention + residual + norm2 ----
    if fused_qkv:
        qkv = mm(x, s_wqkv, s_bqkv)
        sq, sk, sv = qkv[:, :Dq], qkv[:, Dq:2 * Dq], qkv[:, 2 * Dq:]
    else:
        sq = mm(x, s_wq, s_bq)
        sk = mm(x, s_wk, s_bk)
        sv = mm(x, s_wv, s_bv)
    ctx = _attend(sq, sk, sv, ctx_ref, bias_s, num_heads, cd, approx)
    attn = mm(ctx, s_wo, s_bo)
    x = _layer_norm(x + attn, ln2_g[...], ln2_b[...])

    # ---- MLP (Linear -> GELU -> Linear) + residual + norm3 ----
    h = _gelu(mm(x, m_w1, m_b1), approx)
    m = mm(h, m_w2, m_b2)
    x = _layer_norm(x + m, ln3_g[...], ln3_b[...])

    out_ref[...] = x.reshape(Bt, Lq, Dq).astype(out_ref.dtype)


# --------------------------------------------------------------------------------------
# Wrapper: chip-aware tiling, VMEM budgeting, param layout
# --------------------------------------------------------------------------------------
def _physical_vmem_bytes():
    try:
        v = int(getattr(pltpu.get_tpu_info(), "vmem_capacity_bytes", 0))
        if v > 0:
            return v
    except Exception:
        pass
    return 64 << 20  # conservative: v7x has 64 MiB per TensorCore


def _num_tensorcores():
    # v7x has 2 TensorCores/chip ("parallel" grid axes shard across them); v5e/v6e: 1.
    try:
        kind = (jax.devices()[0].device_kind or "").lower()
        if "v7" in kind or "7x" in kind:
            return 2
    except Exception:
        pass
    return 1


def _pick_bt(B, Lq, n_cores):
    """Batch packing factor Bt (a divisor of B).

    Single-core chips: grow Bt toward ~512 packed rows (extra grid steps only add
    per-step overhead).  Multi-core (v7x): keep the step count a multiple of the
    core count so neither TensorCore idles.
    """
    target_rows = 256 if n_cores > 1 else 512
    divisors = [d for d in range(1, B + 1) if B % d == 0]

    def rank(d):
        steps = B // d
        good_steps = (steps % n_cores == 0) if n_cores > 1 else True
        fits = d * Lq <= target_rows
        return (good_steps, fits, d if fits else -d)

    return max(divisors, key=rank)


def _vmem_limit_bytes(Bt, Lq, Dq, Le, De, plist, param_buffers):
    f32 = 4
    rows_q = Bt * Lq
    rows_k = Bt * max(Le, Lq)
    io = 2 * f32 * (2 * Bt * Lq * Dq + Bt * Le * De)            # double-buffered I/O blocks
    par = param_buffers * sum(int(p.size) * p.dtype.itemsize for p in plist)
    scr = f32 * rows_q * Dq                                      # ctx scratch
    tmp = f32 * (4 * rows_q * max(rows_k, 128)                   # scores / probs / bias
                 + 8 * rows_q * max(4 * Dq, 128))                # x, q/k/v, MLP hidden, ...
    need = io + par + scr + tmp + (4 << 20)
    cap = max(_physical_vmem_bytes() - (8 << 20), 16 << 20)      # leave headroom
    return int(min(max(need, 32 << 20), cap))


def _flatten_params(params, Dq, fused, compute_dtype):
    """Weights -> compute dtype (bf16 by default); biases / LN params stay f32."""
    cd, f32, p = compute_dtype, jnp.float32, params
    if fused:
        pairs = [
            (p["c_wq"], cd), (p["c_bq"], f32), (p["c_wkv"], cd), (p["c_bkv"], f32),
            (p["c_wo"], cd), (p["c_bo"], f32),
            (p["s_wqkv"], cd), (p["s_bqkv"], f32), (p["s_wo"], cd), (p["s_bo"], f32),
        ]
    else:
        c_wk, c_wv = p["c_wkv"][:, :Dq], p["c_wkv"][:, Dq:]
        c_bk, c_bv = p["c_bkv"][:, :Dq], p["c_bkv"][:, Dq:]
        s_wq, s_wk, s_wv = (p["s_wqkv"][:, :Dq], p["s_wqkv"][:, Dq:2 * Dq],
                            p["s_wqkv"][:, 2 * Dq:])
        s_bq, s_bk, s_bv = (p["s_bqkv"][:, :Dq], p["s_bqkv"][:, Dq:2 * Dq],
                            p["s_bqkv"][:, 2 * Dq:])
        pairs = [
            (p["c_wq"], cd), (p["c_bq"], f32), (c_wk, cd), (c_bk, f32),
            (c_wv, cd), (c_bv, f32), (p["c_wo"], cd), (p["c_bo"], f32),
            (s_wq, cd), (s_bq, f32), (s_wk, cd), (s_bk, f32), (s_wv, cd), (s_bv, f32),
            (p["s_wo"], cd), (p["s_bo"], f32),
        ]
    pairs += [
        (p["ln1_g"], f32), (p["ln1_b"], f32), (p["ln2_g"], f32), (p["ln2_b"], f32),
        (p["ln3_g"], f32), (p["ln3_b"], f32),
        (p["m_w1"], cd), (p["m_b1"], f32), (p["m_w2"], cd), (p["m_b2"], f32),
    ]
    return [a.astype(dt) for a, dt in pairs]


def qformer_layer(queries, encoder_outputs, params, num_heads,
                  batch_tile=None, compute_dtype=jnp.bfloat16):
    B, Lq, Dq = queries.shape
    _, Le, De = encoder_outputs.shape
    n_cores = _num_tensorcores()
    Bt = batch_tile if batch_tile is not None else _pick_bt(B, Lq, n_cores)
    assert B % Bt == 0, "batch tile must divide batch"

    # Fused KV / QKV layout only when the splits are lane-tile (128) aligned.
    fused = (Dq % 128 == 0)
    plist = _flatten_params(params, Dq, fused, compute_dtype)
    approx = jnp.dtype(compute_dtype) != jnp.dtype(jnp.float32)

    def build(single_buffer_params):
        def param_spec(shape):
            if single_buffer_params:
                # Grid-invariant blocks: the second pipeline buffer is never used.
                return pl.BlockSpec(shape, lambda b: (0, 0),
                                    pipeline_mode=pl.Buffered(1))
            return pl.BlockSpec(shape, lambda b: (0, 0))

        in_specs = ([pl.BlockSpec((Bt, Lq, Dq), lambda b: (b, 0, 0)),
                     pl.BlockSpec((Bt, Le, De), lambda b: (b, 0, 0))]
                    + [param_spec(p.shape) for p in plist])
        out_spec = pl.BlockSpec((Bt, Lq, Dq), lambda b: (b, 0, 0))

        kernel = functools.partial(_qformer_kernel, num_heads=num_heads,
                                   fused_qkv=fused, compute_dtype=compute_dtype,
                                   approx=approx)
        return pl.pallas_call(
            kernel,
            out_shape=jax.ShapeDtypeStruct((B, Lq, Dq), queries.dtype),
            grid=(B // Bt,),
            in_specs=in_specs,
            out_specs=out_spec,
            scratch_shapes=[pltpu.VMEM((Bt * Lq, Dq), jnp.float32)],
            compiler_params=pltpu.CompilerParams(
                dimension_semantics=("parallel",),
                vmem_limit_bytes=_vmem_limit_bytes(
                    Bt, Lq, Dq, Le, De, plist,
                    param_buffers=1 if single_buffer_params else 2)),
        )

    # Prefer single-buffered grid-invariant params; fall back to the default
    # double-buffered pipeline if this JAX/Mosaic build rejects Buffered(1).
    try:
        return build(True)(queries, encoder_outputs, *plist)
    except Exception:
        return build(False)(queries, encoder_outputs, *plist)


# --------------------------------------------------------------------------------------
# Params + pure-JAX reference (matches the PyTorch module semantics)
# --------------------------------------------------------------------------------------
def init_params(key, query_dim, encoder_dim):
    Dq, De, Dh4 = query_dim, encoder_dim, 4 * query_dim
    ks = iter(jax.random.split(key, 32))

    def w(shape, scale=0.05):
        return scale * jax.random.normal(next(ks), shape, dtype=jnp.float32)

    return {
        # cross-attn: q proj (Dq, Dq); fused k|v proj (De, 2*Dq); stored (in, out)
        "c_wq": w((Dq, Dq)), "c_bq": w((1, Dq)),
        "c_wkv": w((De, 2 * Dq)), "c_bkv": w((1, 2 * Dq)),
        "c_wo": w((Dq, Dq)), "c_bo": w((1, Dq)),
        # self-attn: fused q|k|v proj (Dq, 3*Dq)
        "s_wqkv": w((Dq, 3 * Dq)), "s_bqkv": w((1, 3 * Dq)),
        "s_wo": w((Dq, Dq)), "s_bo": w((1, Dq)),
        # layer norms
        "ln1_g": 1.0 + w((1, Dq)), "ln1_b": w((1, Dq)),
        "ln2_g": 1.0 + w((1, Dq)), "ln2_b": w((1, Dq)),
        "ln3_g": 1.0 + w((1, Dq)), "ln3_b": w((1, Dq)),
        # MLP
        "m_w1": w((Dq, Dh4)), "m_b1": w((1, Dh4)),
        "m_w2": w((Dh4, Dq)), "m_b2": w((1, Dq)),
    }


def qformer_reference(queries, enc, params, num_heads):
    """Pure-JAX reference (reshape/einsum multi-head formulation) on the fused params."""
    Dq = queries.shape[-1]
    HI = lax.Precision.HIGHEST

    def dot(a, b):
        return jnp.dot(a, b, precision=HI)

    def mha(q_in, k_in, v_in, wq, bq, wk, bk, wv, bv, wo, bo):
        B, Lq, E = q_in.shape
        Lk = k_in.shape[1]
        H, Dh = num_heads, E // num_heads
        q = (dot(q_in, wq) + bq).reshape(B, Lq, H, Dh).transpose(0, 2, 1, 3)
        k = (dot(k_in, wk) + bk).reshape(B, Lk, H, Dh).transpose(0, 2, 1, 3)
        v = (dot(v_in, wv) + bv).reshape(B, Lk, H, Dh).transpose(0, 2, 1, 3)
        s = jnp.einsum("bhqd,bhkd->bhqk", q, k, precision=HI) / jnp.sqrt(jnp.float32(Dh))
        a = jax.nn.softmax(s, axis=-1)
        o = jnp.einsum("bhqk,bhkd->bhqd", a, v, precision=HI)
        return dot(o.transpose(0, 2, 1, 3).reshape(B, Lq, E), wo) + bo

    def ln(x, g, b):
        mean = jnp.mean(x, -1, keepdims=True)
        var = jnp.mean(jnp.square(x - mean), -1, keepdims=True)
        return (x - mean) / jnp.sqrt(var + LN_EPS) * g + b

    c_wk, c_wv = params["c_wkv"][:, :Dq], params["c_wkv"][:, Dq:]
    c_bk, c_bv = params["c_bkv"][:, :Dq], params["c_bkv"][:, Dq:]
    s_wq, s_wk, s_wv = (params["s_wqkv"][:, :Dq],
                        params["s_wqkv"][:, Dq:2 * Dq],
                        params["s_wqkv"][:, 2 * Dq:])
    s_bq, s_bk, s_bv = (params["s_bqkv"][:, :Dq],
                        params["s_bqkv"][:, Dq:2 * Dq],
                        params["s_bqkv"][:, 2 * Dq:])

    x = queries
    x = ln(x + mha(x, enc, enc,
                   params["c_wq"], params["c_bq"], c_wk, c_bk, c_wv, c_bv,
                   params["c_wo"], params["c_bo"]),
           params["ln1_g"], params["ln1_b"])
    x = ln(x + mha(x, x, x, s_wq, s_bq, s_wk, s_bk, s_wv, s_bv,
                   params["s_wo"], params["s_bo"]),
           params["ln2_g"], params["ln2_b"])
    h = jax.nn.gelu(dot(x, params["m_w1"]) + params["m_b1"], approximate=False)
    m = dot(h, params["m_w2"]) + params["m_b2"]
    x = ln(x + m, params["ln3_g"], params["ln3_b"])
    return x


if __name__ == "__main__":
    B, Lq, Le = 4, 8, 16
    query_dim, encoder_dim, num_heads = 32, 48, 4

    key = jax.random.PRNGKey(0)
    kq, ke, kp = jax.random.split(key, 3)
    queries = jax.random.normal(kq, (B, Lq, query_dim), dtype=jnp.float32)
    encoder_outputs = jax.random.normal(ke, (B, Le, encoder_dim), dtype=jnp.float32)
    params = init_params(kp, query_dim, encoder_dim)

    ref = qformer_reference(queries, encoder_outputs, params, num_heads)

    # Exact-semantics path (f32 MXU operands, exact divides) — tight tolerance.
    out_f32 = jax.block_until_ready(
        qformer_layer(queries, encoder_outputs, params, num_heads,
                      compute_dtype=jnp.float32))
    err32 = float(jnp.max(jnp.abs(out_f32 - ref)))
    assert jnp.allclose(out_f32, ref, rtol=2e-4, atol=2e-4), f"f32 max abs err = {err32}"

    # Performance default: bf16 MXU operands with f32 accumulation — looser tolerance.
    out = jax.block_until_ready(
        qformer_layer(queries, encoder_outputs, params, num_heads))
    assert out.shape == (B, Lq, query_dim)
    errbf = float(jnp.max(jnp.abs(out - ref)))
    assert jnp.allclose(out, ref, rtol=5e-2, atol=5e-2), f"bf16 max abs err = {errbf}"

    print("KERNEL_OK")
</pallas_src>

<mosaic_0001>
module attributes {stable_mosaic.version = 11 : i64} {
  func.func @_qformer_kernel(%arg0: i32, %arg1: memref<4x8x32xf32, #tpu.memory_space<vmem>>, %arg2: memref<4x16x48xf32, #tpu.memory_space<vmem>>, %arg3: memref<32x32xf32, #tpu.memory_space<vmem>>, %arg4: memref<1x32xf32, #tpu.memory_space<vmem>>, %arg5: memref<48x32xf32, #tpu.memory_space<vmem>>, %arg6: memref<1x32xf32, #tpu.memory_space<vmem>>, %arg7: memref<48x32xf32, #tpu.memory_space<vmem>>, %arg8: memref<1x32xf32, #tpu.memory_space<vmem>>, %arg9: memref<32x32xf32, #tpu.memory_space<vmem>>, %arg10: memref<1x32xf32, #tpu.memory_space<vmem>>, %arg11: memref<32x32xf32, #tpu.memory_space<vmem>>, %arg12: memref<1x32xf32, #tpu.memory_space<vmem>>, %arg13: memref<32x32xf32, #tpu.memory_space<vmem>>, %arg14: memref<1x32xf32, #tpu.memory_space<vmem>>, %arg15: memref<32x32xf32, #tpu.memory_space<vmem>>, %arg16: memref<1x32xf32, #tpu.memory_space<vmem>>, %arg17: memref<32x32xf32, #tpu.memory_space<vmem>>, %arg18: memref<1x32xf32, #tpu.memory_space<vmem>>, %arg19: memref<1x32xf32, #tpu.memory_space<vmem>>, %arg20: memref<1x32xf32, #tpu.memory_space<vmem>>, %arg21: memref<1x32xf32, #tpu.memory_space<vmem>>, %arg22: memref<1x32xf32, #tpu.memory_space<vmem>>, %arg23: memref<1x32xf32, #tpu.memory_space<vmem>>, %arg24: memref<1x32xf32, #tpu.memory_space<vmem>>, %arg25: memref<32x128xf32, #tpu.memory_space<vmem>>, %arg26: memref<1x128xf32, #tpu.memory_space<vmem>>, %arg27: memref<128x32xf32, #tpu.memory_space<vmem>>, %arg28: memref<1x32xf32, #tpu.memory_space<vmem>>, %arg29: memref<4x8x32xf32, #tpu.memory_space<vmem>>, %arg30: memref<32x32xf32, #tpu.memory_space<vmem>>) attributes {dimension_semantics = [#tpu.dimension_semantics<parallel>], iteration_bounds = array<i64: 1>, scalar_prefetch = 0 : i64, scratch_operands = 1 : i64, tpu.core_type = #tpu.core_type<tc>, window_params = [{transform_indices = @transform_0, window_bounds = array<i64: 4, 8, 32>}, {transform_indices = @transform_1, window_bounds = array<i64: 4, 16, 48>}, {pipeline_mode = #tpu.pipeline_mode<synchronous>, transform_indices = @transform_2, window_bounds = array<i64: 32, 32>}, {pipeline_mode = #tpu.pipeline_mode<synchronous>, transform_indices = @transform_3, window_bounds = array<i64: 1, 32>}, {pipeline_mode = #tpu.pipeline_mode<synchronous>, transform_indices = @transform_4, window_bounds = array<i64: 48, 32>}, {pipeline_mode = #tpu.pipeline_mode<synchronous>, transform_indices = @transform_5, window_bounds = array<i64: 1, 32>}, {pipeline_mode = #tpu.pipeline_mode<synchronous>, transform_indices = @transform_6, window_bounds = array<i64: 48, 32>}, {pipeline_mode = #tpu.pipeline_mode<synchronous>, transform_indices = @transform_7, window_bounds = array<i64: 1, 32>}, {pipeline_mode = #tpu.pipeline_mode<synchronous>, transform_indices = @transform_8, window_bounds = array<i64: 32, 32>}, {pipeline_mode = #tpu.pipeline_mode<synchronous>, transform_indices = @transform_9, window_bounds = array<i64: 1, 32>}, {pipeline_mode = #tpu.pipeline_mode<synchronous>, transform_indices = @transform_10, window_bounds = array<i64: 32, 32>}, {pipeline_mode = #tpu.pipeline_mode<synchronous>, transform_indices = @transform_11, window_bounds = array<i64: 1, 32>}, {pipeline_mode = #tpu.pipeline_mode<synchronous>, transform_indices = @transform_12, window_bounds = array<i64: 32, 32>}, {pipeline_mode = #tpu.pipeline_mode<synchronous>, transform_indices = @transform_13, window_bounds = array<i64: 1, 32>}, {pipeline_mode = #tpu.pipeline_mode<synchronous>, transform_indices = @transform_14, window_bounds = array<i64: 32, 32>}, {pipeline_mode = #tpu.pipeline_mode<synchronous>, transform_indices = @transform_15, window_bounds = array<i64: 1, 32>}, {pipeline_mode = #tpu.pipeline_mode<synchronous>, transform_indices = @transform_16, window_bounds = array<i64: 32, 32>}, {pipeline_mode = #tpu.pipeline_mode<synchronous>, transform_indices = @transform_17, window_bounds = array<i64: 1, 32>}, {pipeline_mode = #tpu.pipeline_mode<synchronous>, transform_indices = @transform_18, window_bounds = array<i64: 1, 32>}, {pipeline_mode = #tpu.pipeline_mode<synchronous>, transform_indices = @transform_19, window_bounds = array<i64: 1, 32>}, {pipeline_mode = #tpu.pipeline_mode<synchronous>, transform_indices = @transform_20, window_bounds = array<i64: 1, 32>}, {pipeline_mode = #tpu.pipeline_mode<synchronous>, transform_indices = @transform_21, window_bounds = array<i64: 1, 32>}, {pipeline_mode = #tpu.pipeline_mode<synchronous>, transform_indices = @transform_22, window_bounds = array<i64: 1, 32>}, {pipeline_mode = #tpu.pipeline_mode<synchronous>, transform_indices = @transform_23, window_bounds = array<i64: 1, 32>}, {pipeline_mode = #tpu.pipeline_mode<synchronous>, transform_indices = @transform_24, window_bounds = array<i64: 32, 128>}, {pipeline_mode = #tpu.pipeline_mode<synchronous>, transform_indices = @transform_25, window_bounds = array<i64: 1, 128>}, {pipeline_mode = #tpu.pipeline_mode<synchronous>, transform_indices = @transform_26, window_bounds = array<i64: 128, 32>}, {pipeline_mode = #tpu.pipeline_mode<synchronous>, transform_indices = @transform_27, window_bounds = array<i64: 1, 32>}, {transform_indices = @transform_28, window_bounds = array<i64: 4, 8, 32>}]} {
    %c0 = arith.constant 0 : index
    %c0_0 = arith.constant 0 : index
    %c0_1 = arith.constant 0 : index
    %0 = vector.load %arg1[%c0, %c0_0, %c0_1] : memref<4x8x32xf32, #tpu.memory_space<vmem>>, vector<4x8x32xf32>
    %1 = vector.shape_cast %0 : vector<4x8x32xf32> to vector<32x32xf32>
    %c0_2 = arith.constant 0 : index
    %c0_3 = arith.constant 0 : index
    %c0_4 = arith.constant 0 : index
    %2 = vector.load %arg2[%c0_2, %c0_3, %c0_4] : memref<4x16x48xf32, #tpu.memory_space<vmem>>, vector<4x16x48xf32>
    %3 = vector.shape_cast %2 : vector<4x16x48xf32> to vector<64x48xf32>
    %4 = tpu.iota {dimensions = array<i32: 0>} : vector<32x64xi32>
    %5 = tpu.iota {dimensions = array<i32: 1>} : vector<32x64xi32>
    %false = arith.constant false
    %6 = vector.broadcast %false : i1 to vector<32x64xi1>
    %c0_i32 = arith.constant 0 : i32
    %7 = vector.broadcast %c0_i32 : i32 to vector<32x64xi32>
    %8 = arith.cmpi sge, %4, %7 : vector<32x64xi32>
    %c8_i32 = arith.constant 8 : i32
    %9 = vector.broadcast %c8_i32 : i32 to vector<32x64xi32>
    %10 = arith.cmpi slt, %4, %9 : vector<32x64xi32>
    %11 = arith.andi %8, %10 : vector<32x64xi1>
    %c0_i32_5 = arith.constant 0 : i32
    %12 = vector.broadcast %c0_i32_5 : i32 to vector<32x64xi32>
    %13 = arith.cmpi sge, %5, %12 : vector<32x64xi32>
    %14 = arith.andi %11, %13 : vector<32x64xi1>
    %c16_i32 = arith.constant 16 : i32
    %15 = vector.broadcast %c16_i32 : i32 to vector<32x64xi32>
    %16 = arith.cmpi slt, %5, %15 : vector<32x64xi32>
    %17 = arith.andi %14, %16 : vector<32x64xi1>
    %18 = arith.ori %6, %17 : vector<32x64xi1>
    %c8_i32_6 = arith.constant 8 : i32
    %19 = vector.broadcast %c8_i32_6 : i32 to vector<32x64xi32>
    %20 = arith.cmpi sge, %4, %19 : vector<32x64xi32>
    %c16_i32_7 = arith.constant 16 : i32
    %21 = vector.broadcast %c16_i32_7 : i32 to vector<32x64xi32>
    %22 = arith.cmpi slt, %4, %21 : vector<32x64xi32>
    %23 = arith.andi %20, %22 : vector<32x64xi1>
    %c16_i32_8 = arith.constant 16 : i32
    %24 = vector.broadcast %c16_i32_8 : i32 to vector<32x64xi32>
    %25 = arith.cmpi sge, %5, %24 : vector<32x64xi32>
    %26 = arith.andi %23, %25 : vector<32x64xi1>
    %c32_i32 = arith.constant 32 : i32
    %27 = vector.broadcast %c32_i32 : i32 to vector<32x64xi32>
    %28 = arith.cmpi slt, %5, %27 : vector<32x64xi32>
    %29 = arith.andi %26, %28 : vector<32x64xi1>
    %30 = arith.ori %18, %29 : vector<32x64xi1>
    %c16_i32_9 = arith.constant 16 : i32
    %31 = vector.broadcast %c16_i32_9 : i32 to vector<32x64xi32>
    %32 = arith.cmpi sge, %4, %31 : vector<32x64xi32>
    %c24_i32 = arith.constant 24 : i32
    %33 = vector.broadcast %c24_i32 : i32 to vector<32x64xi32>
    %34 = arith.cmpi slt, %4, %33 : vector<32x64xi32>
    %35 = arith.andi %32, %34 : vector<32x64xi1>
    %c32_i32_10 = arith.constant 32 : i32
    %36 = vector.broadcast %c32_i32_10 : i32 to vector<32x64xi32>
    %37 = arith.cmpi sge, %5, %36 : vector<32x64xi32>
    %38 = arith.andi %35, %37 : vector<32x64xi1>
    %c48_i32 = arith.constant 48 : i32
    %39 = vector.broadcast %c48_i32 : i32 to vector<32x64xi32>
    %40 = arith.cmpi slt, %5, %39 : vector<32x64xi32>
    %41 = arith.andi %38, %40 : vector<32x64xi1>
    %42 = arith.ori %30, %41 : vector<32x64xi1>
    %c24_i32_11 = arith.constant 24 : i32
    %43 = vector.broadcast %c24_i32_11 : i32 to vector<32x64xi32>
    %44 = arith.cmpi sge, %4, %43 : vector<32x64xi32>
    %c32_i32_12 = arith.constant 32 : i32
    %45 = vector.broadcast %c32_i32_12 : i32 to vector<32x64xi32>
    %46 = arith.cmpi slt, %4, %45 : vector<32x64xi32>
    %47 = arith.andi %44, %46 : vector<32x64xi1>
    %c48_i32_13 = arith.constant 48 : i32
    %48 = vector.broadcast %c48_i32_13 : i32 to vector<32x64xi32>
    %49 = arith.cmpi sge, %5, %48 : vector<32x64xi32>
    %50 = arith.andi %47, %49 : vector<32x64xi1>
    %c64_i32 = arith.constant 64 : i32
    %51 = vector.broadcast %c64_i32 : i32 to vector<32x64xi32>
    %52 = arith.cmpi slt, %5, %51 : vector<32x64xi32>
    %53 = arith.andi %50, %52 : vector<32x64xi1>
    %54 = arith.ori %42, %53 : vector<32x64xi1>
    %cst = arith.constant 0.000000e+00 : f32
    %cst_14 = arith.constant -1.000000e+30 : f32
    %55 = vector.broadcast %cst : f32 to vector<32x64xf32>
    %56 = vector.broadcast %cst_14 : f32 to vector<32x64xf32>
    %57 = arith.select %54, %55, %56 : vector<32x64xi1>, vector<32x64xf32>
    %58 = tpu.iota {dimensions = array<i32: 0>} : vector<32x32xi32>
    %59 = tpu.iota {dimensions = array<i32: 1>} : vector<32x32xi32>
    %false_15 = arith.constant false
    %60 = vector.broadcast %false_15 : i1 to vector<32x32xi1>
    %c0_i32_16 = arith.constant 0 : i32
    %61 = vector.broadcast %c0_i32_16 : i32 to vector<32x32xi32>
    %62 = arith.cmpi sge, %58, %61 : vector<32x32xi32>
    %c8_i32_17 = arith.constant 8 : i32
    %63 = vector.broadcast %c8_i32_17 : i32 to vector<32x32xi32>
    %64 = arith.cmpi slt, %58, %63 : vector<32x32xi32>
    %65 = arith.andi %62, %64 : vector<32x32xi1>
    %c0_i32_18 = arith.constant 0 : i32
    %66 = vector.broadcast %c0_i32_18 : i32 to vector<32x32xi32>
    %67 = arith.cmpi sge, %59, %66 : vector<32x32xi32>
    %68 = arith.andi %65, %67 : vector<32x32xi1>
    %c8_i32_19 = arith.constant 8 : i32
    %69 = vector.broadcast %c8_i32_19 : i32 to vector<32x32xi32>
    %70 = arith.cmpi slt, %59, %69 : vector<32x32xi32>
    %71 = arith.andi %68, %70 : vector<32x32xi1>
    %72 = arith.ori %60, %71 : vector<32x32xi1>
    %c8_i32_20 = arith.constant 8 : i32
    %73 = vector.broadcast %c8_i32_20 : i32 to vector<32x32xi32>
    %74 = arith.cmpi sge, %58, %73 : vector<32x32xi32>
    %c16_i32_21 = arith.constant 16 : i32
    %75 = vector.broadcast %c16_i32_21 : i32 to vector<32x32xi32>
    %76 = arith.cmpi slt, %58, %75 : vector<32x32xi32>
    %77 = arith.andi %74, %76 : vector<32x32xi1>
    %c8_i32_22 = arith.constant 8 : i32
    %78 = vector.broadcast %c8_i32_22 : i32 to vector<32x32xi32>
    %79 = arith.cmpi sge, %59, %78 : vector<32x32xi32>
    %80 = arith.andi %77, %79 : vector<32x32xi1>
    %c16_i32_23 = arith.constant 16 : i32
    %81 = vector.broadcast %c16_i32_23 : i32 to vector<32x32xi32>
    %82 = arith.cmpi slt, %59, %81 : vector<32x32xi32>
    %83 = arith.andi %80, %82 : vector<32x32xi1>
    %84 = arith.ori %72, %83 : vector<32x32xi1>
    %c16_i32_24 = arith.constant 16 : i32
    %85 = vector.broadcast %c16_i32_24 : i32 to vector<32x32xi32>
    %86 = arith.cmpi sge, %58, %85 : vector<32x32xi32>
    %c24_i32_25 = arith.constant 24 : i32
    %87 = vector.broadcast %c24_i32_25 : i32 to vector<32x32xi32>
    %88 = arith.cmpi slt, %58, %87 : vector<32x32xi32>
    %89 = arith.andi %86, %88 : vector<32x32xi1>
    %c16_i32_26 = arith.constant 16 : i32
    %90 = vector.broadcast %c16_i32_26 : i32 to vector<32x32xi32>
    %91 = arith.cmpi sge, %59, %90 : vector<32x32xi32>
    %92 = arith.andi %89, %91 : vector<32x32xi1>
    %c24_i32_27 = arith.constant 24 : i32
    %93 = vector.broadcast %c24_i32_27 : i32 to vector<32x32xi32>
    %94 = arith.cmpi slt, %59, %93 : vector<32x32xi32>
    %95 = arith.andi %92, %94 : vector<32x32xi1>
    %96 = arith.ori %84, %95 : vector<32x32xi1>
    %c24_i32_28 = arith.constant 24 : i32
    %97 = vector.broadcast %c24_i32_28 : i32 to vector<32x32xi32>
    %98 = arith.cmpi sge, %58, %97 : vector<32x32xi32>
    %c32_i32_29 = arith.constant 32 : i32
    %99 = vector.broadcast %c32_i32_29 : i32 to vector<32x32xi32>
    %100 = arith.cmpi slt, %58, %99 : vector<32x32xi32>
    %101 = arith.andi %98, %100 : vector<32x32xi1>
    %c24_i32_30 = arith.constant 24 : i32
    %102 = vector.broadcast %c24_i32_30 : i32 to vector<32x32xi32>
    %103 = arith.cmpi sge, %59, %102 : vector<32x32xi32>
    %104 = arith.andi %101, %103 : vector<32x32xi1>
    %c32_i32_31 = arith.constant 32 : i32
    %105 = vector.broadcast %c32_i32_31 : i32 to vector<32x32xi32>
    %106 = arith.cmpi slt, %59, %105 : vector<32x32xi32>
    %107 = arith.andi %104, %106 : vector<32x32xi1>
    %108 = arith.ori %96, %107 : vector<32x32xi1>
    %cst_32 = arith.constant 0.000000e+00 : f32
    %cst_33 = arith.constant -1.000000e+30 : f32
    %109 = vector.broadcast %cst_32 : f32 to vector<32x32xf32>
    %110 = vector.broadcast %cst_33 : f32 to vector<32x32xf32>
    %111 = arith.select %108, %109, %110 : vector<32x32xi1>, vector<32x32xf32>
    %c0_34 = arith.constant 0 : index
    %c0_35 = arith.constant 0 : index
    %112 = vector.load %arg3[%c0_34, %c0_35] : memref<32x32xf32, #tpu.memory_space<vmem>>, vector<32x32xf32>
    %cst_36 = arith.constant dense<0.000000e+00> : vector<32x32xf32>
    %113 = tpu.matmul %1, %112, %cst_36 {dimension_numbers = #tpu.dot_dimension_numbers<[1], [0], [0], [1], [0, 0, 1, 1], [], []>} : vector<32x32xf32>, vector<32x32xf32>, vector<32x32xf32> -> vector<32x32xf32>
    %c0_37 = arith.constant 0 : index
    %c0_38 = arith.constant 0 : index
    %114 = vector.load %arg4[%c0_37, %c0_38] : memref<1x32xf32, #tpu.memory_space<vmem>>, vector<1x32xf32>
    %115 = vector.broadcast %114 : vector<1x32xf32> to vector<32x32xf32>
    %116 = arith.addf %113, %115 : vector<32x32xf32>
    %c0_39 = arith.constant 0 : index
    %c0_40 = arith.constant 0 : index
    %117 = vector.load %arg5[%c0_39, %c0_40] : memref<48x32xf32, #tpu.memory_space<vmem>>, vector<48x32xf32>
    %cst_41 = arith.constant dense<0.000000e+00> : vector<64x32xf32>
    %118 = tpu.matmul %3, %117, %cst_41 {dimension_numbers = #tpu.dot_dimension_numbers<[1], [0], [0], [1], [0, 0, 1, 1], [], []>} : vector<64x48xf32>, vector<48x32xf32>, vector<64x32xf32> -> vector<64x32xf32>
    %c0_42 = arith.constant 0 : index
    %c0_43 = arith.constant 0 : index
    %119 = vector.load %arg6[%c0_42, %c0_43] : memref<1x32xf32, #tpu.memory_space<vmem>>, vector<1x32xf32>
    %120 = vector.broadcast %119 : vector<1x32xf32> to vector<64x32xf32>
    %121 = arith.addf %118, %120 : vector<64x32xf32>
    %c0_44 = arith.constant 0 : index
    %c0_45 = arith.constant 0 : index
    %122 = vector.load %arg7[%c0_44, %c0_45] : memref<48x32xf32, #tpu.memory_space<vmem>>, vector<48x32xf32>
    %cst_46 = arith.constant dense<0.000000e+00> : vector<64x32xf32>
    %123 = tpu.matmul %3, %122, %cst_46 {dimension_numbers = #tpu.dot_dimension_numbers<[1], [0], [0], [1], [0, 0, 1, 1], [], []>} : vector<64x48xf32>, vector<48x32xf32>, vector<64x32xf32> -> vector<64x32xf32>
    %c0_47 = arith.constant 0 : index
    %c0_48 = arith.constant 0 : index
    %124 = vector.load %arg8[%c0_47, %c0_48] : memref<1x32xf32, #tpu.memory_space<vmem>>, vector<1x32xf32>
    %125 = vector.broadcast %124 : vector<1x32xf32> to vector<64x32xf32>
    %126 = arith.addf %123, %125 : vector<64x32xf32>
    %127 = vector.extract_strided_slice %116 {offsets = [0, 0], sizes = [32, 8], strides = [1, 1]} : vector<32x32xf32> to vector<32x8xf32>
    %128 = vector.extract_strided_slice %121 {offsets = [0, 0], sizes = [64, 8], strides = [1, 1]} : vector<64x32xf32> to vector<64x8xf32>
    %cst_49 = arith.constant dense<0.000000e+00> : vector<32x64xf32>
    %129 = tpu.matmul %127, %128, %cst_49 {dimension_numbers = #tpu.dot_dimension_numbers<[1], [1], [0], [0], [0, 0, 1, 0], [], []>} : vector<32x8xf32>, vector<64x8xf32>, vector<32x64xf32> -> vector<32x64xf32>
    %cst_50 = arith.constant 0.353553385 : f32
    %130 = vector.broadcast %cst_50 : f32 to vector<32x64xf32>
    %131 = arith.mulf %129, %130 : vector<32x64xf32>
    %132 = arith.addf %131, %57 : vector<32x64xf32>
    %cst_51 = arith.constant dense<0xFF800000> : vector<32xf32>
    %133 = vector.multi_reduction <maximumf>, %132, %cst_51 [1] : vector<32x64xf32> to vector<32xf32>
    %134 = vector.shape_cast %133 : vector<32xf32> to vector<32x1xf32>
    %135 = vector.broadcast %134 : vector<32x1xf32> to vector<32x64xf32>
    %136 = arith.subf %132, %135 : vector<32x64xf32>
    %137 = math.exp %136 : vector<32x64xf32>
    %cst_52 = arith.constant dense<0.000000e+00> : vector<32xf32>
    %138 = vector.multi_reduction <add>, %137, %cst_52 [1] : vector<32x64xf32> to vector<32xf32>
    %139 = vector.shape_cast %138 : vector<32xf32> to vector<32x1xf32>
    %140 = tpu.reciprocal %139 : vector<32x1xf32> -> vector<32x1xf32>
    %141 = vector.broadcast %140 : vector<32x1xf32> to vector<32x64xf32>
    %142 = arith.mulf %137, %141 : vector<32x64xf32>
    %143 = vector.extract_strided_slice %126 {offsets = [0, 0], sizes = [64, 8], strides = [1, 1]} : vector<64x32xf32> to vector<64x8xf32>
    %cst_53 = arith.constant dense<0.000000e+00> : vector<32x8xf32>
    %144 = tpu.matmul %142, %143, %cst_53 {dimension_numbers = #tpu.dot_dimension_numbers<[1], [0], [0], [1], [0, 0, 1, 1], [], []>} : vector<32x64xf32>, vector<64x8xf32>, vector<32x8xf32> -> vector<32x8xf32>
    %c0_54 = arith.constant 0 : index
    %c0_55 = arith.constant 0 : index
    %145 = vector.load %arg30[%c0_54, %c0_55] : memref<32x32xf32, #tpu.memory_space<vmem>>, vector<32x8xf32>
    tpu.vector_store %arg30[%c0_54, %c0_55], %144 {strides = array<i32>} : memref<32x32xf32, #tpu.memory_space<vmem>>, vector<32x8xf32>,
    %146 = vector.extract_strided_slice %116 {offsets = [0, 8], sizes = [32, 8], strides = [1, 1]} : vector<32x32xf32> to vector<32x8xf32>
    %147 = vector.extract_strided_slice %121 {offsets = [0, 8], sizes = [64, 8], strides = [1, 1]} : vector<64x32xf32> to vector<64x8xf32>
    %cst_56 = arith.constant dense<0.000000e+00> : vector<32x64xf32>
    %148 = tpu.matmul %146, %147, %cst_56 {dimension_numbers = #tpu.dot_dimension_numbers<[1], [1], [0], [0], [0, 0, 1, 0], [], []>} : vector<32x8xf32>, vector<64x8xf32>, vector<32x64xf32> -> vector<32x64xf32>
    %cst_57 = arith.constant 0.353553385 : f32
    %149 = vector.broadcast %cst_57 : f32 to vector<32x64xf32>
    %150 = arith.mulf %148, %149 : vector<32x64xf32>
    %151 = arith.addf %150, %57 : vector<32x64xf32>
    %cst_58 = arith.constant dense<0xFF800000> : vector<32xf32>
    %152 = vector.multi_reduction <maximumf>, %151, %cst_58 [1] : vector<32x64xf32> to vector<32xf32>
    %153 = vector.shape_cast %152 : vector<32xf32> to vector<32x1xf32>
    %154 = vector.broadcast %153 : vector<32x1xf32> to vector<32x64xf32>
    %155 = arith.subf %151, %154 : vector<32x64xf32>
    %156 = math.exp %155 : vector<32x64xf32>
    %cst_59 = arith.constant dense<0.000000e+00> : vector<32xf32>
    %157 = vector.multi_reduction <add>, %156, %cst_59 [1] : vector<32x64xf32> to vector<32xf32>
    %158 = vector.shape_cast %157 : vector<32xf32> to vector<32x1xf32>
    %159 = tpu.reciprocal %158 : vector<32x1xf32> -> vector<32x1xf32>
    %160 = vector.broadcast %159 : vector<32x1xf32> to vector<32x64xf32>
    %161 = arith.mulf %156, %160 : vector<32x64xf32>
    %162 = vector.extract_strided_slice %126 {offsets = [0, 8], sizes = [64, 8], strides = [1, 1]} : vector<64x32xf32> to vector<64x8xf32>
    %cst_60 = arith.constant dense<0.000000e+00> : vector<32x8xf32>
    %163 = tpu.matmul %161, %162, %cst_60 {dimension_numbers = #tpu.dot_dimension_numbers<[1], [0], [0], [1], [0, 0, 1, 1], [], []>} : vector<32x64xf32>, vector<64x8xf32>, vector<32x8xf32> -> vector<32x8xf32>
    %c0_61 = arith.constant 0 : index
    %c8 = arith.constant 8 : index
    %164 = vector.load %arg30[%c0_61, %c8] : memref<32x32xf32, #tpu.memory_space<vmem>>, vector<32x8xf32>
    tpu.vector_store %arg30[%c0_61, %c8], %163 {strides = array<i32>} : memref<32x32xf32, #tpu.memory_space<vmem>>, vector<32x8xf32>,
    %165 = vector.extract_strided_slice %116 {offsets = [0, 16], sizes = [32, 8], strides = [1, 1]} : vector<32x32xf32> to vector<32x8xf32>
    %166 = vector.extract_strided_slice %121 {offsets = [0, 16], sizes = [64, 8], strides = [1, 1]} : vector<64x32xf32> to vector<64x8xf32>
    %cst_62 = arith.constant dense<0.000000e+00> : vector<32x64xf32>
    %167 = tpu.matmul %165, %166, %cst_62 {dimension_numbers = #tpu.dot_dimension_numbers<[1], [1], [0], [0], [0, 0, 1, 0], [], []>} : vector<32x8xf32>, vector<64x8xf32>, vector<32x64xf32> -> vector<32x64xf32>
    %cst_63 = arith.constant 0.353553385 : f32
    %168 = vector.broadcast %cst_63 : f32 to vector<32x64xf32>
    %169 = arith.mulf %167, %168 : vector<32x64xf32>
    %170 = arith.addf %169, %57 : vector<32x64xf32>
    %cst_64 = arith.constant dense<0xFF800000> : vector<32xf32>
    %171 = vector.multi_reduction <maximumf>, %170, %cst_64 [1] : vector<32x64xf32> to vector<32xf32>
    %172 = vector.shape_cast %171 : vector<32xf32> to vector<32x1xf32>
    %173 = vector.broadcast %172 : vector<32x1xf32> to vector<32x64xf32>
    %174 = arith.subf %170, %173 : vector<32x64xf32>
    %175 = math.exp %174 : vector<32x64xf32>
    %cst_65 = arith.constant dense<0.000000e+00> : vector<32xf32>
    %176 = vector.multi_reduction <add>, %175, %cst_65 [1] : vector<32x64xf32> to vector<32xf32>
    %177 = vector.shape_cast %176 : vector<32xf32> to vector<32x1xf32>
    %178 = tpu.reciprocal %177 : vector<32x1xf32> -> vector<32x1xf32>
    %179 = vector.broadcast %178 : vector<32x1xf32> to vector<32x64xf32>
    %180 = arith.mulf %175, %179 : vector<32x64xf32>
    %181 = vector.extract_strided_slice %126 {offsets = [0, 16], sizes = [64, 8], strides = [1, 1]} : vector<64x32xf32> to vector<64x8xf32>
    %cst_66 = arith.constant dense<0.000000e+00> : vector<32x8xf32>
    %182 = tpu.matmul %180, %181, %cst_66 {dimension_numbers = #tpu.dot_dimension_numbers<[1], [0], [0], [1], [0, 0, 1, 1], [], []>} : vector<32x64xf32>, vector<64x8xf32>, vector<32x8xf32> -> vector<32x8xf32>
    %c0_67 = arith.constant 0 : index
    %c16 = arith.constant 16 : index
    %183 = vector.load %arg30[%c0_67, %c16] : memref<32x32xf32, #tpu.memory_space<vmem>>, vector<32x8xf32>
    tpu.vector_store %arg30[%c0_67, %c16], %182 {strides = array<i32>} : memref<32x32xf32, #tpu.memory_space<vmem>>, vector<32x8xf32>,
    %184 = vector.extract_strided_slice %116 {offsets = [0, 24], sizes = [32, 8], strides = [1, 1]} : vector<32x32xf32> to vector<32x8xf32>
    %185 = vector.extract_strided_slice %121 {offsets = [0, 24], sizes = [64, 8], strides = [1, 1]} : vector<64x32xf32> to vector<64x8xf32>
    %cst_68 = arith.constant dense<0.000000e+00> : vector<32x64xf32>
    %186 = tpu.matmul %184, %185, %cst_68 {dimension_numbers = #tpu.dot_dimension_numbers<[1], [1], [0], [0], [0, 0, 1, 0], [], []>} : vector<32x8xf32>, vector<64x8xf32>, vector<32x64xf32> -> vector<32x64xf32>
    %cst_69 = arith.constant 0.353553385 : f32
    %187 = vector.broadcast %cst_69 : f32 to vector<32x64xf32>
    %188 = arith.mulf %186, %187 : vector<32x64xf32>
    %189 = arith.addf %188, %57 : vector<32x64xf32>
    %cst_70 = arith.constant dense<0xFF800000> : vector<32xf32>
    %190 = vector.multi_reduction <maximumf>, %189, %cst_70 [1] : vector<32x64xf32> to vector<32xf32>
    %191 = vector.shape_cast %190 : vector<32xf32> to vector<32x1xf32>
    %192 = vector.broadcast %191 : vector<32x1xf32> to vector<32x64xf32>
    %193 = arith.subf %189, %192 : vector<32x64xf32>
    %194 = math.exp %193 : vector<32x64xf32>
    %cst_71 = arith.constant dense<0.000000e+00> : vector<32xf32>
    %195 = vector.multi_reduction <add>, %194, %cst_71 [1] : vector<32x64xf32> to vector<32xf32>
    %196 = vector.shape_cast %195 : vector<32xf32> to vector<32x1xf32>
    %197 = tpu.reciprocal %196 : vector<32x1xf32> -> vector<32x1xf32>
    %198 = vector.broadcast %197 : vector<32x1xf32> to vector<32x64xf32>
    %199 = arith.mulf %194, %198 : vector<32x64xf32>
    %200 = vector.extract_strided_slice %126 {offsets = [0, 24], sizes = [64, 8], strides = [1, 1]} : vector<64x32xf32> to vector<64x8xf32>
    %cst_72 = arith.constant dense<0.000000e+00> : vector<32x8xf32>
    %201 = tpu.matmul %199, %200, %cst_72 {dimension_numbers = #tpu.dot_dimension_numbers<[1], [0], [0], [1], [0, 0, 1, 1], [], []>} : vector<32x64xf32>, vector<64x8xf32>, vector<32x8xf32> -> vector<32x8xf32>
    %c0_73 = arith.constant 0 : index
    %c24 = arith.constant 24 : index
    %202 = vector.load %arg30[%c0_73, %c24] : memref<32x32xf32, #tpu.memory_space<vmem>>, vector<32x8xf32>
    tpu.vector_store %arg30[%c0_73, %c24], %201 {strides = array<i32>} : memref<32x32xf32, #tpu.memory_space<vmem>>, vector<32x8xf32>,
    %c0_74 = arith.constant 0 : index
    %c0_75 = arith.constant 0 : index
    %203 = vector.load %arg30[%c0_74, %c0_75] : memref<32x32xf32, #tpu.memory_space<vmem>>, vector<32x32xf32>
    %c0_76 = arith.constant 0 : index
    %c0_77 = arith.constant 0 : index
    %204 = vector.load %arg9[%c0_76, %c0_77] : memref<32x32xf32, #tpu.memory_space<vmem>>, vector<32x32xf32>
    %cst_78 = arith.constant dense<0.000000e+00> : vector<32x32xf32>
    %205 = tpu.matmul %203, %204, %cst_78 {dimension_numbers = #tpu.dot_dimension_numbers<[1], [0], [0], [1], [0, 0, 1, 1], [], []>} : vector<32x32xf32>, vector<32x32xf32>, vector<32x32xf32> -> vector<32x32xf32>
    %c0_79 = arith.constant 0 : index
    %c0_80 = arith.constant 0 : index
    %206 = vector.load %arg10[%c0_79, %c0_80] : memref<1x32xf32, #tpu.memory_space<vmem>>, vector<1x32xf32>
    %207 = vector.broadcast %206 : vector<1x32xf32> to vector<32x32xf32>
    %208 = arith.addf %205, %207 : vector<32x32xf32>
    %209 = arith.addf %1, %208 : vector<32x32xf32>
    %c0_81 = arith.constant 0 : index
    %c0_82 = arith.constant 0 : index
    %210 = vector.load %arg19[%c0_81, %c0_82] : memref<1x32xf32, #tpu.memory_space<vmem>>, vector<1x32xf32>
    %c0_83 = arith.constant 0 : index
    %c0_84 = arith.constant 0 : index
    %211 = vector.load %arg20[%c0_83, %c0_84] : memref<1x32xf32, #tpu.memory_space<vmem>>, vector<1x32xf32>
    %cst_85 = arith.constant dense<0.000000e+00> : vector<32xf32>
    %212 = vector.multi_reduction <add>, %209, %cst_85 [1] : vector<32x32xf32> to vector<32xf32>
    %213 = vector.shape_cast %212 : vector<32xf32> to vector<32x1xf32>
    %cst_86 = arith.constant 3.200000e+01 : f32
    %214 = vector.broadcast %cst_86 : f32 to vector<32x1xf32>
    %215 = arith.divf %213, %214 : vector<32x1xf32>
    %216 = vector.broadcast %215 : vector<32x1xf32> to vector<32x32xf32>
    %217 = arith.subf %209, %216 : vector<32x32xf32>
    %218 = arith.mulf %217, %217 : vector<32x32xf32>
    %cst_87 = arith.constant dense<0.000000e+00> : vector<32xf32>
    %219 = vector.multi_reduction <add>, %218, %cst_87 [1] : vector<32x32xf32> to vector<32xf32>
    %220 = vector.shape_cast %219 : vector<32xf32> to vector<32x1xf32>
    %cst_88 = arith.constant 3.200000e+01 : f32
    %221 = vector.broadcast %cst_88 : f32 to vector<32x1xf32>
    %222 = arith.divf %220, %221 : vector<32x1xf32>
    %223 = vector.broadcast %215 : vector<32x1xf32> to vector<32x32xf32>
    %224 = arith.subf %209, %223 : vector<32x32xf32>
    %cst_89 = arith.constant 9.99999974E-6 : f32
    %225 = vector.broadcast %cst_89 : f32 to vector<32x1xf32>
    %226 = arith.addf %222, %225 : vector<32x1xf32>
    %227 = math.rsqrt %226 : vector<32x1xf32>
    %228 = vector.broadcast %227 : vector<32x1xf32> to vector<32x32xf32>
    %229 = arith.mulf %224, %228 : vector<32x32xf32>
    %230 = vector.broadcast %210 : vector<1x32xf32> to vector<32x32xf32>
    %231 = arith.mulf %229, %230 : vector<32x32xf32>
    %232 = vector.broadcast %211 : vector<1x32xf32> to vector<32x32xf32>
    %233 = arith.addf %231, %232 : vector<32x32xf32>
    %c0_90 = arith.constant 0 : index
    %c0_91 = arith.constant 0 : index
    %234 = vector.load %arg11[%c0_90, %c0_91] : memref<32x32xf32, #tpu.memory_space<vmem>>, vector<32x32xf32>
    %cst_92 = arith.constant dense<0.000000e+00> : vector<32x32xf32>
    %235 = tpu.matmul %233, %234, %cst_92 {dimension_numbers = #tpu.dot_dimension_numbers<[1], [0], [0], [1], [0, 0, 1, 1], [], []>} : vector<32x32xf32>, vector<32x32xf32>, vector<32x32xf32> -> vector<32x32xf32>
    %c0_93 = arith.constant 0 : index
    %c0_94 = arith.constant 0 : index
    %236 = vector.load %arg12[%c0_93, %c0_94] : memref<1x32xf32, #tpu.memory_space<vmem>>, vector<1x32xf32>
    %237 = vector.broadcast %236 : vector<1x32xf32> to vector<32x32xf32>
    %238 = arith.addf %235, %237 : vector<32x32xf32>
    %c0_95 = arith.constant 0 : index
    %c0_96 = arith.constant 0 : index
    %239 = vector.load %arg13[%c0_95, %c0_96] : memref<32x32xf32, #tpu.memory_space<vmem>>, vector<32x32xf32>
    %cst_97 = arith.constant dense<0.000000e+00> : vector<32x32xf32>
    %240 = tpu.matmul %233, %239, %cst_97 {dimension_numbers = #tpu.dot_dimension_numbers<[1], [0], [0], [1], [0, 0, 1, 1], [], []>} : vector<32x32xf32>, vector<32x32xf32>, vector<32x32xf32> -> vector<32x32xf32>
    %c0_98 = arith.constant 0 : index
    %c0_99 = arith.constant 0 : index
    %241 = vector.load %arg14[%c0_98, %c0_99] : memref<1x32xf32, #tpu.memory_space<vmem>>, vector<1x32xf32>
    %242 = vector.broadcast %241 : vector<1x32xf32> to vector<32x32xf32>
    %243 = arith.addf %240, %242 : vector<32x32xf32>
    %c0_100 = arith.constant 0 : index
    %c0_101 = arith.constant 0 : index
    %244 = vector.load %arg15[%c0_100, %c0_101] : memref<32x32xf32, #tpu.memory_space<vmem>>, vector<32x32xf32>
    %cst_102 = arith.constant dense<0.000000e+00> : vector<32x32xf32>
    %245 = tpu.matmul %233, %244, %cst_102 {dimension_numbers = #tpu.dot_dimension_numbers<[1], [0], [0], [1], [0, 0, 1, 1], [], []>} : vector<32x32xf32>, vector<32x32xf32>, vector<32x32xf32> -> vector<32x32xf32>
    %c0_103 = arith.constant 0 : index
    %c0_104 = arith.constant 0 : index
    %246 = vector.load %arg16[%c0_103, %c0_104] : memref<1x32xf32, #tpu.memory_space<vmem>>, vector<1x32xf32>
    %247 = vector.broadcast %246 : vector<1x32xf32> to vector<32x32xf32>
    %248 = arith.addf %245, %247 : vector<32x32xf32>
    %249 = vector.extract_strided_slice %238 {offsets = [0, 0], sizes = [32, 8], strides = [1, 1]} : vector<32x32xf32> to vector<32x8xf32>
    %250 = vector.extract_strided_slice %243 {offsets = [0, 0], sizes = [32, 8], strides = [1, 1]} : vector<32x32xf32> to vector<32x8xf32>
    %cst_105 = arith.constant dense<0.000000e+00> : vector<32x32xf32>
    %251 = tpu.matmul %249, %250, %cst_105 {dimension_numbers = #tpu.dot_dimension_numbers<[1], [1], [0], [0], [0, 0, 1, 0], [], []>} : vector<32x8xf32>, vector<32x8xf32>, vector<32x32xf32> -> vector<32x32xf32>
    %cst_106 = arith.constant 0.353553385 : f32
    %252 = vector.broadcast %cst_106 : f32 to vector<32x32xf32>
    %253 = arith.mulf %251, %252 : vector<32x32xf32>
    %254 = arith.addf %253, %111 : vector<32x32xf32>
    %cst_107 = arith.constant dense<0xFF800000> : vector<32xf32>
    %255 = vector.multi_reduction <maximumf>, %254, %cst_107 [1] : vector<32x32xf32> to vector<32xf32>
    %256 = vector.shape_cast %255 : vector<32xf32> to vector<32x1xf32>
    %257 = vector.broadcast %256 : vector<32x1xf32> to vector<32x32xf32>
    %258 = arith.subf %254, %257 : vector<32x32xf32>
    %259 = math.exp %258 : vector<32x32xf32>
    %cst_108 = arith.constant dense<0.000000e+00> : vector<32xf32>
    %260 = vector.multi_reduction <add>, %259, %cst_108 [1] : vector<32x32xf32> to vector<32xf32>
    %261 = vector.shape_cast %260 : vector<32xf32> to vector<32x1xf32>
    %262 = tpu.reciprocal %261 : vector<32x1xf32> -> vector<32x1xf32>
    %263 = vector.broadcast %262 : vector<32x1xf32> to vector<32x32xf32>
    %264 = arith.mulf %259, %263 : vector<32x32xf32>
    %265 = vector.extract_strided_slice %248 {offsets = [0, 0], sizes = [32, 8], strides = [1, 1]} : vector<32x32xf32> to vector<32x8xf32>
    %cst_109 = arith.constant dense<0.000000e+00> : vector<32x8xf32>
    %266 = tpu.matmul %264, %265, %cst_109 {dimension_numbers = #tpu.dot_dimension_numbers<[1], [0], [0], [1], [0, 0, 1, 1], [], []>} : vector<32x32xf32>, vector<32x8xf32>, vector<32x8xf32> -> vector<32x8xf32>
    %c0_110 = arith.constant 0 : index
    %c0_111 = arith.constant 0 : index
    %267 = vector.load %arg30[%c0_110, %c0_111] : memref<32x32xf32, #tpu.memory_space<vmem>>, vector<32x8xf32>
    tpu.vector_store %arg30[%c0_110, %c0_111], %266 {strides = array<i32>} : memref<32x32xf32, #tpu.memory_space<vmem>>, vector<32x8xf32>,
    %268 = vector.extract_strided_slice %238 {offsets = [0, 8], sizes = [32, 8], strides = [1, 1]} : vector<32x32xf32> to vector<32x8xf32>
    %269 = vector.extract_strided_slice %243 {offsets = [0, 8], sizes = [32, 8], strides = [1, 1]} : vector<32x32xf32> to vector<32x8xf32>
    %cst_112 = arith.constant dense<0.000000e+00> : vector<32x32xf32>
    %270 = tpu.matmul %268, %269, %cst_112 {dimension_numbers = #tpu.dot_dimension_numbers<[1], [1], [0], [0], [0, 0, 1, 0], [], []>} : vector<32x8xf32>, vector<32x8xf32>, vector<32x32xf32> -> vector<32x32xf32>
    %cst_113 = arith.constant 0.353553385 : f32
    %271 = vector.broadcast %cst_113 : f32 to vector<32x32xf32>
    %272 = arith.mulf %270, %271 : vector<32x32xf32>
    %273 = arith.addf %272, %111 : vector<32x32xf32>
    %cst_114 = arith.constant dense<0xFF800000> : vector<32xf32>
    %274 = vector.multi_reduction <maximumf>, %273, %cst_114 [1] : vector<32x32xf32> to vector<32xf32>
    %275 = vector.shape_cast %274 : vector<32xf32> to vector<32x1xf32>
    %276 = vector.broadcast %275 : vector<32x1xf32> to vector<32x32xf32>
    %277 = arith.subf %273, %276 : vector<32x32xf32>
    %278 = math.exp %277 : vector<32x32xf32>
    %cst_115 = arith.constant dense<0.000000e+00> : vector<32xf32>
    %279 = vector.multi_reduction <add>, %278, %cst_115 [1] : vector<32x32xf32> to vector<32xf32>
    %280 = vector.shape_cast %279 : vector<32xf32> to vector<32x1xf32>
    %281 = tpu.reciprocal %280 : vector<32x1xf32> -> vector<32x1xf32>
    %282 = vector.broadcast %281 : vector<32x1xf32> to vector<32x32xf32>
    %283 = arith.mulf %278, %282 : vector<32x32xf32>
    %284 = vector.extract_strided_slice %248 {offsets = [0, 8], sizes = [32, 8], strides = [1, 1]} : vector<32x32xf32> to vector<32x8xf32>
    %cst_116 = arith.constant dense<0.000000e+00> : vector<32x8xf32>
    %285 = tpu.matmul %283, %284, %cst_116 {dimension_numbers = #tpu.dot_dimension_numbers<[1], [0], [0], [1], [0, 0, 1, 1], [], []>} : vector<32x32xf32>, vector<32x8xf32>, vector<32x8xf32> -> vector<32x8xf32>
    %c0_117 = arith.constant 0 : index
    %c8_118 = arith.constant 8 : index
    %286 = vector.load %arg30[%c0_117, %c8_118] : memref<32x32xf32, #tpu.memory_space<vmem>>, vector<32x8xf32>
    tpu.vector_store %arg30[%c0_117, %c8_118], %285 {strides = array<i32>} : memref<32x32xf32, #tpu.memory_space<vmem>>, vector<32x8xf32>,
    %287 = vector.extract_strided_slice %238 {offsets = [0, 16], sizes = [32, 8], strides = [1, 1]} : vector<32x32xf32> to vector<32x8xf32>
    %288 = vector.extract_strided_slice %243 {offsets = [0, 16], sizes = [32, 8], strides = [1, 1]} : vector<32x32xf32> to vector<32x8xf32>
    %cst_119 = arith.constant dense<0.000000e+00> : vector<32x32xf32>
    %289 = tpu.matmul %287, %288, %cst_119 {dimension_numbers = #tpu.dot_dimension_numbers<[1], [1], [0], [0], [0, 0, 1, 0], [], []>} : vector<32x8xf32>, vector<32x8xf32>, vector<32x32xf32> -> vector<32x32xf32>
    %cst_120 = arith.constant 0.353553385 : f32
    %290 = vector.broadcast %cst_120 : f32 to vector<32x32xf32>
    %291 = arith.mulf %289, %290 : vector<32x32xf32>
    %292 = arith.addf %291, %111 : vector<32x32xf32>
    %cst_121 = arith.constant dense<0xFF800000> : vector<32xf32>
    %293 = vector.multi_reduction <maximumf>, %292, %cst_121 [1] : vector<32x32xf32> to vector<32xf32>
    %294 = vector.shape_cast %293 : vector<32xf32> to vector<32x1xf32>
    %295 = vector.broadcast %294 : vector<32x1xf32> to vector<32x32xf32>
    %296 = arith.subf %292, %295 : vector<32x32xf32>
    %297 = math.exp %296 : vector<32x32xf32>
    %cst_122 = arith.constant dense<0.000000e+00> : vector<32xf32>
    %298 = vector.multi_reduction <add>, %297, %cst_122 [1] : vector<32x32xf32> to vector<32xf32>
    %299 = vector.shape_cast %298 : vector<32xf32> to vector<32x1xf32>
    %300 = tpu.reciprocal %299 : vector<32x1xf32> -> vector<32x1xf32>
    %301 = vector.broadcast %300 : vector<32x1xf32> to vector<32x32xf32>
    %302 = arith.mulf %297, %301 : vector<32x32xf32>
    %303 = vector.extract_strided_slice %248 {offsets = [0, 16], sizes = [32, 8], strides = [1, 1]} : vector<32x32xf32> to vector<32x8xf32>
    %cst_123 = arith.constant dense<0.000000e+00> : vector<32x8xf32>
    %304 = tpu.matmul %302, %303, %cst_123 {dimension_numbers = #tpu.dot_dimension_numbers<[1], [0], [0], [1], [0, 0, 1, 1], [], []>} : vector<32x32xf32>, vector<32x8xf32>, vector<32x8xf32> -> vector<32x8xf32>
    %c0_124 = arith.constant 0 : index
    %c16_125 = arith.constant 16 : index
    %305 = vector.load %arg30[%c0_124, %c16_125] : memref<32x32xf32, #tpu.memory_space<vmem>>, vector<32x8xf32>
    tpu.vector_store %arg30[%c0_124, %c16_125], %304 {strides = array<i32>} : memref<32x32xf32, #tpu.memory_space<vmem>>, vector<32x8xf32>,
    %306 = vector.extract_strided_slice %238 {offsets = [0, 24], sizes = [32, 8], strides = [1, 1]} : vector<32x32xf32> to vector<32x8xf32>
    %307 = vector.extract_strided_slice %243 {offsets = [0, 24], sizes = [32, 8], strides = [1, 1]} : vector<32x32xf32> to vector<32x8xf32>
    %cst_126 = arith.constant dense<0.000000e+00> : vector<32x32xf32>
    %308 = tpu.matmul %306, %307, %cst_126 {dimension_numbers = #tpu.dot_dimension_numbers<[1], [1], [0], [0], [0, 0, 1, 0], [], []>} : vector<32x8xf32>, vector<32x8xf32>, vector<32x32xf32> -> vector<32x32xf32>
    %cst_127 = arith.constant 0.353553385 : f32
    %309 = vector.broadcast %cst_127 : f32 to vector<32x32xf32>
    %310 = arith.mulf %308, %309 : vector<32x32xf32>
    %311 = arith.addf %310, %111 : vector<32x32xf32>
    %cst_128 = arith.constant dense<0xFF800000> : vector<32xf32>
    %312 = vector.multi_reduction <maximumf>, %311, %cst_128 [1] : vector<32x32xf32> to vector<32xf32>
    %313 = vector.shape_cast %312 : vector<32xf32> to vector<32x1xf32>
    %314 = vector.broadcast %313 : vector<32x1xf32> to vector<32x32xf32>
    %315 = arith.subf %311, %314 : vector<32x32xf32>
    %316 = math.exp %315 : vector<32x32xf32>
    %cst_129 = arith.constant dense<0.000000e+00> : vector<32xf32>
    %317 = vector.multi_reduction <add>, %316, %cst_129 [1] : vector<32x32xf32> to vector<32xf32>
    %318 = vector.shape_cast %317 : vector<32xf32> to vector<32x1xf32>
    %319 = tpu.reciprocal %318 : vector<32x1xf32> -> vector<32x1xf32>
    %320 = vector.broadcast %319 : vector<32x1xf32> to vector<32x32xf32>
    %321 = arith.mulf %316, %320 : vector<32x32xf32>
    %322 = vector.extract_strided_slice %248 {offsets = [0, 24], sizes = [32, 8], strides = [1, 1]} : vector<32x32xf32> to vector<32x8xf32>
    %cst_130 = arith.constant dense<0.000000e+00> : vector<32x8xf32>
    %323 = tpu.matmul %321, %322, %cst_130 {dimension_numbers = #tpu.dot_dimension_numbers<[1], [0], [0], [1], [0, 0, 1, 1], [], []>} : vector<32x32xf32>, vector<32x8xf32>, vector<32x8xf32> -> vector<32x8xf32>
    %c0_131 = arith.constant 0 : index
    %c24_132 = arith.constant 24 : index
    %324 = vector.load %arg30[%c0_131, %c24_132] : memref<32x32xf32, #tpu.memory_space<vmem>>, vector<32x8xf32>
    tpu.vector_store %arg30[%c0_131, %c24_132], %323 {strides = array<i32>} : memref<32x32xf32, #tpu.memory_space<vmem>>, vector<32x8xf32>,
    %c0_133 = arith.constant 0 : index
    %c0_134 = arith.constant 0 : index
    %325 = vector.load %arg30[%c0_133, %c0_134] : memref<32x32xf32, #tpu.memory_space<vmem>>, vector<32x32xf32>
    %c0_135 = arith.constant 0 : index
    %c0_136 = arith.constant 0 : index
    %326 = vector.load %arg17[%c0_135, %c0_136] : memref<32x32xf32, #tpu.memory_space<vmem>>, vector<32x32xf32>
    %cst_137 = arith.constant dense<0.000000e+00> : vector<32x32xf32>
    %327 = tpu.matmul %325, %326, %cst_137 {dimension_numbers = #tpu.dot_dimension_numbers<[1], [0], [0], [1], [0, 0, 1, 1], [], []>} : vector<32x32xf32>, vector<32x32xf32>, vector<32x32xf32> -> vector<32x32xf32>
    %c0_138 = arith.constant 0 : index
    %c0_139 = arith.constant 0 : index
    %328 = vector.load %arg18[%c0_138, %c0_139] : memref<1x32xf32, #tpu.memory_space<vmem>>, vector<1x32xf32>
    %329 = vector.broadcast %328 : vector<1x32xf32> to vector<32x32xf32>
    %330 = arith.addf %327, %329 : vector<32x32xf32>
    %331 = arith.addf %233, %330 : vector<32x32xf32>
    %c0_140 = arith.constant 0 : index
    %c0_141 = arith.constant 0 : index
    %332 = vector.load %arg21[%c0_140, %c0_141] : memref<1x32xf32, #tpu.memory_space<vmem>>, vector<1x32xf32>
    %c0_142 = arith.constant 0 : index
    %c0_143 = arith.constant 0 : index
    %333 = vector.load %arg22[%c0_142, %c0_143] : memref<1x32xf32, #tpu.memory_space<vmem>>, vector<1x32xf32>
    %cst_144 = arith.constant dense<0.000000e+00> : vector<32xf32>
    %334 = vector.multi_reduction <add>, %331, %cst_144 [1] : vector<32x32xf32> to vector<32xf32>
    %335 = vector.shape_cast %334 : vector<32xf32> to vector<32x1xf32>
    %cst_145 = arith.constant 3.200000e+01 : f32
    %336 = vector.broadcast %cst_145 : f32 to vector<32x1xf32>
    %337 = arith.divf %335, %336 : vector<32x1xf32>
    %338 = vector.broadcast %337 : vector<32x1xf32> to vector<32x32xf32>
    %339 = arith.subf %331, %338 : vector<32x32xf32>
    %340 = arith.mulf %339, %339 : vector<32x32xf32>
    %cst_146 = arith.constant dense<0.000000e+00> : vector<32xf32>
    %341 = vector.multi_reduction <add>, %340, %cst_146 [1] : vector<32x32xf32> to vector<32xf32>
    %342 = vector.shape_cast %341 : vector<32xf32> to vector<32x1xf32>
    %cst_147 = arith.constant 3.200000e+01 : f32
    %343 = vector.broadcast %cst_147 : f32 to vector<32x1xf32>
    %344 = arith.divf %342, %343 : vector<32x1xf32>
    %345 = vector.broadcast %337 : vector<32x1xf32> to vector<32x32xf32>
    %346 = arith.subf %331, %345 : vector<32x32xf32>
    %cst_148 = arith.constant 9.99999974E-6 : f32
    %347 = vector.broadcast %cst_148 : f32 to vector<32x1xf32>
    %348 = arith.addf %344, %347 : vector<32x1xf32>
    %349 = math.rsqrt %348 : vector<32x1xf32>
    %350 = vector.broadcast %349 : vector<32x1xf32> to vector<32x32xf32>
    %351 = arith.mulf %346, %350 : vector<32x32xf32>
    %352 = vector.broadcast %332 : vector<1x32xf32> to vector<32x32xf32>
    %353 = arith.mulf %351, %352 : vector<32x32xf32>
    %354 = vector.broadcast %333 : vector<1x32xf32> to vector<32x32xf32>
    %355 = arith.addf %353, %354 : vector<32x32xf32>
    %c0_149 = arith.constant 0 : index
    %c0_150 = arith.constant 0 : index
    %356 = vector.load %arg25[%c0_149, %c0_150] : memref<32x128xf32, #tpu.memory_space<vmem>>, vector<32x128xf32>
    %cst_151 = arith.constant dense<0.000000e+00> : vector<32x128xf32>
    %357 = tpu.matmul %355, %356, %cst_151 {dimension_numbers = #tpu.dot_dimension_numbers<[1], [0], [0], [1], [0, 0, 1, 1], [], []>} : vector<32x32xf32>, vector<32x128xf32>, vector<32x128xf32> -> vector<32x128xf32>
    %c0_152 = arith.constant 0 : index
    %c0_153 = arith.constant 0 : index
    %358 = vector.load %arg26[%c0_152, %c0_153] : memref<1x128xf32, #tpu.memory_space<vmem>>, vector<1x128xf32>
    %359 = vector.broadcast %358 : vector<1x128xf32> to vector<32x128xf32>
    %360 = arith.addf %357, %359 : vector<32x128xf32>
    %cst_154 = arith.constant 5.000000e-01 : f32
    %361 = vector.broadcast %cst_154 : f32 to vector<32x128xf32>
    %362 = arith.mulf %361, %360 : vector<32x128xf32>
    %cst_155 = arith.constant 0.707106769 : f32
    %363 = vector.broadcast %cst_155 : f32 to vector<32x128xf32>
    %364 = arith.mulf %360, %363 : vector<32x128xf32>
    %365 = math.absf %364 : vector<32x128xf32>
    %cst_156 = arith.constant 0.327591091 : f32
    %366 = vector.broadcast %cst_156 : f32 to vector<32x128xf32>
    %367 = arith.mulf %366, %365 : vector<32x128xf32>
    %cst_157 = arith.constant 1.000000e+00 : f32
    %368 = vector.broadcast %cst_157 : f32 to vector<32x128xf32>
    %369 = arith.addf %368, %367 : vector<32x128xf32>
    %370 = tpu.reciprocal %369 : vector<32x128xf32> -> vector<32x128xf32>
    %cst_158 = arith.constant 1.06140542 : f32
    %371 = vector.broadcast %cst_158 : f32 to vector<32x128xf32>
    %372 = arith.mulf %371, %370 : vector<32x128xf32>
    %cst_159 = arith.constant -1.45315206 : f32
    %373 = vector.broadcast %cst_159 : f32 to vector<32x128xf32>
    %374 = arith.addf %372, %373 : vector<32x128xf32>
    %375 = arith.mulf %374, %370 : vector<32x128xf32>
    %cst_160 = arith.constant 1.42141378 : f32
    %376 = vector.broadcast %cst_160 : f32 to vector<32x128xf32>
    %377 = arith.addf %375, %376 : vector<32x128xf32>
    %378 = arith.mulf %377, %370 : vector<32x128xf32>
    %cst_161 = arith.constant -0.284496725 : f32
    %379 = vector.broadcast %cst_161 : f32 to vector<32x128xf32>
    %380 = arith.addf %378, %379 : vector<32x128xf32>
    %381 = arith.mulf %380, %370 : vector<32x128xf32>
    %cst_162 = arith.constant 0.254829586 : f32
    %382 = vector.broadcast %cst_162 : f32 to vector<32x128xf32>
    %383 = arith.addf %381, %382 : vector<32x128xf32>
    %384 = arith.mulf %383, %370 : vector<32x128xf32>
    %cst_163 = arith.constant 0.000000e+00 : f32
    %385 = vector.broadcast %cst_163 : f32 to vector<32x128xf32>
    %386 = arith.subf %385, %365 : vector<32x128xf32>
    %387 = arith.mulf %386, %365 : vector<32x128xf32>
    %388 = math.exp %387 : vector<32x128xf32>
    %389 = arith.mulf %384, %388 : vector<32x128xf32>
    %cst_164 = arith.constant 1.000000e+00 : f32
    %390 = vector.broadcast %cst_164 : f32 to vector<32x128xf32>
    %391 = arith.subf %390, %389 : vector<32x128xf32>
    %cst_165 = arith.constant 0.000000e+00 : f32
    %392 = vector.broadcast %cst_165 : f32 to vector<32x128xf32>
    %393 = arith.cmpf oge, %364, %392 : vector<32x128xf32>
    %cst_166 = arith.constant 0.000000e+00 : f32
    %394 = vector.broadcast %cst_166 : f32 to vector<32x128xf32>
    %395 = arith.subf %394, %391 : vector<32x128xf32>
    %396 = arith.select %393, %391, %395 : vector<32x128xi1>, vector<32x128xf32>
    %cst_167 = arith.constant 1.000000e+00 : f32
    %397 = vector.broadcast %cst_167 : f32 to vector<32x128xf32>
    %398 = arith.addf %397, %396 : vector<32x128xf32>
    %399 = arith.mulf %362, %398 : vector<32x128xf32>
    %c0_168 = arith.constant 0 : index
    %c0_169 = arith.constant 0 : index
    %400 = vector.load %arg27[%c0_168, %c0_169] : memref<128x32xf32, #tpu.memory_space<vmem>>, vector<128x32xf32>
    %cst_170 = arith.constant dense<0.000000e+00> : vector<32x32xf32>
    %401 = tpu.matmul %399, %400, %cst_170 {dimension_numbers = #tpu.dot_dimension_numbers<[1], [0], [0], [1], [0, 0, 1, 1], [], []>} : vector<32x128xf32>, vector<128x32xf32>, vector<32x32xf32> -> vector<32x32xf32>
    %c0_171 = arith.constant 0 : index
    %c0_172 = arith.constant 0 : index
    %402 = vector.load %arg28[%c0_171, %c0_172] : memref<1x32xf32, #tpu.memory_space<vmem>>, vector<1x32xf32>
    %403 = vector.broadcast %402 : vector<1x32xf32> to vector<32x32xf32>
    %404 = arith.addf %401, %403 : vector<32x32xf32>
    %405 = arith.addf %355, %404 : vector<32x32xf32>
    %c0_173 = arith.constant 0 : index
    %c0_174 = arith.constant 0 : index
    %406 = vector.load %arg23[%c0_173, %c0_174] : memref<1x32xf32, #tpu.memory_space<vmem>>, vector<1x32xf32>
    %c0_175 = arith.constant 0 : index
    %c0_176 = arith.constant 0 : index
    %407 = vector.load %arg24[%c0_175, %c0_176] : memref<1x32xf32, #tpu.memory_space<vmem>>, vector<1x32xf32>
    %cst_177 = arith.constant dense<0.000000e+00> : vector<32xf32>
    %408 = vector.multi_reduction <add>, %405, %cst_177 [1] : vector<32x32xf32> to vector<32xf32>
    %409 = vector.shape_cast %408 : vector<32xf32> to vector<32x1xf32>
    %cst_178 = arith.constant 3.200000e+01 : f32
    %410 = vector.broadcast %cst_178 : f32 to vector<32x1xf32>
    %411 = arith.divf %409, %410 : vector<32x1xf32>
    %412 = vector.broadcast %411 : vector<32x1xf32> to vector<32x32xf32>
    %413 = arith.subf %405, %412 : vector<32x32xf32>
    %414 = arith.mulf %413, %413 : vector<32x32xf32>
    %cst_179 = arith.constant dense<0.000000e+00> : vector<32xf32>
    %415 = vector.multi_reduction <add>, %414, %cst_179 [1] : vector<32x32xf32> to vector<32xf32>
    %416 = vector.shape_cast %415 : vector<32xf32> to vector<32x1xf32>
    %cst_180 = arith.constant 3.200000e+01 : f32
    %417 = vector.broadcast %cst_180 : f32 to vector<32x1xf32>
    %418 = arith.divf %416, %417 : vector<32x1xf32>
    %419 = vector.broadcast %411 : vector<32x1xf32> to vector<32x32xf32>
    %420 = arith.subf %405, %419 : vector<32x32xf32>
    %cst_181 = arith.constant 9.99999974E-6 : f32
    %421 = vector.broadcast %cst_181 : f32 to vector<32x1xf32>
    %422 = arith.addf %418, %421 : vector<32x1xf32>
    %423 = math.rsqrt %422 : vector<32x1xf32>
    %424 = vector.broadcast %423 : vector<32x1xf32> to vector<32x32xf32>
    %425 = arith.mulf %420, %424 : vector<32x32xf32>
    %426 = vector.broadcast %406 : vector<1x32xf32> to vector<32x32xf32>
    %427 = arith.mulf %425, %426 : vector<32x32xf32>
    %428 = vector.broadcast %407 : vector<1x32xf32> to vector<32x32xf32>
    %429 = arith.addf %427, %428 : vector<32x32xf32>
    %430 = vector.shape_cast %429 : vector<32x32xf32> to vector<4x8x32xf32>
    %c0_182 = arith.constant 0 : index
    %c0_183 = arith.constant 0 : index
    %c0_184 = arith.constant 0 : index
    %431 = vector.load %arg29[%c0_182, %c0_183, %c0_184] : memref<4x8x32xf32, #tpu.memory_space<vmem>>, vector<4x8x32xf32>
    tpu.vector_store %arg29[%c0_182, %c0_183, %c0_184], %430 {strides = array<i32>} : memref<4x8x32xf32, #tpu.memory_space<vmem>>, vector<4x8x32xf32>,
    return
  }
  func.func @transform_0(%arg0: i32) -> (i32, i32, i32) {
    %c0_i32 = arith.constant 0 : i32
    %c0_i32_0 = arith.constant 0 : i32
    %c0_i32_1 = arith.constant 0 : i32
    return %arg0, %c0_i32, %c0_i32_0 : i32, i32, i32
  }
  func.func @transform_1(%arg0: i32) -> (i32, i32, i32) {
    %c0_i32 = arith.constant 0 : i32
    %c0_i32_0 = arith.constant 0 : i32
    %c0_i32_1 = arith.constant 0 : i32
    return %arg0, %c0_i32, %c0_i32_0 : i32, i32, i32
  }
  func.func @transform_2(%arg0: i32) -> (i32, i32) {
    %c0_i32 = arith.constant 0 : i32
    %c0_i32_0 = arith.constant 0 : i32
    %c0_i32_1 = arith.constant 0 : i32
    return %c0_i32, %c0_i32_0 : i32, i32
  }
  func.func @transform_3(%arg0: i32) -> (i32, i32) {
    %c0_i32 = arith.constant 0 : i32
    %c0_i32_0 = arith.constant 0 : i32
    %c0_i32_1 = arith.constant 0 : i32
    return %c0_i32, %c0_i32_0 : i32, i32
  }
  func.func @transform_4(%arg0: i32) -> (i32, i32) {
    %c0_i32 = arith.constant 0 : i32
    %c0_i32_0 = arith.constant 0 : i32
    %c0_i32_1 = arith.constant 0 : i32
    return %c0_i32, %c0_i32_0 : i32, i32
  }
  func.func @transform_5(%arg0: i32) -> (i32, i32) {
    %c0_i32 = arith.constant 0 : i32
    %c0_i32_0 = arith.constant 0 : i32
    %c0_i32_1 = arith.constant 0 : i32
    return %c0_i32, %c0_i32_0 : i32, i32
  }
  func.func @transform_6(%arg0: i32) -> (i32, i32) {
    %c0_i32 = arith.constant 0 : i32
    %c0_i32_0 = arith.constant 0 : i32
    %c0_i32_1 = arith.constant 0 : i32
    return %c0_i32, %c0_i32_0 : i32, i32
  }
  func.func @transform_7(%arg0: i32) -> (i32, i32) {
    %c0_i32 = arith.constant 0 : i32
    %c0_i32_0 = arith.constant 0 : i32
    %c0_i32_1 = arith.constant 0 : i32
    return %c0_i32, %c0_i32_0 : i32, i32
  }
  func.func @transform_8(%arg0: i32) -> (i32, i32) {
    %c0_i32 = arith.constant 0 : i32
    %c0_i32_0 = arith.constant 0 : i32
    %c0_i32_1 = arith.constant 0 : i32
    return %c0_i32, %c0_i32_0 : i32, i32
  }
  func.func @transform_9(%arg0: i32) -> (i32, i32) {
    %c0_i32 = arith.constant 0 : i32
    %c0_i32_0 = arith.constant 0 : i32
    %c0_i32_1 = arith.constant 0 : i32
    return %c0_i32, %c0_i32_0 : i32, i32
  }
  func.func @transform_10(%arg0: i32) -> (i32, i32) {
    %c0_i32 = arith.constant 0 : i32
    %c0_i32_0 = arith.constant 0 : i32
    %c0_i32_1 = arith.constant 0 : i32
    return %c0_i32, %c0_i32_0 : i32, i32
  }
  func.func @transform_11(%arg0: i32) -> (i32, i32) {
    %c0_i32 = arith.constant 0 : i32
    %c0_i32_0 = arith.constant 0 : i32
    %c0_i32_1 = arith.constant 0 : i32
    return %c0_i32, %c0_i32_0 : i32, i32
  }
  func.func @transform_12(%arg0: i32) -> (i32, i32) {
    %c0_i32 = arith.constant 0 : i32
    %c0_i32_0 = arith.constant 0 : i32
    %c0_i32_1 = arith.constant 0 : i32
    return %c0_i32, %c0_i32_0 : i32, i32
  }
  func.func @transform_13(%arg0: i32) -> (i32, i32) {
    %c0_i32 = arith.constant 0 : i32
    %c0_i32_0 = arith.constant 0 : i32
    %c0_i32_1 = arith.constant 0 : i32
    return %c0_i32, %c0_i32_0 : i32, i32
  }
  func.func @transform_14(%arg0: i32) -> (i32, i32) {
    %c0_i32 = arith.constant 0 : i32
    %c0_i32_0 = arith.constant 0 : i32
    %c0_i32_1 = arith.constant 0 : i32
    return %c0_i32, %c0_i32_0 : i32, i32
  }
  func.func @transform_15(%arg0: i32) -> (i32, i32) {
    %c0_i32 = arith.constant 0 : i32
    %c0_i32_0 = arith.constant 0 : i32
    %c0_i32_1 = arith.constant 0 : i32
    return %c0_i32, %c0_i32_0 : i32, i32
  }
  func.func @transform_16(%arg0: i32) -> (i32, i32) {
    %c0_i32 = arith.constant 0 : i32
    %c0_i32_0 = arith.constant 0 : i32
    %c0_i32_1 = arith.constant 0 : i32
    return %c0_i32, %c0_i32_0 : i32, i32
  }
  func.func @transform_17(%arg0: i32) -> (i32, i32) {
    %c0_i32 = arith.constant 0 : i32
    %c0_i32_0 = arith.constant 0 : i32
    %c0_i32_1 = arith.constant 0 : i32
    return %c0_i32, %c0_i32_0 : i32, i32
  }
  func.func @transform_18(%arg0: i32) -> (i32, i32) {
    %c0_i32 = arith.constant 0 : i32
    %c0_i32_0 = arith.constant 0 : i32
    %c0_i32_1 = arith.constant 0 : i32
    return %c0_i32, %c0_i32_0 : i32, i32
  }
  func.func @transform_19(%arg0: i32) -> (i32, i32) {
    %c0_i32 = arith.constant 0 : i32
    %c0_i32_0 = arith.constant 0 : i32
    %c0_i32_1 = arith.constant 0 : i32
    return %c0_i32, %c0_i32_0 : i32, i32
  }
  func.func @transform_20(%arg0: i32) -> (i32, i32) {
    %c0_i32 = arith.constant 0 : i32
    %c0_i32_0 = arith.constant 0 : i32
    %c0_i32_1 = arith.constant 0 : i32
    return %c0_i32, %c0_i32_0 : i32, i32
  }
  func.func @transform_21(%arg0: i32) -> (i32, i32) {
    %c0_i32 = arith.constant 0 : i32
    %c0_i32_0 = arith.constant 0 : i32
    %c0_i32_1 = arith.constant 0 : i32
    return %c0_i32, %c0_i32_0 : i32, i32
  }
  func.func @transform_22(%arg0: i32) -> (i32, i32) {
    %c0_i32 = arith.constant 0 : i32
    %c0_i32_0 = arith.constant 0 : i32
    %c0_i32_1 = arith.constant 0 : i32
    return %c0_i32, %c0_i32_0 : i32, i32
  }
  func.func @transform_23(%arg0: i32) -> (i32, i32) {
    %c0_i32 = arith.constant 0 : i32
    %c0_i32_0 = arith.constant 0 : i32
    %c0_i32_1 = arith.constant 0 : i32
    return %c0_i32, %c0_i32_0 : i32, i32
  }
  func.func @transform_24(%arg0: i32) -> (i32, i32) {
    %c0_i32 = arith.constant 0 : i32
    %c0_i32_0 = arith.constant 0 : i32
    %c0_i32_1 = arith.constant 0 : i32
    return %c0_i32, %c0_i32_0 : i32, i32
  }
  func.func @transform_25(%arg0: i32) -> (i32, i32) {
    %c0_i32 = arith.constant 0 : i32
    %c0_i32_0 = arith.constant 0 : i32
    %c0_i32_1 = arith.constant 0 : i32
    return %c0_i32, %c0_i32_0 : i32, i32
  }
  func.func @transform_26(%arg0: i32) -> (i32, i32) {
    %c0_i32 = arith.constant 0 : i32
    %c0_i32_0 = arith.constant 0 : i32
    %c0_i32_1 = arith.constant 0 : i32
    return %c0_i32, %c0_i32_0 : i32, i32
  }
  func.func @transform_27(%arg0: i32) -> (i32, i32) {
    %c0_i32 = arith.constant 0 : i32
    %c0_i32_0 = arith.constant 0 : i32
    %c0_i32_1 = arith.constant 0 : i32
    return %c0_i32, %c0_i32_0 : i32, i32
  }
  func.func @transform_28(%arg0: i32) -> (i32, i32, i32) {
    %c0_i32 = arith.constant 0 : i32
    %c0_i32_0 = arith.constant 0 : i32
    %c0_i32_1 = arith.constant 0 : i32
    return %arg0, %c0_i32, %c0_i32_0 : i32, i32, i32
  }
}

module attributes {stable_mosaic.version = 11 : i64} {
  func.func @_qformer_kernel(%arg0: i32, %arg1: memref<4x8x32xf32, #tpu.memory_space<vmem>>, %arg2: memref<4x16x48xf32, #tpu.memory_space<vmem>>, %arg3: memref<32x32xf32, #tpu.memory_space<vmem>>, %arg4: memref<1x32xf32, #tpu.memory_space<vmem>>, %arg5: memref<48x32xf32, #tpu.memory_space<vmem>>, %arg6: memref<1x32xf32, #tpu.memory_space<vmem>>, %arg7: memref<48x32xf32, #tpu.memory_space<vmem>>, %arg8: memref<1x32xf32, #tpu.memory_space<vmem>>, %arg9: memref<32x32xf32, #tpu.memory_space<vmem>>, %arg10: memref<1x32xf32, #tpu.memory_space<vmem>>, %arg11: memref<32x32xf32, #tpu.memory_space<vmem>>, %arg12: memref<1x32xf32, #tpu.memory_space<vmem>>, %arg13: memref<32x32xf32, #tpu.memory_space<vmem>>, %arg14: memref<1x32xf32, #tpu.memory_space<vmem>>, %arg15: memref<32x32xf32, #tpu.memory_space<vmem>>, %arg16: memref<1x32xf32, #tpu.memory_space<vmem>>, %arg17: memref<32x32xf32, #tpu.memory_space<vmem>>, %arg18: memref<1x32xf32, #tpu.memory_space<vmem>>, %arg19: memref<1x32xf32, #tpu.memory_space<vmem>>, %arg20: memref<1x32xf32, #tpu.memory_space<vmem>>, %arg21: memref<1x32xf32, #tpu.memory_space<vmem>>, %arg22: memref<1x32xf32, #tpu.memory_space<vmem>>, %arg23: memref<1x32xf32, #tpu.memory_space<vmem>>, %arg24: memref<1x32xf32, #tpu.memory_space<vmem>>, %arg25: memref<32x128xf32, #tpu.memory_space<vmem>>, %arg26: memref<1x128xf32, #tpu.memory_space<vmem>>, %arg27: memref<128x32xf32, #tpu.memory_space<vmem>>, %arg28: memref<1x32xf32, #tpu.memory_space<vmem>>, %arg29: memref<4x8x32xf32, #tpu.memory_space<vmem>>, %arg30: memref<32x32xf32, #tpu.memory_space<vmem>>) attributes {dimension_semantics = [#tpu.dimension_semantics<parallel>], iteration_bounds = array<i64: 1>, scalar_prefetch = 0 : i64, scratch_operands = 1 : i64, tpu.core_type = #tpu.core_type<tc>, window_params = [{transform_indices = @transform_0, window_bounds = array<i64: 4, 8, 32>}, {transform_indices = @transform_1, window_bounds = array<i64: 4, 16, 48>}, {pipeline_mode = #tpu.pipeline_mode<synchronous>, transform_indices = @transform_2, window_bounds = array<i64: 32, 32>}, {pipeline_mode = #tpu.pipeline_mode<synchronous>, transform_indices = @transform_3, window_bounds = array<i64: 1, 32>}, {pipeline_mode = #tpu.pipeline_mode<synchronous>, transform_indices = @transform_4, window_bounds = array<i64: 48, 32>}, {pipeline_mode = #tpu.pipeline_mode<synchronous>, transform_indices = @transform_5, window_bounds = array<i64: 1, 32>}, {pipeline_mode = #tpu.pipeline_mode<synchronous>, transform_indices = @transform_6, window_bounds = array<i64: 48, 32>}, {pipeline_mode = #tpu.pipeline_mode<synchronous>, transform_indices = @transform_7, window_bounds = array<i64: 1, 32>}, {pipeline_mode = #tpu.pipeline_mode<synchronous>, transform_indices = @transform_8, window_bounds = array<i64: 32, 32>}, {pipeline_mode = #tpu.pipeline_mode<synchronous>, transform_indices = @transform_9, window_bounds = array<i64: 1, 32>}, {pipeline_mode = #tpu.pipeline_mode<synchronous>, transform_indices = @transform_10, window_bounds = array<i64: 32, 32>}, {pipeline_mode = #tpu.pipeline_mode<synchronous>, transform_indices = @transform_11, window_bounds = array<i64: 1, 32>}, {pipeline_mode = #tpu.pipeline_mode<synchronous>, transform_indices = @transform_12, window_bounds = array<i64: 32, 32>}, {pipeline_mode = #tpu.pipeline_mode<synchronous>, transform_indices = @transform_13, window_bounds = array<i64: 1, 32>}, {pipeline_mode = #tpu.pipeline_mode<synchronous>, transform_indices = @transform_14, window_bounds = array<i64: 32, 32>}, {pipeline_mode = #tpu.pipeline_mode<synchronous>, transform_indices = @transform_15, window_bounds = array<i64: 1, 32>}, {pipeline_mode = #tpu.pipeline_mode<synchronous>, transform_indices = @transform_16, window_bounds = array<i64: 32, 32>}, {pipeline_mode = #tpu.pipeline_mode<synchronous>, transform_indices = @transform_17, window_bounds = array<i64: 1, 32>}, {pipeline_mode = #tpu.pipeline_mode<synchronous>, transform_indices = @transform_18, window_bounds = array<i64: 1, 32>}, {pipeline_mode = #tpu.pipeline_mode<synchronous>, transform_indices = @transform_19, window_bounds = array<i64: 1, 32>}, {pipeline_mode = #tpu.pipeline_mode<synchronous>, transform_indices = @transform_20, window_bounds = array<i64: 1, 32>}, {pipeline_mode = #tpu.pipeline_mode<synchronous>, transform_indices = @transform_21, window_bounds = array<i64: 1, 32>}, {pipeline_mode = #tpu.pipeline_mode<synchronous>, transform_indices = @transform_22, window_bounds = array<i64: 1, 32>}, {pipeline_mode = #tpu.pipeline_mode<synchronous>, transform_indices = @transform_23, window_bounds = array<i64: 1, 32>}, {pipeline_mode = #tpu.pipeline_mode<synchronous>, transform_indices = @transform_24, window_bounds = array<i64: 32, 128>}, {pipeline_mode = #tpu.pipeline_mode<synchronous>, transform_indices = @transform_25, window_bounds = array<i64: 1, 128>}, {pipeline_mode = #tpu.pipeline_mode<synchronous>, transform_indices = @transform_26, window_bounds = array<i64: 128, 32>}, {pipeline_mode = #tpu.pipeline_mode<synchronous>, transform_indices = @transform_27, window_bounds = array<i64: 1, 32>}, {transform_indices = @transform_28, window_bounds = array<i64: 4, 8, 32>}]} {
    %c0 = arith.constant 0 : index
    %c0_0 = arith.constant 0 : index
    %c0_1 = arith.constant 0 : index
    %0 = vector.load %arg1[%c0, %c0_0, %c0_1] : memref<4x8x32xf32, #tpu.memory_space<vmem>>, vector<4x8x32xf32>
    %1 = vector.shape_cast %0 : vector<4x8x32xf32> to vector<32x32xf32>
    %c0_2 = arith.constant 0 : index
    %c0_3 = arith.constant 0 : index
    %c0_4 = arith.constant 0 : index
    %2 = vector.load %arg2[%c0_2, %c0_3, %c0_4] : memref<4x16x48xf32, #tpu.memory_space<vmem>>, vector<4x16x48xf32>
    %3 = vector.shape_cast %2 : vector<4x16x48xf32> to vector<64x48xf32>
    %4 = tpu.iota {dimensions = array<i32: 0>} : vector<32x64xi32>
    %5 = tpu.iota {dimensions = array<i32: 1>} : vector<32x64xi32>
    %false = arith.constant false
    %6 = vector.broadcast %false : i1 to vector<32x64xi1>
    %c0_i32 = arith.constant 0 : i32
    %7 = vector.broadcast %c0_i32 : i32 to vector<32x64xi32>
    %8 = arith.cmpi sge, %4, %7 : vector<32x64xi32>
    %c8_i32 = arith.constant 8 : i32
    %9 = vector.broadcast %c8_i32 : i32 to vector<32x64xi32>
    %10 = arith.cmpi slt, %4, %9 : vector<32x64xi32>
    %11 = arith.andi %8, %10 : vector<32x64xi1>
    %c0_i32_5 = arith.constant 0 : i32
    %12 = vector.broadcast %c0_i32_5 : i32 to vector<32x64xi32>
    %13 = arith.cmpi sge, %5, %12 : vector<32x64xi32>
    %14 = arith.andi %11, %13 : vector<32x64xi1>
    %c16_i32 = arith.constant 16 : i32
    %15 = vector.broadcast %c16_i32 : i32 to vector<32x64xi32>
    %16 = arith.cmpi slt, %5, %15 : vector<32x64xi32>
    %17 = arith.andi %14, %16 : vector<32x64xi1>
    %18 = arith.ori %6, %17 : vector<32x64xi1>
    %c8_i32_6 = arith.constant 8 : i32
    %19 = vector.broadcast %c8_i32_6 : i32 to vector<32x64xi32>
    %20 = arith.cmpi sge, %4, %19 : vector<32x64xi32>
    %c16_i32_7 = arith.constant 16 : i32
    %21 = vector.broadcast %c16_i32_7 : i32 to vector<32x64xi32>
    %22 = arith.cmpi slt, %4, %21 : vector<32x64xi32>
    %23 = arith.andi %20, %22 : vector<32x64xi1>
    %c16_i32_8 = arith.constant 16 : i32
    %24 = vector.broadcast %c16_i32_8 : i32 to vector<32x64xi32>
    %25 = arith.cmpi sge, %5, %24 : vector<32x64xi32>
    %26 = arith.andi %23, %25 : vector<32x64xi1>
    %c32_i32 = arith.constant 32 : i32
    %27 = vector.broadcast %c32_i32 : i32 to vector<32x64xi32>
    %28 = arith.cmpi slt, %5, %27 : vector<32x64xi32>
    %29 = arith.andi %26, %28 : vector<32x64xi1>
    %30 = arith.ori %18, %29 : vector<32x64xi1>
    %c16_i32_9 = arith.constant 16 : i32
    %31 = vector.broadcast %c16_i32_9 : i32 to vector<32x64xi32>
    %32 = arith.cmpi sge, %4, %31 : vector<32x64xi32>
    %c24_i32 = arith.constant 24 : i32
    %33 = vector.broadcast %c24_i32 : i32 to vector<32x64xi32>
    %34 = arith.cmpi slt, %4, %33 : vector<32x64xi32>
    %35 = arith.andi %32, %34 : vector<32x64xi1>
    %c32_i32_10 = arith.constant 32 : i32
    %36 = vector.broadcast %c32_i32_10 : i32 to vector<32x64xi32>
    %37 = arith.cmpi sge, %5, %36 : vector<32x64xi32>
    %38 = arith.andi %35, %37 : vector<32x64xi1>
    %c48_i32 = arith.constant 48 : i32
    %39 = vector.broadcast %c48_i32 : i32 to vector<32x64xi32>
    %40 = arith.cmpi slt, %5, %39 : vector<32x64xi32>
    %41 = arith.andi %38, %40 : vector<32x64xi1>
    %42 = arith.ori %30, %41 : vector<32x64xi1>
    %c24_i32_11 = arith.constant 24 : i32
    %43 = vector.broadcast %c24_i32_11 : i32 to vector<32x64xi32>
    %44 = arith.cmpi sge, %4, %43 : vector<32x64xi32>
    %c32_i32_12 = arith.constant 32 : i32
    %45 = vector.broadcast %c32_i32_12 : i32 to vector<32x64xi32>
    %46 = arith.cmpi slt, %4, %45 : vector<32x64xi32>
    %47 = arith.andi %44, %46 : vector<32x64xi1>
    %c48_i32_13 = arith.constant 48 : i32
    %48 = vector.broadcast %c48_i32_13 : i32 to vector<32x64xi32>
    %49 = arith.cmpi sge, %5, %48 : vector<32x64xi32>
    %50 = arith.andi %47, %49 : vector<32x64xi1>
    %c64_i32 = arith.constant 64 : i32
    %51 = vector.broadcast %c64_i32 : i32 to vector<32x64xi32>
    %52 = arith.cmpi slt, %5, %51 : vector<32x64xi32>
    %53 = arith.andi %50, %52 : vector<32x64xi1>
    %54 = arith.ori %42, %53 : vector<32x64xi1>
    %cst = arith.constant 0.000000e+00 : f32
    %cst_14 = arith.constant -1.000000e+30 : f32
    %55 = vector.broadcast %cst : f32 to vector<32x64xf32>
    %56 = vector.broadcast %cst_14 : f32 to vector<32x64xf32>
    %57 = arith.select %54, %55, %56 : vector<32x64xi1>, vector<32x64xf32>
    %58 = tpu.iota {dimensions = array<i32: 0>} : vector<32x32xi32>
    %59 = tpu.iota {dimensions = array<i32: 1>} : vector<32x32xi32>
    %false_15 = arith.constant false
    %60 = vector.broadcast %false_15 : i1 to vector<32x32xi1>
    %c0_i32_16 = arith.constant 0 : i32
    %61 = vector.broadcast %c0_i32_16 : i32 to vector<32x32xi32>
    %62 = arith.cmpi sge, %58, %61 : vector<32x32xi32>
    %c8_i32_17 = arith.constant 8 : i32
    %63 = vector.broadcast %c8_i32_17 : i32 to vector<32x32xi32>
    %64 = arith.cmpi slt, %58, %63 : vector<32x32xi32>
    %65 = arith.andi %62, %64 : vector<32x32xi1>
    %c0_i32_18 = arith.constant 0 : i32
    %66 = vector.broadcast %c0_i32_18 : i32 to vector<32x32xi32>
    %67 = arith.cmpi sge, %59, %66 : vector<32x32xi32>
    %68 = arith.andi %65, %67 : vector<32x32xi1>
    %c8_i32_19 = arith.constant 8 : i32
    %69 = vector.broadcast %c8_i32_19 : i32 to vector<32x32xi32>
    %70 = arith.cmpi slt, %59, %69 : vector<32x32xi32>
    %71 = arith.andi %68, %70 : vector<32x32xi1>
    %72 = arith.ori %60, %71 : vector<32x32xi1>
    %c8_i32_20 = arith.constant 8 : i32
    %73 = vector.broadcast %c8_i32_20 : i32 to vector<32x32xi32>
    %74 = arith.cmpi sge, %58, %73 : vector<32x32xi32>
    %c16_i32_21 = arith.constant 16 : i32
    %75 = vector.broadcast %c16_i32_21 : i32 to vector<32x32xi32>
    %76 = arith.cmpi slt, %58, %75 : vector<32x32xi32>
    %77 = arith.andi %74, %76 : vector<32x32xi1>
    %c8_i32_22 = arith.constant 8 : i32
    %78 = vector.broadcast %c8_i32_22 : i32 to vector<32x32xi32>
    %79 = arith.cmpi sge, %59, %78 : vector<32x32xi32>
    %80 = arith.andi %77, %79 : vector<32x32xi1>
    %c16_i32_23 = arith.constant 16 : i32
    %81 = vector.broadcast %c16_i32_23 : i32 to vector<32x32xi32>
    %82 = arith.cmpi slt, %59, %81 : vector<32x32xi32>
    %83 = arith.andi %80, %82 : vector<32x32xi1>
    %84 = arith.ori %72, %83 : vector<32x32xi1>
    %c16_i32_24 = arith.constant 16 : i32
    %85 = vector.broadcast %c16_i32_24 : i32 to vector<32x32xi32>
    %86 = arith.cmpi sge, %58, %85 : vector<32x32xi32>
    %c24_i32_25 = arith.constant 24 : i32
    %87 = vector.broadcast %c24_i32_25 : i32 to vector<32x32xi32>
    %88 = arith.cmpi slt, %58, %87 : vector<32x32xi32>
    %89 = arith.andi %86, %88 : vector<32x32xi1>
    %c16_i32_26 = arith.constant 16 : i32
    %90 = vector.broadcast %c16_i32_26 : i32 to vector<32x32xi32>
    %91 = arith.cmpi sge, %59, %90 : vector<32x32xi32>
    %92 = arith.andi %89, %91 : vector<32x32xi1>
    %c24_i32_27 = arith.constant 24 : i32
    %93 = vector.broadcast %c24_i32_27 : i32 to vector<32x32xi32>
    %94 = arith.cmpi slt, %59, %93 : vector<32x32xi32>
    %95 = arith.andi %92, %94 : vector<32x32xi1>
    %96 = arith.ori %84, %95 : vector<32x32xi1>
    %c24_i32_28 = arith.constant 24 : i32
    %97 = vector.broadcast %c24_i32_28 : i32 to vector<32x32xi32>
    %98 = arith.cmpi sge, %58, %97 : vector<32x32xi32>
    %c32_i32_29 = arith.constant 32 : i32
    %99 = vector.broadcast %c32_i32_29 : i32 to vector<32x32xi32>
    %100 = arith.cmpi slt, %58, %99 : vector<32x32xi32>
    %101 = arith.andi %98, %100 : vector<32x32xi1>
    %c24_i32_30 = arith.constant 24 : i32
    %102 = vector.broadcast %c24_i32_30 : i32 to vector<32x32xi32>
    %103 = arith.cmpi sge, %59, %102 : vector<32x32xi32>
    %104 = arith.andi %101, %103 : vector<32x32xi1>
    %c32_i32_31 = arith.constant 32 : i32
    %105 = vector.broadcast %c32_i32_31 : i32 to vector<32x32xi32>
    %106 = arith.cmpi slt, %59, %105 : vector<32x32xi32>
    %107 = arith.andi %104, %106 : vector<32x32xi1>
    %108 = arith.ori %96, %107 : vector<32x32xi1>
    %cst_32 = arith.constant 0.000000e+00 : f32
    %cst_33 = arith.constant -1.000000e+30 : f32
    %109 = vector.broadcast %cst_32 : f32 to vector<32x32xf32>
    %110 = vector.broadcast %cst_33 : f32 to vector<32x32xf32>
    %111 = arith.select %108, %109, %110 : vector<32x32xi1>, vector<32x32xf32>
    %c0_34 = arith.constant 0 : index
    %c0_35 = arith.constant 0 : index
    %112 = vector.load %arg3[%c0_34, %c0_35] : memref<32x32xf32, #tpu.memory_space<vmem>>, vector<32x32xf32>
    %cst_36 = arith.constant dense<0.000000e+00> : vector<32x32xf32>
    %113 = tpu.matmul %1, %112, %cst_36 {dimension_numbers = #tpu.dot_dimension_numbers<[1], [0], [0], [1], [0, 0, 1, 1], [], []>} : vector<32x32xf32>, vector<32x32xf32>, vector<32x32xf32> -> vector<32x32xf32>
    %c0_37 = arith.constant 0 : index
    %c0_38 = arith.constant 0 : index
    %114 = vector.load %arg4[%c0_37, %c0_38] : memref<1x32xf32, #tpu.memory_space<vmem>>, vector<1x32xf32>
    %115 = vector.broadcast %114 : vector<1x32xf32> to vector<32x32xf32>
    %116 = arith.addf %113, %115 : vector<32x32xf32>
    %c0_39 = arith.constant 0 : index
    %c0_40 = arith.constant 0 : index
    %117 = vector.load %arg5[%c0_39, %c0_40] : memref<48x32xf32, #tpu.memory_space<vmem>>, vector<48x32xf32>
    %cst_41 = arith.constant dense<0.000000e+00> : vector<64x32xf32>
    %118 = tpu.matmul %3, %117, %cst_41 {dimension_numbers = #tpu.dot_dimension_numbers<[1], [0], [0], [1], [0, 0, 1, 1], [], []>} : vector<64x48xf32>, vector<48x32xf32>, vector<64x32xf32> -> vector<64x32xf32>
    %c0_42 = arith.constant 0 : index
    %c0_43 = arith.constant 0 : index
    %119 = vector.load %arg6[%c0_42, %c0_43] : memref<1x32xf32, #tpu.memory_space<vmem>>, vector<1x32xf32>
    %120 = vector.broadcast %119 : vector<1x32xf32> to vector<64x32xf32>
    %121 = arith.addf %118, %120 : vector<64x32xf32>
    %c0_44 = arith.constant 0 : index
    %c0_45 = arith.constant 0 : index
    %122 = vector.load %arg7[%c0_44, %c0_45] : memref<48x32xf32, #tpu.memory_space<vmem>>, vector<48x32xf32>
    %cst_46 = arith.constant dense<0.000000e+00> : vector<64x32xf32>
    %123 = tpu.matmul %3, %122, %cst_46 {dimension_numbers = #tpu.dot_dimension_numbers<[1], [0], [0], [1], [0, 0, 1, 1], [], []>} : vector<64x48xf32>, vector<48x32xf32>, vector<64x32xf32> -> vector<64x32xf32>
    %c0_47 = arith.constant 0 : index
    %c0_48 = arith.constant 0 : index
    %124 = vector.load %arg8[%c0_47, %c0_48] : memref<1x32xf32, #tpu.memory_space<vmem>>, vector<1x32xf32>
    %125 = vector.broadcast %124 : vector<1x32xf32> to vector<64x32xf32>
    %126 = arith.addf %123, %125 : vector<64x32xf32>
    %127 = vector.extract_strided_slice %116 {offsets = [0, 0], sizes = [32, 8], strides = [1, 1]} : vector<32x32xf32> to vector<32x8xf32>
    %128 = vector.extract_strided_slice %121 {offsets = [0, 0], sizes = [64, 8], strides = [1, 1]} : vector<64x32xf32> to vector<64x8xf32>
    %cst_49 = arith.constant dense<0.000000e+00> : vector<32x64xf32>
    %129 = tpu.matmul %127, %128, %cst_49 {dimension_numbers = #tpu.dot_dimension_numbers<[1], [1], [0], [0], [0, 0, 1, 0], [], []>} : vector<32x8xf32>, vector<64x8xf32>, vector<32x64xf32> -> vector<32x64xf32>
    %cst_50 = arith.constant 0.353553385 : f32
    %130 = vector.broadcast %cst_50 : f32 to vector<32x64xf32>
    %131 = arith.mulf %129, %130 : vector<32x64xf32>
    %132 = arith.addf %131, %57 : vector<32x64xf32>
    %cst_51 = arith.constant dense<0xFF800000> : vector<32xf32>
    %133 = vector.multi_reduction <maximumf>, %132, %cst_51 [1] : vector<32x64xf32> to vector<32xf32>
    %134 = vector.shape_cast %133 : vector<32xf32> to vector<32x1xf32>
    %135 = vector.broadcast %134 : vector<32x1xf32> to vector<32x64xf32>
    %136 = arith.subf %132, %135 : vector<32x64xf32>
    %137 = math.exp %136 : vector<32x64xf32>
    %cst_52 = arith.constant dense<0.000000e+00> : vector<32xf32>
    %138 = vector.multi_reduction <add>, %137, %cst_52 [1] : vector<32x64xf32> to vector<32xf32>
    %139 = vector.shape_cast %138 : vector<32xf32> to vector<32x1xf32>
    %140 = tpu.reciprocal %139 : vector<32x1xf32> -> vector<32x1xf32>
    %141 = vector.broadcast %140 : vector<32x1xf32> to vector<32x64xf32>
    %142 = arith.mulf %137, %141 : vector<32x64xf32>
    %143 = vector.extract_strided_slice %126 {offsets = [0, 0], sizes = [64, 8], strides = [1, 1]} : vector<64x32xf32> to vector<64x8xf32>
    %cst_53 = arith.constant dense<0.000000e+00> : vector<32x8xf32>
    %144 = tpu.matmul %142, %143, %cst_53 {dimension_numbers = #tpu.dot_dimension_numbers<[1], [0], [0], [1], [0, 0, 1, 1], [], []>} : vector<32x64xf32>, vector<64x8xf32>, vector<32x8xf32> -> vector<32x8xf32>
    %c0_54 = arith.constant 0 : index
    %c0_55 = arith.constant 0 : index
    %145 = vector.load %arg30[%c0_54, %c0_55] : memref<32x32xf32, #tpu.memory_space<vmem>>, vector<32x8xf32>
    tpu.vector_store %arg30[%c0_54, %c0_55], %144 {strides = array<i32>} : memref<32x32xf32, #tpu.memory_space<vmem>>, vector<32x8xf32>,
    %146 = vector.extract_strided_slice %116 {offsets = [0, 8], sizes = [32, 8], strides = [1, 1]} : vector<32x32xf32> to vector<32x8xf32>
    %147 = vector.extract_strided_slice %121 {offsets = [0, 8], sizes = [64, 8], strides = [1, 1]} : vector<64x32xf32> to vector<64x8xf32>
    %cst_56 = arith.constant dense<0.000000e+00> : vector<32x64xf32>
    %148 = tpu.matmul %146, %147, %cst_56 {dimension_numbers = #tpu.dot_dimension_numbers<[1], [1], [0], [0], [0, 0, 1, 0], [], []>} : vector<32x8xf32>, vector<64x8xf32>, vector<32x64xf32> -> vector<32x64xf32>
    %cst_57 = arith.constant 0.353553385 : f32
    %149 = vector.broadcast %cst_57 : f32 to vector<32x64xf32>
    %150 = arith.mulf %148, %149 : vector<32x64xf32>
    %151 = arith.addf %150, %57 : vector<32x64xf32>
    %cst_58 = arith.constant dense<0xFF800000> : vector<32xf32>
    %152 = vector.multi_reduction <maximumf>, %151, %cst_58 [1] : vector<32x64xf32> to vector<32xf32>
    %153 = vector.shape_cast %152 : vector<32xf32> to vector<32x1xf32>
    %154 = vector.broadcast %153 : vector<32x1xf32> to vector<32x64xf32>
    %155 = arith.subf %151, %154 : vector<32x64xf32>
    %156 = math.exp %155 : vector<32x64xf32>
    %cst_59 = arith.constant dense<0.000000e+00> : vector<32xf32>
    %157 = vector.multi_reduction <add>, %156, %cst_59 [1] : vector<32x64xf32> to vector<32xf32>
    %158 = vector.shape_cast %157 : vector<32xf32> to vector<32x1xf32>
    %159 = tpu.reciprocal %158 : vector<32x1xf32> -> vector<32x1xf32>
    %160 = vector.broadcast %159 : vector<32x1xf32> to vector<32x64xf32>
    %161 = arith.mulf %156, %160 : vector<32x64xf32>
    %162 = vector.extract_strided_slice %126 {offsets = [0, 8], sizes = [64, 8], strides = [1, 1]} : vector<64x32xf32> to vector<64x8xf32>
    %cst_60 = arith.constant dense<0.000000e+00> : vector<32x8xf32>
    %163 = tpu.matmul %161, %162, %cst_60 {dimension_numbers = #tpu.dot_dimension_numbers<[1], [0], [0], [1], [0, 0, 1, 1], [], []>} : vector<32x64xf32>, vector<64x8xf32>, vector<32x8xf32> -> vector<32x8xf32>
    %c0_61 = arith.constant 0 : index
    %c8 = arith.constant 8 : index
    %164 = vector.load %arg30[%c0_61, %c8] : memref<32x32xf32, #tpu.memory_space<vmem>>, vector<32x8xf32>
    tpu.vector_store %arg30[%c0_61, %c8], %163 {strides = array<i32>} : memref<32x32xf32, #tpu.memory_space<vmem>>, vector<32x8xf32>,
    %165 = vector.extract_strided_slice %116 {offsets = [0, 16], sizes = [32, 8], strides = [1, 1]} : vector<32x32xf32> to vector<32x8xf32>
    %166 = vector.extract_strided_slice %121 {offsets = [0, 16], sizes = [64, 8], strides = [1, 1]} : vector<64x32xf32> to vector<64x8xf32>
    %cst_62 = arith.constant dense<0.000000e+00> : vector<32x64xf32>
    %167 = tpu.matmul %165, %166, %cst_62 {dimension_numbers = #tpu.dot_dimension_numbers<[1], [1], [0], [0], [0, 0, 1, 0], [], []>} : vector<32x8xf32>, vector<64x8xf32>, vector<32x64xf32> -> vector<32x64xf32>
    %cst_63 = arith.constant 0.353553385 : f32
    %168 = vector.broadcast %cst_63 : f32 to vector<32x64xf32>
    %169 = arith.mulf %167, %168 : vector<32x64xf32>
    %170 = arith.addf %169, %57 : vector<32x64xf32>
    %cst_64 = arith.constant dense<0xFF800000> : vector<32xf32>
    %171 = vector.multi_reduction <maximumf>, %170, %cst_64 [1] : vector<32x64xf32> to vector<32xf32>
    %172 = vector.shape_cast %171 : vector<32xf32> to vector<32x1xf32>
    %173 = vector.broadcast %172 : vector<32x1xf32> to vector<32x64xf32>
    %174 = arith.subf %170, %173 : vector<32x64xf32>
    %175 = math.exp %174 : vector<32x64xf32>
    %cst_65 = arith.constant dense<0.000000e+00> : vector<32xf32>
    %176 = vector.multi_reduction <add>, %175, %cst_65 [1] : vector<32x64xf32> to vector<32xf32>
    %177 = vector.shape_cast %176 : vector<32xf32> to vector<32x1xf32>
    %178 = tpu.reciprocal %177 : vector<32x1xf32> -> vector<32x1xf32>
    %179 = vector.broadcast %178 : vector<32x1xf32> to vector<32x64xf32>
    %180 = arith.mulf %175, %179 : vector<32x64xf32>
    %181 = vector.extract_strided_slice %126 {offsets = [0, 16], sizes = [64, 8], strides = [1, 1]} : vector<64x32xf32> to vector<64x8xf32>
    %cst_66 = arith.constant dense<0.000000e+00> : vector<32x8xf32>
    %182 = tpu.matmul %180, %181, %cst_66 {dimension_numbers = #tpu.dot_dimension_numbers<[1], [0], [0], [1], [0, 0, 1, 1], [], []>} : vector<32x64xf32>, vector<64x8xf32>, vector<32x8xf32> -> vector<32x8xf32>
    %c0_67 = arith.constant 0 : index
    %c16 = arith.constant 16 : index
    %183 = vector.load %arg30[%c0_67, %c16] : memref<32x32xf32, #tpu.memory_space<vmem>>, vector<32x8xf32>
    tpu.vector_store %arg30[%c0_67, %c16], %182 {strides = array<i32>} : memref<32x32xf32, #tpu.memory_space<vmem>>, vector<32x8xf32>,
    %184 = vector.extract_strided_slice %116 {offsets = [0, 24], sizes = [32, 8], strides = [1, 1]} : vector<32x32xf32> to vector<32x8xf32>
    %185 = vector.extract_strided_slice %121 {offsets = [0, 24], sizes = [64, 8], strides = [1, 1]} : vector<64x32xf32> to vector<64x8xf32>
    %cst_68 = arith.constant dense<0.000000e+00> : vector<32x64xf32>
    %186 = tpu.matmul %184, %185, %cst_68 {dimension_numbers = #tpu.dot_dimension_numbers<[1], [1], [0], [0], [0, 0, 1, 0], [], []>} : vector<32x8xf32>, vector<64x8xf32>, vector<32x64xf32> -> vector<32x64xf32>
    %cst_69 = arith.constant 0.353553385 : f32
    %187 = vector.broadcast %cst_69 : f32 to vector<32x64xf32>
    %188 = arith.mulf %186, %187 : vector<32x64xf32>
    %189 = arith.addf %188, %57 : vector<32x64xf32>
    %cst_70 = arith.constant dense<0xFF800000> : vector<32xf32>
    %190 = vector.multi_reduction <maximumf>, %189, %cst_70 [1] : vector<32x64xf32> to vector<32xf32>
    %191 = vector.shape_cast %190 : vector<32xf32> to vector<32x1xf32>
    %192 = vector.broadcast %191 : vector<32x1xf32> to vector<32x64xf32>
    %193 = arith.subf %189, %192 : vector<32x64xf32>
    %194 = math.exp %193 : vector<32x64xf32>
    %cst_71 = arith.constant dense<0.000000e+00> : vector<32xf32>
    %195 = vector.multi_reduction <add>, %194, %cst_71 [1] : vector<32x64xf32> to vector<32xf32>
    %196 = vector.shape_cast %195 : vector<32xf32> to vector<32x1xf32>
    %197 = tpu.reciprocal %196 : vector<32x1xf32> -> vector<32x1xf32>
    %198 = vector.broadcast %197 : vector<32x1xf32> to vector<32x64xf32>
    %199 = arith.mulf %194, %198 : vector<32x64xf32>
    %200 = vector.extract_strided_slice %126 {offsets = [0, 24], sizes = [64, 8], strides = [1, 1]} : vector<64x32xf32> to vector<64x8xf32>
    %cst_72 = arith.constant dense<0.000000e+00> : vector<32x8xf32>
    %201 = tpu.matmul %199, %200, %cst_72 {dimension_numbers = #tpu.dot_dimension_numbers<[1], [0], [0], [1], [0, 0, 1, 1], [], []>} : vector<32x64xf32>, vector<64x8xf32>, vector<32x8xf32> -> vector<32x8xf32>
    %c0_73 = arith.constant 0 : index
    %c24 = arith.constant 24 : index
    %202 = vector.load %arg30[%c0_73, %c24] : memref<32x32xf32, #tpu.memory_space<vmem>>, vector<32x8xf32>
    tpu.vector_store %arg30[%c0_73, %c24], %201 {strides = array<i32>} : memref<32x32xf32, #tpu.memory_space<vmem>>, vector<32x8xf32>,
    %c0_74 = arith.constant 0 : index
    %c0_75 = arith.constant 0 : index
    %203 = vector.load %arg30[%c0_74, %c0_75] : memref<32x32xf32, #tpu.memory_space<vmem>>, vector<32x32xf32>
    %c0_76 = arith.constant 0 : index
    %c0_77 = arith.constant 0 : index
    %204 = vector.load %arg9[%c0_76, %c0_77] : memref<32x32xf32, #tpu.memory_space<vmem>>, vector<32x32xf32>
    %cst_78 = arith.constant dense<0.000000e+00> : vector<32x32xf32>
    %205 = tpu.matmul %203, %204, %cst_78 {dimension_numbers = #tpu.dot_dimension_numbers<[1], [0], [0], [1], [0, 0, 1, 1], [], []>} : vector<32x32xf32>, vector<32x32xf32>, vector<32x32xf32> -> vector<32x32xf32>
    %c0_79 = arith.constant 0 : index
    %c0_80 = arith.constant 0 : index
    %206 = vector.load %arg10[%c0_79, %c0_80] : memref<1x32xf32, #tpu.memory_space<vmem>>, vector<1x32xf32>
    %207 = vector.broadcast %206 : vector<1x32xf32> to vector<32x32xf32>
    %208 = arith.addf %205, %207 : vector<32x32xf32>
    %209 = arith.addf %1, %208 : vector<32x32xf32>
    %c0_81 = arith.constant 0 : index
    %c0_82 = arith.constant 0 : index
    %210 = vector.load %arg19[%c0_81, %c0_82] : memref<1x32xf32, #tpu.memory_space<vmem>>, vector<1x32xf32>
    %c0_83 = arith.constant 0 : index
    %c0_84 = arith.constant 0 : index
    %211 = vector.load %arg20[%c0_83, %c0_84] : memref<1x32xf32, #tpu.memory_space<vmem>>, vector<1x32xf32>
    %cst_85 = arith.constant dense<0.000000e+00> : vector<32xf32>
    %212 = vector.multi_reduction <add>, %209, %cst_85 [1] : vector<32x32xf32> to vector<32xf32>
    %213 = vector.shape_cast %212 : vector<32xf32> to vector<32x1xf32>
    %cst_86 = arith.constant 3.200000e+01 : f32
    %214 = vector.broadcast %cst_86 : f32 to vector<32x1xf32>
    %215 = arith.divf %213, %214 : vector<32x1xf32>
    %216 = vector.broadcast %215 : vector<32x1xf32> to vector<32x32xf32>
    %217 = arith.subf %209, %216 : vector<32x32xf32>
    %218 = arith.mulf %217, %217 : vector<32x32xf32>
    %cst_87 = arith.constant dense<0.000000e+00> : vector<32xf32>
    %219 = vector.multi_reduction <add>, %218, %cst_87 [1] : vector<32x32xf32> to vector<32xf32>
    %220 = vector.shape_cast %219 : vector<32xf32> to vector<32x1xf32>
    %cst_88 = arith.constant 3.200000e+01 : f32
    %221 = vector.broadcast %cst_88 : f32 to vector<32x1xf32>
    %222 = arith.divf %220, %221 : vector<32x1xf32>
    %223 = vector.broadcast %215 : vector<32x1xf32> to vector<32x32xf32>
    %224 = arith.subf %209, %223 : vector<32x32xf32>
    %cst_89 = arith.constant 9.99999974E-6 : f32
    %225 = vector.broadcast %cst_89 : f32 to vector<32x1xf32>
    %226 = arith.addf %222, %225 : vector<32x1xf32>
    %227 = math.rsqrt %226 : vector<32x1xf32>
    %228 = vector.broadcast %227 : vector<32x1xf32> to vector<32x32xf32>
    %229 = arith.mulf %224, %228 : vector<32x32xf32>
    %230 = vector.broadcast %210 : vector<1x32xf32> to vector<32x32xf32>
    %231 = arith.mulf %229, %230 : vector<32x32xf32>
    %232 = vector.broadcast %211 : vector<1x32xf32> to vector<32x32xf32>
    %233 = arith.addf %231, %232 : vector<32x32xf32>
    %c0_90 = arith.constant 0 : index
    %c0_91 = arith.constant 0 : index
    %234 = vector.load %arg11[%c0_90, %c0_91] : memref<32x32xf32, #tpu.memory_space<vmem>>, vector<32x32xf32>
    %cst_92 = arith.constant dense<0.000000e+00> : vector<32x32xf32>
    %235 = tpu.matmul %233, %234, %cst_92 {dimension_numbers = #tpu.dot_dimension_numbers<[1], [0], [0], [1], [0, 0, 1, 1], [], []>} : vector<32x32xf32>, vector<32x32xf32>, vector<32x32xf32> -> vector<32x32xf32>
    %c0_93 = arith.constant 0 : index
    %c0_94 = arith.constant 0 : index
    %236 = vector.load %arg12[%c0_93, %c0_94] : memref<1x32xf32, #tpu.memory_space<vmem>>, vector<1x32xf32>
    %237 = vector.broadcast %236 : vector<1x32xf32> to vector<32x32xf32>
    %238 = arith.addf %235, %237 : vector<32x32xf32>
    %c0_95 = arith.constant 0 : index
    %c0_96 = arith.constant 0 : index
    %239 = vector.load %arg13[%c0_95, %c0_96] : memref<32x32xf32, #tpu.memory_space<vmem>>, vector<32x32xf32>
    %cst_97 = arith.constant dense<0.000000e+00> : vector<32x32xf32>
    %240 = tpu.matmul %233, %239, %cst_97 {dimension_numbers = #tpu.dot_dimension_numbers<[1], [0], [0], [1], [0, 0, 1, 1], [], []>} : vector<32x32xf32>, vector<32x32xf32>, vector<32x32xf32> -> vector<32x32xf32>
    %c0_98 = arith.constant 0 : index
    %c0_99 = arith.constant 0 : index
    %241 = vector.load %arg14[%c0_98, %c0_99] : memref<1x32xf32, #tpu.memory_space<vmem>>, vector<1x32xf32>
    %242 = vector.broadcast %241 : vector<1x32xf32> to vector<32x32xf32>
    %243 = arith.addf %240, %242 : vector<32x32xf32>
    %c0_100 = arith.constant 0 : index
    %c0_101 = arith.constant 0 : index
    %244 = vector.load %arg15[%c0_100, %c0_101] : memref<32x32xf32, #tpu.memory_space<vmem>>, vector<32x32xf32>
    %cst_102 = arith.constant dense<0.000000e+00> : vector<32x32xf32>
    %245 = tpu.matmul %233, %244, %cst_102 {dimension_numbers = #tpu.dot_dimension_numbers<[1], [0], [0], [1], [0, 0, 1, 1], [], []>} : vector<32x32xf32>, vector<32x32xf32>, vector<32x32xf32> -> vector<32x32xf32>
    %c0_103 = arith.constant 0 : index
    %c0_104 = arith.constant 0 : index
    %246 = vector.load %arg16[%c0_103, %c0_104] : memref<1x32xf32, #tpu.memory_space<vmem>>, vector<1x32xf32>
    %247 = vector.broadcast %246 : vector<1x32xf32> to vector<32x32xf32>
    %248 = arith.addf %245, %247 : vector<32x32xf32>
    %249 = vector.extract_strided_slice %238 {offsets = [0, 0], sizes = [32, 8], strides = [1, 1]} : vector<32x32xf32> to vector<32x8xf32>
    %250 = vector.extract_strided_slice %243 {offsets = [0, 0], sizes = [32, 8], strides = [1, 1]} : vector<32x32xf32> to vector<32x8xf32>
    %cst_105 = arith.constant dense<0.000000e+00> : vector<32x32xf32>
    %251 = tpu.matmul %249, %250, %cst_105 {dimension_numbers = #tpu.dot_dimension_numbers<[1], [1], [0], [0], [0, 0, 1, 0], [], []>} : vector<32x8xf32>, vector<32x8xf32>, vector<32x32xf32> -> vector<32x32xf32>
    %cst_106 = arith.constant 0.353553385 : f32
    %252 = vector.broadcast %cst_106 : f32 to vector<32x32xf32>
    %253 = arith.mulf %251, %252 : vector<32x32xf32>
    %254 = arith.addf %253, %111 : vector<32x32xf32>
    %cst_107 = arith.constant dense<0xFF800000> : vector<32xf32>
    %255 = vector.multi_reduction <maximumf>, %254, %cst_107 [1] : vector<32x32xf32> to vector<32xf32>
    %256 = vector.shape_cast %255 : vector<32xf32> to vector<32x1xf32>
    %257 = vector.broadcast %256 : vector<32x1xf32> to vector<32x32xf32>
    %258 = arith.subf %254, %257 : vector<32x32xf32>
    %259 = math.exp %258 : vector<32x32xf32>
    %cst_108 = arith.constant dense<0.000000e+00> : vector<32xf32>
    %260 = vector.multi_reduction <add>, %259, %cst_108 [1] : vector<32x32xf32> to vector<32xf32>
    %261 = vector.shape_cast %260 : vector<32xf32> to vector<32x1xf32>
    %262 = tpu.reciprocal %261 : vector<32x1xf32> -> vector<32x1xf32>
    %263 = vector.broadcast %262 : vector<32x1xf32> to vector<32x32xf32>
    %264 = arith.mulf %259, %263 : vector<32x32xf32>
    %265 = vector.extract_strided_slice %248 {offsets = [0, 0], sizes = [32, 8], strides = [1, 1]} : vector<32x32xf32> to vector<32x8xf32>
    %cst_109 = arith.constant dense<0.000000e+00> : vector<32x8xf32>
    %266 = tpu.matmul %264, %265, %cst_109 {dimension_numbers = #tpu.dot_dimension_numbers<[1], [0], [0], [1], [0, 0, 1, 1], [], []>} : vector<32x32xf32>, vector<32x8xf32>, vector<32x8xf32> -> vector<32x8xf32>
    %c0_110 = arith.constant 0 : index
    %c0_111 = arith.constant 0 : index
    %267 = vector.load %arg30[%c0_110, %c0_111] : memref<32x32xf32, #tpu.memory_space<vmem>>, vector<32x8xf32>
    tpu.vector_store %arg30[%c0_110, %c0_111], %266 {strides = array<i32>} : memref<32x32xf32, #tpu.memory_space<vmem>>, vector<32x8xf32>,
    %268 = vector.extract_strided_slice %238 {offsets = [0, 8], sizes = [32, 8], strides = [1, 1]} : vector<32x32xf32> to vector<32x8xf32>
    %269 = vector.extract_strided_slice %243 {offsets = [0, 8], sizes = [32, 8], strides = [1, 1]} : vector<32x32xf32> to vector<32x8xf32>
    %cst_112 = arith.constant dense<0.000000e+00> : vector<32x32xf32>
    %270 = tpu.matmul %268, %269, %cst_112 {dimension_numbers = #tpu.dot_dimension_numbers<[1], [1], [0], [0], [0, 0, 1, 0], [], []>} : vector<32x8xf32>, vector<32x8xf32>, vector<32x32xf32> -> vector<32x32xf32>
    %cst_113 = arith.constant 0.353553385 : f32
    %271 = vector.broadcast %cst_113 : f32 to vector<32x32xf32>
    %272 = arith.mulf %270, %271 : vector<32x32xf32>
    %273 = arith.addf %272, %111 : vector<32x32xf32>
    %cst_114 = arith.constant dense<0xFF800000> : vector<32xf32>
    %274 = vector.multi_reduction <maximumf>, %273, %cst_114 [1] : vector<32x32xf32> to vector<32xf32>
    %275 = vector.shape_cast %274 : vector<32xf32> to vector<32x1xf32>
    %276 = vector.broadcast %275 : vector<32x1xf32> to vector<32x32xf32>
    %277 = arith.subf %273, %276 : vector<32x32xf32>
    %278 = math.exp %277 : vector<32x32xf32>
    %cst_115 = arith.constant dense<0.000000e+00> : vector<32xf32>
    %279 = vector.multi_reduction <add>, %278, %cst_115 [1] : vector<32x32xf32> to vector<32xf32>
    %280 = vector.shape_cast %279 : vector<32xf32> to vector<32x1xf32>
    %281 = tpu.reciprocal %280 : vector<32x1xf32> -> vector<32x1xf32>
    %282 = vector.broadcast %281 : vector<32x1xf32> to vector<32x32xf32>
    %283 = arith.mulf %278, %282 : vector<32x32xf32>
    %284 = vector.extract_strided_slice %248 {offsets = [0, 8], sizes = [32, 8], strides = [1, 1]} : vector<32x32xf32> to vector<32x8xf32>
    %cst_116 = arith.constant dense<0.000000e+00> : vector<32x8xf32>
    %285 = tpu.matmul %283, %284, %cst_116 {dimension_numbers = #tpu.dot_dimension_numbers<[1], [0], [0], [1], [0, 0, 1, 1], [], []>} : vector<32x32xf32>, vector<32x8xf32>, vector<32x8xf32> -> vector<32x8xf32>
    %c0_117 = arith.constant 0 : index
    %c8_118 = arith.constant 8 : index
    %286 = vector.load %arg30[%c0_117, %c8_118] : memref<32x32xf32, #tpu.memory_space<vmem>>, vector<32x8xf32>
    tpu.vector_store %arg30[%c0_117, %c8_118], %285 {strides = array<i32>} : memref<32x32xf32, #tpu.memory_space<vmem>>, vector<32x8xf32>,
    %287 = vector.extract_strided_slice %238 {offsets = [0, 16], sizes = [32, 8], strides = [1, 1]} : vector<32x32xf32> to vector<32x8xf32>
    %288 = vector.extract_strided_slice %243 {offsets = [0, 16], sizes = [32, 8], strides = [1, 1]} : vector<32x32xf32> to vector<32x8xf32>
    %cst_119 = arith.constant dense<0.000000e+00> : vector<32x32xf32>
    %289 = tpu.matmul %287, %288, %cst_119 {dimension_numbers = #tpu.dot_dimension_numbers<[1], [1], [0], [0], [0, 0, 1, 0], [], []>} : vector<32x8xf32>, vector<32x8xf32>, vector<32x32xf32> -> vector<32x32xf32>
    %cst_120 = arith.constant 0.353553385 : f32
    %290 = vector.broadcast %cst_120 : f32 to vector<32x32xf32>
    %291 = arith.mulf %289, %290 : vector<32x32xf32>
    %292 = arith.addf %291, %111 : vector<32x32xf32>
    %cst_121 = arith.constant dense<0xFF800000> : vector<32xf32>
    %293 = vector.multi_reduction <maximumf>, %292, %cst_121 [1] : vector<32x32xf32> to vector<32xf32>
    %294 = vector.shape_cast %293 : vector<32xf32> to vector<32x1xf32>
    %295 = vector.broadcast %294 : vector<32x1xf32> to vector<32x32xf32>
    %296 = arith.subf %292, %295 : vector<32x32xf32>
    %297 = math.exp %296 : vector<32x32xf32>
    %cst_122 = arith.constant dense<0.000000e+00> : vector<32xf32>
    %298 = vector.multi_reduction <add>, %297, %cst_122 [1] : vector<32x32xf32> to vector<32xf32>
    %299 = vector.shape_cast %298 : vector<32xf32> to vector<32x1xf32>
    %300 = tpu.reciprocal %299 : vector<32x1xf32> -> vector<32x1xf32>
    %301 = vector.broadcast %300 : vector<32x1xf32> to vector<32x32xf32>
    %302 = arith.mulf %297, %301 : vector<32x32xf32>
    %303 = vector.extract_strided_slice %248 {offsets = [0, 16], sizes = [32, 8], strides = [1, 1]} : vector<32x32xf32> to vector<32x8xf32>
    %cst_123 = arith.constant dense<0.000000e+00> : vector<32x8xf32>
    %304 = tpu.matmul %302, %303, %cst_123 {dimension_numbers = #tpu.dot_dimension_numbers<[1], [0], [0], [1], [0, 0, 1, 1], [], []>} : vector<32x32xf32>, vector<32x8xf32>, vector<32x8xf32> -> vector<32x8xf32>
    %c0_124 = arith.constant 0 : index
    %c16_125 = arith.constant 16 : index
    %305 = vector.load %arg30[%c0_124, %c16_125] : memref<32x32xf32, #tpu.memory_space<vmem>>, vector<32x8xf32>
    tpu.vector_store %arg30[%c0_124, %c16_125], %304 {strides = array<i32>} : memref<32x32xf32, #tpu.memory_space<vmem>>, vector<32x8xf32>,
    %306 = vector.extract_strided_slice %238 {offsets = [0, 24], sizes = [32, 8], strides = [1, 1]} : vector<32x32xf32> to vector<32x8xf32>
    %307 = vector.extract_strided_slice %243 {offsets = [0, 24], sizes = [32, 8], strides = [1, 1]} : vector<32x32xf32> to vector<32x8xf32>
    %cst_126 = arith.constant dense<0.000000e+00> : vector<32x32xf32>
    %308 = tpu.matmul %306, %307, %cst_126 {dimension_numbers = #tpu.dot_dimension_numbers<[1], [1], [0], [0], [0, 0, 1, 0], [], []>} : vector<32x8xf32>, vector<32x8xf32>, vector<32x32xf32> -> vector<32x32xf32>
    %cst_127 = arith.constant 0.353553385 : f32
    %309 = vector.broadcast %cst_127 : f32 to vector<32x32xf32>
    %310 = arith.mulf %308, %309 : vector<32x32xf32>
    %311 = arith.addf %310, %111 : vector<32x32xf32>
    %cst_128 = arith.constant dense<0xFF800000> : vector<32xf32>
    %312 = vector.multi_reduction <maximumf>, %311, %cst_128 [1] : vector<32x32xf32> to vector<32xf32>
    %313 = vector.shape_cast %312 : vector<32xf32> to vector<32x1xf32>
    %314 = vector.broadcast %313 : vector<32x1xf32> to vector<32x32xf32>
    %315 = arith.subf %311, %314 : vector<32x32xf32>
    %316 = math.exp %315 : vector<32x32xf32>
    %cst_129 = arith.constant dense<0.000000e+00> : vector<32xf32>
    %317 = vector.multi_reduction <add>, %316, %cst_129 [1] : vector<32x32xf32> to vector<32xf32>
    %318 = vector.shape_cast %317 : vector<32xf32> to vector<32x1xf32>
    %319 = tpu.reciprocal %318 : vector<32x1xf32> -> vector<32x1xf32>
    %320 = vector.broadcast %319 : vector<32x1xf32> to vector<32x32xf32>
    %321 = arith.mulf %316, %320 : vector<32x32xf32>
    %322 = vector.extract_strided_slice %248 {offsets = [0, 24], sizes = [32, 8], strides = [1, 1]} : vector<32x32xf32> to vector<32x8xf32>
    %cst_130 = arith.constant dense<0.000000e+00> : vector<32x8xf32>
    %323 = tpu.matmul %321, %322, %cst_130 {dimension_numbers = #tpu.dot_dimension_numbers<[1], [0], [0], [1], [0, 0, 1, 1], [], []>} : vector<32x32xf32>, vector<32x8xf32>, vector<32x8xf32> -> vector<32x8xf32>
    %c0_131 = arith.constant 0 : index
    %c24_132 = arith.constant 24 : index
    %324 = vector.load %arg30[%c0_131, %c24_132] : memref<32x32xf32, #tpu.memory_space<vmem>>, vector<32x8xf32>
    tpu.vector_store %arg30[%c0_131, %c24_132], %323 {strides = array<i32>} : memref<32x32xf32, #tpu.memory_space<vmem>>, vector<32x8xf32>,
    %c0_133 = arith.constant 0 : index
    %c0_134 = arith.constant 0 : index
    %325 = vector.load %arg30[%c0_133, %c0_134] : memref<32x32xf32, #tpu.memory_space<vmem>>, vector<32x32xf32>
    %c0_135 = arith.constant 0 : index
    %c0_136 = arith.constant 0 : index
    %326 = vector.load %arg17[%c0_135, %c0_136] : memref<32x32xf32, #tpu.memory_space<vmem>>, vector<32x32xf32>
    %cst_137 = arith.constant dense<0.000000e+00> : vector<32x32xf32>
    %327 = tpu.matmul %325, %326, %cst_137 {dimension_numbers = #tpu.dot_dimension_numbers<[1], [0], [0], [1], [0, 0, 1, 1], [], []>} : vector<32x32xf32>, vector<32x32xf32>, vector<32x32xf32> -> vector<32x32xf32>
    %c0_138 = arith.constant 0 : index
    %c0_139 = arith.constant 0 : index
    %328 = vector.load %arg18[%c0_138, %c0_139] : memref<1x32xf32, #tpu.memory_space<vmem>>, vector<1x32xf32>
    %329 = vector.broadcast %328 : vector<1x32xf32> to vector<32x32xf32>
    %330 = arith.addf %327, %329 : vector<32x32xf32>
    %331 = arith.addf %233, %330 : vector<32x32xf32>
    %c0_140 = arith.constant 0 : index
    %c0_141 = arith.constant 0 : index
    %332 = vector.load %arg21[%c0_140, %c0_141] : memref<1x32xf32, #tpu.memory_space<vmem>>, vector<1x32xf32>
    %c0_142 = arith.constant 0 : index
    %c0_143 = arith.constant 0 : index
    %333 = vector.load %arg22[%c0_142, %c0_143] : memref<1x32xf32, #tpu.memory_space<vmem>>, vector<1x32xf32>
    %cst_144 = arith.constant dense<0.000000e+00> : vector<32xf32>
    %334 = vector.multi_reduction <add>, %331, %cst_144 [1] : vector<32x32xf32> to vector<32xf32>
    %335 = vector.shape_cast %334 : vector<32xf32> to vector<32x1xf32>
    %cst_145 = arith.constant 3.200000e+01 : f32
    %336 = vector.broadcast %cst_145 : f32 to vector<32x1xf32>
    %337 = arith.divf %335, %336 : vector<32x1xf32>
    %338 = vector.broadcast %337 : vector<32x1xf32> to vector<32x32xf32>
    %339 = arith.subf %331, %338 : vector<32x32xf32>
    %340 = arith.mulf %339, %339 : vector<32x32xf32>
    %cst_146 = arith.constant dense<0.000000e+00> : vector<32xf32>
    %341 = vector.multi_reduction <add>, %340, %cst_146 [1] : vector<32x32xf32> to vector<32xf32>
    %342 = vector.shape_cast %341 : vector<32xf32> to vector<32x1xf32>
    %cst_147 = arith.constant 3.200000e+01 : f32
    %343 = vector.broadcast %cst_147 : f32 to vector<32x1xf32>
    %344 = arith.divf %342, %343 : vector<32x1xf32>
    %345 = vector.broadcast %337 : vector<32x1xf32> to vector<32x32xf32>
    %346 = arith.subf %331, %345 : vector<32x32xf32>
    %cst_148 = arith.constant 9.99999974E-6 : f32
    %347 = vector.broadcast %cst_148 : f32 to vector<32x1xf32>
    %348 = arith.addf %344, %347 : vector<32x1xf32>
    %349 = math.rsqrt %348 : vector<32x1xf32>
    %350 = vector.broadcast %349 : vector<32x1xf32> to vector<32x32xf32>
    %351 = arith.mulf %346, %350 : vector<32x32xf32>
    %352 = vector.broadcast %332 : vector<1x32xf32> to vector<32x32xf32>
    %353 = arith.mulf %351, %352 : vector<32x32xf32>
    %354 = vector.broadcast %333 : vector<1x32xf32> to vector<32x32xf32>
    %355 = arith.addf %353, %354 : vector<32x32xf32>
    %c0_149 = arith.constant 0 : index
    %c0_150 = arith.constant 0 : index
    %356 = vector.load %arg25[%c0_149, %c0_150] : memref<32x128xf32, #tpu.memory_space<vmem>>, vector<32x128xf32>
    %cst_151 = arith.constant dense<0.000000e+00> : vector<32x128xf32>
    %357 = tpu.matmul %355, %356, %cst_151 {dimension_numbers = #tpu.dot_dimension_numbers<[1], [0], [0], [1], [0, 0, 1, 1], [], []>} : vector<32x32xf32>, vector<32x128xf32>, vector<32x128xf32> -> vector<32x128xf32>
    %c0_152 = arith.constant 0 : index
    %c0_153 = arith.constant 0 : index
    %358 = vector.load %arg26[%c0_152, %c0_153] : memref<1x128xf32, #tpu.memory_space<vmem>>, vector<1x128xf32>
    %359 = vector.broadcast %358 : vector<1x128xf32> to vector<32x128xf32>
    %360 = arith.addf %357, %359 : vector<32x128xf32>
    %cst_154 = arith.constant 5.000000e-01 : f32
    %361 = vector.broadcast %cst_154 : f32 to vector<32x128xf32>
    %362 = arith.mulf %361, %360 : vector<32x128xf32>
    %cst_155 = arith.constant 0.707106769 : f32
    %363 = vector.broadcast %cst_155 : f32 to vector<32x128xf32>
    %364 = arith.mulf %360, %363 : vector<32x128xf32>
    %365 = math.absf %364 : vector<32x128xf32>
    %cst_156 = arith.constant 0.327591091 : f32
    %366 = vector.broadcast %cst_156 : f32 to vector<32x128xf32>
    %367 = arith.mulf %366, %365 : vector<32x128xf32>
    %cst_157 = arith.constant 1.000000e+00 : f32
    %368 = vector.broadcast %cst_157 : f32 to vector<32x128xf32>
    %369 = arith.addf %368, %367 : vector<32x128xf32>
    %370 = tpu.reciprocal %369 : vector<32x128xf32> -> vector<32x128xf32>
    %cst_158 = arith.constant 1.06140542 : f32
    %371 = vector.broadcast %cst_158 : f32 to vector<32x128xf32>
    %372 = arith.mulf %371, %370 : vector<32x128xf32>
    %cst_159 = arith.constant -1.45315206 : f32
    %373 = vector.broadcast %cst_159 : f32 to vector<32x128xf32>
    %374 = arith.addf %372, %373 : vector<32x128xf32>
    %375 = arith.mulf %374, %370 : vector<32x128xf32>
    %cst_160 = arith.constant 1.42141378 : f32
    %376 = vector.broadcast %cst_160 : f32 to vector<32x128xf32>
    %377 = arith.addf %375, %376 : vector<32x128xf32>
    %378 = arith.mulf %377, %370 : vector<32x128xf32>
    %cst_161 = arith.constant -0.284496725 : f32
    %379 = vector.broadcast %cst_161 : f32 to vector<32x128xf32>
    %380 = arith.addf %378, %379 : vector<32x128xf32>
    %381 = arith.mulf %380, %370 : vector<32x128xf32>
    %cst_162 = arith.constant 0.254829586 : f32
    %382 = vector.broadcast %cst_162 : f32 to vector<32x128xf32>
    %383 = arith.addf %381, %382 : vector<32x128xf32>
    %384 = arith.mulf %383, %370 : vector<32x128xf32>
    %cst_163 = arith.constant 0.000000e+00 : f32
    %385 = vector.broadcast %cst_163 : f32 to vector<32x128xf32>
    %386 = arith.subf %385, %365 : vector<32x128xf32>
    %387 = arith.mulf %386, %365 : vector<32x128xf32>
    %388 = math.exp %387 : vector<32x128xf32>
    %389 = arith.mulf %384, %388 : vector<32x128xf32>
    %cst_164 = arith.constant 1.000000e+00 : f32
    %390 = vector.broadcast %cst_164 : f32 to vector<32x128xf32>
    %391 = arith.subf %390, %389 : vector<32x128xf32>
    %cst_165 = arith.constant 0.000000e+00 : f32
    %392 = vector.broadcast %cst_165 : f32 to vector<32x128xf32>
    %393 = arith.cmpf oge, %364, %392 : vector<32x128xf32>
    %cst_166 = arith.constant 0.000000e+00 : f32
    %394 = vector.broadcast %cst_166 : f32 to vector<32x128xf32>
    %395 = arith.subf %394, %391 : vector<32x128xf32>
    %396 = arith.select %393, %391, %395 : vector<32x128xi1>, vector<32x128xf32>
    %cst_167 = arith.constant 1.000000e+00 : f32
    %397 = vector.broadcast %cst_167 : f32 to vector<32x128xf32>
    %398 = arith.addf %397, %396 : vector<32x128xf32>
    %399 = arith.mulf %362, %398 : vector<32x128xf32>
    %c0_168 = arith.constant 0 : index
    %c0_169 = arith.constant 0 : index
    %400 = vector.load %arg27[%c0_168, %c0_169] : memref<128x32xf32, #tpu.memory_space<vmem>>, vector<128x32xf32>
    %cst_170 = arith.constant dense<0.000000e+00> : vector<32x32xf32>
    %401 = tpu.matmul %399, %400, %cst_170 {dimension_numbers = #tpu.dot_dimension_numbers<[1], [0], [0], [1], [0, 0, 1, 1], [], []>} : vector<32x128xf32>, vector<128x32xf32>, vector<32x32xf32> -> vector<32x32xf32>
    %c0_171 = arith.constant 0 : index
    %c0_172 = arith.constant 0 : index
    %402 = vector.load %arg28[%c0_171, %c0_172] : memref<1x32xf32, #tpu.memory_space<vmem>>, vector<1x32xf32>
    %403 = vector.broadcast %402 : vector<1x32xf32> to vector<32x32xf32>
    %404 = arith.addf %401, %403 : vector<32x32xf32>
    %405 = arith.addf %355, %404 : vector<32x32xf32>
    %c0_173 = arith.constant 0 : index
    %c0_174 = arith.constant 0 : index
    %406 = vector.load %arg23[%c0_173, %c0_174] : memref<1x32xf32, #tpu.memory_space<vmem>>, vector<1x32xf32>
    %c0_175 = arith.constant 0 : index
    %c0_176 = arith.constant 0 : index
    %407 = vector.load %arg24[%c0_175, %c0_176] : memref<1x32xf32, #tpu.memory_space<vmem>>, vector<1x32xf32>
    %cst_177 = arith.constant dense<0.000000e+00> : vector<32xf32>
    %408 = vector.multi_reduction <add>, %405, %cst_177 [1] : vector<32x32xf32> to vector<32xf32>
    %409 = vector.shape_cast %408 : vector<32xf32> to vector<32x1xf32>
    %cst_178 = arith.constant 3.200000e+01 : f32
    %410 = vector.broadcast %cst_178 : f32 to vector<32x1xf32>
    %411 = arith.divf %409, %410 : vector<32x1xf32>
    %412 = vector.broadcast %411 : vector<32x1xf32> to vector<32x32xf32>
    %413 = arith.subf %405, %412 : vector<32x32xf32>
    %414 = arith.mulf %413, %413 : vector<32x32xf32>
    %cst_179 = arith.constant dense<0.000000e+00> : vector<32xf32>
    %415 = vector.multi_reduction <add>, %414, %cst_179 [1] : vector<32x32xf32> to vector<32xf32>
    %416 = vector.shape_cast %415 : vector<32xf32> to vector<32x1xf32>
    %cst_180 = arith.constant 3.200000e+01 : f32
    %417 = vector.broadcast %cst_180 : f32 to vector<32x1xf32>
    %418 = arith.divf %416, %417 : vector<32x1xf32>
    %419 = vector.broadcast %411 : vector<32x1xf32> to vector<32x32xf32>
    %420 = arith.subf %405, %419 : vector<32x32xf32>
    %cst_181 = arith.constant 9.99999974E-6 : f32
    %421 = vector.broadcast %cst_181 : f32 to vector<32x1xf32>
    %422 = arith.addf %418, %421 : vector<32x1xf32>
    %423 = math.rsqrt %422 : vector<32x1xf32>
    %424 = vector.broadcast %423 : vector<32x1xf32> to vector<32x32xf32>
    %425 = arith.mulf %420, %424 : vector<32x32xf32>
    %426 = vector.broadcast %406 : vector<1x32xf32> to vector<32x32xf32>
    %427 = arith.mulf %425, %426 : vector<32x32xf32>
    %428 = vector.broadcast %407 : vector<1x32xf32> to vector<32x32xf32>
    %429 = arith.addf %427, %428 : vector<32x32xf32>
    %430 = vector.shape_cast %429 : vector<32x32xf32> to vector<4x8x32xf32>
    %c0_182 = arith.constant 0 : index
    %c0_183 = arith.constant 0 : index
    %c0_184 = arith.constant 0 : index
    %431 = vector.load %arg29[%c0_182, %c0_183, %c0_184] : memref<4x8x32xf32, #tpu.memory_space<vmem>>, vector<4x8x32xf32>
    tpu.vector_store %arg29[%c0_182, %c0_183, %c0_184], %430 {strides = array<i32>} : memref<4x8x32xf32, #tpu.memory_space<vmem>>, vector<4x8x32xf32>,
    return
  }
  func.func @transform_0(%arg0: i32) -> (i32, i32, i32) {
    %c0_i32 = arith.constant 0 : i32
    %c0_i32_0 = arith.constant 0 : i32
    %c0_i32_1 = arith.constant 0 : i32
    return %arg0, %c0_i32, %c0_i32_0 : i32, i32, i32
  }
  func.func @transform_1(%arg0: i32) -> (i32, i32, i32) {
    %c0_i32 = arith.constant 0 : i32
    %c0_i32_0 = arith.constant 0 : i32
    %c0_i32_1 = arith.constant 0 : i32
    return %arg0, %c0_i32, %c0_i32_0 : i32, i32, i32
  }
  func.func @transform_2(%arg0: i32) -> (i32, i32) {
    %c0_i32 = arith.constant 0 : i32
    %c0_i32_0 = arith.constant 0 : i32
    %c0_i32_1 = arith.constant 0 : i32
    return %c0_i32, %c0_i32_0 : i32, i32
  }
  func.func @transform_3(%arg0: i32) -> (i32, i32) {
    %c0_i32 = arith.constant 0 : i32
    %c0_i32_0 = arith.constant 0 : i32
    %c0_i32_1 = arith.constant 0 : i32
    return %c0_i32, %c0_i32_0 : i32, i32
  }
  func.func @transform_4(%arg0: i32) -> (i32, i32) {
    %c0_i32 = arith.constant 0 : i32
    %c0_i32_0 = arith.constant 0 : i32
    %c0_i32_1 = arith.constant 0 : i32
    return %c0_i32, %c0_i32_0 : i32, i32
  }
  func.func @transform_5(%arg0: i32) -> (i32, i32) {
    %c0_i32 = arith.constant 0 : i32
    %c0_i32_0 = arith.constant 0 : i32
    %c0_i32_1 = arith.constant 0 : i32
    return %c0_i32, %c0_i32_0 : i32, i32
  }
  func.func @transform_6(%arg0: i32) -> (i32, i32) {
    %c0_i32 = arith.constant 0 : i32
    %c0_i32_0 = arith.constant 0 : i32
    %c0_i32_1 = arith.constant 0 : i32
    return %c0_i32, %c0_i32_0 : i32, i32
  }
  func.func @transform_7(%arg0: i32) -> (i32, i32) {
    %c0_i32 = arith.constant 0 : i32
    %c0_i32_0 = arith.constant 0 : i32
    %c0_i32_1 = arith.constant 0 : i32
    return %c0_i32, %c0_i32_0 : i32, i32
  }
  func.func @transform_8(%arg0: i32) -> (i32, i32) {
    %c0_i32 = arith.constant 0 : i32
    %c0_i32_0 = arith.constant 0 : i32
    %c0_i32_1 = arith.constant 0 : i32
    return %c0_i32, %c0_i32_0 : i32, i32
  }
  func.func @transform_9(%arg0: i32) -> (i32, i32) {
    %c0_i32 = arith.constant 0 : i32
    %c0_i32_0 = arith.constant 0 : i32
    %c0_i32_1 = arith.constant 0 : i32
    return %c0_i32, %c0_i32_0 : i32, i32
  }
  func.func @transform_10(%arg0: i32) -> (i32, i32) {
    %c0_i32 = arith.constant 0 : i32
    %c0_i32_0 = arith.constant 0 : i32
    %c0_i32_1 = arith.constant 0 : i32
    return %c0_i32, %c0_i32_0 : i32, i32
  }
  func.func @transform_11(%arg0: i32) -> (i32, i32) {
    %c0_i32 = arith.constant 0 : i32
    %c0_i32_0 = arith.constant 0 : i32
    %c0_i32_1 = arith.constant 0 : i32
    return %c0_i32, %c0_i32_0 : i32, i32
  }
  func.func @transform_12(%arg0: i32) -> (i32, i32) {
    %c0_i32 = arith.constant 0 : i32
    %c0_i32_0 = arith.constant 0 : i32
    %c0_i32_1 = arith.constant 0 : i32
    return %c0_i32, %c0_i32_0 : i32, i32
  }
  func.func @transform_13(%arg0: i32) -> (i32, i32) {
    %c0_i32 = arith.constant 0 : i32
    %c0_i32_0 = arith.constant 0 : i32
    %c0_i32_1 = arith.constant 0 : i32
    return %c0_i32, %c0_i32_0 : i32, i32
  }
  func.func @transform_14(%arg0: i32) -> (i32, i32) {
    %c0_i32 = arith.constant 0 : i32
    %c0_i32_0 = arith.constant 0 : i32
    %c0_i32_1 = arith.constant 0 : i32
    return %c0_i32, %c0_i32_0 : i32, i32
  }
  func.func @transform_15(%arg0: i32) -> (i32, i32) {
    %c0_i32 = arith.constant 0 : i32
    %c0_i32_0 = arith.constant 0 : i32
    %c0_i32_1 = arith.constant 0 : i32
    return %c0_i32, %c0_i32_0 : i32, i32
  }
  func.func @transform_16(%arg0: i32) -> (i32, i32) {
    %c0_i32 = arith.constant 0 : i32
    %c0_i32_0 = arith.constant 0 : i32
    %c0_i32_1 = arith.constant 0 : i32
    return %c0_i32, %c0_i32_0 : i32, i32
  }
  func.func @transform_17(%arg0: i32) -> (i32, i32) {
    %c0_i32 = arith.constant 0 : i32
    %c0_i32_0 = arith.constant 0 : i32
    %c0_i32_1 = arith.constant 0 : i32
    return %c0_i32, %c0_i32_0 : i32, i32
  }
  func.func @transform_18(%arg0: i32) -> (i32, i32) {
    %c0_i32 = arith.constant 0 : i32
    %c0_i32_0 = arith.constant 0 : i32
    %c0_i32_1 = arith.constant 0 : i32
    return %c0_i32, %c0_i32_0 : i32, i32
  }
  func.func @transform_19(%arg0: i32) -> (i32, i32) {
    %c0_i32 = arith.constant 0 : i32
    %c0_i32_0 = arith.constant 0 : i32
    %c0_i32_1 = arith.constant 0 : i32
    return %c0_i32, %c0_i32_0 : i32, i32
  }
  func.func @transform_20(%arg0: i32) -> (i32, i32) {
    %c0_i32 = arith.constant 0 : i32
    %c0_i32_0 = arith.constant 0 : i32
    %c0_i32_1 = arith.constant 0 : i32
    return %c0_i32, %c0_i32_0 : i32, i32
  }
  func.func @transform_21(%arg0: i32) -> (i32, i32) {
    %c0_i32 = arith.constant 0 : i32
    %c0_i32_0 = arith.constant 0 : i32
    %c0_i32_1 = arith.constant 0 : i32
    return %c0_i32, %c0_i32_0 : i32, i32
  }
  func.func @transform_22(%arg0: i32) -> (i32, i32) {
    %c0_i32 = arith.constant 0 : i32
    %c0_i32_0 = arith.constant 0 : i32
    %c0_i32_1 = arith.constant 0 : i32
    return %c0_i32, %c0_i32_0 : i32, i32
  }
  func.func @transform_23(%arg0: i32) -> (i32, i32) {
    %c0_i32 = arith.constant 0 : i32
    %c0_i32_0 = arith.constant 0 : i32
    %c0_i32_1 = arith.constant 0 : i32
    return %c0_i32, %c0_i32_0 : i32, i32
  }
  func.func @transform_24(%arg0: i32) -> (i32, i32) {
    %c0_i32 = arith.constant 0 : i32
    %c0_i32_0 = arith.constant 0 : i32
    %c0_i32_1 = arith.constant 0 : i32
    return %c0_i32, %c0_i32_0 : i32, i32
  }
  func.func @transform_25(%arg0: i32) -> (i32, i32) {
    %c0_i32 = arith.constant 0 : i32
    %c0_i32_0 = arith.constant 0 : i32
    %c0_i32_1 = arith.constant 0 : i32
    return %c0_i32, %c0_i32_0 : i32, i32
  }
  func.func @transform_26(%arg0: i32) -> (i32, i32) {
    %c0_i32 = arith.constant 0 : i32
    %c0_i32_0 = arith.constant 0 : i32
    %c0_i32_1 = arith.constant 0 : i32
    return %c0_i32, %c0_i32_0 : i32, i32
  }
  func.func @transform_27(%arg0: i32) -> (i32, i32) {
    %c0_i32 = arith.constant 0 : i32
    %c0_i32_0 = arith.constant 0 : i32
    %c0_i32_1 = arith.constant 0 : i32
    return %c0_i32, %c0_i32_0 : i32, i32
  }
  func.func @transform_28(%arg0: i32) -> (i32, i32, i32) {
    %c0_i32 = arith.constant 0 : i32
    %c0_i32_0 = arith.constant 0 : i32
    %c0_i32_1 = arith.constant 0 : i32
    return %arg0, %c0_i32, %c0_i32_0 : i32, i32, i32
  }
}

</mosaic_0001>

<llo_original>
// kernel: tpu_custom_call.1
$region0: #{tpu_custom_call.1}
  #allocation0 [shape = 'u32[]', space=smem, size = 0x4, offset = 0x4, fixed_abs, tag = 'smem constant byte address 0x4 - core index']
  #allocation1 [shape = 'u32[144,128]{1,0:T(1,128)}', space=vmem, size = 0x12000, scoped, tag = 'internal scratch']
  #allocation2 [shape = 'f32[32,32]{1,0:T(8,128)}', space=vmem, size = 0x4000, scoped, tag = 'scratch operand']
  %s0 = inlined_call_operand.vmem [shape: f32[4,8,32], index: 0, kind: input, shape index: {}]
  %s1 = inlined_call_operand.vmem [shape: f32[4,16,48], index: 1, kind: input, shape index: {}]
  %s2 = inlined_call_operand.vmem [shape: f32[32,32], index: 2, kind: input, shape index: {}]
  %s3 = inlined_call_operand.vmem [shape: f32[1,32], index: 3, kind: input, shape index: {}]
  %s4 = inlined_call_operand.vmem [shape: f32[48,32], index: 4, kind: input, shape index: {}]
  %s5 = inlined_call_operand.vmem [shape: f32[1,32], index: 5, kind: input, shape index: {}]
  %s6 = inlined_call_operand.vmem [shape: f32[48,32], index: 6, kind: input, shape index: {}]
  %s7 = inlined_call_operand.vmem [shape: f32[1,32], index: 7, kind: input, shape index: {}]
  %s8 = inlined_call_operand.vmem [shape: f32[32,32], index: 8, kind: input, shape index: {}]
  %s9 = inlined_call_operand.vmem [shape: f32[1,32], index: 9, kind: input, shape index: {}]
  %s10 = inlined_call_operand.vmem [shape: f32[32,32], index: 10, kind: input, shape index: {}]
  %s11 = inlined_call_operand.vmem [shape: f32[1,32], index: 11, kind: input, shape index: {}]
  %s12 = inlined_call_operand.vmem [shape: f32[32,32], index: 12, kind: input, shape index: {}]
  %s13 = inlined_call_operand.vmem [shape: f32[1,32], index: 13, kind: input, shape index: {}]
  %s14 = inlined_call_operand.vmem [shape: f32[32,32], index: 14, kind: input, shape index: {}]
  %s15 = inlined_call_operand.vmem [shape: f32[1,32], index: 15, kind: input, shape index: {}]
  %s16 = inlined_call_operand.vmem [shape: f32[32,32], index: 16, kind: input, shape index: {}]
  %s17 = inlined_call_operand.vmem [shape: f32[1,32], index: 17, kind: input, shape index: {}]
  %s18 = inlined_call_operand.vmem [shape: f32[1,32], index: 18, kind: input, shape index: {}]
  %s19 = inlined_call_operand.vmem [shape: f32[1,32], index: 19, kind: input, shape index: {}]
  %s20 = inlined_call_operand.vmem [shape: f32[1,32], index: 20, kind: input, shape index: {}]
  %s21 = inlined_call_operand.vmem [shape: f32[1,32], index: 21, kind: input, shape index: {}]
  %s22 = inlined_call_operand.vmem [shape: f32[1,32], index: 22, kind: input, shape index: {}]
  %s23 = inlined_call_operand.vmem [shape: f32[1,32], index: 23, kind: input, shape index: {}]
  %s24 = inlined_call_operand.vmem [shape: f32[32,128], index: 24, kind: input, shape index: {}]
  %s25 = inlined_call_operand.vmem [shape: f32[1,128], index: 25, kind: input, shape index: {}]
  %s26 = inlined_call_operand.vmem [shape: f32[128,32], index: 26, kind: input, shape index: {}]
  %s27 = inlined_call_operand.vmem [shape: f32[1,32], index: 27, kind: input, shape index: {}]
  %s28 = inlined_call_operand.hbm [shape: f32[4,8,32], index: 28, kind: output, shape index: {}]
  %s29 = sld [smem:[#allocation0]]
  $region122: #{tpu_custom_call.1} parent=0
    _
  %s31 = ssub.s32 1, %s29
  %s32 = scalar_select 0, %s31, %s29
  $region1: #{tpu_custom_call.1} parent=0
    #allocation3 [shape = 'u8[16384]{0}', space=vmem, size = 0x4000, scoped, tag = 'output window, operand 0, single buffered']
    #allocation4 [shape = 's32[1]{0}', space=sflag, size = 0x4, scoped, tag = 'scoped memory for tpu_custom_call.1']
    %33 = vsyncpa [#allocation4], 0
    // Predicated region
    $region2: #{tpu_custom_call.1} parent=1 // pred_check
      _
    $region3: #{tpu_custom_call.1} parent=1 // pred_check_branch
      %35 = sbr.rel (0) target = $region5
    $region4: #{tpu_custom_call.1} parent=1 // pred_region
      _
    $region5: #{tpu_custom_call.1} parent=1 // pred_fallthru
      _
    // Predicated region
    $region6: #{tpu_custom_call.1} parent=1 // pred_check
      _
    $region7: #{tpu_custom_call.1} parent=1 // pred_check_branch
      %37 = sbr.rel (0) target = $region9
    $region8: #{tpu_custom_call.1} parent=1 // pred_region
      _
    $region9: #{tpu_custom_call.1} parent=1 // pred_fallthru
      _
    // Predicated region
    $region10: #{tpu_custom_call.1} parent=1 // pred_check
      _
    $region11: #{tpu_custom_call.1} parent=1 // pred_check_branch
      %39 = sbr.rel (0) target = $region13
    $region12: #{tpu_custom_call.1} parent=1 // pred_region
      _
    $region13: #{tpu_custom_call.1} parent=1 // pred_fallthru
      _
    // Predicated region
    $region14: #{tpu_custom_call.1} parent=1 // pred_check
      _
    $region15: #{tpu_custom_call.1} parent=1 // pred_check_branch
      %41 = sbr.rel (0) target = $region17
    $region16: #{tpu_custom_call.1} parent=1 // pred_region
      _
    $region17: #{tpu_custom_call.1} parent=1 // pred_fallthru
      _
    // Predicated region
    $region18: #{tpu_custom_call.1} parent=1 // pred_check
      _
    $region19: #{tpu_custom_call.1} parent=1 // pred_check_branch
      %43 = sbr.rel (0) target = $region21
    $region20: #{tpu_custom_call.1} parent=1 // pred_region
      _
    $region21: #{tpu_custom_call.1} parent=1 // pred_fallthru
      _
    // Predicated region
    $region22: #{tpu_custom_call.1} parent=1 // pred_check
      _
    $region23: #{tpu_custom_call.1} parent=1 // pred_check_branch
      %45 = sbr.rel (0) target = $region25
    $region24: #{tpu_custom_call.1} parent=1 // pred_region
      _
    $region25: #{tpu_custom_call.1} parent=1 // pred_fallthru
      _
    // Predicated region
    $region26: #{tpu_custom_call.1} parent=1 // pred_check
      _
    $region27: #{tpu_custom_call.1} parent=1 // pred_check_branch
      %47 = sbr.rel (0) target = $region29
    $region28: #{tpu_custom_call.1} parent=1 // pred_region
      _
    $region29: #{tpu_custom_call.1} parent=1 // pred_fallthru
      _
    // Predicated region
    $region30: #{tpu_custom_call.1} parent=1 // pred_check
      _
    $region31: #{tpu_custom_call.1} parent=1 // pred_check_branch
      %49 = sbr.rel (0) target = $region33
    $region32: #{tpu_custom_call.1} parent=1 // pred_region
      _
    $region33: #{tpu_custom_call.1} parent=1 // pred_fallthru
      _
    // Predicated region
    $region34: #{tpu_custom_call.1} parent=1 // pred_check
      _
    $region35: #{tpu_custom_call.1} parent=1 // pred_check_branch
      %51 = sbr.rel (0) target = $region37
    $region36: #{tpu_custom_call.1} parent=1 // pred_region
      _
    $region37: #{tpu_custom_call.1} parent=1 // pred_fallthru
      _
    // Predicated region
    $region38: #{tpu_custom_call.1} parent=1 // pred_check
      _
    $region39: #{tpu_custom_call.1} parent=1 // pred_check_branch
      %53 = sbr.rel (0) target = $region41
    $region40: #{tpu_custom_call.1} parent=1 // pred_region
      _
    $region41: #{tpu_custom_call.1} parent=1 // pred_fallthru
      _
    // Predicated region
    $region42: #{tpu_custom_call.1} parent=1 // pred_check
      _
    $region43: #{tpu_custom_call.1} parent=1 // pred_check_branch
      %55 = sbr.rel (0) target = $region45
    $region44: #{tpu_custom_call.1} parent=1 // pred_region
      _
    $region45: #{tpu_custom_call.1} parent=1 // pred_fallthru
      _
    // Predicated region
    $region46: #{tpu_custom_call.1} parent=1 // pred_check
      _
    $region47: #{tpu_custom_call.1} parent=1 // pred_check_branch
      %57 = sbr.rel (0) target = $region49
    $region48: #{tpu_custom_call.1} parent=1 // pred_region
      _
    $region49: #{tpu_custom_call.1} parent=1 // pred_fallthru
      _
    // Predicated region
    $region50: #{tpu_custom_call.1} parent=1 // pred_check
      _
    $region51: #{tpu_custom_call.1} parent=1 // pred_check_branch
      %59 = sbr.rel (0) target = $region53
    $region52: #{tpu_custom_call.1} parent=1 // pred_region
      _
    $region53: #{tpu_custom_call.1} parent=1 // pred_fallthru
      _
    // Predicated region
    $region54: #{tpu_custom_call.1} parent=1 // pred_check
      _
    $region55: #{tpu_custom_call.1} parent=1 // pred_check_branch
      %61 = sbr.rel (0) target = $region57
    $region56: #{tpu_custom_call.1} parent=1 // pred_region
      _
    $region57: #{tpu_custom_call.1} parent=1 // pred_fallthru
      _
    // Predicated region
    $region58: #{tpu_custom_call.1} parent=1 // pred_check
      _
    $region59: #{tpu_custom_call.1} parent=1 // pred_check_branch
      %63 = sbr.rel (0) target = $region61
    $region60: #{tpu_custom_call.1} parent=1 // pred_region
      _
    $region61: #{tpu_custom_call.1} parent=1 // pred_fallthru
      _
    // Predicated region
    $region62: #{tpu_custom_call.1} parent=1 // pred_check
      _
    $region63: #{tpu_custom_call.1} parent=1 // pred_check_branch
      %65 = sbr.rel (0) target = $region65
    $region64: #{tpu_custom_call.1} parent=1 // pred_region
      _
    $region65: #{tpu_custom_call.1} parent=1 // pred_fallthru
      _
    // Predicated region
    $region66: #{tpu_custom_call.1} parent=1 // pred_check
      _
    $region67: #{tpu_custom_call.1} parent=1 // pred_check_branch
      %67 = sbr.rel (0) target = $region69
    $region68: #{tpu_custom_call.1} parent=1 // pred_region
      _
    $region69: #{tpu_custom_call.1} parent=1 // pred_fallthru
      _
    // Predicated region
    $region70: #{tpu_custom_call.1} parent=1 // pred_check
      _
    $region71: #{tpu_custom_call.1} parent=1 // pred_check_branch
      %69 = sbr.rel (0) target = $region73
    $region72: #{tpu_custom_call.1} parent=1 // pred_region
      _
    $region73: #{tpu_custom_call.1} parent=1 // pred_fallthru
      _
    // Predicated region
    $region74: #{tpu_custom_call.1} parent=1 // pred_check
      _
    $region75: #{tpu_custom_call.1} parent=1 // pred_check_branch
      %71 = sbr.rel (0) target = $region77
    $region76: #{tpu_custom_call.1} parent=1 // pred_region
      _
    $region77: #{tpu_custom_call.1} parent=1 // pred_fallthru
      _
    // Predicated region
    $region78: #{tpu_custom_call.1} parent=1 // pred_check
      _
    $region79: #{tpu_custom_call.1} parent=1 // pred_check_branch
      %73 = sbr.rel (0) target = $region81
    $region80: #{tpu_custom_call.1} parent=1 // pred_region
      _
    $region81: #{tpu_custom_call.1} parent=1 // pred_fallthru
      _
    // Predicated region
    $region82: #{tpu_custom_call.1} parent=1 // pred_check
      _
    $region83: #{tpu_custom_call.1} parent=1 // pred_check_branch
      %75 = sbr.rel (0) target = $region85
    $region84: #{tpu_custom_call.1} parent=1 // pred_region
      _
    $region85: #{tpu_custom_call.1} parent=1 // pred_fallthru
      _
    // Predicated region
    $region86: #{tpu_custom_call.1} parent=1 // pred_check
      _
    $region87: #{tpu_custom_call.1} parent=1 // pred_check_branch
      %77 = sbr.rel (0) target = $region89
    $region88: #{tpu_custom_call.1} parent=1 // pred_region
      _
    $region89: #{tpu_custom_call.1} parent=1 // pred_fallthru
      _
    // Predicated region
    $region90: #{tpu_custom_call.1} parent=1 // pred_check
      _
    $region91: #{tpu_custom_call.1} parent=1 // pred_check_branch
      %79 = sbr.rel (0) target = $region93
    $region92: #{tpu_custom_call.1} parent=1 // pred_region
      _
    $region93: #{tpu_custom_call.1} parent=1 // pred_fallthru
      _
    // Predicated region
    $region94: #{tpu_custom_call.1} parent=1 // pred_check
      _
    $region95: #{tpu_custom_call.1} parent=1 // pred_check_branch
      %81 = sbr.rel (0) target = $region97
    $region96: #{tpu_custom_call.1} parent=1 // pred_region
      _
    $region97: #{tpu_custom_call.1} parent=1 // pred_fallthru
      _
    // Predicated region
    $region98: #{tpu_custom_call.1} parent=1 // pred_check
      _
    $region99: #{tpu_custom_call.1} parent=1 // pred_check_branch
      %83 = sbr.rel (0) target = $region101
    $region100: #{tpu_custom_call.1} parent=1 // pred_region
      _
    $region101: #{tpu_custom_call.1} parent=1 // pred_fallthru
      _
    // Predicated region
    $region102: #{tpu_custom_call.1} parent=1 // pred_check
      _
    $region103: #{tpu_custom_call.1} parent=1 // pred_check_branch
      %85 = sbr.rel (0) target = $region105
    $region104: #{tpu_custom_call.1} parent=1 // pred_region
      _
    $region105: #{tpu_custom_call.1} parent=1 // pred_fallthru
      _
    // Predicated region
    $region106: #{tpu_custom_call.1} parent=1 // pred_check
      _
    $region107: #{tpu_custom_call.1} parent=1 // pred_check_branch
      %87 = sbr.rel (0) target = $region109
    $region108: #{tpu_custom_call.1} parent=1 // pred_region
      _
    $region109: #{tpu_custom_call.1} parent=1 // pred_fallthru
      _
    // Predicated region
    $region110: #{tpu_custom_call.1} parent=1 // pred_check
      _
    $region111: #{tpu_custom_call.1} parent=1 // pred_check_branch
      %89 = sbr.rel (0) target = $region113
    $region112: #{tpu_custom_call.1} parent=1 // pred_region
      _
    $region113: #{tpu_custom_call.1} parent=1 // pred_fallthru
      _
    %v90 = vld [vmem:[%s0] sm:$0xff]
    %v91 = vld [vmem:[%s0 + $0x8] sm:$0xff]
    %v92 = vld [vmem:[%s0 + $0x10] sm:$0xff]
    %v93 = vld [vmem:[%s0 + $0x18] sm:$0xff]
    %v94 = vld [vmem:[%s1] sm:$0xff]
    %v95 = vld [vmem:[%s1 + $0x8] sm:$0xff]
    %v96 = vld [vmem:[%s1 + $0x10] sm:$0xff]
    %v97 = vld [vmem:[%s1 + $0x18] sm:$0xff]
    %v98 = vld [vmem:[%s1 + $0x20] sm:$0xff]
    %v99 = vld [vmem:[%s1 + $0x28] sm:$0xff]
    %v100 = vld [vmem:[%s1 + $0x30] sm:$0xff]
    %v101 = vld [vmem:[%s1 + $0x38] sm:$0xff]
    %v102 = vlaneseq
    %v103 = vshrl.u32 %v102, 7
    %v104 = vadd.s32 %v103, 8
    %v105 = vadd.s32 %v103, 16
    %v106 = vadd.s32 %v103, 24
    %v107 = vlaneseq
    %v108 = vand.u32 %v107, 127
    %vm109 = vcmp.ge.s32.totalorder %v103, 0
    %vm110 = vcmp.ge.s32.totalorder %v104, 0
    %vm111 = vcmp.ge.s32.totalorder %v105, 0
    %vm112 = vcmp.ge.s32.totalorder %v106, 0
    %vm113 = vcmp.lt.s32.totalorder %v103, 8
    %vm114 = vcmp.lt.s32.totalorder %v104, 8
    %vm115 = vcmp.lt.s32.totalorder %v105, 8
    %vm116 = vcmp.lt.s32.totalorder %v106, 8
    %vm117 = vmand %vm109, %vm113
    %vm118 = vmand %vm110, %vm114
    %vm119 = vmand %vm111, %vm115
    %vm120 = vmand %vm112, %vm116
    %vm121 = vcmp.ge.s32.totalorder %v108, 0
    %vm122 = vmand %vm117, %vm121
    %vm123 = vmand %vm118, %vm121
    %vm124 = vmand %vm119, %vm121
    %vm125 = vmand %vm120, %vm121
    %vm126 = vcmp.lt.s32.totalorder %v108, 16
    %vm127 = vmand %vm122, %vm126
    %vm128 = vmand %vm123, %vm126
    %vm129 = vmand %vm124, %vm126
    %vm130 = vmand %vm125, %vm126
    %vm131 = vcmp.ge.s32.totalorder %v103, 8
    %vm132 = vcmp.ge.s32.totalorder %v104, 8
    %vm133 = vcmp.ge.s32.totalorder %v105, 8
    %vm134 = vcmp.ge.s32.totalorder %v106, 8
    %vm135 = vcmp.lt.s32.totalorder %v103, 16
    %vm136 = vcmp.lt.s32.totalorder %v104, 16
    %vm137 = vcmp.lt.s32.totalorder %v105, 16
    %vm138 = vcmp.lt.s32.totalorder %v106, 16
    %vm139 = vmand %vm131, %vm135
    %vm140 = vmand %vm132, %vm136
    %vm141 = vmand %vm133, %vm137
    %vm142 = vmand %vm134, %vm138
    %vm143 = vcmp.ge.s32.totalorder %v108, 16
    %vm144 = vmand %vm139, %vm143
    %vm145 = vmand %vm140, %vm143
    %vm146 = vmand %vm141, %vm143
    %vm147 = vmand %vm142, %vm143
    %vm148 = vcmp.lt.s32.totalorder %v108, 32
    %vm149 = vmand %vm144, %vm148
    %vm150 = vmand %vm145, %vm148
    %vm151 = vmand %vm146, %vm148
    %vm152 = vmand %vm147, %vm148
    %vm153 = vmor %vm127, %vm149
    %vm154 = vmor %vm128, %vm150
    %vm155 = vmor %vm129, %vm151
    %vm156 = vmor %vm130, %vm152
    %vm157 = vcmp.ge.s32.totalorder %v103, 16
    %vm158 = vcmp.ge.s32.totalorder %v104, 16
    %vm159 = vcmp.ge.s32.totalorder %v105, 16
    %vm160 = vcmp.ge.s32.totalorder %v106, 16
    %vm161 = vcmp.lt.s32.totalorder %v103, 24
    %vm162 = vcmp.lt.s32.totalorder %v104, 24
    %vm163 = vcmp.lt.s32.totalorder %v105, 24
    %vm164 = vcmp.lt.s32.totalorder %v106, 24
    %vm165 = vmand %vm157, %vm161
    %vm166 = vmand %vm158, %vm162
    %vm167 = vmand %vm159, %vm163
    %vm168 = vmand %vm160, %vm164
    %vm169 = vcmp.ge.s32.totalorder %v108, 32
    %vm170 = vmand %vm165, %vm169
    %vm171 = vmand %vm166, %vm169
    %vm172 = vmand %vm167, %vm169
    %vm173 = vmand %vm168, %vm169
    %vm174 = vcmp.lt.s32.totalorder %v108, 48
    %vm175 = vmand %vm170, %vm174
    %vm176 = vmand %vm171, %vm174
    %vm177 = vmand %vm172, %vm174
    %vm178 = vmand %vm173, %vm174
    %vm179 = vmor %vm153, %vm175
    %vm180 = vmor %vm154, %vm176
    %vm181 = vmor %vm155, %vm177
    %vm182 = vmor %vm156, %vm178
    %vm183 = vcmp.ge.s32.totalorder %v103, 24
    %vm184 = vcmp.ge.s32.totalorder %v104, 24
    %vm185 = vcmp.ge.s32.totalorder %v105, 24
    %vm186 = vcmp.ge.s32.totalorder %v106, 24
    %vm187 = vcmp.lt.s32.totalorder %v103, 32
    %vm188 = vcmp.lt.s32.totalorder %v104, 32
    %vm189 = vcmp.lt.s32.totalorder %v105, 32
    %vm190 = vcmp.lt.s32.totalorder %v106, 32
    %vm191 = vmand %vm183, %vm187
    %vm192 = vmand %vm184, %vm188
    %vm193 = vmand %vm185, %vm189
    %vm194 = vmand %vm186, %vm190
    %vm195 = vcmp.ge.s32.totalorder %v108, 48
    %vm196 = vmand %vm191, %vm195
    %vm197 = vmand %vm192, %vm195
    %vm198 = vmand %vm193, %vm195
    %vm199 = vmand %vm194, %vm195
    %vm200 = vcmp.lt.s32.totalorder %v108, 64
    %vm201 = vmand %vm196, %vm200
    %vm202 = vmand %vm197, %vm200
    %vm203 = vmand %vm198, %vm200
    %vm204 = vmand %vm199, %vm200
    %vm205 = vmor %vm179, %vm201
    %vm206 = vmor %vm180, %vm202
    %vm207 = vmor %vm181, %vm203
    %vm208 = vmor %vm182, %vm204
    %v209 = vsel %vm205, 0.0, -1e+30
    %v210 = vsel %vm206, 0.0, -1e+30
    %v211 = vsel %vm207, 0.0, -1e+30
    %v212 = vsel %vm208, 0.0, -1e+30
    %vm213 = vcmp.lt.s32.totalorder %v108, 8
    %vm214 = vmand %vm122, %vm213
    %vm215 = vmand %vm123, %vm213
    %vm216 = vmand %vm124, %vm213
    %vm217 = vmand %vm125, %vm213
    %vm218 = vcmp.ge.s32.totalorder %v108, 8
    %vm219 = vmand %vm139, %vm218
    %vm220 = vmand %vm140, %vm218
    %vm221 = vmand %vm141, %vm218
    %vm222 = vmand %vm142, %vm218
    %vm223 = vmand %vm219, %vm126
    %vm224 = vmand %vm220, %vm126
    %vm225 = vmand %vm221, %vm126
    %vm226 = vmand %vm222, %vm126
    %vm227 = vmor %vm214, %vm223
    %vm228 = vmor %vm215, %vm224
    %vm229 = vmor %vm216, %vm225
    %vm230 = vmor %vm217, %vm226
    %vm231 = vmand %vm165, %vm143
    %vm232 = vmand %vm166, %vm143
    %vm233 = vmand %vm167, %vm143
    %vm234 = vmand %vm168, %vm143
    %vm235 = vcmp.lt.s32.totalorder %v108, 24
    %vm236 = vmand %vm231, %vm235
    %vm237 = vmand %vm232, %vm235
    %vm238 = vmand %vm233, %vm235
    %vm239 = vmand %vm234, %vm235
    %vm240 = vmor %vm227, %vm236
    %vm241 = vmor %vm228, %vm237
    %vm242 = vmor %vm229, %vm238
    %vm243 = vmor %vm230, %vm239
    %vm244 = vcmp.ge.s32.totalorder %v108, 24
    %vm245 = vmand %vm191, %vm244
    %vm246 = vmand %vm192, %vm244
    %vm247 = vmand %vm193, %vm244
    %vm248 = vmand %vm194, %vm244
    %vm249 = vmand %vm245, %vm148
    %vm250 = vmand %vm246, %vm148
    %vm251 = vmand %vm247, %vm148
    %vm252 = vmand %vm248, %vm148
    %vm253 = vmor %vm240, %vm249
    %vm254 = vmor %vm241, %vm250
    %vm255 = vmor %vm242, %vm251
    %vm256 = vmor %vm243, %vm252
    %v257 = vsel %vm253, 0.0, -1e+30
    %v258 = vsel %vm254, 0.0, -1e+30
    %v259 = vsel %vm255, 0.0, -1e+30
    %v260 = vsel %vm256, 0.0, -1e+30
    %v261 = vld [vmem:[%s2] sm:$0xff]
    %v262 = vld [vmem:[%s2 + $0x8] sm:$0xff]
    %v263 = vld [vmem:[%s2 + $0x10] sm:$0xff]
    %v264 = vld [vmem:[%s2 + $0x18] sm:$0xff]
    %v265 = vld [vmem:[%s3] sm:$0x1]
    %v267 = vlaneseq
    %v268 = vshrl.u32 %v267, 7
    %v269 = vsub.s32 0, %v268
    %v270 = vrot.slane %v265, %v269
    %vm272 = vcmask 261120
    %v274 = vsel %vm272, %v90, 0
    %v277 = vsel %vm272, %v91, 0
    %v280 = vsel %vm272, %v92, 0
    %v283 = vsel %vm272, %v93, 0
    %285 = vmatprep.subr.mxu0 0.0
    %286 = vmatpush1.msra.mxu0 %v261
    %287 = vmatprep.subr.mxu0 0.0
    %288 = vmatpush1.msra.mxu0 %v262
    %289 = vmatprep.subr.mxu0 0.0
    %290 = vmatpush1.msra.mxu0 %v263
    %291 = vmatprep.subr.mxu0 0.0
    %292 = vmatpush1.msra.mxu0 %v264
    %293 = vmatprep.subr.mxu0 0.0
    %294 = vmatpush1.msra.mxu0 0.0
    %295 = vmatprep.subr.mxu0 0.0
    %296 = vmatpush1.msra.mxu0 0.0
    %297 = vmatprep.subr.mxu0 0.0
    %298 = vmatpush1.msra.mxu0 0.0
    %299 = vmatprep.subr.mxu0 0.0
    %300 = vmatpush1.msra.mxu0 0.0
    %301 = vmatprep.subr.mxu0 0.0
    %302 = vmatpush1.msra.mxu0 0.0
    %303 = vmatprep.subr.mxu0 0.0
    %304 = vmatpush1.msra.mxu0 0.0
    %305 = vmatprep.subr.mxu0 0.0
    %306 = vmatpush1.msra.mxu0 0.0
    %307 = vmatprep.subr.mxu0 0.0
    %308 = vmatpush1.msra.mxu0 0.0
    %309 = vmatprep.subr.mxu0 0.0
    %310 = vmatpush1.msra.mxu0 0.0
    %311 = vmatprep.subr.mxu0 0.0
    %312 = vmatpush1.msra.mxu0 0.0
    %313 = vmatprep.subr.mxu0 0.0
    %314 = vmatpush1.msra.mxu0 0.0
    %315 = vmatprep.subr.mxu0 0.0
    %316 = vmatpush1.msra.mxu0 0.0
    %317 = vmatprep.subr.mxu0 0.0
    %318 = vmatpush1.msra.mxu0 0.0
    %319 = vmatprep.subr.mxu0 0.0
    %320 = vmatpush1.msra.mxu0 0.0
    %321 = vmatprep.subr.mxu0 0.0
    %322 = vmatpush1.msra.mxu0 0.0
    %323 = vmatprep.subr.mxu0 0.0
    %324 = vmatpush1.msra.mxu0 0.0
    %325 = vmatprep.subr.mxu0 0.0
    %326 = vmatpush1.msra.mxu0 0.0
    %327 = vmatprep.subr.mxu0 0.0
    %328 = vmatpush1.msra.mxu0 0.0
    %329 = vmatprep.subr.mxu0 0.0
    %330 = vmatpush1.msra.mxu0 0.0
    %331 = vmatprep.subr.mxu0 0.0
    %332 = vmatpush1.msra.mxu0 0.0
    %333 = vmatprep.subr.mxu0 0.0
    %334 = vmatpush1.msra.mxu0 0.0
    %335 = vmatprep.subr.mxu0 0.0
    %336 = vmatpush1.msra.mxu0 0.0
    %337 = vmatprep.subr.mxu0 0.0
    %338 = vmatpush1.msra.mxu0 0.0
    %339 = vmatprep.subr.mxu0 0.0
    %340 = vmatpush1.msra.mxu0 0.0
    %341 = vmatprep.subr.mxu0 0.0
    %342 = vmatpush1.msra.mxu0 0.0
    %343 = vmatprep.subr.mxu0 0.0
    %344 = vmatpush1.msra.mxu0 0.0
    %345 = vmatprep.subr.mxu0 0.0
    %346 = vmatpush1.msra.mxu0 0.0
    %347 = vmatprep.subr.mxu0 0.0
    %348 = vmatpush1.msra.mxu0 0.0
    %349 = vmatprep.mubr.f32.mxu0 0.0
    %350 = vmatmul.mubr.f32.gmra.mrb[0].mxu0 %v274
    %v351 = vpop.f32.mrb[0].mxu0
    %v352 = vadd.f32 %v270, %v351
    %v353 = vpop.f32.mrb[0].mxu0
    %354 = vmatprep.mubr.f32.mxu0 0.0
    %355 = vmatmul.mubr.f32.gmra.mrb[0].mxu0 %v277
    %v356 = vpop.f32.mrb[0].mxu0
    %v357 = vadd.f32 %v270, %v356
    %v358 = vpop.f32.mrb[0].mxu0
    %359 = vmatprep.mubr.f32.mxu0 0.0
    %360 = vmatmul.mubr.f32.gmra.mrb[0].mxu0 %v280
    %v361 = vpop.f32.mrb[0].mxu0
    %v362 = vadd.f32 %v270, %v361
    %v363 = vpop.f32.mrb[0].mxu0
    %364 = vmatprep.mubr.f32.mxu0 0.0
    %365 = vmatmul.mubr.f32.gmra.mrb[0].mxu0 %v283
    %v366 = vpop.f32.mrb[0].mxu0
    %v367 = vadd.f32 %v270, %v366
    %v368 = vpop.f32.mrb[0].mxu0
    %369 = vdwg.mxu0
    %v370 = vld [vmem:[%s4] sm:$0xff]
    %v371 = vld [vmem:[%s4 + $0x8] sm:$0xff]
    %v372 = vld [vmem:[%s4 + $0x10] sm:$0xff]
    %v373 = vld [vmem:[%s4 + $0x18] sm:$0xff]
    %v374 = vld [vmem:[%s4 + $0x20] sm:$0xff]
    %v375 = vld [vmem:[%s4 + $0x28] sm:$0xff]
    %v376 = vld [vmem:[%s5] sm:$0x1]
    %v378 = vlaneseq
    %v379 = vshrl.u32 %v378, 7
    %v380 = vsub.s32 0, %v379
    %v381 = vrot.slane %v376, %v380
    %vm383 = vcmask 392192
    %v385 = vsel %vm383, %v94, 0
    %v388 = vsel %vm383, %v95, 0
    %v391 = vsel %vm383, %v96, 0
    %v394 = vsel %vm383, %v97, 0
    %v397 = vsel %vm383, %v98, 0
    %v400 = vsel %vm383, %v99, 0
    %v403 = vsel %vm383, %v100, 0
    %v406 = vsel %vm383, %v101, 0
    %408 = vmatprep.subr.mxu0 0.0
    %409 = vmatpush1.msra.mxu0 %v370
    %410 = vmatprep.subr.mxu0 0.0
    %411 = vmatpush1.msra.mxu0 %v371
    %412 = vmatprep.subr.mxu0 0.0
    %413 = vmatpush1.msra.mxu0 %v372
    %414 = vmatprep.subr.mxu0 0.0
    %415 = vmatpush1.msra.mxu0 %v373
    %416 = vmatprep.subr.mxu0 0.0
    %417 = vmatpush1.msra.mxu0 %v374
    %418 = vmatprep.subr.mxu0 0.0
    %419 = vmatpush1.msra.mxu0 %v375
    %420 = vmatprep.subr.mxu0 0.0
    %421 = vmatpush1.msra.mxu0 0.0
    %422 = vmatprep.subr.mxu0 0.0
    %423 = vmatpush1.msra.mxu0 0.0
    %424 = vmatprep.subr.mxu0 0.0
    %425 = vmatpush1.msra.mxu0 0.0
    %426 = vmatprep.subr.mxu0 0.0
    %427 = vmatpush1.msra.mxu0 0.0
    %428 = vmatprep.subr.mxu0 0.0
    %429 = vmatpush1.msra.mxu0 0.0
    %430 = vmatprep.subr.mxu0 0.0
    %431 = vmatpush1.msra.mxu0 0.0
    %432 = vmatprep.subr.mxu0 0.0
    %433 = vmatpush1.msra.mxu0 0.0
    %434 = vmatprep.subr.mxu0 0.0
    %435 = vmatpush1.msra.mxu0 0.0
    %436 = vmatprep.subr.mxu0 0.0
    %437 = vmatpush1.msra.mxu0 0.0
    %438 = vmatprep.subr.mxu0 0.0
    %439 = vmatpush1.msra.mxu0 0.0
    %440 = vmatprep.subr.mxu0 0.0
    %441 = vmatpush1.msra.mxu0 0.0
    %442 = vmatprep.subr.mxu0 0.0
    %443 = vmatpush1.msra.mxu0 0.0
    %444 = vmatprep.subr.mxu0 0.0
    %445 = vmatpush1.msra.mxu0 0.0
    %446 = vmatprep.subr.mxu0 0.0
    %447 = vmatpush1.msra.mxu0 0.0
    %448 = vmatprep.subr.mxu0 0.0
    %449 = vmatpush1.msra.mxu0 0.0
    %450 = vmatprep.subr.mxu0 0.0
    %451 = vmatpush1.msra.mxu0 0.0
    %452 = vmatprep.subr.mxu0 0.0
    %453 = vmatpush1.msra.mxu0 0.0
    %454 = vmatprep.subr.mxu0 0.0
    %455 = vmatpush1.msra.mxu0 0.0
    %456 = vmatprep.subr.mxu0 0.0
    %457 = vmatpush1.msra.mxu0 0.0
    %458 = vmatprep.subr.mxu0 0.0
    %459 = vmatpush1.msra.mxu0 0.0
    %460 = vmatprep.subr.mxu0 0.0
    %461 = vmatpush1.msra.mxu0 0.0
    %462 = vmatprep.subr.mxu0 0.0
    %463 = vmatpush1.msra.mxu0 0.0
    %464 = vmatprep.subr.mxu0 0.0
    %465 = vmatpush1.msra.mxu0 0.0
    %466 = vmatprep.subr.mxu0 0.0
    %467 = vmatpush1.msra.mxu0 0.0
    %468 = vmatprep.subr.mxu0 0.0
    %469 = vmatpush1.msra.mxu0 0.0
    %470 = vmatprep.subr.mxu0 0.0
    %471 = vmatpush1.msra.mxu0 0.0
    %472 = vmatprep.mubr.f32.mxu0 0.0
    %473 = vmatmul.mubr.f32.gmra.mrb[0].mxu0 %v385
    %v474 = vpop.f32.mrb[0].mxu0
    %v475 = vadd.f32 %v381, %v474
    %v476 = vpop.f32.mrb[0].mxu0
    %477 = vmatprep.mubr.f32.mxu0 0.0
    %478 = vmatmul.mubr.f32.gmra.mrb[0].mxu0 %v388
    %v479 = vpop.f32.mrb[0].mxu0
    %v480 = vadd.f32 %v381, %v479
    %v481 = vpop.f32.mrb[0].mxu0
    %482 = vmatprep.mubr.f32.mxu0 0.0
    %483 = vmatmul.mubr.f32.gmra.mrb[0].mxu0 %v391
    %v484 = vpop.f32.mrb[0].mxu0
    %v485 = vadd.f32 %v381, %v484
    %v486 = vpop.f32.mrb[0].mxu0
    %487 = vmatprep.mubr.f32.mxu0 0.0
    %488 = vmatmul.mubr.f32.gmra.mrb[0].mxu0 %v394
    %v489 = vpop.f32.mrb[0].mxu0
    %v490 = vadd.f32 %v381, %v489
    %v491 = vpop.f32.mrb[0].mxu0
    %492 = vmatprep.mubr.f32.mxu0 0.0
    %493 = vmatmul.mubr.f32.gmra.mrb[0].mxu0 %v397
    %v494 = vpop.f32.mrb[0].mxu0
    %v495 = vadd.f32 %v381, %v494
    %v496 = vpop.f32.mrb[0].mxu0
    %497 = vmatprep.mubr.f32.mxu0 0.0
    %498 = vmatmul.mubr.f32.gmra.mrb[0].mxu0 %v400
    %v499 = vpop.f32.mrb[0].mxu0
    %v500 = vadd.f32 %v381, %v499
    %v501 = vpop.f32.mrb[0].mxu0
    %502 = vmatprep.mubr.f32.mxu0 0.0
    %503 = vmatmul.mubr.f32.gmra.mrb[0].mxu0 %v403
    %v504 = vpop.f32.mrb[0].mxu0
    %v505 = vadd.f32 %v381, %v504
    %v506 = vpop.f32.mrb[0].mxu0
    %507 = vmatprep.mubr.f32.mxu0 0.0
    %508 = vmatmul.mubr.f32.gmra.mrb[0].mxu0 %v406
    %v509 = vpop.f32.mrb[0].mxu0
    %v510 = vadd.f32 %v381, %v509
    %v511 = vpop.f32.mrb[0].mxu0
    %512 = vdwg.mxu0
    %v513 = vld [vmem:[%s6] sm:$0xff]
    %v514 = vld [vmem:[%s6 + $0x8] sm:$0xff]
    %v515 = vld [vmem:[%s6 + $0x10] sm:$0xff]
    %v516 = vld [vmem:[%s6 + $0x18] sm:$0xff]
    %v517 = vld [vmem:[%s6 + $0x20] sm:$0xff]
    %v518 = vld [vmem:[%s6 + $0x28] sm:$0xff]
    %v519 = vld [vmem:[%s7] sm:$0x1]
    %v521 = vlaneseq
    %v522 = vshrl.u32 %v521, 7
    %v523 = vsub.s32 0, %v522
    %v524 = vrot.slane %v519, %v523
    %526 = vmatprep.subr.mxu0 0.0
    %527 = vmatpush1.msra.mxu0 %v513
    %528 = vmatprep.subr.mxu0 0.0
    %529 = vmatpush1.msra.mxu0 %v514
    %530 = vmatprep.subr.mxu0 0.0
    %531 = vmatpush1.msra.mxu0 %v515
    %532 = vmatprep.subr.mxu0 0.0
    %533 = vmatpush1.msra.mxu0 %v516
    %534 = vmatprep.subr.mxu0 0.0
    %535 = vmatpush1.msra.mxu0 %v517
    %536 = vmatprep.subr.mxu0 0.0
    %537 = vmatpush1.msra.mxu0 %v518
    %538 = vmatprep.subr.mxu0 0.0
    %539 = vmatpush1.msra.mxu0 0.0
    %540 = vmatprep.subr.mxu0 0.0
    %541 = vmatpush1.msra.mxu0 0.0
    %542 = vmatprep.subr.mxu0 0.0
    %543 = vmatpush1.msra.mxu0 0.0
    %544 = vmatprep.subr.mxu0 0.0
    %545 = vmatpush1.msra.mxu0 0.0
    %546 = vmatprep.subr.mxu0 0.0
    %547 = vmatpush1.msra.mxu0 0.0
    %548 = vmatprep.subr.mxu0 0.0
    %549 = vmatpush1.msra.mxu0 0.0
    %550 = vmatprep.subr.mxu0 0.0
    %551 = vmatpush1.msra.mxu0 0.0
    %552 = vmatprep.subr.mxu0 0.0
    %553 = vmatpush1.msra.mxu0 0.0
    %554 = vmatprep.subr.mxu0 0.0
    %555 = vmatpush1.msra.mxu0 0.0
    %556 = vmatprep.subr.mxu0 0.0
    %557 = vmatpush1.msra.mxu0 0.0
    %558 = vmatprep.subr.mxu0 0.0
    %559 = vmatpush1.msra.mxu0 0.0
    %560 = vmatprep.subr.mxu0 0.0
    %561 = vmatpush1.msra.mxu0 0.0
    %562 = vmatprep.subr.mxu0 0.0
    %563 = vmatpush1.msra.mxu0 0.0
    %564 = vmatprep.subr.mxu0 0.0
    %565 = vmatpush1.msra.mxu0 0.0
    %566 = vmatprep.subr.mxu0 0.0
    %567 = vmatpush1.msra.mxu0 0.0
    %568 = vmatprep.subr.mxu0 0.0
    %569 = vmatpush1.msra.mxu0 0.0
    %570 = vmatprep.subr.mxu0 0.0
    %571 = vmatpush1.msra.mxu0 0.0
    %572 = vmatprep.subr.mxu0 0.0
    %573 = vmatpush1.msra.mxu0 0.0
    %574 = vmatprep.subr.mxu0 0.0
    %575 = vmatpush1.msra.mxu0 0.0
    %576 = vmatprep.subr.mxu0 0.0
    %577 = vmatpush1.msra.mxu0 0.0
    %578 = vmatprep.subr.mxu0 0.0
    %579 = vmatpush1.msra.mxu0 0.0
    %580 = vmatprep.subr.mxu0 0.0
    %581 = vmatpush1.msra.mxu0 0.0
    %582 = vmatprep.subr.mxu0 0.0
    %583 = vmatpush1.msra.mxu0 0.0
    %584 = vmatprep.subr.mxu0 0.0
    %585 = vmatpush1.msra.mxu0 0.0
    %586 = vmatprep.subr.mxu0 0.0
    %587 = vmatpush1.msra.mxu0 0.0
    %588 = vmatprep.subr.mxu0 0.0
    %589 = vmatpush1.msra.mxu0 0.0
    %590 = vmatprep.mubr.f32.mxu0 0.0
    %591 = vmatmul.mubr.f32.gmra.mrb[0].mxu0 %v385
    %v592 = vpop.f32.mrb[0].mxu0
    %v593 = vadd.f32 %v524, %v592
    %v594 = vpop.f32.mrb[0].mxu0
    %595 = vmatprep.mubr.f32.mxu0 0.0
    %596 = vmatmul.mubr.f32.gmra.mrb[0].mxu0 %v388
    %v597 = vpop.f32.mrb[0].mxu0
    %v598 = vadd.f32 %v524, %v597
    %v599 = vpop.f32.mrb[0].mxu0
    %600 = vmatprep.mubr.f32.mxu0 0.0
    %601 = vmatmul.mubr.f32.gmra.mrb[0].mxu0 %v391
    %v602 = vpop.f32.mrb[0].mxu0
    %v603 = vadd.f32 %v524, %v602
    %v604 = vpop.f32.mrb[0].mxu0
    %605 = vmatprep.mubr.f32.mxu0 0.0
    %606 = vmatmul.mubr.f32.gmra.mrb[0].mxu0 %v394
    %v607 = vpop.f32.mrb[0].mxu0
    %v608 = vadd.f32 %v524, %v607
    %v609 = vpop.f32.mrb[0].mxu0
    %610 = vmatprep.mubr.f32.mxu0 0.0
    %611 = vmatmul.mubr.f32.gmra.mrb[0].mxu0 %v397
    %v612 = vpop.f32.mrb[0].mxu0
    %v613 = vadd.f32 %v524, %v612
    %v614 = vpop.f32.mrb[0].mxu0
    %615 = vmatprep.mubr.f32.mxu0 0.0
    %616 = vmatmul.mubr.f32.gmra.mrb[0].mxu0 %v400
    %v617 = vpop.f32.mrb[0].mxu0
    %v618 = vadd.f32 %v524, %v617
    %v619 = vpop.f32.mrb[0].mxu0
    %620 = vmatprep.mubr.f32.mxu0 0.0
    %621 = vmatmul.mubr.f32.gmra.mrb[0].mxu0 %v403
    %v622 = vpop.f32.mrb[0].mxu0
    %v623 = vadd.f32 %v524, %v622
    %v624 = vpop.f32.mrb[0].mxu0
    %625 = vmatprep.mubr.f32.mxu0 0.0
    %626 = vmatmul.mubr.f32.gmra.mrb[0].mxu0 %v406
    %v627 = vpop.f32.mrb[0].mxu0
    %v628 = vadd.f32 %v524, %v627
    %v629 = vpop.f32.mrb[0].mxu0
    %630 = vdwg.mxu0
    %vm631 = vcmask 64512
    %v633 = vsel %vm631, %v352, 0
    %v636 = vsel %vm631, %v357, 0
    %v639 = vsel %vm631, %v362, 0
    %v642 = vsel %vm631, %v367, 0
    %v645 = vsel %vm631, %v475, 0
    %v648 = vsel %vm631, %v480, 0
    %v651 = vsel %vm631, %v485, 0
    %v654 = vsel %vm631, %v490, 0
    %v657 = vsel %vm631, %v495, 0
    %v660 = vsel %vm631, %v500, 0
    %v663 = vsel %vm631, %v505, 0
    %v666 = vsel %vm631, %v510, 0
    %668 = vmatprep.subr.mxu0 0.0
    %669 = vmatpush1.xpose.msra.mxu0 %v645
    %670 = vmatprep.subr.mxu0 0.0
    %671 = vmatpush1.xpose.msra.mxu0 %v648
    %672 = vmatprep.subr.mxu0 0.0
    %673 = vmatpush1.xpose.msra.mxu0 %v651
    %674 = vmatprep.subr.mxu0 0.0
    %675 = vmatpush1.xpose.msra.mxu0 %v654
    %676 = vmatprep.subr.mxu0 0.0
    %677 = vmatpush1.xpose.msra.mxu0 %v657
    %678 = vmatprep.subr.mxu0 0.0
    %679 = vmatpush1.xpose.msra.mxu0 %v660
    %680 = vmatprep.subr.mxu0 0.0
    %681 = vmatpush1.xpose.msra.mxu0 %v663
    %682 = vmatprep.subr.mxu0 0.0
    %683 = vmatpush1.xpose.msra.mxu0 %v666
    %684 = vmatprep.subr.mxu0 0.0
    %685 = vmatpush1.xpose.msra.mxu0 0.0
    %686 = vmatprep.subr.mxu0 0.0
    %687 = vmatpush1.xpose.msra.mxu0 0.0
    %688 = vmatprep.subr.mxu0 0.0
    %689 = vmatpush1.xpose.msra.mxu0 0.0
    %690 = vmatprep.subr.mxu0 0.0
    %691 = vmatpush1.xpose.msra.mxu0 0.0
    %692 = vmatprep.subr.mxu0 0.0
    %693 = vmatpush1.xpose.msra.mxu0 0.0
    %694 = vmatprep.subr.mxu0 0.0
    %695 = vmatpush1.xpose.msra.mxu0 0.0
    %696 = vmatprep.subr.mxu0 0.0
    %697 = vmatpush1.xpose.msra.mxu0 0.0
    %698 = vmatprep.subr.mxu0 0.0
    %699 = vmatpush1.xpose.msra.mxu0 0.0
    %700 = vmatprep.subr.mxu0 0.0
    %701 = vmatpush1.xpose.msra.mxu0 0.0
    %702 = vmatprep.subr.mxu0 0.0
    %703 = vmatpush1.xpose.msra.mxu0 0.0
    %704 = vmatprep.subr.mxu0 0.0
    %705 = vmatpush1.xpose.msra.mxu0 0.0
    %706 = vmatprep.subr.mxu0 0.0
    %707 = vmatpush1.xpose.msra.mxu0 0.0
    %708 = vmatprep.subr.mxu0 0.0
    %709 = vmatpush1.xpose.msra.mxu0 0.0
    %710 = vmatprep.subr.mxu0 0.0
    %711 = vmatpush1.xpose.msra.mxu0 0.0
    %712 = vmatprep.subr.mxu0 0.0
    %713 = vmatpush1.xpose.msra.mxu0 0.0
    %714 = vmatprep.subr.mxu0 0.0
    %715 = vmatpush1.xpose.msra.mxu0 0.0
    %716 = vmatprep.subr.mxu0 0.0
    %717 = vmatpush1.xpose.msra.mxu0 0.0
    %718 = vmatprep.subr.mxu0 0.0
    %719 = vmatpush1.xpose.msra.mxu0 0.0
    %720 = vmatprep.subr.mxu0 0.0
    %721 = vmatpush1.xpose.msra.mxu0 0.0
    %722 = vmatprep.subr.mxu0 0.0
    %723 = vmatpush1.xpose.msra.mxu0 0.0
    %724 = vmatprep.subr.mxu0 0.0
    %725 = vmatpush1.xpose.msra.mxu0 0.0
    %726 = vmatprep.subr.mxu0 0.0
    %727 = vmatpush1.xpose.msra.mxu0 0.0
    %728 = vmatprep.subr.mxu0 0.0
    %729 = vmatpush1.xpose.msra.mxu0 0.0
    %730 = vmatprep.subr.mxu0 0.0
    %731 = vmatpush1.xpose.msra.mxu0 0.0
    %732 = vmatprep.mubr.f32.mxu0 0.0
    %733 = vmatmul.mubr.f32.gmra.mrb[0].mxu0 %v633
    %v734 = vpop.f32.mrb[0].mxu0
    %v735 = vadd.f32 0.0, %v734
    %v736 = vpop.f32.mrb[0].mxu0
    %737 = vmatprep.mubr.f32.mxu0 0.0
    %738 = vmatmul.mubr.f32.gmra.mrb[0].mxu0 %v636
    %v739 = vpop.f32.mrb[0].mxu0
    %v740 = vadd.f32 0.0, %v739
    %v741 = vpop.f32.mrb[0].mxu0
    %742 = vmatprep.mubr.f32.mxu0 0.0
    %743 = vmatmul.mubr.f32.gmra.mrb[0].mxu0 %v639
    %v744 = vpop.f32.mrb[0].mxu0
    %v745 = vadd.f32 0.0, %v744
    %v746 = vpop.f32.mrb[0].mxu0
    %747 = vmatprep.mubr.f32.mxu0 0.0
    %748 = vmatmul.mubr.f32.gmra.mrb[0].mxu0 %v642
    %v749 = vpop.f32.mrb[0].mxu0
    %v750 = vadd.f32 0.0, %v749
    %v751 = vpop.f32.mrb[0].mxu0
    %752 = vdwg.mxu0
    %v753 = vmul.f32 %v735, 0.35355338
    %v754 = vmul.f32 %v740, 0.35355338
    %v755 = vmul.f32 %v745, 0.35355338
    %v756 = vmul.f32 %v750, 0.35355338
    %v757 = vadd.f32 %v753, %v209
    %v758 = vadd.f32 %v754, %v210
    %v759 = vadd.f32 %v755, %v211
    %v760 = vadd.f32 %v756, %v212
    %vm761 = vcmask 523264
    %v762 = vsel %vm761, %v757, -inf
    %763 = vmax.xlane.f32.xlu0 %v762
    %v764 = vpop.xlane.xlu0 %763
    %v765 = vsel %vm761, %v758, -inf
    %766 = vmax.xlane.f32.xlu0 %v765
    %v767 = vpop.xlane.xlu0 %766
    %v768 = vsel %vm761, %v759, -inf
    %769 = vmax.xlane.f32.xlu0 %v768
    %v770 = vpop.xlane.xlu0 %769
    %v771 = vsel %vm761, %v760, -inf
    %772 = vmax.xlane.f32.xlu0 %v771
    %v773 = vpop.xlane.xlu0 %772
    %v774 = vsub.f32 %v757, %v764
    %v775 = vsub.f32 %v758, %v767
    %v776 = vsub.f32 %v759, %v770
    %v777 = vsub.f32 %v760, %v773
    %v778 = vmul.f32 %v774, 1.442695
    %v779 = vpow.pop %v778
    %v780 = vmul.f32 %v775, 1.442695
    %v781 = vpow.pop %v780
    %v782 = vmul.f32 %v776, 1.442695
    %v783 = vpow.pop %v782
    %v784 = vmul.f32 %v777, 1.442695
    %v785 = vpow.pop %v784
    %v786 = vsel %vm761, %v779, 0.0
    %787 = vadd.xlane.f32.xlu0 %v786
    %v788 = vpop.xlane.xlu0 %787
    %v789 = vsel %vm761, %v781, 0.0
    %790 = vadd.xlane.f32.xlu0 %v789
    %v791 = vpop.xlane.xlu0 %790
    %v792 = vsel %vm761, %v783, 0.0
    %793 = vadd.xlane.f32.xlu0 %v792
    %v794 = vpop.xlane.xlu0 %793
    %v795 = vsel %vm761, %v785, 0.0
    %796 = vadd.xlane.f32.xlu0 %v795
    %v797 = vpop.xlane.xlu0 %796
    %v798 = vrcp.pop %v788
    %v799 = vrcp.pop %v791
    %v800 = vrcp.pop %v794
    %v801 = vrcp.pop %v797
    %v802 = vmul.f32 %v779, %v798
    %v803 = vmul.f32 %v781, %v799
    %v804 = vmul.f32 %v783, %v800
    %v805 = vmul.f32 %v785, %v801
    %v807 = vsel %vm761, %v802, 0
    %v810 = vsel %vm761, %v803, 0
    %v813 = vsel %vm761, %v804, 0
    %v816 = vsel %vm761, %v805, 0
    %818 = vmatprep.subr.mxu0 0.0
    %819 = vmatpush1.msra.mxu0 %v593
    %820 = vmatprep.subr.mxu0 0.0
    %821 = vmatpush1.msra.mxu0 %v598
    %822 = vmatprep.subr.mxu0 0.0
    %823 = vmatpush1.msra.mxu0 %v603
    %824 = vmatprep.subr.mxu0 0.0
    %825 = vmatpush1.msra.mxu0 %v608
    %826 = vmatprep.subr.mxu0 0.0
    %827 = vmatpush1.msra.mxu0 %v613
    %828 = vmatprep.subr.mxu0 0.0
    %829 = vmatpush1.msra.mxu0 %v618
    %830 = vmatprep.subr.mxu0 0.0
    %831 = vmatpush1.msra.mxu0 %v623
    %832 = vmatprep.subr.mxu0 0.0
    %833 = vmatpush1.msra.mxu0 %v628
    %834 = vmatprep.subr.mxu0 0.0
    %835 = vmatpush1.msra.mxu0 0.0
    %836 = vmatprep.subr.mxu0 0.0
    %837 = vmatpush1.msra.mxu0 0.0
    %838 = vmatprep.subr.mxu0 0.0
    %839 = vmatpush1.msra.mxu0 0.0
    %840 = vmatprep.subr.mxu0 0.0
    %841 = vmatpush1.msra.mxu0 0.0
    %842 = vmatprep.subr.mxu0 0.0
    %843 = vmatpush1.msra.mxu0 0.0
    %844 = vmatprep.subr.mxu0 0.0
    %845 = vmatpush1.msra.mxu0 0.0
    %846 = vmatprep.subr.mxu0 0.0
    %847 = vmatpush1.msra.mxu0 0.0
    %848 = vmatprep.subr.mxu0 0.0
    %849 = vmatpush1.msra.mxu0 0.0
    %850 = vmatprep.subr.mxu0 0.0
    %851 = vmatpush1.msra.mxu0 0.0
    %852 = vmatprep.subr.mxu0 0.0
    %853 = vmatpush1.msra.mxu0 0.0
    %854 = vmatprep.subr.mxu0 0.0
    %855 = vmatpush1.msra.mxu0 0.0
    %856 = vmatprep.subr.mxu0 0.0
    %857 = vmatpush1.msra.mxu0 0.0
    %858 = vmatprep.subr.mxu0 0.0
    %859 = vmatpush1.msra.mxu0 0.0
    %860 = vmatprep.subr.mxu0 0.0
    %861 = vmatpush1.msra.mxu0 0.0
    %862 = vmatprep.subr.mxu0 0.0
    %863 = vmatpush1.msra.mxu0 0.0
    %864 = vmatprep.subr.mxu0 0.0
    %865 = vmatpush1.msra.mxu0 0.0
    %866 = vmatprep.subr.mxu0 0.0
    %867 = vmatpush1.msra.mxu0 0.0
    %868 = vmatprep.subr.mxu0 0.0
    %869 = vmatpush1.msra.mxu0 0.0
    %870 = vmatprep.subr.mxu0 0.0
    %871 = vmatpush1.msra.mxu0 0.0
    %872 = vmatprep.subr.mxu0 0.0
    %873 = vmatpush1.msra.mxu0 0.0
    %874 = vmatprep.subr.mxu0 0.0
    %875 = vmatpush1.msra.mxu0 0.0
    %876 = vmatprep.subr.mxu0 0.0
    %877 = vmatpush1.msra.mxu0 0.0
    %878 = vmatprep.subr.mxu0 0.0
    %879 = vmatpush1.msra.mxu0 0.0
    %880 = vmatprep.subr.mxu0 0.0
    %881 = vmatpush1.msra.mxu0 0.0
    %882 = vmatprep.mubr.f32.mxu0 0.0
    %883 = vmatmul.mubr.f32.gmra.mrb[0].mxu0 %v807
    %v884 = vpop.f32.mrb[0].mxu0
    %v885 = vadd.f32 0.0, %v884
    %v886 = vpop.f32.mrb[0].mxu0
    %887 = vmatprep.mubr.f32.mxu0 0.0
    %888 = vmatmul.mubr.f32.gmra.mrb[0].mxu0 %v810
    %v889 = vpop.f32.mrb[0].mxu0
    %v890 = vadd.f32 0.0, %v889
    %v891 = vpop.f32.mrb[0].mxu0
    %892 = vmatprep.mubr.f32.mxu0 0.0
    %893 = vmatmul.mubr.f32.gmra.mrb[0].mxu0 %v813
    %v894 = vpop.f32.mrb[0].mxu0
    %v895 = vadd.f32 0.0, %v894
    %v896 = vpop.f32.mrb[0].mxu0
    %897 = vmatprep.mubr.f32.mxu0 0.0
    %898 = vmatmul.mubr.f32.gmra.mrb[0].mxu0 %v816
    %v899 = vpop.f32.mrb[0].mxu0
    %v900 = vadd.f32 0.0, %v899
    %v901 = vpop.f32.mrb[0].mxu0
    %902 = vdwg.mxu0
    %903 = vst.msk [vmem:[#allocation2] sm:$0xff] %vm631, %v885
    %904 = vst.msk [vmem:[#allocation2 + $0x8] sm:$0xff] %vm631, %v890
    %905 = vst.msk [vmem:[#allocation2 + $0x10] sm:$0xff] %vm631, %v895
    %906 = vst.msk [vmem:[#allocation2 + $0x18] sm:$0xff] %vm631, %v900
    %907 = vrot.lane.b32.xlu0 %v352, 120
    %v908 = vpop.permute.xlu0 %907
    %909 = vrot.lane.b32.xlu0 %v357, 120
    %v910 = vpop.permute.xlu0 %909
    %911 = vrot.lane.b32.xlu0 %v362, 120
    %v912 = vpop.permute.xlu0 %911
    %913 = vrot.lane.b32.xlu0 %v367, 120
    %v914 = vpop.permute.xlu0 %913
    %915 = vrot.lane.b32.xlu0 %v475, 120
    %v916 = vpop.permute.xlu0 %915
    %917 = vrot.lane.b32.xlu0 %v480, 120
    %v918 = vpop.permute.xlu0 %917
    %919 = vrot.lane.b32.xlu0 %v485, 120
    %v920 = vpop.permute.xlu0 %919
    %921 = vrot.lane.b32.xlu0 %v490, 120
    %v922 = vpop.permute.xlu0 %921
    %923 = vrot.lane.b32.xlu0 %v495, 120
    %v924 = vpop.permute.xlu0 %923
    %925 = vrot.lane.b32.xlu0 %v500, 120
    %v926 = vpop.permute.xlu0 %925
    %927 = vrot.lane.b32.xlu0 %v505, 120
    %v928 = vpop.permute.xlu0 %927
    %929 = vrot.lane.b32.xlu0 %v510, 120
    %v930 = vpop.permute.xlu0 %929
    %v931 = vsel %vm631, %v908, 0
    %v933 = vsel %vm631, %v910, 0
    %v935 = vsel %vm631, %v912, 0
    %v937 = vsel %vm631, %v914, 0
    %v939 = vsel %vm631, %v916, 0
    %v941 = vsel %vm631, %v918, 0
    %v943 = vsel %vm631, %v920, 0
    %v945 = vsel %vm631, %v922, 0
    %v947 = vsel %vm631, %v924, 0
    %v949 = vsel %vm631, %v926, 0
    %v951 = vsel %vm631, %v928, 0
    %v953 = vsel %vm631, %v930, 0
    %955 = vmatprep.subr.mxu0 0.0
    %956 = vmatpush1.xpose.msra.mxu0 %v939
    %957 = vmatprep.subr.mxu0 0.0
    %958 = vmatpush1.xpose.msra.mxu0 %v941
    %959 = vmatprep.subr.mxu0 0.0
    %960 = vmatpush1.xpose.msra.mxu0 %v943
    %961 = vmatprep.subr.mxu0 0.0
    %962 = vmatpush1.xpose.msra.mxu0 %v945
    %963 = vmatprep.subr.mxu0 0.0
    %964 = vmatpush1.xpose.msra.mxu0 %v947
    %965 = vmatprep.subr.mxu0 0.0
    %966 = vmatpush1.xpose.msra.mxu0 %v949
    %967 = vmatprep.subr.mxu0 0.0
    %968 = vmatpush1.xpose.msra.mxu0 %v951
    %969 = vmatprep.subr.mxu0 0.0
    %970 = vmatpush1.xpose.msra.mxu0 %v953
    %971 = vmatprep.subr.mxu0 0.0
    %972 = vmatpush1.xpose.msra.mxu0 0.0
    %973 = vmatprep.subr.mxu0 0.0
    %974 = vmatpush1.xpose.msra.mxu0 0.0
    %975 = vmatprep.subr.mxu0 0.0
    %976 = vmatpush1.xpose.msra.mxu0 0.0
    %977 = vmatprep.subr.mxu0 0.0
    %978 = vmatpush1.xpose.msra.mxu0 0.0
    %979 = vmatprep.subr.mxu0 0.0
    %980 = vmatpush1.xpose.msra.mxu0 0.0
    %981 = vmatprep.subr.mxu0 0.0
    %982 = vmatpush1.xpose.msra.mxu0 0.0
    %983 = vmatprep.subr.mxu0 0.0
    %984 = vmatpush1.xpose.msra.mxu0 0.0
    %985 = vmatprep.subr.mxu0 0.0
    %986 = vmatpush1.xpose.msra.mxu0 0.0
    %987 = vmatprep.subr.mxu0 0.0
    %988 = vmatpush1.xpose.msra.mxu0 0.0
    %989 = vmatprep.subr.mxu0 0.0
    %990 = vmatpush1.xpose.msra.mxu0 0.0
    %991 = vmatprep.subr.mxu0 0.0
    %992 = vmatpush1.xpose.msra.mxu0 0.0
    %993 = vmatprep.subr.mxu0 0.0
    %994 = vmatpush1.xpose.msra.mxu0 0.0
    %995 = vmatprep.subr.mxu0 0.0
    %996 = vmatpush1.xpose.msra.mxu0 0.0
    %997 = vmatprep.subr.mxu0 0.0
    %998 = vmatpush1.xpose.msra.mxu0 0.0
    %999 = vmatprep.subr.mxu0 0.0
    %1000 = vmatpush1.xpose.msra.mxu0 0.0
    %1001 = vmatprep.subr.mxu0 0.0
    %1002 = vmatpush1.xpose.msra.mxu0 0.0
    %1003 = vmatprep.subr.mxu0 0.0
    %1004 = vmatpush1.xpose.msra.mxu0 0.0
    %1005 = vmatprep.subr.mxu0 0.0
    %1006 = vmatpush1.xpose.msra.mxu0 0.0
    %1007 = vmatprep.subr.mxu0 0.0
    %1008 = vmatpush1.xpose.msra.mxu0 0.0
    %1009 = vmatprep.subr.mxu0 0.0
    %1010 = vmatpush1.xpose.msra.mxu0 0.0
    %1011 = vmatprep.subr.mxu0 0.0
    %1012 = vmatpush1.xpose.msra.mxu0 0.0
    %1013 = vmatprep.subr.mxu0 0.0
    %1014 = vmatpush1.xpose.msra.mxu0 0.0
    %1015 = vmatprep.subr.mxu0 0.0
    %1016 = vmatpush1.xpose.msra.mxu0 0.0
    %1017 = vmatprep.subr.mxu0 0.0
    %1018 = vmatpush1.xpose.msra.mxu0 0.0
    %1019 = vmatprep.mubr.f32.mxu0 0.0
    %1020 = vmatmul.mubr.f32.gmra.mrb[0].mxu0 %v931
    %v1021 = vpop.f32.mrb[0].mxu0
    %v1022 = vadd.f32 0.0, %v1021
    %v1023 = vpop.f32.mrb[0].mxu0
    %1024 = vmatprep.mubr.f32.mxu0 0.0
    %1025 = vmatmul.mubr.f32.gmra.mrb[0].mxu0 %v933
    %v1026 = vpop.f32.mrb[0].mxu0
    %v1027 = vadd.f32 0.0, %v1026
    %v1028 = vpop.f32.mrb[0].mxu0
    %1029 = vmatprep.mubr.f32.mxu0 0.0
    %1030 = vmatmul.mubr.f32.gmra.mrb[0].mxu0 %v935
    %v1031 = vpop.f32.mrb[0].mxu0
    %v1032 = vadd.f32 0.0, %v1031
    %v1033 = vpop.f32.mrb[0].mxu0
    %1034 = vmatprep.mubr.f32.mxu0 0.0
    %1035 = vmatmul.mubr.f32.gmra.mrb[0].mxu0 %v937
    %v1036 = vpop.f32.mrb[0].mxu0
    %v1037 = vadd.f32 0.0, %v1036
    %v1038 = vpop.f32.mrb[0].mxu0
    %1039 = vdwg.mxu0
    %v1040 = vmul.f32 %v1022, 0.35355338
    %v1041 = vmul.f32 %v1027, 0.35355338
    %v1042 = vmul.f32 %v1032, 0.35355338
    %v1043 = vmul.f32 %v1037, 0.35355338
    %v1044 = vadd.f32 %v1040, %v209
    %v1045 = vadd.f32 %v1041, %v210
    %v1046 = vadd.f32 %v1042, %v211
    %v1047 = vadd.f32 %v1043, %v212
    %v1048 = vsel %vm761, %v1044, -inf
    %1049 = vmax.xlane.f32.xlu0 %v1048
    %v1050 = vpop.xlane.xlu0 %1049
    %v1051 = vsel %vm761, %v1045, -inf
    %1052 = vmax.xlane.f32.xlu0 %v1051
    %v1053 = vpop.xlane.xlu0 %1052
    %v1054 = vsel %vm761, %v1046, -inf
    %1055 = vmax.xlane.f32.xlu0 %v1054
    %v1056 = vpop.xlane.xlu0 %1055
    %v1057 = vsel %vm761, %v1047, -inf
    %1058 = vmax.xlane.f32.xlu0 %v1057
    %v1059 = vpop.xlane.xlu0 %1058
    %v1060 = vsub.f32 %v1044, %v1050
    %v1061 = vsub.f32 %v1045, %v1053
    %v1062 = vsub.f32 %v1046, %v1056
    %v1063 = vsub.f32 %v1047, %v1059
    %v1064 = vmul.f32 %v1060, 1.442695
    %v1065 = vpow.pop %v1064
    %v1066 = vmul.f32 %v1061, 1.442695
    %v1067 = vpow.pop %v1066
    %v1068 = vmul.f32 %v1062, 1.442695
    %v1069 = vpow.pop %v1068
    %v1070 = vmul.f32 %v1063, 1.442695
    %v1071 = vpow.pop %v1070
    %v1072 = vsel %vm761, %v1065, 0.0
    %1073 = vadd.xlane.f32.xlu0 %v1072
    %v1074 = vpop.xlane.xlu0 %1073
    %v1075 = vsel %vm761, %v1067, 0.0
    %1076 = vadd.xlane.f32.xlu0 %v1075
    %v1077 = vpop.xlane.xlu0 %1076
    %v1078 = vsel %vm761, %v1069, 0.0
    %1079 = vadd.xlane.f32.xlu0 %v1078
    %v1080 = vpop.xlane.xlu0 %1079
    %v1081 = vsel %vm761, %v1071, 0.0
    %1082 = vadd.xlane.f32.xlu0 %v1081
    %v1083 = vpop.xlane.xlu0 %1082
    %v1084 = vrcp.pop %v1074
    %v1085 = vrcp.pop %v1077
    %v1086 = vrcp.pop %v1080
    %v1087 = vrcp.pop %v1083
    %v1088 = vmul.f32 %v1065, %v1084
    %v1089 = vmul.f32 %v1067, %v1085
    %v1090 = vmul.f32 %v1069, %v1086
    %v1091 = vmul.f32 %v1071, %v1087
    %1100 = vrot.lane.b32.xlu0 %v593, 120
    %v1101 = vpop.permute.xlu0 %1100
    %1102 = vrot.lane.b32.xlu0 %v598, 120
    %v1103 = vpop.permute.xlu0 %1102
    %1104 = vrot.lane.b32.xlu0 %v603, 120
    %v1105 = vpop.permute.xlu0 %1104
    %1106 = vrot.lane.b32.xlu0 %v608, 120
    %v1107 = vpop.permute.xlu0 %1106
    %1108 = vrot.lane.b32.xlu0 %v613, 120
    %v1109 = vpop.permute.xlu0 %1108
    %1110 = vrot.lane.b32.xlu0 %v618, 120
    %v1111 = vpop.permute.xlu0 %1110
    %1112 = vrot.lane.b32.xlu0 %v623, 120
    %v1113 = vpop.permute.xlu0 %1112
    %1114 = vrot.lane.b32.xlu0 %v628, 120
    %v1115 = vpop.permute.xlu0 %1114
    %v1125 = vsel %vm761, %v1088, 0
    %v1128 = vsel %vm761, %v1089, 0
    %v1131 = vsel %vm761, %v1090, 0
    %v1134 = vsel %vm761, %v1091, 0
    %1136 = vmatprep.subr.mxu0 0.0
    %1137 = vmatpush1.msra.mxu0 %v1101
    %1138 = vmatprep.subr.mxu0 0.0
    %1139 = vmatpush1.msra.mxu0 %v1103
    %1140 = vmatprep.subr.mxu0 0.0
    %1141 = vmatpush1.msra.mxu0 %v1105
    %1142 = vmatprep.subr.mxu0 0.0
    %1143 = vmatpush1.msra.mxu0 %v1107
    %1144 = vmatprep.subr.mxu0 0.0
    %1145 = vmatpush1.msra.mxu0 %v1109
    %1146 = vmatprep.subr.mxu0 0.0
    %1147 = vmatpush1.msra.mxu0 %v1111
    %1148 = vmatprep.subr.mxu0 0.0
    %1149 = vmatpush1.msra.mxu0 %v1113
    %1150 = vmatprep.subr.mxu0 0.0
    %1151 = vmatpush1.msra.mxu0 %v1115
    %1152 = vmatprep.subr.mxu0 0.0
    %1153 = vmatpush1.msra.mxu0 0.0
    %1154 = vmatprep.subr.mxu0 0.0
    %1155 = vmatpush1.msra.mxu0 0.0
    %1156 = vmatprep.subr.mxu0 0.0
    %1157 = vmatpush1.msra.mxu0 0.0
    %1158 = vmatprep.subr.mxu0 0.0
    %1159 = vmatpush1.msra.mxu0 0.0
    %1160 = vmatprep.subr.mxu0 0.0
    %1161 = vmatpush1.msra.mxu0 0.0
    %1162 = vmatprep.subr.mxu0 0.0
    %1163 = vmatpush1.msra.mxu0 0.0
    %1164 = vmatprep.subr.mxu0 0.0
    %1165 = vmatpush1.msra.mxu0 0.0
    %1166 = vmatprep.subr.mxu0 0.0
    %1167 = vmatpush1.msra.mxu0 0.0
    %1168 = vmatprep.subr.mxu0 0.0
    %1169 = vmatpush1.msra.mxu0 0.0
    %1170 = vmatprep.subr.mxu0 0.0
    %1171 = vmatpush1.msra.mxu0 0.0
    %1172 = vmatprep.subr.mxu0 0.0
    %1173 = vmatpush1.msra.mxu0 0.0
    %1174 = vmatprep.subr.mxu0 0.0
    %1175 = vmatpush1.msra.mxu0 0.0
    %1176 = vmatprep.subr.mxu0 0.0
    %1177 = vmatpush1.msra.mxu0 0.0
    %1178 = vmatprep.subr.mxu0 0.0
    %1179 = vmatpush1.msra.mxu0 0.0
    %1180 = vmatprep.subr.mxu0 0.0
    %1181 = vmatpush1.msra.mxu0 0.0
    %1182 = vmatprep.subr.mxu0 0.0
    %1183 = vmatpush1.msra.mxu0 0.0
    %1184 = vmatprep.subr.mxu0 0.0
    %1185 = vmatpush1.msra.mxu0 0.0
    %1186 = vmatprep.subr.mxu0 0.0
    %1187 = vmatpush1.msra.mxu0 0.0
    %1188 = vmatprep.subr.mxu0 0.0
    %1189 = vmatpush1.msra.mxu0 0.0
    %1190 = vmatprep.subr.mxu0 0.0
    %1191 = vmatpush1.msra.mxu0 0.0
    %1192 = vmatprep.subr.mxu0 0.0
    %1193 = vmatpush1.msra.mxu0 0.0
    %1194 = vmatprep.subr.mxu0 0.0
    %1195 = vmatpush1.msra.mxu0 0.0
    %1196 = vmatprep.subr.mxu0 0.0
    %1197 = vmatpush1.msra.mxu0 0.0
    %1198 = vmatprep.subr.mxu0 0.0
    %1199 = vmatpush1.msra.mxu0 0.0
    %1200 = vmatprep.mubr.f32.mxu0 0.0
    %1201 = vmatmul.mubr.f32.gmra.mrb[0].mxu0 %v1125
    %v1202 = vpop.f32.mrb[0].mxu0
    %v1203 = vadd.f32 0.0, %v1202
    %v1204 = vpop.f32.mrb[0].mxu0
    %1205 = vmatprep.mubr.f32.mxu0 0.0
    %1206 = vmatmul.mubr.f32.gmra.mrb[0].mxu0 %v1128
    %v1207 = vpop.f32.mrb[0].mxu0
    %v1208 = vadd.f32 0.0, %v1207
    %v1209 = vpop.f32.mrb[0].mxu0
    %1210 = vmatprep.mubr.f32.mxu0 0.0
    %1211 = vmatmul.mubr.f32.gmra.mrb[0].mxu0 %v1131
    %v1212 = vpop.f32.mrb[0].mxu0
    %v1213 = vadd.f32 0.0, %v1212
    %v1214 = vpop.f32.mrb[0].mxu0
    %1215 = vmatprep.mubr.f32.mxu0 0.0
    %1216 = vmatmul.mubr.f32.gmra.mrb[0].mxu0 %v1134
    %v1217 = vpop.f32.mrb[0].mxu0
    %v1218 = vadd.f32 0.0, %v1217
    %v1219 = vpop.f32.mrb[0].mxu0
    %1220 = vdwg.mxu0
    %1225 = vrot.lane.b32.xlu0 %v1203, 8
    %v1226 = vpop.permute.xlu0 %1225
    %1227 = vrot.lane.b32.xlu0 %v1208, 8
    %v1228 = vpop.permute.xlu0 %1227
    %1229 = vrot.lane.b32.xlu0 %v1213, 8
    %v1230 = vpop.permute.xlu0 %1229
    %1231 = vrot.lane.b32.xlu0 %v1218, 8
    %v1232 = vpop.permute.xlu0 %1231
    %vm1237 = vcmask 130112
    %1238 = vst.msk [vmem:[#allocation2] sm:$0xff] %vm1237, %v1226
    %1239 = vst.msk [vmem:[#allocation2 + $0x8] sm:$0xff] %vm1237, %v1228
    %1240 = vst.msk [vmem:[#allocation2 + $0x10] sm:$0xff] %vm1237, %v1230
    %1241 = vst.msk [vmem:[#allocation2 + $0x18] sm:$0xff] %vm1237, %v1232
    %1242 = vrot.lane.b32.xlu0 %v352, 112
    %v1243 = vpop.permute.xlu0 %1242
    %1244 = vrot.lane.b32.xlu0 %v357, 112
    %v1245 = vpop.permute.xlu0 %1244
    %1246 = vrot.lane.b32.xlu0 %v362, 112
    %v1247 = vpop.permute.xlu0 %1246
    %1248 = vrot.lane.b32.xlu0 %v367, 112
    %v1249 = vpop.permute.xlu0 %1248
    %1250 = vrot.lane.b32.xlu0 %v475, 112
    %v1251 = vpop.permute.xlu0 %1250
    %1252 = vrot.lane.b32.xlu0 %v480, 112
    %v1253 = vpop.permute.xlu0 %1252
    %1254 = vrot.lane.b32.xlu0 %v485, 112
    %v1255 = vpop.permute.xlu0 %1254
    %1256 = vrot.lane.b32.xlu0 %v490, 112
    %v1257 = vpop.permute.xlu0 %1256
    %1258 = vrot.lane.b32.xlu0 %v495, 112
    %v1259 = vpop.permute.xlu0 %1258
    %1260 = vrot.lane.b32.xlu0 %v500, 112
    %v1261 = vpop.permute.xlu0 %1260
    %1262 = vrot.lane.b32.xlu0 %v505, 112
    %v1263 = vpop.permute.xlu0 %1262
    %1264 = vrot.lane.b32.xlu0 %v510, 112
    %v1265 = vpop.permute.xlu0 %1264
    %v1266 = vsel %vm631, %v1243, 0
    %v1268 = vsel %vm631, %v1245, 0
    %v1270 = vsel %vm631, %v1247, 0
    %v1272 = vsel %vm631, %v1249, 0
    %v1274 = vsel %vm631, %v1251, 0
    %v1276 = vsel %vm631, %v1253, 0
    %v1278 = vsel %vm631, %v1255, 0
    %v1280 = vsel %vm631, %v1257, 0
    %v1282 = vsel %vm631, %v1259, 0
    %v1284 = vsel %vm631, %v1261, 0
    %v1286 = vsel %vm631, %v1263, 0
    %v1288 = vsel %vm631, %v1265, 0
    %1290 = vmatprep.subr.mxu0 0.0
    %1291 = vmatpush1.xpose.msra.mxu0 %v1274
    %1292 = vmatprep.subr.mxu0 0.0
    %1293 = vmatpush1.xpose.msra.mxu0 %v1276
    %1294 = vmatprep.subr.mxu0 0.0
    %1295 = vmatpush1.xpose.msra.mxu0 %v1278
    %1296 = vmatprep.subr.mxu0 0.0
    %1297 = vmatpush1.xpose.msra.mxu0 %v1280
    %1298 = vmatprep.subr.mxu0 0.0
    %1299 = vmatpush1.xpose.msra.mxu0 %v1282
    %1300 = vmatprep.subr.mxu0 0.0
    %1301 = vmatpush1.xpose.msra.mxu0 %v1284
    %1302 = vmatprep.subr.mxu0 0.0
    %1303 = vmatpush1.xpose.msra.mxu0 %v1286
    %1304 = vmatprep.subr.mxu0 0.0
    %1305 = vmatpush1.xpose.msra.mxu0 %v1288
    %1306 = vmatprep.subr.mxu0 0.0
    %1307 = vmatpush1.xpose.msra.mxu0 0.0
    %1308 = vmatprep.subr.mxu0 0.0
    %1309 = vmatpush1.xpose.msra.mxu0 0.0
    %1310 = vmatprep.subr.mxu0 0.0
    %1311 = vmatpush1.xpose.msra.mxu0 0.0
    %1312 = vmatprep.subr.mxu0 0.0
    %1313 = vmatpush1.xpose.msra.mxu0 0.0
    %1314 = vmatprep.subr.mxu0 0.0
    %1315 = vmatpush1.xpose.msra.mxu0 0.0
    %1316 = vmatprep.subr.mxu0 0.0
    %1317 = vmatpush1.xpose.msra.mxu0 0.0
    %1318 = vmatprep.subr.mxu0 0.0
    %1319 = vmatpush1.xpose.msra.mxu0 0.0
    %1320 = vmatprep.subr.mxu0 0.0
    %1321 = vmatpush1.xpose.msra.mxu0 0.0
    %1322 = vmatprep.subr.mxu0 0.0
    %1323 = vmatpush1.xpose.msra.mxu0 0.0
    %1324 = vmatprep.subr.mxu0 0.0
    %1325 = vmatpush1.xpose.msra.mxu0 0.0
    %1326 = vmatprep.subr.mxu0 0.0
    %1327 = vmatpush1.xpose.msra.mxu0 0.0
    %1328 = vmatprep.subr.mxu0 0.0
    %1329 = vmatpush1.xpose.msra.mxu0 0.0
    %1330 = vmatprep.subr.mxu0 0.0
    %1331 = vmatpush1.xpose.msra.mxu0 0.0
    %1332 = vmatprep.subr.mxu0 0.0
    %1333 = vmatpush1.xpose.msra.mxu0 0.0
    %1334 = vmatprep.subr.mxu0 0.0
    %1335 = vmatpush1.xpose.msra.mxu0 0.0
    %1336 = vmatprep.subr.mxu0 0.0
    %1337 = vmatpush1.xpose.msra.mxu0 0.0
    %1338 = vmatprep.subr.mxu0 0.0
    %1339 = vmatpush1.xpose.msra.mxu0 0.0
    %1340 = vmatprep.subr.mxu0 0.0
    %1341 = vmatpush1.xpose.msra.mxu0 0.0
    %1342 = vmatprep.subr.mxu0 0.0
    %1343 = vmatpush1.xpose.msra.mxu0 0.0
    %1344 = vmatprep.subr.mxu0 0.0
    %1345 = vmatpush1.xpose.msra.mxu0 0.0
    %1346 = vmatprep.subr.mxu0 0.0
    %1347 = vmatpush1.xpose.msra.mxu0 0.0
    %1348 = vmatprep.subr.mxu0 0.0
    %1349 = vmatpush1.xpose.msra.mxu0 0.0
    %1350 = vmatprep.subr.mxu0 0.0
    %1351 = vmatpush1.xpose.msra.mxu0 0.0
    %1352 = vmatprep.subr.mxu0 0.0
    %1353 = vmatpush1.xpose.msra.mxu0 0.0
    %1354 = vmatprep.mubr.f32.mxu0 0.0
    %1355 = vmatmul.mubr.f32.gmra.mrb[0].mxu0 %v1266
    %v1356 = vpop.f32.mrb[0].mxu0
    %v1357 = vadd.f32 0.0, %v1356
    %v1358 = vpop.f32.mrb[0].mxu0
    %1359 = vmatprep.mubr.f32.mxu0 0.0
    %1360 = vmatmul.mubr.f32.gmra.mrb[0].mxu0 %v1268
    %v1361 = vpop.f32.mrb[0].mxu0
    %v1362 = vadd.f32 0.0, %v1361
    %v1363 = vpop.f32.mrb[0].mxu0
    %1364 = vmatprep.mubr.f32.mxu0 0.0
    %1365 = vmatmul.mubr.f32.gmra.mrb[0].mxu0 %v1270
    %v1366 = vpop.f32.mrb[0].mxu0
    %v1367 = vadd.f32 0.0, %v1366
    %v1368 = vpop.f32.mrb[0].mxu0
    %1369 = vmatprep.mubr.f32.mxu0 0.0
    %1370 = vmatmul.mubr.f32.gmra.mrb[0].mxu0 %v1272
    %v1371 = vpop.f32.mrb[0].mxu0
    %v1372 = vadd.f32 0.0, %v1371
    %v1373 = vpop.f32.mrb[0].mxu0
    %1374 = vdwg.mxu0
    %v1375 = vmul.f32 %v1357, 0.35355338
    %v1376 = vmul.f32 %v1362, 0.35355338
    %v1377 = vmul.f32 %v1367, 0.35355338
    %v1378 = vmul.f32 %v1372, 0.35355338
    %v1379 = vadd.f32 %v1375, %v209
    %v1380 = vadd.f32 %v1376, %v210
    %v1381 = vadd.f32 %v1377, %v211
    %v1382 = vadd.f32 %v1378, %v212
    %v1383 = vsel %vm761, %v1379, -inf
    %1384 = vmax.xlane.f32.xlu0 %v1383
    %v1385 = vpop.xlane.xlu0 %1384
    %v1386 = vsel %vm761, %v1380, -inf
    %1387 = vmax.xlane.f32.xlu0 %v1386
    %v1388 = vpop.xlane.xlu0 %1387
    %v1389 = vsel %vm761, %v1381, -inf
    %1390 = vmax.xlane.f32.xlu0 %v1389
    %v1391 = vpop.xlane.xlu0 %1390
    %v1392 = vsel %vm761, %v1382, -inf
    %1393 = vmax.xlane.f32.xlu0 %v1392
    %v1394 = vpop.xlane.xlu0 %1393
    %v1395 = vsub.f32 %v1379, %v1385
    %v1396 = vsub.f32 %v1380, %v1388
    %v1397 = vsub.f32 %v1381, %v1391
    %v1398 = vsub.f32 %v1382, %v1394
    %v1399 = vmul.f32 %v1395, 1.442695
    %v1400 = vpow.pop %v1399
    %v1401 = vmul.f32 %v1396, 1.442695
    %v1402 = vpow.pop %v1401
    %v1403 = vmul.f32 %v1397, 1.442695
    %v1404 = vpow.pop %v1403
    %v1405 = vmul.f32 %v1398, 1.442695
    %v1406 = vpow.pop %v1405
    %v1407 = vsel %vm761, %v1400, 0.0
    %1408 = vadd.xlane.f32.xlu0 %v1407
    %v1409 = vpop.xlane.xlu0 %1408
    %v1410 = vsel %vm761, %v1402, 0.0
    %1411 = vadd.xlane.f32.xlu0 %v1410
    %v1412 = vpop.xlane.xlu0 %1411
    %v1413 = vsel %vm761, %v1404, 0.0
    %1414 = vadd.xlane.f32.xlu0 %v1413
    %v1415 = vpop.xlane.xlu0 %1414
    %v1416 = vsel %vm761, %v1406, 0.0
    %1417 = vadd.xlane.f32.xlu0 %v1416
    %v1418 = vpop.xlane.xlu0 %1417
    %v1419 = vrcp.pop %v1409
    %v1420 = vrcp.pop %v1412
    %v1421 = vrcp.pop %v1415
    %v1422 = vrcp.pop %v1418
    %v1423 = vmul.f32 %v1400, %v1419
    %v1424 = vmul.f32 %v1402, %v1420
    %v1425 = vmul.f32 %v1404, %v1421
    %v1426 = vmul.f32 %v1406, %v1422
    %1427 = vrot.lane.b32.xlu0 %v593, 112
    %v1428 = vpop.permute.xlu0 %1427
    %1429 = vrot.lane.b32.xlu0 %v598, 112
    %v1430 = vpop.permute.xlu0 %1429
    %1431 = vrot.lane.b32.xlu0 %v603, 112
    %v1432 = vpop.permute.xlu0 %1431
    %1433 = vrot.lane.b32.xlu0 %v608, 112
    %v1434 = vpop.permute.xlu0 %1433
    %1435 = vrot.lane.b32.xlu0 %v613, 112
    %v1436 = vpop.permute.xlu0 %1435
    %1437 = vrot.lane.b32.xlu0 %v618, 112
    %v1438 = vpop.permute.xlu0 %1437
    %1439 = vrot.lane.b32.xlu0 %v623, 112
    %v1440 = vpop.permute.xlu0 %1439
    %1441 = vrot.lane.b32.xlu0 %v628, 112
    %v1442 = vpop.permute.xlu0 %1441
    %v1452 = vsel %vm761, %v1423, 0
    %v1455 = vsel %vm761, %v1424, 0
    %v1458 = vsel %vm761, %v1425, 0
    %v1461 = vsel %vm761, %v1426, 0
    %1463 = vmatprep.subr.mxu0 0.0
    %1464 = vmatpush1.msra.mxu0 %v1428
    %1465 = vmatprep.subr.mxu0 0.0
    %1466 = vmatpush1.msra.mxu0 %v1430
    %1467 = vmatprep.subr.mxu0 0.0
    %1468 = vmatpush1.msra.mxu0 %v1432
    %1469 = vmatprep.subr.mxu0 0.0
    %1470 = vmatpush1.msra.mxu0 %v1434
    %1471 = vmatprep.subr.mxu0 0.0
    %1472 = vmatpush1.msra.mxu0 %v1436
    %1473 = vmatprep.subr.mxu0 0.0
    %1474 = vmatpush1.msra.mxu0 %v1438
    %1475 = vmatprep.subr.mxu0 0.0
    %1476 = vmatpush1.msra.mxu0 %v1440
    %1477 = vmatprep.subr.mxu0 0.0
    %1478 = vmatpush1.msra.mxu0 %v1442
    %1479 = vmatprep.subr.mxu0 0.0
    %1480 = vmatpush1.msra.mxu0 0.0
    %1481 = vmatprep.subr.mxu0 0.0
    %1482 = vmatpush1.msra.mxu0 0.0
    %1483 = vmatprep.subr.mxu0 0.0
    %1484 = vmatpush1.msra.mxu0 0.0
    %1485 = vmatprep.subr.mxu0 0.0
    %1486 = vmatpush1.msra.mxu0 0.0
    %1487 = vmatprep.subr.mxu0 0.0
    %1488 = vmatpush1.msra.mxu0 0.0
    %1489 = vmatprep.subr.mxu0 0.0
    %1490 = vmatpush1.msra.mxu0 0.0
    %1491 = vmatprep.subr.mxu0 0.0
    %1492 = vmatpush1.msra.mxu0 0.0
    %1493 = vmatprep.subr.mxu0 0.0
    %1494 = vmatpush1.msra.mxu0 0.0
    %1495 = vmatprep.subr.mxu0 0.0
    %1496 = vmatpush1.msra.mxu0 0.0
    %1497 = vmatprep.subr.mxu0 0.0
    %1498 = vmatpush1.msra.mxu0 0.0
    %1499 = vmatprep.subr.mxu0 0.0
    %1500 = vmatpush1.msra.mxu0 0.0
    %1501 = vmatprep.subr.mxu0 0.0
    %1502 = vmatpush1.msra.mxu0 0.0
    %1503 = vmatprep.subr.mxu0 0.0
    %1504 = vmatpush1.msra.mxu0 0.0
    %1505 = vmatprep.subr.mxu0 0.0
    %1506 = vmatpush1.msra.mxu0 0.0
    %1507 = vmatprep.subr.mxu0 0.0
    %1508 = vmatpush1.msra.mxu0 0.0
    %1509 = vmatprep.subr.mxu0 0.0
    %1510 = vmatpush1.msra.mxu0 0.0
    %1511 = vmatprep.subr.mxu0 0.0
    %1512 = vmatpush1.msra.mxu0 0.0
    %1513 = vmatprep.subr.mxu0 0.0
    %1514 = vmatpush1.msra.mxu0 0.0
    %1515 = vmatprep.subr.mxu0 0.0
    %1516 = vmatpush1.msra.mxu0 0.0
    %1517 = vmatprep.subr.mxu0 0.0
    %1518 = vmatpush1.msra.mxu0 0.0
    %1519 = vmatprep.subr.mxu0 0.0
    %1520 = vmatpush1.msra.mxu0 0.0
    %1521 = vmatprep.subr.mxu0 0.0
    %1522 = vmatpush1.msra.mxu0 0.0
    %1523 = vmatprep.subr.mxu0 0.0
    %1524 = vmatpush1.msra.mxu0 0.0
    %1525 = vmatprep.subr.mxu0 0.0
    %1526 = vmatpush1.msra.mxu0 0.0
    %1527 = vmatprep.mubr.f32.mxu0 0.0
    %1528 = vmatmul.mubr.f32.gmra.mrb[0].mxu0 %v1452
    %v1529 = vpop.f32.mrb[0].mxu0
    %v1530 = vadd.f32 0.0, %v1529
    %v1531 = vpop.f32.mrb[0].mxu0
    %1532 = vmatprep.mubr.f32.mxu0 0.0
    %1533 = vmatmul.mubr.f32.gmra.mrb[0].mxu0 %v1455
    %v1534 = vpop.f32.mrb[0].mxu0
    %v1535 = vadd.f32 0.0, %v1534
    %v1536 = vpop.f32.mrb[0].mxu0
    %1537 = vmatprep.mubr.f32.mxu0 0.0
    %1538 = vmatmul.mubr.f32.gmra.mrb[0].mxu0 %v1458
    %v1539 = vpop.f32.mrb[0].mxu0
    %v1540 = vadd.f32 0.0, %v1539
    %v1541 = vpop.f32.mrb[0].mxu0
    %1542 = vmatprep.mubr.f32.mxu0 0.0
    %1543 = vmatmul.mubr.f32.gmra.mrb[0].mxu0 %v1461
    %v1544 = vpop.f32.mrb[0].mxu0
    %v1545 = vadd.f32 0.0, %v1544
    %v1546 = vpop.f32.mrb[0].mxu0
    %1547 = vdwg.mxu0
    %1552 = vrot.lane.b32.xlu0 %v1530, 16
    %v1553 = vpop.permute.xlu0 %1552
    %1554 = vrot.lane.b32.xlu0 %v1535, 16
    %v1555 = vpop.permute.xlu0 %1554
    %1556 = vrot.lane.b32.xlu0 %v1540, 16
    %v1557 = vpop.permute.xlu0 %1556
    %1558 = vrot.lane.b32.xlu0 %v1545, 16
    %v1559 = vpop.permute.xlu0 %1558
    %vm1564 = vcmask 195712
    %1565 = vst.msk [vmem:[#allocation2] sm:$0xff] %vm1564, %v1553
    %1566 = vst.msk [vmem:[#allocation2 + $0x8] sm:$0xff] %vm1564, %v1555
    %1567 = vst.msk [vmem:[#allocation2 + $0x10] sm:$0xff] %vm1564, %v1557
    %1568 = vst.msk [vmem:[#allocation2 + $0x18] sm:$0xff] %vm1564, %v1559
    %1569 = vrot.lane.b32.xlu0 %v352, 104
    %v1570 = vpop.permute.xlu0 %1569
    %1571 = vrot.lane.b32.xlu0 %v357, 104
    %v1572 = vpop.permute.xlu0 %1571
    %1573 = vrot.lane.b32.xlu0 %v362, 104
    %v1574 = vpop.permute.xlu0 %1573
    %1575 = vrot.lane.b32.xlu0 %v367, 104
    %v1576 = vpop.permute.xlu0 %1575
    %1577 = vrot.lane.b32.xlu0 %v475, 104
    %v1578 = vpop.permute.xlu0 %1577
    %1579 = vrot.lane.b32.xlu0 %v480, 104
    %v1580 = vpop.permute.xlu0 %1579
    %1581 = vrot.lane.b32.xlu0 %v485, 104
    %v1582 = vpop.permute.xlu0 %1581
    %1583 = vrot.lane.b32.xlu0 %v490, 104
    %v1584 = vpop.permute.xlu0 %1583
    %1585 = vrot.lane.b32.xlu0 %v495, 104
    %v1586 = vpop.permute.xlu0 %1585
    %1587 = vrot.lane.b32.xlu0 %v500, 104
    %v1588 = vpop.permute.xlu0 %1587
    %1589 = vrot.lane.b32.xlu0 %v505, 104
    %v1590 = vpop.permute.xlu0 %1589
    %1591 = vrot.lane.b32.xlu0 %v510, 104
    %v1592 = vpop.permute.xlu0 %1591
    %v1593 = vsel %vm631, %v1570, 0
    %v1595 = vsel %vm631, %v1572, 0
    %v1597 = vsel %vm631, %v1574, 0
    %v1599 = vsel %vm631, %v1576, 0
    %v1601 = vsel %vm631, %v1578, 0
    %v1603 = vsel %vm631, %v1580, 0
    %v1605 = vsel %vm631, %v1582, 0
    %v1607 = vsel %vm631, %v1584, 0
    %v1609 = vsel %vm631, %v1586, 0
    %v1611 = vsel %vm631, %v1588, 0
    %v1613 = vsel %vm631, %v1590, 0
    %v1615 = vsel %vm631, %v1592, 0
    %1617 = vmatprep.subr.mxu0 0.0
    %1618 = vmatpush1.xpose.msra.mxu0 %v1601
    %1619 = vmatprep.subr.mxu0 0.0
    %1620 = vmatpush1.xpose.msra.mxu0 %v1603
    %1621 = vmatprep.subr.mxu0 0.0
    %1622 = vmatpush1.xpose.msra.mxu0 %v1605
    %1623 = vmatprep.subr.mxu0 0.0
    %1624 = vmatpush1.xpose.msra.mxu0 %v1607
    %1625 = vmatprep.subr.mxu0 0.0
    %1626 = vmatpush1.xpose.msra.mxu0 %v1609
    %1627 = vmatprep.subr.mxu0 0.0
    %1628 = vmatpush1.xpose.msra.mxu0 %v1611
    %1629 = vmatprep.subr.mxu0 0.0
    %1630 = vmatpush1.xpose.msra.mxu0 %v1613
    %1631 = vmatprep.subr.mxu0 0.0
    %1632 = vmatpush1.xpose.msra.mxu0 %v1615
    %1633 = vmatprep.subr.mxu0 0.0
    %1634 = vmatpush1.xpose.msra.mxu0 0.0
    %1635 = vmatprep.subr.mxu0 0.0
    %1636 = vmatpush1.xpose.msra.mxu0 0.0
    %1637 = vmatprep.subr.mxu0 0.0
    %1638 = vmatpush1.xpose.msra.mxu0 0.0
    %1639 = vmatprep.subr.mxu0 0.0
    %1640 = vmatpush1.xpose.msra.mxu0 0.0
    %1641 = vmatprep.subr.mxu0 0.0
    %1642 = vmatpush1.xpose.msra.mxu0 0.0
    %1643 = vmatprep.subr.mxu0 0.0
    %1644 = vmatpush1.xpose.msra.mxu0 0.0
    %1645 = vmatprep.subr.mxu0 0.0
    %1646 = vmatpush1.xpose.msra.mxu0 0.0
    %1647 = vmatprep.subr.mxu0 0.0
    %1648 = vmatpush1.xpose.msra.mxu0 0.0
    %1649 = vmatprep.subr.mxu0 0.0
    %1650 = vmatpush1.xpose.msra.mxu0 0.0
    %1651 = vmatprep.subr.mxu0 0.0
    %1652 = vmatpush1.xpose.msra.mxu0 0.0
    %1653 = vmatprep.subr.mxu0 0.0
    %1654 = vmatpush1.xpose.msra.mxu0 0.0
    %1655 = vmatprep.subr.mxu0 0.0
    %1656 = vmatpush1.xpose.msra.mxu0 0.0
    %1657 = vmatprep.subr.mxu0 0.0
    %1658 = vmatpush1.xpose.msra.mxu0 0.0
    %1659 = vmatprep.subr.mxu0 0.0
    %1660 = vmatpush1.xpose.msra.mxu0 0.0
    %1661 = vmatprep.subr.mxu0 0.0
    %1662 = vmatpush1.xpose.msra.mxu0 0.0
    %1663 = vmatprep.subr.mxu0 0.0
    %1664 = vmatpush1.xpose.msra.mxu0 0.0
    %1665 = vmatprep.subr.mxu0 0.0
    %1666 = vmatpush1.xpose.msra.mxu0 0.0
    %1667 = vmatprep.subr.mxu0 0.0
    %1668 = vmatpush1.xpose.msra.mxu0 0.0
    %1669 = vmatprep.subr.mxu0 0.0
    %1670 = vmatpush1.xpose.msra.mxu0 0.0
    %1671 = vmatprep.subr.mxu0 0.0
    %1672 = vmatpush1.xpose.msra.mxu0 0.0
    %1673 = vmatprep.subr.mxu0 0.0
    %1674 = vmatpush1.xpose.msra.mxu0 0.0
    %1675 = vmatprep.subr.mxu0 0.0
    %1676 = vmatpush1.xpose.msra.mxu0 0.0
    %1677 = vmatprep.subr.mxu0 0.0
    %1678 = vmatpush1.xpose.msra.mxu0 0.0
    %1679 = vmatprep.subr.mxu0 0.0
    %1680 = vmatpush1.xpose.msra.mxu0 0.0
    %1681 = vmatprep.mubr.f32.mxu0 0.0
    %1682 = vmatmul.mubr.f32.gmra.mrb[0].mxu0 %v1593
    %v1683 = vpop.f32.mrb[0].mxu0
    %v1684 = vadd.f32 0.0, %v1683
    %v1685 = vpop.f32.mrb[0].mxu0
    %1686 = vmatprep.mubr.f32.mxu0 0.0
    %1687 = vmatmul.mubr.f32.gmra.mrb[0].mxu0 %v1595
    %v1688 = vpop.f32.mrb[0].mxu0
    %v1689 = vadd.f32 0.0, %v1688
    %v1690 = vpop.f32.mrb[0].mxu0
    %1691 = vmatprep.mubr.f32.mxu0 0.0
    %1692 = vmatmul.mubr.f32.gmra.mrb[0].mxu0 %v1597
    %v1693 = vpop.f32.mrb[0].mxu0
    %v1694 = vadd.f32 0.0, %v1693
    %v1695 = vpop.f32.mrb[0].mxu0
    %1696 = vmatprep.mubr.f32.mxu0 0.0
    %1697 = vmatmul.mubr.f32.gmra.mrb[0].mxu0 %v1599
    %v1698 = vpop.f32.mrb[0].mxu0
    %v1699 = vadd.f32 0.0, %v1698
    %v1700 = vpop.f32.mrb[0].mxu0
    %1701 = vdwg.mxu0
    %v1702 = vmul.f32 %v1684, 0.35355338
    %v1703 = vmul.f32 %v1689, 0.35355338
    %v1704 = vmul.f32 %v1694, 0.35355338
    %v1705 = vmul.f32 %v1699, 0.35355338
    %v1706 = vadd.f32 %v1702, %v209
    %v1707 = vadd.f32 %v1703, %v210
    %v1708 = vadd.f32 %v1704, %v211
    %v1709 = vadd.f32 %v1705, %v212
    %v1710 = vsel %vm761, %v1706, -inf
    %1711 = vmax.xlane.f32.xlu0 %v1710
    %v1712 = vpop.xlane.xlu0 %1711
    %v1713 = vsel %vm761, %v1707, -inf
    %1714 = vmax.xlane.f32.xlu0 %v1713
    %v1715 = vpop.xlane.xlu0 %1714
    %v1716 = vsel %vm761, %v1708, -inf
    %1717 = vmax.xlane.f32.xlu0 %v1716
    %v1718 = vpop.xlane.xlu0 %1717
    %v1719 = vsel %vm761, %v1709, -inf
    %1720 = vmax.xlane.f32.xlu0 %v1719
    %v1721 = vpop.xlane.xlu0 %1720
    %v1722 = vsub.f32 %v1706, %v1712
    %v1723 = vsub.f32 %v1707, %v1715
    %v1724 = vsub.f32 %v1708, %v1718
    %v1725 = vsub.f32 %v1709, %v1721
    %v1726 = vmul.f32 %v1722, 1.442695
    %v1727 = vpow.pop %v1726
    %v1728 = vmul.f32 %v1723, 1.442695
    %v1729 = vpow.pop %v1728
    %v1730 = vmul.f32 %v1724, 1.442695
    %v1731 = vpow.pop %v1730
    %v1732 = vmul.f32 %v1725, 1.442695
    %v1733 = vpow.pop %v1732
    %v1734 = vsel %vm761, %v1727, 0.0
    %1735 = vadd.xlane.f32.xlu0 %v1734
    %v1736 = vpop.xlane.xlu0 %1735
    %v1737 = vsel %vm761, %v1729, 0.0
    %1738 = vadd.xlane.f32.xlu0 %v1737
    %v1739 = vpop.xlane.xlu0 %1738
    %v1740 = vsel %vm761, %v1731, 0.0
    %1741 = vadd.xlane.f32.xlu0 %v1740
    %v1742 = vpop.xlane.xlu0 %1741
    %v1743 = vsel %vm761, %v1733, 0.0
    %1744 = vadd.xlane.f32.xlu0 %v1743
    %v1745 = vpop.xlane.xlu0 %1744
    %v1746 = vrcp.pop %v1736
    %v1747 = vrcp.pop %v1739
    %v1748 = vrcp.pop %v1742
    %v1749 = vrcp.pop %v1745
    %v1750 = vmul.f32 %v1727, %v1746
    %v1751 = vmul.f32 %v1729, %v1747
    %v1752 = vmul.f32 %v1731, %v1748
    %v1753 = vmul.f32 %v1733, %v1749
    %1754 = vrot.lane.b32.xlu0 %v593, 104
    %v1755 = vpop.permute.xlu0 %1754
    %1756 = vrot.lane.b32.xlu0 %v598, 104
    %v1757 = vpop.permute.xlu0 %1756
    %1758 = vrot.lane.b32.xlu0 %v603, 104
    %v1759 = vpop.permute.xlu0 %1758
    %1760 = vrot.lane.b32.xlu0 %v608, 104
    %v1761 = vpop.permute.xlu0 %1760
    %1762 = vrot.lane.b32.xlu0 %v613, 104
    %v1763 = vpop.permute.xlu0 %1762
    %1764 = vrot.lane.b32.xlu0 %v618, 104
    %v1765 = vpop.permute.xlu0 %1764
    %1766 = vrot.lane.b32.xlu0 %v623, 104
    %v1767 = vpop.permute.xlu0 %1766
    %1768 = vrot.lane.b32.xlu0 %v628, 104
    %v1769 = vpop.permute.xlu0 %1768
    %v1779 = vsel %vm761, %v1750, 0
    %v1782 = vsel %vm761, %v1751, 0
    %v1785 = vsel %vm761, %v1752, 0
    %v1788 = vsel %vm761, %v1753, 0
    %1790 = vmatprep.subr.mxu0 0.0
    %1791 = vmatpush1.msra.mxu0 %v1755
    %1792 = vmatprep.subr.mxu0 0.0
    %1793 = vmatpush1.msra.mxu0 %v1757
    %1794 = vmatprep.subr.mxu0 0.0
    %1795 = vmatpush1.msra.mxu0 %v1759
    %1796 = vmatprep.subr.mxu0 0.0
    %1797 = vmatpush1.msra.mxu0 %v1761
    %1798 = vmatprep.subr.mxu0 0.0
    %1799 = vmatpush1.msra.mxu0 %v1763
    %1800 = vmatprep.subr.mxu0 0.0
    %1801 = vmatpush1.msra.mxu0 %v1765
    %1802 = vmatprep.subr.mxu0 0.0
    %1803 = vmatpush1.msra.mxu0 %v1767
    %1804 = vmatprep.subr.mxu0 0.0
    %1805 = vmatpush1.msra.mxu0 %v1769
    %1806 = vmatprep.subr.mxu0 0.0
    %1807 = vmatpush1.msra.mxu0 0.0
    %1808 = vmatprep.subr.mxu0 0.0
    %1809 = vmatpush1.msra.mxu0 0.0
    %1810 = vmatprep.subr.mxu0 0.0
    %1811 = vmatpush1.msra.mxu0 0.0
    %1812 = vmatprep.subr.mxu0 0.0
    %1813 = vmatpush1.msra.mxu0 0.0
    %1814 = vmatprep.subr.mxu0 0.0
    %1815 = vmatpush1.msra.mxu0 0.0
    %1816 = vmatprep.subr.mxu0 0.0
    %1817 = vmatpush1.msra.mxu0 0.0
    %1818 = vmatprep.subr.mxu0 0.0
    %1819 = vmatpush1.msra.mxu0 0.0
    %1820 = vmatprep.subr.mxu0 0.0
    %1821 = vmatpush1.msra.mxu0 0.0
    %1822 = vmatprep.subr.mxu0 0.0
    %1823 = vmatpush1.msra.mxu0 0.0
    %1824 = vmatprep.subr.mxu0 0.0
    %1825 = vmatpush1.msra.mxu0 0.0
    %1826 = vmatprep.subr.mxu0 0.0
    %1827 = vmatpush1.msra.mxu0 0.0
    %1828 = vmatprep.subr.mxu0 0.0
    %1829 = vmatpush1.msra.mxu0 0.0
    %1830 = vmatprep.subr.mxu0 0.0
    %1831 = vmatpush1.msra.mxu0 0.0
    %1832 = vmatprep.subr.mxu0 0.0
    %1833 = vmatpush1.msra.mxu0 0.0
    %1834 = vmatprep.subr.mxu0 0.0
    %1835 = vmatpush1.msra.mxu0 0.0
    %1836 = vmatprep.subr.mxu0 0.0
    %1837 = vmatpush1.msra.mxu0 0.0
    %1838 = vmatprep.subr.mxu0 0.0
    %1839 = vmatpush1.msra.mxu0 0.0
    %1840 = vmatprep.subr.mxu0 0.0
    %1841 = vmatpush1.msra.mxu0 0.0
    %1842 = vmatprep.subr.mxu0 0.0
    %1843 = vmatpush1.msra.mxu0 0.0
    %1844 = vmatprep.subr.mxu0 0.0
    %1845 = vmatpush1.msra.mxu0 0.0
    %1846 = vmatprep.subr.mxu0 0.0
    %1847 = vmatpush1.msra.mxu0 0.0
    %1848 = vmatprep.subr.mxu0 0.0
    %1849 = vmatpush1.msra.mxu0 0.0
    %1850 = vmatprep.subr.mxu0 0.0
    %1851 = vmatpush1.msra.mxu0 0.0
    %1852 = vmatprep.subr.mxu0 0.0
    %1853 = vmatpush1.msra.mxu0 0.0
    %1854 = vmatprep.mubr.f32.mxu0 0.0
    %1855 = vmatmul.mubr.f32.gmra.mrb[0].mxu0 %v1779
    %v1856 = vpop.f32.mrb[0].mxu0
    %v1857 = vadd.f32 0.0, %v1856
    %v1858 = vpop.f32.mrb[0].mxu0
    %1859 = vmatprep.mubr.f32.mxu0 0.0
    %1860 = vmatmul.mubr.f32.gmra.mrb[0].mxu0 %v1782
    %v1861 = vpop.f32.mrb[0].mxu0
    %v1862 = vadd.f32 0.0, %v1861
    %v1863 = vpop.f32.mrb[0].mxu0
    %1864 = vmatprep.mubr.f32.mxu0 0.0
    %1865 = vmatmul.mubr.f32.gmra.mrb[0].mxu0 %v1785
    %v1866 = vpop.f32.mrb[0].mxu0
    %v1867 = vadd.f32 0.0, %v1866
    %v1868 = vpop.f32.mrb[0].mxu0
    %1869 = vmatprep.mubr.f32.mxu0 0.0
    %1870 = vmatmul.mubr.f32.gmra.mrb[0].mxu0 %v1788
    %v1871 = vpop.f32.mrb[0].mxu0
    %v1872 = vadd.f32 0.0, %v1871
    %v1873 = vpop.f32.mrb[0].mxu0
    %1874 = vdwg.mxu0
    %1879 = vrot.lane.b32.xlu0 %v1857, 24
    %v1880 = vpop.permute.xlu0 %1879
    %1881 = vrot.lane.b32.xlu0 %v1862, 24
    %v1882 = vpop.permute.xlu0 %1881
    %1883 = vrot.lane.b32.xlu0 %v1867, 24
    %v1884 = vpop.permute.xlu0 %1883
    %1885 = vrot.lane.b32.xlu0 %v1872, 24
    %v1886 = vpop.permute.xlu0 %1885
    %vm1891 = vcmask 261312
    %1892 = vst.msk [vmem:[#allocation2] sm:$0xff] %vm1891, %v1880
    %1893 = vst.msk [vmem:[#allocation2 + $0x8] sm:$0xff] %vm1891, %v1882
    %1894 = vst.msk [vmem:[#allocation2 + $0x10] sm:$0xff] %vm1891, %v1884
    %1895 = vst.msk [vmem:[#allocation2 + $0x18] sm:$0xff] %vm1891, %v1886
    %v1896 = vld [vmem:[#allocation2] sm:$0xff]
    %v1897 = vld [vmem:[#allocation2 + $0x8] sm:$0xff]
    %v1898 = vld [vmem:[#allocation2 + $0x10] sm:$0xff]
    %v1899 = vld [vmem:[#allocation2 + $0x18] sm:$0xff]
    %v1900 = vld [vmem:[%s8] sm:$0xff]
    %v1901 = vld [vmem:[%s8 + $0x8] sm:$0xff]
    %v1902 = vld [vmem:[%s8 + $0x10] sm:$0xff]
    %v1903 = vld [vmem:[%s8 + $0x18] sm:$0xff]
    %v1904 = vld [vmem:[%s9] sm:$0x1]
    %v1906 = vlaneseq
    %v1907 = vshrl.u32 %v1906, 7
    %v1908 = vsub.s32 0, %v1907
    %v1909 = vrot.slane %v1904, %v1908
    %v1912 = vsel %vm272, %v1896, 0
    %v1915 = vsel %vm272, %v1897, 0
    %v1918 = vsel %vm272, %v1898, 0
    %v1921 = vsel %vm272, %v1899, 0
    %1923 = vmatprep.subr.mxu0 0.0
    %1924 = vmatpush1.msra.mxu0 %v1900
    %1925 = vmatprep.subr.mxu0 0.0
    %1926 = vmatpush1.msra.mxu0 %v1901
    %1927 = vmatprep.subr.mxu0 0.0
    %1928 = vmatpush1.msra.mxu0 %v1902
    %1929 = vmatprep.subr.mxu0 0.0
    %1930 = vmatpush1.msra.mxu0 %v1903
    %1931 = vmatprep.subr.mxu0 0.0
    %1932 = vmatpush1.msra.mxu0 0.0
    %1933 = vmatprep.subr.mxu0 0.0
    %1934 = vmatpush1.msra.mxu0 0.0
    %1935 = vmatprep.subr.mxu0 0.0
    %1936 = vmatpush1.msra.mxu0 0.0
    %1937 = vmatprep.subr.mxu0 0.0
    %1938 = vmatpush1.msra.mxu0 0.0
    %1939 = vmatprep.subr.mxu0 0.0
    %1940 = vmatpush1.msra.mxu0 0.0
    %1941 = vmatprep.subr.mxu0 0.0
    %1942 = vmatpush1.msra.mxu0 0.0
    %1943 = vmatprep.subr.mxu0 0.0
    %1944 = vmatpush1.msra.mxu0 0.0
    %1945 = vmatprep.subr.mxu0 0.0
    %1946 = vmatpush1.msra.mxu0 0.0
    %1947 = vmatprep.subr.mxu0 0.0
    %1948 = vmatpush1.msra.mxu0 0.0
    %1949 = vmatprep.subr.mxu0 0.0
    %1950 = vmatpush1.msra.mxu0 0.0
    %1951 = vmatprep.subr.mxu0 0.0
    %1952 = vmatpush1.msra.mxu0 0.0
    %1953 = vmatprep.subr.mxu0 0.0
    %1954 = vmatpush1.msra.mxu0 0.0
    %1955 = vmatprep.subr.mxu0 0.0
    %1956 = vmatpush1.msra.mxu0 0.0
    %1957 = vmatprep.subr.mxu0 0.0
    %1958 = vmatpush1.msra.mxu0 0.0
    %1959 = vmatprep.subr.mxu0 0.0
    %1960 = vmatpush1.msra.mxu0 0.0
    %1961 = vmatprep.subr.mxu0 0.0
    %1962 = vmatpush1.msra.mxu0 0.0
    %1963 = vmatprep.subr.mxu0 0.0
    %1964 = vmatpush1.msra.mxu0 0.0
    %1965 = vmatprep.subr.mxu0 0.0
    %1966 = vmatpush1.msra.mxu0 0.0
    %1967 = vmatprep.subr.mxu0 0.0
    %1968 = vmatpush1.msra.mxu0 0.0
    %1969 = vmatprep.subr.mxu0 0.0
    %1970 = vmatpush1.msra.mxu0 0.0
    %1971 = vmatprep.subr.mxu0 0.0
    %1972 = vmatpush1.msra.mxu0 0.0
    %1973 = vmatprep.subr.mxu0 0.0
    %1974 = vmatpush1.msra.mxu0 0.0
    %1975 = vmatprep.subr.mxu0 0.0
    %1976 = vmatpush1.msra.mxu0 0.0
    %1977 = vmatprep.subr.mxu0 0.0
    %1978 = vmatpush1.msra.mxu0 0.0
    %1979 = vmatprep.subr.mxu0 0.0
    %1980 = vmatpush1.msra.mxu0 0.0
    %1981 = vmatprep.subr.mxu0 0.0
    %1982 = vmatpush1.msra.mxu0 0.0
    %1983 = vmatprep.subr.mxu0 0.0
    %1984 = vmatpush1.msra.mxu0 0.0
    %1985 = vmatprep.subr.mxu0 0.0
    %1986 = vmatpush1.msra.mxu0 0.0
    %1987 = vmatprep.mubr.f32.mxu0 0.0
    %1988 = vmatmul.mubr.f32.gmra.mrb[0].mxu0 %v1912
    %v1989 = vpop.f32.mrb[0].mxu0
    %v1990 = vadd.f32 %v1909, %v1989
    %v1991 = vpop.f32.mrb[0].mxu0
    %1992 = vmatprep.mubr.f32.mxu0 0.0
    %1993 = vmatmul.mubr.f32.gmra.mrb[0].mxu0 %v1915
    %v1994 = vpop.f32.mrb[0].mxu0
    %v1995 = vadd.f32 %v1909, %v1994
    %v1996 = vpop.f32.mrb[0].mxu0
    %1997 = vmatprep.mubr.f32.mxu0 0.0
    %1998 = vmatmul.mubr.f32.gmra.mrb[0].mxu0 %v1918
    %v1999 = vpop.f32.mrb[0].mxu0
    %v2000 = vadd.f32 %v1909, %v1999
    %v2001 = vpop.f32.mrb[0].mxu0
    %2002 = vmatprep.mubr.f32.mxu0 0.0
    %2003 = vmatmul.mubr.f32.gmra.mrb[0].mxu0 %v1921
    %v2004 = vpop.f32.mrb[0].mxu0
    %v2005 = vadd.f32 %v1909, %v2004
    %v2006 = vpop.f32.mrb[0].mxu0
    %2007 = vdwg.mxu0
    %v2008 = vadd.f32 %v90, %v1990
    %v2009 = vadd.f32 %v91, %v1995
    %v2010 = vadd.f32 %v92, %v2000
    %v2011 = vadd.f32 %v93, %v2005
    %v2012 = vld [vmem:[%s18] sm:$0x1]
    %v2013 = vld [vmem:[%s19] sm:$0x1]
    %v2014 = vsel %vm272, %v2008, 0.0
    %2015 = vadd.xlane.f32.xlu0 %v2014
    %v2016 = vpop.xlane.xlu0 %2015
    %v2017 = vsel %vm272, %v2009, 0.0
    %2018 = vadd.xlane.f32.xlu0 %v2017
    %v2019 = vpop.xlane.xlu0 %2018
    %v2020 = vsel %vm272, %v2010, 0.0
    %2021 = vadd.xlane.f32.xlu0 %v2020
    %v2022 = vpop.xlane.xlu0 %2021
    %v2023 = vsel %vm272, %v2011, 0.0
    %2024 = vadd.xlane.f32.xlu0 %v2023
    %v2025 = vpop.xlane.xlu0 %2024
    %v2026 = vrcp.pop 32.0
    %v2027 = vmul.f32 %v2016, %v2026
    %v2028 = vmul.f32 %v2019, %v2026
    %v2029 = vmul.f32 %v2022, %v2026
    %v2030 = vmul.f32 %v2025, %v2026
    %v2031 = vsub.f32 %v2008, %v2027
    %v2032 = vsub.f32 %v2009, %v2028
    %v2033 = vsub.f32 %v2010, %v2029
    %v2034 = vsub.f32 %v2011, %v2030
    %v2035 = vmul.f32 %v2031, %v2031
    %v2036 = vmul.f32 %v2032, %v2032
    %v2037 = vmul.f32 %v2033, %v2033
    %v2038 = vmul.f32 %v2034, %v2034
    %v2039 = vsel %vm272, %v2035, 0.0
    %2040 = vadd.xlane.f32.xlu0 %v2039
    %v2041 = vpop.xlane.xlu0 %2040
    %v2042 = vsel %vm272, %v2036, 0.0
    %2043 = vadd.xlane.f32.xlu0 %v2042
    %v2044 = vpop.xlane.xlu0 %2043
    %v2045 = vsel %vm272, %v2037, 0.0
    %2046 = vadd.xlane.f32.xlu0 %v2045
    %v2047 = vpop.xlane.xlu0 %2046
    %v2048 = vsel %vm272, %v2038, 0.0
    %2049 = vadd.xlane.f32.xlu0 %v2048
    %v2050 = vpop.xlane.xlu0 %2049
    %v2051 = vmul.f32 %v2041, %v2026
    %v2052 = vmul.f32 %v2044, %v2026
    %v2053 = vmul.f32 %v2047, %v2026
    %v2054 = vmul.f32 %v2050, %v2026
    %v2055 = vadd.f32 %v2051, 1e-05
    %v2056 = vadd.f32 %v2052, 1e-05
    %v2057 = vadd.f32 %v2053, 1e-05
    %v2058 = vadd.f32 %v2054, 1e-05
    %v2059 = vrsqrt.pop %v2055
    %v2060 = vrsqrt.pop %v2056
    %v2061 = vrsqrt.pop %v2057
    %v2062 = vrsqrt.pop %v2058
    %v2063 = vmul.f32 %v2031, %v2059
    %v2064 = vmul.f32 %v2032, %v2060
    %v2065 = vmul.f32 %v2033, %v2061
    %v2066 = vmul.f32 %v2034, %v2062
    %v2068 = vlaneseq
    %v2069 = vshrl.u32 %v2068, 7
    %v2070 = vsub.s32 0, %v2069
    %v2071 = vrot.slane %v2012, %v2070
    %v2073 = vmul.f32 %v2063, %v2071
    %v2074 = vmul.f32 %v2064, %v2071
    %v2075 = vmul.f32 %v2065, %v2071
    %v2076 = vmul.f32 %v2066, %v2071
    %v2078 = vlaneseq
    %v2079 = vshrl.u32 %v2078, 7
    %v2080 = vsub.s32 0, %v2079
    %v2081 = vrot.slane %v2013, %v2080
    %v2083 = vadd.f32 %v2073, %v2081
    %v2084 = vadd.f32 %v2074, %v2081
    %v2085 = vadd.f32 %v2075, %v2081
    %v2086 = vadd.f32 %v2076, %v2081
    %v2087 = vld [vmem:[%s10] sm:$0xff]
    %v2088 = vld [vmem:[%s10 + $0x8] sm:$0xff]
    %v2089 = vld [vmem:[%s10 + $0x10] sm:$0xff]
    %v2090 = vld [vmem:[%s10 + $0x18] sm:$0xff]
    %v2091 = vld [vmem:[%s11] sm:$0x1]
    %v2093 = vlaneseq
    %v2094 = vshrl.u32 %v2093, 7
    %v2095 = vsub.s32 0, %v2094
    %v2096 = vrot.slane %v2091, %v2095
    %v2099 = vsel %vm272, %v2083, 0
    %v2102 = vsel %vm272, %v2084, 0
    %v2105 = vsel %vm272, %v2085, 0
    %v2108 = vsel %vm272, %v2086, 0
    %2110 = vmatprep.subr.mxu0 0.0
    %2111 = vmatpush1.msra.mxu0 %v2087
    %2112 = vmatprep.subr.mxu0 0.0
    %2113 = vmatpush1.msra.mxu0 %v2088
    %2114 = vmatprep.subr.mxu0 0.0
    %2115 = vmatpush1.msra.mxu0 %v2089
    %2116 = vmatprep.subr.mxu0 0.0
    %2117 = vmatpush1.msra.mxu0 %v2090
    %2118 = vmatprep.subr.mxu0 0.0
    %2119 = vmatpush1.msra.mxu0 0.0
    %2120 = vmatprep.subr.mxu0 0.0
    %2121 = vmatpush1.msra.mxu0 0.0
    %2122 = vmatprep.subr.mxu0 0.0
    %2123 = vmatpush1.msra.mxu0 0.0
    %2124 = vmatprep.subr.mxu0 0.0
    %2125 = vmatpush1.msra.mxu0 0.0
    %2126 = vmatprep.subr.mxu0 0.0
    %2127 = vmatpush1.msra.mxu0 0.0
    %2128 = vmatprep.subr.mxu0 0.0
    %2129 = vmatpush1.msra.mxu0 0.0
    %2130 = vmatprep.subr.mxu0 0.0
    %2131 = vmatpush1.msra.mxu0 0.0
    %2132 = vmatprep.subr.mxu0 0.0
    %2133 = vmatpush1.msra.mxu0 0.0
    %2134 = vmatprep.subr.mxu0 0.0
    %2135 = vmatpush1.msra.mxu0 0.0
    %2136 = vmatprep.subr.mxu0 0.0
    %2137 = vmatpush1.msra.mxu0 0.0
    %2138 = vmatprep.subr.mxu0 0.0
    %2139 = vmatpush1.msra.mxu0 0.0
    %2140 = vmatprep.subr.mxu0 0.0
    %2141 = vmatpush1.msra.mxu0 0.0
    %2142 = vmatprep.subr.mxu0 0.0
    %2143 = vmatpush1.msra.mxu0 0.0
    %2144 = vmatprep.subr.mxu0 0.0
    %2145 = vmatpush1.msra.mxu0 0.0
    %2146 = vmatprep.subr.mxu0 0.0
    %2147 = vmatpush1.msra.mxu0 0.0
    %2148 = vmatprep.subr.mxu0 0.0
    %2149 = vmatpush1.msra.mxu0 0.0
    %2150 = vmatprep.subr.mxu0 0.0
    %2151 = vmatpush1.msra.mxu0 0.0
    %2152 = vmatprep.subr.mxu0 0.0
    %2153 = vmatpush1.msra.mxu0 0.0
    %2154 = vmatprep.subr.mxu0 0.0
    %2155 = vmatpush1.msra.mxu0 0.0
    %2156 = vmatprep.subr.mxu0 0.0
    %2157 = vmatpush1.msra.mxu0 0.0
    %2158 = vmatprep.subr.mxu0 0.0
    %2159 = vmatpush1.msra.mxu0 0.0
    %2160 = vmatprep.subr.mxu0 0.0
    %2161 = vmatpush1.msra.mxu0 0.0
    %2162 = vmatprep.subr.mxu0 0.0
    %2163 = vmatpush1.msra.mxu0 0.0
    %2164 = vmatprep.subr.mxu0 0.0
    %2165 = vmatpush1.msra.mxu0 0.0
    %2166 = vmatprep.subr.mxu0 0.0
    %2167 = vmatpush1.msra.mxu0 0.0
    %2168 = vmatprep.subr.mxu0 0.0
    %2169 = vmatpush1.msra.mxu0 0.0
    %2170 = vmatprep.subr.mxu0 0.0
    %2171 = vmatpush1.msra.mxu0 0.0
    %2172 = vmatprep.subr.mxu0 0.0
    %2173 = vmatpush1.msra.mxu0 0.0
    %2174 = vmatprep.mubr.f32.mxu0 0.0
    %2175 = vmatmul.mubr.f32.gmra.mrb[0].mxu0 %v2099
    %v2176 = vpop.f32.mrb[0].mxu0
    %v2177 = vadd.f32 %v2096, %v2176
    %v2178 = vpop.f32.mrb[0].mxu0
    %2179 = vmatprep.mubr.f32.mxu0 0.0
    %2180 = vmatmul.mubr.f32.gmra.mrb[0].mxu0 %v2102
    %v2181 = vpop.f32.mrb[0].mxu0
    %v2182 = vadd.f32 %v2096, %v2181
    %v2183 = vpop.f32.mrb[0].mxu0
    %2184 = vmatprep.mubr.f32.mxu0 0.0
    %2185 = vmatmul.mubr.f32.gmra.mrb[0].mxu0 %v2105
    %v2186 = vpop.f32.mrb[0].mxu0
    %v2187 = vadd.f32 %v2096, %v2186
    %v2188 = vpop.f32.mrb[0].mxu0
    %2189 = vmatprep.mubr.f32.mxu0 0.0
    %2190 = vmatmul.mubr.f32.gmra.mrb[0].mxu0 %v2108
    %v2191 = vpop.f32.mrb[0].mxu0
    %v2192 = vadd.f32 %v2096, %v2191
    %v2193 = vpop.f32.mrb[0].mxu0
    %2194 = vdwg.mxu0
    %v2195 = vld [vmem:[%s12] sm:$0xff]
    %v2196 = vld [vmem:[%s12 + $0x8] sm:$0xff]
    %v2197 = vld [vmem:[%s12 + $0x10] sm:$0xff]
    %v2198 = vld [vmem:[%s12 + $0x18] sm:$0xff]
    %v2199 = vld [vmem:[%s13] sm:$0x1]
    %v2201 = vlaneseq
    %v2202 = vshrl.u32 %v2201, 7
    %v2203 = vsub.s32 0, %v2202
    %v2204 = vrot.slane %v2199, %v2203
    %2206 = vmatprep.subr.mxu0 0.0
    %2207 = vmatpush1.msra.mxu0 %v2195
    %2208 = vmatprep.subr.mxu0 0.0
    %2209 = vmatpush1.msra.mxu0 %v2196
    %2210 = vmatprep.subr.mxu0 0.0
    %2211 = vmatpush1.msra.mxu0 %v2197
    %2212 = vmatprep.subr.mxu0 0.0
    %2213 = vmatpush1.msra.mxu0 %v2198
    %2214 = vmatprep.subr.mxu0 0.0
    %2215 = vmatpush1.msra.mxu0 0.0
    %2216 = vmatprep.subr.mxu0 0.0
    %2217 = vmatpush1.msra.mxu0 0.0
    %2218 = vmatprep.subr.mxu0 0.0
    %2219 = vmatpush1.msra.mxu0 0.0
    %2220 = vmatprep.subr.mxu0 0.0
    %2221 = vmatpush1.msra.mxu0 0.0
    %2222 = vmatprep.subr.mxu0 0.0
    %2223 = vmatpush1.msra.mxu0 0.0
    %2224 = vmatprep.subr.mxu0 0.0
    %2225 = vmatpush1.msra.mxu0 0.0
    %2226 = vmatprep.subr.mxu0 0.0
    %2227 = vmatpush1.msra.mxu0 0.0
    %2228 = vmatprep.subr.mxu0 0.0
    %2229 = vmatpush1.msra.mxu0 0.0
    %2230 = vmatprep.subr.mxu0 0.0
    %2231 = vmatpush1.msra.mxu0 0.0
    %2232 = vmatprep.subr.mxu0 0.0
    %2233 = vmatpush1.msra.mxu0 0.0
    %2234 = vmatprep.subr.mxu0 0.0
    %2235 = vmatpush1.msra.mxu0 0.0
    %2236 = vmatprep.subr.mxu0 0.0
    %2237 = vmatpush1.msra.mxu0 0.0
    %2238 = vmatprep.subr.mxu0 0.0
    %2239 = vmatpush1.msra.mxu0 0.0
    %2240 = vmatprep.subr.mxu0 0.0
    %2241 = vmatpush1.msra.mxu0 0.0
    %2242 = vmatprep.subr.mxu0 0.0
    %2243 = vmatpush1.msra.mxu0 0.0
    %2244 = vmatprep.subr.mxu0 0.0
    %2245 = vmatpush1.msra.mxu0 0.0
    %2246 = vmatprep.subr.mxu0 0.0
    %2247 = vmatpush1.msra.mxu0 0.0
    %2248 = vmatprep.subr.mxu0 0.0
    %2249 = vmatpush1.msra.mxu0 0.0
    %2250 = vmatprep.subr.mxu0 0.0
    %2251 = vmatpush1.msra.mxu0 0.0
    %2252 = vmatprep.subr.mxu0 0.0
    %2253 = vmatpush1.msra.mxu0 0.0
    %2254 = vmatprep.subr.mxu0 0.0
    %2255 = vmatpush1.msra.mxu0 0.0
    %2256 = vmatprep.subr.mxu0 0.0
    %2257 = vmatpush1.msra.mxu0 0.0
    %2258 = vmatprep.subr.mxu0 0.0
    %2259 = vmatpush1.msra.mxu0 0.0
    %2260 = vmatprep.subr.mxu0 0.0
    %2261 = vmatpush1.msra.mxu0 0.0
    %2262 = vmatprep.subr.mxu0 0.0
    %2263 = vmatpush1.msra.mxu0 0.0
    %2264 = vmatprep.subr.mxu0 0.0
    %2265 = vmatpush1.msra.mxu0 0.0
    %2266 = vmatprep.subr.mxu0 0.0
    %2267 = vmatpush1.msra.mxu0 0.0
    %2268 = vmatprep.subr.mxu0 0.0
    %2269 = vmatpush1.msra.mxu0 0.0
    %2270 = vmatprep.mubr.f32.mxu0 0.0
    %2271 = vmatmul.mubr.f32.gmra.mrb[0].mxu0 %v2099
    %v2272 = vpop.f32.mrb[0].mxu0
    %v2273 = vadd.f32 %v2204, %v2272
    %v2274 = vpop.f32.mrb[0].mxu0
    %2275 = vmatprep.mubr.f32.mxu0 0.0
    %2276 = vmatmul.mubr.f32.gmra.mrb[0].mxu0 %v2102
    %v2277 = vpop.f32.mrb[0].mxu0
    %v2278 = vadd.f32 %v2204, %v2277
    %v2279 = vpop.f32.mrb[0].mxu0
    %2280 = vmatprep.mubr.f32.mxu0 0.0
    %2281 = vmatmul.mubr.f32.gmra.mrb[0].mxu0 %v2105
    %v2282 = vpop.f32.mrb[0].mxu0
    %v2283 = vadd.f32 %v2204, %v2282
    %v2284 = vpop.f32.mrb[0].mxu0
    %2285 = vmatprep.mubr.f32.mxu0 0.0
    %2286 = vmatmul.mubr.f32.gmra.mrb[0].mxu0 %v2108
    %v2287 = vpop.f32.mrb[0].mxu0
    %v2288 = vadd.f32 %v2204, %v2287
    %v2289 = vpop.f32.mrb[0].mxu0
    %2290 = vdwg.mxu0
    %v2291 = vld [vmem:[%s14] sm:$0xff]
    %v2292 = vld [vmem:[%s14 + $0x8] sm:$0xff]
    %v2293 = vld [vmem:[%s14 + $0x10] sm:$0xff]
    %v2294 = vld [vmem:[%s14 + $0x18] sm:$0xff]
    %v2295 = vld [vmem:[%s15] sm:$0x1]
    %v2297 = vlaneseq
    %v2298 = vshrl.u32 %v2297, 7
    %v2299 = vsub.s32 0, %v2298
    %v2300 = vrot.slane %v2295, %v2299
    %2302 = vmatprep.subr.mxu0 0.0
    %2303 = vmatpush1.msra.mxu0 %v2291
    %2304 = vmatprep.subr.mxu0 0.0
    %2305 = vmatpush1.msra.mxu0 %v2292
    %2306 = vmatprep.subr.mxu0 0.0
    %2307 = vmatpush1.msra.mxu0 %v2293
    %2308 = vmatprep.subr.mxu0 0.0
    %2309 = vmatpush1.msra.mxu0 %v2294
    %2310 = vmatprep.subr.mxu0 0.0
    %2311 = vmatpush1.msra.mxu0 0.0
    %2312 = vmatprep.subr.mxu0 0.0
    %2313 = vmatpush1.msra.mxu0 0.0
    %2314 = vmatprep.subr.mxu0 0.0
    %2315 = vmatpush1.msra.mxu0 0.0
    %2316 = vmatprep.subr.mxu0 0.0
    %2317 = vmatpush1.msra.mxu0 0.0
    %2318 = vmatprep.subr.mxu0 0.0
    %2319 = vmatpush1.msra.mxu0 0.0
    %2320 = vmatprep.subr.mxu0 0.0
    %2321 = vmatpush1.msra.mxu0 0.0
    %2322 = vmatprep.subr.mxu0 0.0
    %2323 = vmatpush1.msra.mxu0 0.0
    %2324 = vmatprep.subr.mxu0 0.0
    %2325 = vmatpush1.msra.mxu0 0.0
    %2326 = vmatprep.subr.mxu0 0.0
    %2327 = vmatpush1.msra.mxu0 0.0
    %2328 = vmatprep.subr.mxu0 0.0
    %2329 = vmatpush1.msra.mxu0 0.0
    %2330 = vmatprep.subr.mxu0 0.0
    %2331 = vmatpush1.msra.mxu0 0.0
    %2332 = vmatprep.subr.mxu0 0.0
    %2333 = vmatpush1.msra.mxu0 0.0
    %2334 = vmatprep.subr.mxu0 0.0
    %2335 = vmatpush1.msra.mxu0 0.0
    %2336 = vmatprep.subr.mxu0 0.0
    %2337 = vmatpush1.msra.mxu0 0.0
    %2338 = vmatprep.subr.mxu0 0.0
    %2339 = vmatpush1.msra.mxu0 0.0
    %2340 = vmatprep.subr.mxu0 0.0
    %2341 = vmatpush1.msra.mxu0 0.0
    %2342 = vmatprep.subr.mxu0 0.0
    %2343 = vmatpush1.msra.mxu0 0.0
    %2344 = vmatprep.subr.mxu0 0.0
    %2345 = vmatpush1.msra.mxu0 0.0
    %2346 = vmatprep.subr.mxu0 0.0
    %2347 = vmatpush1.msra.mxu0 0.0
    %2348 = vmatprep.subr.mxu0 0.0
    %2349 = vmatpush1.msra.mxu0 0.0
    %2350 = vmatprep.subr.mxu0 0.0
    %2351 = vmatpush1.msra.mxu0 0.0
    %2352 = vmatprep.subr.mxu0 0.0
    %2353 = vmatpush1.msra.mxu0 0.0
    %2354 = vmatprep.subr.mxu0 0.0
    %2355 = vmatpush1.msra.mxu0 0.0
    %2356 = vmatprep.subr.mxu0 0.0
    %2357 = vmatpush1.msra.mxu0 0.0
    %2358 = vmatprep.subr.mxu0 0.0
    %2359 = vmatpush1.msra.mxu0 0.0
    %2360 = vmatprep.subr.mxu0 0.0
    %2361 = vmatpush1.msra.mxu0 0.0
    %2362 = vmatprep.subr.mxu0 0.0
    %2363 = vmatpush1.msra.mxu0 0.0
    %2364 = vmatprep.subr.mxu0 0.0
    %2365 = vmatpush1.msra.mxu0 0.0
    %2366 = vmatprep.mubr.f32.mxu0 0.0
    %2367 = vmatmul.mubr.f32.gmra.mrb[0].mxu0 %v2099
    %v2368 = vpop.f32.mrb[0].mxu0
    %v2369 = vadd.f32 %v2300, %v2368
    %v2370 = vpop.f32.mrb[0].mxu0
    %2371 = vmatprep.mubr.f32.mxu0 0.0
    %2372 = vmatmul.mubr.f32.gmra.mrb[0].mxu0 %v2102
    %v2373 = vpop.f32.mrb[0].mxu0
    %v2374 = vadd.f32 %v2300, %v2373
    %v2375 = vpop.f32.mrb[0].mxu0
    %2376 = vmatprep.mubr.f32.mxu0 0.0
    %2377 = vmatmul.mubr.f32.gmra.mrb[0].mxu0 %v2105
    %v2378 = vpop.f32.mrb[0].mxu0
    %v2379 = vadd.f32 %v2300, %v2378
    %v2380 = vpop.f32.mrb[0].mxu0
    %2381 = vmatprep.mubr.f32.mxu0 0.0
    %2382 = vmatmul.mubr.f32.gmra.mrb[0].mxu0 %v2108
    %v2383 = vpop.f32.mrb[0].mxu0
    %v2384 = vadd.f32 %v2300, %v2383
    %v2385 = vpop.f32.mrb[0].mxu0
    %2386 = vdwg.mxu0
    %v2388 = vsel %vm631, %v2177, 0
    %v2391 = vsel %vm631, %v2182, 0
    %v2394 = vsel %vm631, %v2187, 0
    %v2397 = vsel %vm631, %v2192, 0
    %v2400 = vsel %vm631, %v2273, 0
    %v2403 = vsel %vm631, %v2278, 0
    %v2406 = vsel %vm631, %v2283, 0
    %v2409 = vsel %vm631, %v2288, 0
    %2411 = vmatprep.subr.mxu0 0.0
    %2412 = vmatpush1.xpose.msra.mxu0 %v2400
    %2413 = vmatprep.subr.mxu0 0.0
    %2414 = vmatpush1.xpose.msra.mxu0 %v2403
    %2415 = vmatprep.subr.mxu0 0.0
    %2416 = vmatpush1.xpose.msra.mxu0 %v2406
    %2417 = vmatprep.subr.mxu0 0.0
    %2418 = vmatpush1.xpose.msra.mxu0 %v2409
    %2419 = vmatprep.subr.mxu0 0.0
    %2420 = vmatpush1.xpose.msra.mxu0 0.0
    %2421 = vmatprep.subr.mxu0 0.0
    %2422 = vmatpush1.xpose.msra.mxu0 0.0
    %2423 = vmatprep.subr.mxu0 0.0
    %2424 = vmatpush1.xpose.msra.mxu0 0.0
    %2425 = vmatprep.subr.mxu0 0.0
    %2426 = vmatpush1.xpose.msra.mxu0 0.0
    %2427 = vmatprep.subr.mxu0 0.0
    %2428 = vmatpush1.xpose.msra.mxu0 0.0
    %2429 = vmatprep.subr.mxu0 0.0
    %2430 = vmatpush1.xpose.msra.mxu0 0.0
    %2431 = vmatprep.subr.mxu0 0.0
    %2432 = vmatpush1.xpose.msra.mxu0 0.0
    %2433 = vmatprep.subr.mxu0 0.0
    %2434 = vmatpush1.xpose.msra.mxu0 0.0
    %2435 = vmatprep.subr.mxu0 0.0
    %2436 = vmatpush1.xpose.msra.mxu0 0.0
    %2437 = vmatprep.subr.mxu0 0.0
    %2438 = vmatpush1.xpose.msra.mxu0 0.0
    %2439 = vmatprep.subr.mxu0 0.0
    %2440 = vmatpush1.xpose.msra.mxu0 0.0
    %2441 = vmatprep.subr.mxu0 0.0
    %2442 = vmatpush1.xpose.msra.mxu0 0.0
    %2443 = vmatprep.subr.mxu0 0.0
    %2444 = vmatpush1.xpose.msra.mxu0 0.0
    %2445 = vmatprep.subr.mxu0 0.0
    %2446 = vmatpush1.xpose.msra.mxu0 0.0
    %2447 = vmatprep.subr.mxu0 0.0
    %2448 = vmatpush1.xpose.msra.mxu0 0.0
    %2449 = vmatprep.subr.mxu0 0.0
    %2450 = vmatpush1.xpose.msra.mxu0 0.0
    %2451 = vmatprep.subr.mxu0 0.0
    %2452 = vmatpush1.xpose.msra.mxu0 0.0
    %2453 = vmatprep.subr.mxu0 0.0
    %2454 = vmatpush1.xpose.msra.mxu0 0.0
    %2455 = vmatprep.subr.mxu0 0.0
    %2456 = vmatpush1.xpose.msra.mxu0 0.0
    %2457 = vmatprep.subr.mxu0 0.0
    %2458 = vmatpush1.xpose.msra.mxu0 0.0
    %2459 = vmatprep.subr.mxu0 0.0
    %2460 = vmatpush1.xpose.msra.mxu0 0.0
    %2461 = vmatprep.subr.mxu0 0.0
    %2462 = vmatpush1.xpose.msra.mxu0 0.0
    %2463 = vmatprep.subr.mxu0 0.0
    %2464 = vmatpush1.xpose.msra.mxu0 0.0
    %2465 = vmatprep.subr.mxu0 0.0
    %2466 = vmatpush1.xpose.msra.mxu0 0.0
    %2467 = vmatprep.subr.mxu0 0.0
    %2468 = vmatpush1.xpose.msra.mxu0 0.0
    %2469 = vmatprep.subr.mxu0 0.0
    %2470 = vmatpush1.xpose.msra.mxu0 0.0
    %2471 = vmatprep.subr.mxu0 0.0
    %2472 = vmatpush1.xpose.msra.mxu0 0.0
    %2473 = vmatprep.subr.mxu0 0.0
    %2474 = vmatpush1.xpose.msra.mxu0 0.0
    %2475 = vmatprep.mubr.f32.mxu0 0.0
    %2476 = vmatmul.mubr.f32.gmra.mrb[0].mxu0 %v2388
    %v2477 = vpop.f32.mrb[0].mxu0
    %v2478 = vadd.f32 0.0, %v2477
    %v2479 = vpop.f32.mrb[0].mxu0
    %2480 = vmatprep.mubr.f32.mxu0 0.0
    %2481 = vmatmul.mubr.f32.gmra.mrb[0].mxu0 %v2391
    %v2482 = vpop.f32.mrb[0].mxu0
    %v2483 = vadd.f32 0.0, %v2482
    %v2484 = vpop.f32.mrb[0].mxu0
    %2485 = vmatprep.mubr.f32.mxu0 0.0
    %2486 = vmatmul.mubr.f32.gmra.mrb[0].mxu0 %v2394
    %v2487 = vpop.f32.mrb[0].mxu0
    %v2488 = vadd.f32 0.0, %v2487
    %v2489 = vpop.f32.mrb[0].mxu0
    %2490 = vmatprep.mubr.f32.mxu0 0.0
    %2491 = vmatmul.mubr.f32.gmra.mrb[0].mxu0 %v2397
    %v2492 = vpop.f32.mrb[0].mxu0
    %v2493 = vadd.f32 0.0, %v2492
    %v2494 = vpop.f32.mrb[0].mxu0
    %2495 = vdwg.mxu0
    %v2496 = vmul.f32 %v2478, 0.35355338
    %v2497 = vmul.f32 %v2483, 0.35355338
    %v2498 = vmul.f32 %v2488, 0.35355338
    %v2499 = vmul.f32 %v2493, 0.35355338
    %v2500 = vadd.f32 %v2496, %v257
    %v2501 = vadd.f32 %v2497, %v258
    %v2502 = vadd.f32 %v2498, %v259
    %v2503 = vadd.f32 %v2499, %v260
    %v2504 = vsel %vm272, %v2500, -inf
    %2505 = vmax.xlane.f32.xlu0 %v2504
    %v2506 = vpop.xlane.xlu0 %2505
    %v2507 = vsel %vm272, %v2501, -inf
    %2508 = vmax.xlane.f32.xlu0 %v2507
    %v2509 = vpop.xlane.xlu0 %2508
    %v2510 = vsel %vm272, %v2502, -inf
    %2511 = vmax.xlane.f32.xlu0 %v2510
    %v2512 = vpop.xlane.xlu0 %2511
    %v2513 = vsel %vm272, %v2503, -inf
    %2514 = vmax.xlane.f32.xlu0 %v2513
    %v2515 = vpop.xlane.xlu0 %2514
    %v2516 = vsub.f32 %v2500, %v2506
    %v2517 = vsub.f32 %v2501, %v2509
    %v2518 = vsub.f32 %v2502, %v2512
    %v2519 = vsub.f32 %v2503, %v2515
    %v2520 = vmul.f32 %v2516, 1.442695
    %v2521 = vpow.pop %v2520
    %v2522 = vmul.f32 %v2517, 1.442695
    %v2523 = vpow.pop %v2522
    %v2524 = vmul.f32 %v2518, 1.442695
    %v2525 = vpow.pop %v2524
    %v2526 = vmul.f32 %v2519, 1.442695
    %v2527 = vpow.pop %v2526
    %v2528 = vsel %vm272, %v2521, 0.0
    %2529 = vadd.xlane.f32.xlu0 %v2528
    %v2530 = vpop.xlane.xlu0 %2529
    %v2531 = vsel %vm272, %v2523, 0.0
    %2532 = vadd.xlane.f32.xlu0 %v2531
    %v2533 = vpop.xlane.xlu0 %2532
    %v2534 = vsel %vm272, %v2525, 0.0
    %2535 = vadd.xlane.f32.xlu0 %v2534
    %v2536 = vpop.xlane.xlu0 %2535
    %v2537 = vsel %vm272, %v2527, 0.0
    %2538 = vadd.xlane.f32.xlu0 %v2537
    %v2539 = vpop.xlane.xlu0 %2538
    %v2540 = vrcp.pop %v2530
    %v2541 = vrcp.pop %v2533
    %v2542 = vrcp.pop %v2536
    %v2543 = vrcp.pop %v2539
    %v2544 = vmul.f32 %v2521, %v2540
    %v2545 = vmul.f32 %v2523, %v2541
    %v2546 = vmul.f32 %v2525, %v2542
    %v2547 = vmul.f32 %v2527, %v2543
    %v2549 = vsel %vm272, %v2544, 0
    %v2552 = vsel %vm272, %v2545, 0
    %v2555 = vsel %vm272, %v2546, 0
    %v2558 = vsel %vm272, %v2547, 0
    %2560 = vmatprep.subr.mxu0 0.0
    %2561 = vmatpush1.msra.mxu0 %v2369
    %2562 = vmatprep.subr.mxu0 0.0
    %2563 = vmatpush1.msra.mxu0 %v2374
    %2564 = vmatprep.subr.mxu0 0.0
    %2565 = vmatpush1.msra.mxu0 %v2379
    %2566 = vmatprep.subr.mxu0 0.0
    %2567 = vmatpush1.msra.mxu0 %v2384
    %2568 = vmatprep.subr.mxu0 0.0
    %2569 = vmatpush1.msra.mxu0 0.0
    %2570 = vmatprep.subr.mxu0 0.0
    %2571 = vmatpush1.msra.mxu0 0.0
    %2572 = vmatprep.subr.mxu0 0.0
    %2573 = vmatpush1.msra.mxu0 0.0
    %2574 = vmatprep.subr.mxu0 0.0
    %2575 = vmatpush1.msra.mxu0 0.0
    %2576 = vmatprep.subr.mxu0 0.0
    %2577 = vmatpush1.msra.mxu0 0.0
    %2578 = vmatprep.subr.mxu0 0.0
    %2579 = vmatpush1.msra.mxu0 0.0
    %2580 = vmatprep.subr.mxu0 0.0
    %2581 = vmatpush1.msra.mxu0 0.0
    %2582 = vmatprep.subr.mxu0 0.0
    %2583 = vmatpush1.msra.mxu0 0.0
    %2584 = vmatprep.subr.mxu0 0.0
    %2585 = vmatpush1.msra.mxu0 0.0
    %2586 = vmatprep.subr.mxu0 0.0
    %2587 = vmatpush1.msra.mxu0 0.0
    %2588 = vmatprep.subr.mxu0 0.0
    %2589 = vmatpush1.msra.mxu0 0.0
    %2590 = vmatprep.subr.mxu0 0.0
    %2591 = vmatpush1.msra.mxu0 0.0
    %2592 = vmatprep.subr.mxu0 0.0
    %2593 = vmatpush1.msra.mxu0 0.0
    %2594 = vmatprep.subr.mxu0 0.0
    %2595 = vmatpush1.msra.mxu0 0.0
    %2596 = vmatprep.subr.mxu0 0.0
    %2597 = vmatpush1.msra.mxu0 0.0
    %2598 = vmatprep.subr.mxu0 0.0
    %2599 = vmatpush1.msra.mxu0 0.0
    %2600 = vmatprep.subr.mxu0 0.0
    %2601 = vmatpush1.msra.mxu0 0.0
    %2602 = vmatprep.subr.mxu0 0.0
    %2603 = vmatpush1.msra.mxu0 0.0
    %2604 = vmatprep.subr.mxu0 0.0
    %2605 = vmatpush1.msra.mxu0 0.0
    %2606 = vmatprep.subr.mxu0 0.0
    %2607 = vmatpush1.msra.mxu0 0.0
    %2608 = vmatprep.subr.mxu0 0.0
    %2609 = vmatpush1.msra.mxu0 0.0
    %2610 = vmatprep.subr.mxu0 0.0
    %2611 = vmatpush1.msra.mxu0 0.0
    %2612 = vmatprep.subr.mxu0 0.0
    %2613 = vmatpush1.msra.mxu0 0.0
    %2614 = vmatprep.subr.mxu0 0.0
    %2615 = vmatpush1.msra.mxu0 0.0
    %2616 = vmatprep.subr.mxu0 0.0
    %2617 = vmatpush1.msra.mxu0 0.0
    %2618 = vmatprep.subr.mxu0 0.0
    %2619 = vmatpush1.msra.mxu0 0.0
    %2620 = vmatprep.subr.mxu0 0.0
    %2621 = vmatpush1.msra.mxu0 0.0
    %2622 = vmatprep.subr.mxu0 0.0
    %2623 = vmatpush1.msra.mxu0 0.0
    %2624 = vmatprep.mubr.f32.mxu0 0.0
    %2625 = vmatmul.mubr.f32.gmra.mrb[0].mxu0 %v2549
    %v2626 = vpop.f32.mrb[0].mxu0
    %v2627 = vadd.f32 0.0, %v2626
    %v2628 = vpop.f32.mrb[0].mxu0
    %2629 = vmatprep.mubr.f32.mxu0 0.0
    %2630 = vmatmul.mubr.f32.gmra.mrb[0].mxu0 %v2552
    %v2631 = vpop.f32.mrb[0].mxu0
    %v2632 = vadd.f32 0.0, %v2631
    %v2633 = vpop.f32.mrb[0].mxu0
    %2634 = vmatprep.mubr.f32.mxu0 0.0
    %2635 = vmatmul.mubr.f32.gmra.mrb[0].mxu0 %v2555
    %v2636 = vpop.f32.mrb[0].mxu0
    %v2637 = vadd.f32 0.0, %v2636
    %v2638 = vpop.f32.mrb[0].mxu0
    %2639 = vmatprep.mubr.f32.mxu0 0.0
    %2640 = vmatmul.mubr.f32.gmra.mrb[0].mxu0 %v2558
    %v2641 = vpop.f32.mrb[0].mxu0
    %v2642 = vadd.f32 0.0, %v2641
    %v2643 = vpop.f32.mrb[0].mxu0
    %2644 = vdwg.mxu0
    %2645 = vst.msk [vmem:[#allocation2] sm:$0xff] %vm631, %v2627
    %2646 = vst.msk [vmem:[#allocation2 + $0x8] sm:$0xff] %vm631, %v2632
    %2647 = vst.msk [vmem:[#allocation2 + $0x10] sm:$0xff] %vm631, %v2637
    %2648 = vst.msk [vmem:[#allocation2 + $0x18] sm:$0xff] %vm631, %v2642
    %2649 = vrot.lane.b32.xlu0 %v2177, 120
    %v2650 = vpop.permute.xlu0 %2649
    %2651 = vrot.lane.b32.xlu0 %v2182, 120
    %v2652 = vpop.permute.xlu0 %2651
    %2653 = vrot.lane.b32.xlu0 %v2187, 120
    %v2654 = vpop.permute.xlu0 %2653
    %2655 = vrot.lane.b32.xlu0 %v2192, 120
    %v2656 = vpop.permute.xlu0 %2655
    %2657 = vrot.lane.b32.xlu0 %v2273, 120
    %v2658 = vpop.permute.xlu0 %2657
    %2659 = vrot.lane.b32.xlu0 %v2278, 120
    %v2660 = vpop.permute.xlu0 %2659
    %2661 = vrot.lane.b32.xlu0 %v2283, 120
    %v2662 = vpop.permute.xlu0 %2661
    %2663 = vrot.lane.b32.xlu0 %v2288, 120
    %v2664 = vpop.permute.xlu0 %2663
    %v2665 = vsel %vm631, %v2650, 0
    %v2667 = vsel %vm631, %v2652, 0
    %v2669 = vsel %vm631, %v2654, 0
    %v2671 = vsel %vm631, %v2656, 0
    %v2673 = vsel %vm631, %v2658, 0
    %v2675 = vsel %vm631, %v2660, 0
    %v2677 = vsel %vm631, %v2662, 0
    %v2679 = vsel %vm631, %v2664, 0
    %2681 = vmatprep.subr.mxu0 0.0
    %2682 = vmatpush1.xpose.msra.mxu0 %v2673
    %2683 = vmatprep.subr.mxu0 0.0
    %2684 = vmatpush1.xpose.msra.mxu0 %v2675
    %2685 = vmatprep.subr.mxu0 0.0
    %2686 = vmatpush1.xpose.msra.mxu0 %v2677
    %2687 = vmatprep.subr.mxu0 0.0
    %2688 = vmatpush1.xpose.msra.mxu0 %v2679
    %2689 = vmatprep.subr.mxu0 0.0
    %2690 = vmatpush1.xpose.msra.mxu0 0.0
    %2691 = vmatprep.subr.mxu0 0.0
    %2692 = vmatpush1.xpose.msra.mxu0 0.0
    %2693 = vmatprep.subr.mxu0 0.0
    %2694 = vmatpush1.xpose.msra.mxu0 0.0
    %2695 = vmatprep.subr.mxu0 0.0
    %2696 = vmatpush1.xpose.msra.mxu0 0.0
    %2697 = vmatprep.subr.mxu0 0.0
    %2698 = vmatpush1.xpose.msra.mxu0 0.0
    %2699 = vmatprep.subr.mxu0 0.0
    %2700 = vmatpush1.xpose.msra.mxu0 0.0
    %2701 = vmatprep.subr.mxu0 0.0
    %2702 = vmatpush1.xpose.msra.mxu0 0.0
    %2703 = vmatprep.subr.mxu0 0.0
    %2704 = vmatpush1.xpose.msra.mxu0 0.0
    %2705 = vmatprep.subr.mxu0 0.0
    %2706 = vmatpush1.xpose.msra.mxu0 0.0
    %2707 = vmatprep.subr.mxu0 0.0
    %2708 = vmatpush1.xpose.msra.mxu0 0.0
    %2709 = vmatprep.subr.mxu0 0.0
    %2710 = vmatpush1.xpose.msra.mxu0 0.0
    %2711 = vmatprep.subr.mxu0 0.0
    %2712 = vmatpush1.xpose.msra.mxu0 0.0
    %2713 = vmatprep.subr.mxu0 0.0
    %2714 = vmatpush1.xpose.msra.mxu0 0.0
    %2715 = vmatprep.subr.mxu0 0.0
    %2716 = vmatpush1.xpose.msra.mxu0 0.0
    %2717 = vmatprep.subr.mxu0 0.0
    %2718 = vmatpush1.xpose.msra.mxu0 0.0
    %2719 = vmatprep.subr.mxu0 0.0
    %2720 = vmatpush1.xpose.msra.mxu0 0.0
    %2721 = vmatprep.subr.mxu0 0.0
    %2722 = vmatpush1.xpose.msra.mxu0 0.0
    %2723 = vmatprep.subr.mxu0 0.0
    %2724 = vmatpush1.xpose.msra.mxu0 0.0
    %2725 = vmatprep.subr.mxu0 0.0
    %2726 = vmatpush1.xpose.msra.mxu0 0.0
    %2727 = vmatprep.subr.mxu0 0.0
    %2728 = vmatpush1.xpose.msra.mxu0 0.0
    %2729 = vmatprep.subr.mxu0 0.0
    %2730 = vmatpush1.xpose.msra.mxu0 0.0
    %2731 = vmatprep.subr.mxu0 0.0
    %2732 = vmatpush1.xpose.msra.mxu0 0.0
    %2733 = vmatprep.subr.mxu0 0.0
    %2734 = vmatpush1.xpose.msra.mxu0 0.0
    %2735 = vmatprep.subr.mxu0 0.0
    %2736 = vmatpush1.xpose.msra.mxu0 0.0
    %2737 = vmatprep.subr.mxu0 0.0
    %2738 = vmatpush1.xpose.msra.mxu0 0.0
    %2739 = vmatprep.subr.mxu0 0.0
    %2740 = vmatpush1.xpose.msra.mxu0 0.0
    %2741 = vmatprep.subr.mxu0 0.0
    %2742 = vmatpush1.xpose.msra.mxu0 0.0
    %2743 = vmatprep.subr.mxu0 0.0
    %2744 = vmatpush1.xpose.msra.mxu0 0.0
    %2745 = vmatprep.mubr.f32.mxu0 0.0
    %2746 = vmatmul.mubr.f32.gmra.mrb[0].mxu0 %v2665
    %v2747 = vpop.f32.mrb[0].mxu0
    %v2748 = vadd.f32 0.0, %v2747
    %v2749 = vpop.f32.mrb[0].mxu0
    %2750 = vmatprep.mubr.f32.mxu0 0.0
    %2751 = vmatmul.mubr.f32.gmra.mrb[0].mxu0 %v2667
    %v2752 = vpop.f32.mrb[0].mxu0
    %v2753 = vadd.f32 0.0, %v2752
    %v2754 = vpop.f32.mrb[0].mxu0
    %2755 = vmatprep.mubr.f32.mxu0 0.0
    %2756 = vmatmul.mubr.f32.gmra.mrb[0].mxu0 %v2669
    %v2757 = vpop.f32.mrb[0].mxu0
    %v2758 = vadd.f32 0.0, %v2757
    %v2759 = vpop.f32.mrb[0].mxu0
    %2760 = vmatprep.mubr.f32.mxu0 0.0
    %2761 = vmatmul.mubr.f32.gmra.mrb[0].mxu0 %v2671
    %v2762 = vpop.f32.mrb[0].mxu0
    %v2763 = vadd.f32 0.0, %v2762
    %v2764 = vpop.f32.mrb[0].mxu0
    %2765 = vdwg.mxu0
    %v2766 = vmul.f32 %v2748, 0.35355338
    %v2767 = vmul.f32 %v2753, 0.35355338
    %v2768 = vmul.f32 %v2758, 0.35355338
    %v2769 = vmul.f32 %v2763, 0.35355338
    %v2770 = vadd.f32 %v2766, %v257
    %v2771 = vadd.f32 %v2767, %v258
    %v2772 = vadd.f32 %v2768, %v259
    %v2773 = vadd.f32 %v2769, %v260
    %v2774 = vsel %vm272, %v2770, -inf
    %2775 = vmax.xlane.f32.xlu0 %v2774
    %v2776 = vpop.xlane.xlu0 %2775
    %v2777 = vsel %vm272, %v2771, -inf
    %2778 = vmax.xlane.f32.xlu0 %v2777
    %v2779 = vpop.xlane.xlu0 %2778
    %v2780 = vsel %vm272, %v2772, -inf
    %2781 = vmax.xlane.f32.xlu0 %v2780
    %v2782 = vpop.xlane.xlu0 %2781
    %v2783 = vsel %vm272, %v2773, -inf
    %2784 = vmax.xlane.f32.xlu0 %v2783
    %v2785 = vpop.xlane.xlu0 %2784
    %v2786 = vsub.f32 %v2770, %v2776
    %v2787 = vsub.f32 %v2771, %v2779
    %v2788 = vsub.f32 %v2772, %v2782
    %v2789 = vsub.f32 %v2773, %v2785
    %v2790 = vmul.f32 %v2786, 1.442695
    %v2791 = vpow.pop %v2790
    %v2792 = vmul.f32 %v2787, 1.442695
    %v2793 = vpow.pop %v2792
    %v2794 = vmul.f32 %v2788, 1.442695
    %v2795 = vpow.pop %v2794
    %v2796 = vmul.f32 %v2789, 1.442695
    %v2797 = vpow.pop %v2796
    %v2798 = vsel %vm272, %v2791, 0.0
    %2799 = vadd.xlane.f32.xlu0 %v2798
    %v2800 = vpop.xlane.xlu0 %2799
    %v2801 = vsel %vm272, %v2793, 0.0
    %2802 = vadd.xlane.f32.xlu0 %v2801
    %v2803 = vpop.xlane.xlu0 %2802
    %v2804 = vsel %vm272, %v2795, 0.0
    %2805 = vadd.xlane.f32.xlu0 %v2804
    %v2806 = vpop.xlane.xlu0 %2805
    %v2807 = vsel %vm272, %v2797, 0.0
    %2808 = vadd.xlane.f32.xlu0 %v2807
    %v2809 = vpop.xlane.xlu0 %2808
    %v2810 = vrcp.pop %v2800
    %v2811 = vrcp.pop %v2803
    %v2812 = vrcp.pop %v2806
    %v2813 = vrcp.pop %v2809
    %v2814 = vmul.f32 %v2791, %v2810
    %v2815 = vmul.f32 %v2793, %v2811
    %v2816 = vmul.f32 %v2795, %v2812
    %v2817 = vmul.f32 %v2797, %v2813
    %2822 = vrot.lane.b32.xlu0 %v2369, 120
    %v2823 = vpop.permute.xlu0 %2822
    %2824 = vrot.lane.b32.xlu0 %v2374, 120
    %v2825 = vpop.permute.xlu0 %2824
    %2826 = vrot.lane.b32.xlu0 %v2379, 120
    %v2827 = vpop.permute.xlu0 %2826
    %2828 = vrot.lane.b32.xlu0 %v2384, 120
    %v2829 = vpop.permute.xlu0 %2828
    %v2835 = vsel %vm272, %v2814, 0
    %v2838 = vsel %vm272, %v2815, 0
    %v2841 = vsel %vm272, %v2816, 0
    %v2844 = vsel %vm272, %v2817, 0
    %2846 = vmatprep.subr.mxu0 0.0
    %2847 = vmatpush1.msra.mxu0 %v2823
    %2848 = vmatprep.subr.mxu0 0.0
    %2849 = vmatpush1.msra.mxu0 %v2825
    %2850 = vmatprep.subr.mxu0 0.0
    %2851 = vmatpush1.msra.mxu0 %v2827
    %2852 = vmatprep.subr.mxu0 0.0
    %2853 = vmatpush1.msra.mxu0 %v2829
    %2854 = vmatprep.subr.mxu0 0.0
    %2855 = vmatpush1.msra.mxu0 0.0
    %2856 = vmatprep.subr.mxu0 0.0
    %2857 = vmatpush1.msra.mxu0 0.0
    %2858 = vmatprep.subr.mxu0 0.0
    %2859 = vmatpush1.msra.mxu0 0.0
    %2860 = vmatprep.subr.mxu0 0.0
    %2861 = vmatpush1.msra.mxu0 0.0
    %2862 = vmatprep.subr.mxu0 0.0
    %2863 = vmatpush1.msra.mxu0 0.0
    %2864 = vmatprep.subr.mxu0 0.0
    %2865 = vmatpush1.msra.mxu0 0.0
    %2866 = vmatprep.subr.mxu0 0.0
    %2867 = vmatpush1.msra.mxu0 0.0
    %2868 = vmatprep.subr.mxu0 0.0
    %2869 = vmatpush1.msra.mxu0 0.0
    %2870 = vmatprep.subr.mxu0 0.0
    %2871 = vmatpush1.msra.mxu0 0.0
    %2872 = vmatprep.subr.mxu0 0.0
    %2873 = vmatpush1.msra.mxu0 0.0
    %2874 = vmatprep.subr.mxu0 0.0
    %2875 = vmatpush1.msra.mxu0 0.0
    %2876 = vmatprep.subr.mxu0 0.0
    %2877 = vmatpush1.msra.mxu0 0.0
    %2878 = vmatprep.subr.mxu0 0.0
    %2879 = vmatpush1.msra.mxu0 0.0
    %2880 = vmatprep.subr.mxu0 0.0
    %2881 = vmatpush1.msra.mxu0 0.0
    %2882 = vmatprep.subr.mxu0 0.0
    %2883 = vmatpush1.msra.mxu0 0.0
    %2884 = vmatprep.subr.mxu0 0.0
    %2885 = vmatpush1.msra.mxu0 0.0
    %2886 = vmatprep.subr.mxu0 0.0
    %2887 = vmatpush1.msra.mxu0 0.0
    %2888 = vmatprep.subr.mxu0 0.0
    %2889 = vmatpush1.msra.mxu0 0.0
    %2890 = vmatprep.subr.mxu0 0.0
    %2891 = vmatpush1.msra.mxu0 0.0
    %2892 = vmatprep.subr.mxu0 0.0
    %2893 = vmatpush1.msra.mxu0 0.0
    %2894 = vmatprep.subr.mxu0 0.0
    %2895 = vmatpush1.msra.mxu0 0.0
    %2896 = vmatprep.subr.mxu0 0.0
    %2897 = vmatpush1.msra.mxu0 0.0
    %2898 = vmatprep.subr.mxu0 0.0
    %2899 = vmatpush1.msra.mxu0 0.0
    %2900 = vmatprep.subr.mxu0 0.0
    %2901 = vmatpush1.msra.mxu0 0.0
    %2902 = vmatprep.subr.mxu0 0.0
    %2903 = vmatpush1.msra.mxu0 0.0
    %2904 = vmatprep.subr.mxu0 0.0
    %2905 = vmatpush1.msra.mxu0 0.0
    %2906 = vmatprep.subr.mxu0 0.0
    %2907 = vmatpush1.msra.mxu0 0.0
    %2908 = vmatprep.subr.mxu0 0.0
    %2909 = vmatpush1.msra.mxu0 0.0
    %2910 = vmatprep.mubr.f32.mxu0 0.0
    %2911 = vmatmul.mubr.f32.gmra.mrb[0].mxu0 %v2835
    %v2912 = vpop.f32.mrb[0].mxu0
    %v2913 = vadd.f32 0.0, %v2912
    %v2914 = vpop.f32.mrb[0].mxu0
    %2915 = vmatprep.mubr.f32.mxu0 0.0
    %2916 = vmatmul.mubr.f32.gmra.mrb[0].mxu0 %v2838
    %v2917 = vpop.f32.mrb[0].mxu0
    %v2918 = vadd.f32 0.0, %v2917
    %v2919 = vpop.f32.mrb[0].mxu0
    %2920 = vmatprep.mubr.f32.mxu0 0.0
    %2921 = vmatmul.mubr.f32.gmra.mrb[0].mxu0 %v2841
    %v2922 = vpop.f32.mrb[0].mxu0
    %v2923 = vadd.f32 0.0, %v2922
    %v2924 = vpop.f32.mrb[0].mxu0
    %2925 = vmatprep.mubr.f32.mxu0 0.0
    %2926 = vmatmul.mubr.f32.gmra.mrb[0].mxu0 %v2844
    %v2927 = vpop.f32.mrb[0].mxu0
    %v2928 = vadd.f32 0.0, %v2927
    %v2929 = vpop.f32.mrb[0].mxu0
    %2930 = vdwg.mxu0
    %2935 = vrot.lane.b32.xlu0 %v2913, 8
    %v2936 = vpop.permute.xlu0 %2935
    %2937 = vrot.lane.b32.xlu0 %v2918, 8
    %v2938 = vpop.permute.xlu0 %2937
    %2939 = vrot.lane.b32.xlu0 %v2923, 8
    %v2940 = vpop.permute.xlu0 %2939
    %2941 = vrot.lane.b32.xlu0 %v2928, 8
    %v2942 = vpop.permute.xlu0 %2941
    %2947 = vst.msk [vmem:[#allocation2] sm:$0xff] %vm1237, %v2936
    %2948 = vst.msk [vmem:[#allocation2 + $0x8] sm:$0xff] %vm1237, %v2938
    %2949 = vst.msk [vmem:[#allocation2 + $0x10] sm:$0xff] %vm1237, %v2940
    %2950 = vst.msk [vmem:[#allocation2 + $0x18] sm:$0xff] %vm1237, %v2942
    %2951 = vrot.lane.b32.xlu0 %v2177, 112
    %v2952 = vpop.permute.xlu0 %2951
    %2953 = vrot.lane.b32.xlu0 %v2182, 112
    %v2954 = vpop.permute.xlu0 %2953
    %2955 = vrot.lane.b32.xlu0 %v2187, 112
    %v2956 = vpop.permute.xlu0 %2955
    %2957 = vrot.lane.b32.xlu0 %v2192, 112
    %v2958 = vpop.permute.xlu0 %2957
    %2959 = vrot.lane.b32.xlu0 %v2273, 112
    %v2960 = vpop.permute.xlu0 %2959
    %2961 = vrot.lane.b32.xlu0 %v2278, 112
    %v2962 = vpop.permute.xlu0 %2961
    %2963 = vrot.lane.b32.xlu0 %v2283, 112
    %v2964 = vpop.permute.xlu0 %2963
    %2965 = vrot.lane.b32.xlu0 %v2288, 112
    %v2966 = vpop.permute.xlu0 %2965
    %v2967 = vsel %vm631, %v2952, 0
    %v2969 = vsel %vm631, %v2954, 0
    %v2971 = vsel %vm631, %v2956, 0
    %v2973 = vsel %vm631, %v2958, 0
    %v2975 = vsel %vm631, %v2960, 0
    %v2977 = vsel %vm631, %v2962, 0
    %v2979 = vsel %vm631, %v2964, 0
    %v2981 = vsel %vm631, %v2966, 0
    %2983 = vmatprep.subr.mxu0 0.0
    %2984 = vmatpush1.xpose.msra.mxu0 %v2975
    %2985 = vmatprep.subr.mxu0 0.0
    %2986 = vmatpush1.xpose.msra.mxu0 %v2977
    %2987 = vmatprep.subr.mxu0 0.0
    %2988 = vmatpush1.xpose.msra.mxu0 %v2979
    %2989 = vmatprep.subr.mxu0 0.0
    %2990 = vmatpush1.xpose.msra.mxu0 %v2981
    %2991 = vmatprep.subr.mxu0 0.0
    %2992 = vmatpush1.xpose.msra.mxu0 0.0
    %2993 = vmatprep.subr.mxu0 0.0
    %2994 = vmatpush1.xpose.msra.mxu0 0.0
    %2995 = vmatprep.subr.mxu0 0.0
    %2996 = vmatpush1.xpose.msra.mxu0 0.0
    %2997 = vmatprep.subr.mxu0 0.0
    %2998 = vmatpush1.xpose.msra.mxu0 0.0
    %2999 = vmatprep.subr.mxu0 0.0
    %3000 = vmatpush1.xpose.msra.mxu0 0.0
    %3001 = vmatprep.subr.mxu0 0.0
    %3002 = vmatpush1.xpose.msra.mxu0 0.0
    %3003 = vmatprep.subr.mxu0 0.0
    %3004 = vmatpush1.xpose.msra.mxu0 0.0
    %3005 = vmatprep.subr.mxu0 0.0
    %3006 = vmatpush1.xpose.msra.mxu0 0.0
    %3007 = vmatprep.subr.mxu0 0.0
    %3008 = vmatpush1.xpose.msra.mxu0 0.0
    %3009 = vmatprep.subr.mxu0 0.0
    %3010 = vmatpush1.xpose.msra.mxu0 0.0
    %3011 = vmatprep.subr.mxu0 0.0
    %3012 = vmatpush1.xpose.msra.mxu0 0.0
    %3013 = vmatprep.subr.mxu0 0.0
    %3014 = vmatpush1.xpose.msra.mxu0 0.0
    %3015 = vmatprep.subr.mxu0 0.0
    %3016 = vmatpush1.xpose.msra.mxu0 0.0
    %3017 = vmatprep.subr.mxu0 0.0
    %3018 = vmatpush1.xpose.msra.mxu0 0.0
    %3019 = vmatprep.subr.mxu0 0.0
    %3020 = vmatpush1.xpose.msra.mxu0 0.0
    %3021 = vmatprep.subr.mxu0 0.0
    %3022 = vmatpush1.xpose.msra.mxu0 0.0
    %3023 = vmatprep.subr.mxu0 0.0
    %3024 = vmatpush1.xpose.msra.mxu0 0.0
    %3025 = vmatprep.subr.mxu0 0.0
    %3026 = vmatpush1.xpose.msra.mxu0 0.0
    %3027 = vmatprep.subr.mxu0 0.0
    %3028 = vmatpush1.xpose.msra.mxu0 0.0
    %3029 = vmatprep.subr.mxu0 0.0
    %3030 = vmatpush1.xpose.msra.mxu0 0.0
    %3031 = vmatprep.subr.mxu0 0.0
    %3032 = vmatpush1.xpose.msra.mxu0 0.0
    %3033 = vmatprep.subr.mxu0 0.0
    %3034 = vmatpush1.xpose.msra.mxu0 0.0
    %3035 = vmatprep.subr.mxu0 0.0
    %3036 = vmatpush1.xpose.msra.mxu0 0.0
    %3037 = vmatprep.subr.mxu0 0.0
    %3038 = vmatpush1.xpose.msra.mxu0 0.0
    %3039 = vmatprep.subr.mxu0 0.0
    %3040 = vmatpush1.xpose.msra.mxu0 0.0
    %3041 = vmatprep.subr.mxu0 0.0
    %3042 = vmatpush1.xpose.msra.mxu0 0.0
    %3043 = vmatprep.subr.mxu0 0.0
    %3044 = vmatpush1.xpose.msra.mxu0 0.0
    %3045 = vmatprep.subr.mxu0 0.0
    %3046 = vmatpush1.xpose.msra.mxu0 0.0
    %3047 = vmatprep.mubr.f32.mxu0 0.0
    %3048 = vmatmul.mubr.f32.gmra.mrb[0].mxu0 %v2967
    %v3049 = vpop.f32.mrb[0].mxu0
    %v3050 = vadd.f32 0.0, %v3049
    %v3051 = vpop.f32.mrb[0].mxu0
    %3052 = vmatprep.mubr.f32.mxu0 0.0
    %3053 = vmatmul.mubr.f32.gmra.mrb[0].mxu0 %v2969
    %v3054 = vpop.f32.mrb[0].mxu0
    %v3055 = vadd.f32 0.0, %v3054
    %v3056 = vpop.f32.mrb[0].mxu0
    %3057 = vmatprep.mubr.f32.mxu0 0.0
    %3058 = vmatmul.mubr.f32.gmra.mrb[0].mxu0 %v2971
    %v3059 = vpop.f32.mrb[0].mxu0
    %v3060 = vadd.f32 0.0, %v3059
    %v3061 = vpop.f32.mrb[0].mxu0
    %3062 = vmatprep.mubr.f32.mxu0 0.0
    %3063 = vmatmul.mubr.f32.gmra.mrb[0].mxu0 %v2973
    %v3064 = vpop.f32.mrb[0].mxu0
    %v3065 = vadd.f32 0.0, %v3064
    %v3066 = vpop.f32.mrb[0].mxu0
    %3067 = vdwg.mxu0
    %v3068 = vmul.f32 %v3050, 0.35355338
    %v3069 = vmul.f32 %v3055, 0.35355338
    %v3070 = vmul.f32 %v3060, 0.35355338
    %v3071 = vmul.f32 %v3065, 0.35355338
    %v3072 = vadd.f32 %v3068, %v257
    %v3073 = vadd.f32 %v3069, %v258
    %v3074 = vadd.f32 %v3070, %v259
    %v3075 = vadd.f32 %v3071, %v260
    %v3076 = vsel %vm272, %v3072, -inf
    %3077 = vmax.xlane.f32.xlu0 %v3076
    %v3078 = vpop.xlane.xlu0 %3077
    %v3079 = vsel %vm272, %v3073, -inf
    %3080 = vmax.xlane.f32.xlu0 %v3079
    %v3081 = vpop.xlane.xlu0 %3080
    %v3082 = vsel %vm272, %v3074, -inf
    %3083 = vmax.xlane.f32.xlu0 %v3082
    %v3084 = vpop.xlane.xlu0 %3083
    %v3085 = vsel %vm272, %v3075, -inf
    %3086 = vmax.xlane.f32.xlu0 %v3085
    %v3087 = vpop.xlane.xlu0 %3086
    %v3088 = vsub.f32 %v3072, %v3078
    %v3089 = vsub.f32 %v3073, %v3081
    %v3090 = vsub.f32 %v3074, %v3084
    %v3091 = vsub.f32 %v3075, %v3087
    %v3092 = vmul.f32 %v3088, 1.442695
    %v3093 = vpow.pop %v3092
    %v3094 = vmul.f32 %v3089, 1.442695
    %v3095 = vpow.pop %v3094
    %v3096 = vmul.f32 %v3090, 1.442695
    %v3097 = vpow.pop %v3096
    %v3098 = vmul.f32 %v3091, 1.442695
    %v3099 = vpow.pop %v3098
    %v3100 = vsel %vm272, %v3093, 0.0
    %3101 = vadd.xlane.f32.xlu0 %v3100
    %v3102 = vpop.xlane.xlu0 %3101
    %v3103 = vsel %vm272, %v3095, 0.0
    %3104 = vadd.xlane.f32.xlu0 %v3103
    %v3105 = vpop.xlane.xlu0 %3104
    %v3106 = vsel %vm272, %v3097, 0.0
    %3107 = vadd.xlane.f32.xlu0 %v3106
    %v3108 = vpop.xlane.xlu0 %3107
    %v3109 = vsel %vm272, %v3099, 0.0
    %3110 = vadd.xlane.f32.xlu0 %v3109
    %v3111 = vpop.xlane.xlu0 %3110
    %v3112 = vrcp.pop %v3102
    %v3113 = vrcp.pop %v3105
    %v3114 = vrcp.pop %v3108
    %v3115 = vrcp.pop %v3111
    %v3116 = vmul.f32 %v3093, %v3112
    %v3117 = vmul.f32 %v3095, %v3113
    %v3118 = vmul.f32 %v3097, %v3114
    %v3119 = vmul.f32 %v3099, %v3115
    %3120 = vrot.lane.b32.xlu0 %v2369, 112
    %v3121 = vpop.permute.xlu0 %3120
    %3122 = vrot.lane.b32.xlu0 %v2374, 112
    %v3123 = vpop.permute.xlu0 %3122
    %3124 = vrot.lane.b32.xlu0 %v2379, 112
    %v3125 = vpop.permute.xlu0 %3124
    %3126 = vrot.lane.b32.xlu0 %v2384, 112
    %v3127 = vpop.permute.xlu0 %3126
    %v3133 = vsel %vm272, %v3116, 0
    %v3136 = vsel %vm272, %v3117, 0
    %v3139 = vsel %vm272, %v3118, 0
    %v3142 = vsel %vm272, %v3119, 0
    %3144 = vmatprep.subr.mxu0 0.0
    %3145 = vmatpush1.msra.mxu0 %v3121
    %3146 = vmatprep.subr.mxu0 0.0
    %3147 = vmatpush1.msra.mxu0 %v3123
    %3148 = vmatprep.subr.mxu0 0.0
    %3149 = vmatpush1.msra.mxu0 %v3125
    %3150 = vmatprep.subr.mxu0 0.0
    %3151 = vmatpush1.msra.mxu0 %v3127
    %3152 = vmatprep.subr.mxu0 0.0
    %3153 = vmatpush1.msra.mxu0 0.0
    %3154 = vmatprep.subr.mxu0 0.0
    %3155 = vmatpush1.msra.mxu0 0.0
    %3156 = vmatprep.subr.mxu0 0.0
    %3157 = vmatpush1.msra.mxu0 0.0
    %3158 = vmatprep.subr.mxu0 0.0
    %3159 = vmatpush1.msra.mxu0 0.0
    %3160 = vmatprep.subr.mxu0 0.0
    %3161 = vmatpush1.msra.mxu0 0.0
    %3162 = vmatprep.subr.mxu0 0.0
    %3163 = vmatpush1.msra.mxu0 0.0
    %3164 = vmatprep.subr.mxu0 0.0
    %3165 = vmatpush1.msra.mxu0 0.0
    %3166 = vmatprep.subr.mxu0 0.0
    %3167 = vmatpush1.msra.mxu0 0.0
    %3168 = vmatprep.subr.mxu0 0.0
    %3169 = vmatpush1.msra.mxu0 0.0
    %3170 = vmatprep.subr.mxu0 0.0
    %3171 = vmatpush1.msra.mxu0 0.0
    %3172 = vmatprep.subr.mxu0 0.0
    %3173 = vmatpush1.msra.mxu0 0.0
    %3174 = vmatprep.subr.mxu0 0.0
    %3175 = vmatpush1.msra.mxu0 0.0
    %3176 = vmatprep.subr.mxu0 0.0
    %3177 = vmatpush1.msra.mxu0 0.0
    %3178 = vmatprep.subr.mxu0 0.0
    %3179 = vmatpush1.msra.mxu0 0.0
    %3180 = vmatprep.subr.mxu0 0.0
    %3181 = vmatpush1.msra.mxu0 0.0
    %3182 = vmatprep.subr.mxu0 0.0
    %3183 = vmatpush1.msra.mxu0 0.0
    %3184 = vmatprep.subr.mxu0 0.0
    %3185 = vmatpush1.msra.mxu0 0.0
    %3186 = vmatprep.subr.mxu0 0.0
    %3187 = vmatpush1.msra.mxu0 0.0
    %3188 = vmatprep.subr.mxu0 0.0
    %3189 = vmatpush1.msra.mxu0 0.0
    %3190 = vmatprep.subr.mxu0 0.0
    %3191 = vmatpush1.msra.mxu0 0.0
    %3192 = vmatprep.subr.mxu0 0.0
    %3193 = vmatpush1.msra.mxu0 0.0
    %3194 = vmatprep.subr.mxu0 0.0
    %3195 = vmatpush1.msra.mxu0 0.0
    %3196 = vmatprep.subr.mxu0 0.0
    %3197 = vmatpush1.msra.mxu0 0.0
    %3198 = vmatprep.subr.mxu0 0.0
    %3199 = vmatpush1.msra.mxu0 0.0
    %3200 = vmatprep.subr.mxu0 0.0
    %3201 = vmatpush1.msra.mxu0 0.0
    %3202 = vmatprep.subr.mxu0 0.0
    %3203 = vmatpush1.msra.mxu0 0.0
    %3204 = vmatprep.subr.mxu0 0.0
    %3205 = vmatpush1.msra.mxu0 0.0
    %3206 = vmatprep.subr.mxu0 0.0
    %3207 = vmatpush1.msra.mxu0 0.0
    %3208 = vmatprep.mubr.f32.mxu0 0.0
    %3209 = vmatmul.mubr.f32.gmra.mrb[0].mxu0 %v3133
    %v3210 = vpop.f32.mrb[0].mxu0
    %v3211 = vadd.f32 0.0, %v3210
    %v3212 = vpop.f32.mrb[0].mxu0
    %3213 = vmatprep.mubr.f32.mxu0 0.0
    %3214 = vmatmul.mubr.f32.gmra.mrb[0].mxu0 %v3136
    %v3215 = vpop.f32.mrb[0].mxu0
    %v3216 = vadd.f32 0.0, %v3215
    %v3217 = vpop.f32.mrb[0].mxu0
    %3218 = vmatprep.mubr.f32.mxu0 0.0
    %3219 = vmatmul.mubr.f32.gmra.mrb[0].mxu0 %v3139
    %v3220 = vpop.f32.mrb[0].mxu0
    %v3221 = vadd.f32 0.0, %v3220
    %v3222 = vpop.f32.mrb[0].mxu0
    %3223 = vmatprep.mubr.f32.mxu0 0.0
    %3224 = vmatmul.mubr.f32.gmra.mrb[0].mxu0 %v3142
    %v3225 = vpop.f32.mrb[0].mxu0
    %v3226 = vadd.f32 0.0, %v3225
    %v3227 = vpop.f32.mrb[0].mxu0
    %3228 = vdwg.mxu0
    %3233 = vrot.lane.b32.xlu0 %v3211, 16
    %v3234 = vpop.permute.xlu0 %3233
    %3235 = vrot.lane.b32.xlu0 %v3216, 16
    %v3236 = vpop.permute.xlu0 %3235
    %3237 = vrot.lane.b32.xlu0 %v3221, 16
    %v3238 = vpop.permute.xlu0 %3237
    %3239 = vrot.lane.b32.xlu0 %v3226, 16
    %v3240 = vpop.permute.xlu0 %3239
    %3245 = vst.msk [vmem:[#allocation2] sm:$0xff] %vm1564, %v3234
    %3246 = vst.msk [vmem:[#allocation2 + $0x8] sm:$0xff] %vm1564, %v3236
    %3247 = vst.msk [vmem:[#allocation2 + $0x10] sm:$0xff] %vm1564, %v3238
    %3248 = vst.msk [vmem:[#allocation2 + $0x18] sm:$0xff] %vm1564, %v3240
    %3249 = vrot.lane.b32.xlu0 %v2177, 104
    %v3250 = vpop.permute.xlu0 %3249
    %3251 = vrot.lane.b32.xlu0 %v2182, 104
    %v3252 = vpop.permute.xlu0 %3251
    %3253 = vrot.lane.b32.xlu0 %v2187, 104
    %v3254 = vpop.permute.xlu0 %3253
    %3255 = vrot.lane.b32.xlu0 %v2192, 104
    %v3256 = vpop.permute.xlu0 %3255
    %3257 = vrot.lane.b32.xlu0 %v2273, 104
    %v3258 = vpop.permute.xlu0 %3257
    %3259 = vrot.lane.b32.xlu0 %v2278, 104
    %v3260 = vpop.permute.xlu0 %3259
    %3261 = vrot.lane.b32.xlu0 %v2283, 104
    %v3262 = vpop.permute.xlu0 %3261
    %3263 = vrot.lane.b32.xlu0 %v2288, 104
    %v3264 = vpop.permute.xlu0 %3263
    %v3265 = vsel %vm631, %v3250, 0
    %v3267 = vsel %vm631, %v3252, 0
    %v3269 = vsel %vm631, %v3254, 0
    %v3271 = vsel %vm631, %v3256, 0
    %v3273 = vsel %vm631, %v3258, 0
    %v3275 = vsel %vm631, %v3260, 0
    %v3277 = vsel %vm631, %v3262, 0
    %v3279 = vsel %vm631, %v3264, 0
    %3281 = vmatprep.subr.mxu0 0.0
    %3282 = vmatpush1.xpose.msra.mxu0 %v3273
    %3283 = vmatprep.subr.mxu0 0.0
    %3284 = vmatpush1.xpose.msra.mxu0 %v3275
    %3285 = vmatprep.subr.mxu0 0.0
    %3286 = vmatpush1.xpose.msra.mxu0 %v3277
    %3287 = vmatprep.subr.mxu0 0.0
    %3288 = vmatpush1.xpose.msra.mxu0 %v3279
    %3289 = vmatprep.subr.mxu0 0.0
    %3290 = vmatpush1.xpose.msra.mxu0 0.0
    %3291 = vmatprep.subr.mxu0 0.0
    %3292 = vmatpush1.xpose.msra.mxu0 0.0
    %3293 = vmatprep.subr.mxu0 0.0
    %3294 = vmatpush1.xpose.msra.mxu0 0.0
    %3295 = vmatprep.subr.mxu0 0.0
    %3296 = vmatpush1.xpose.msra.mxu0 0.0
    %3297 = vmatprep.subr.mxu0 0.0
    %3298 = vmatpush1.xpose.msra.mxu0 0.0
    %3299 = vmatprep.subr.mxu0 0.0
    %3300 = vmatpush1.xpose.msra.mxu0 0.0
    %3301 = vmatprep.subr.mxu0 0.0
    %3302 = vmatpush1.xpose.msra.mxu0 0.0
    %3303 = vmatprep.subr.mxu0 0.0
    %3304 = vmatpush1.xpose.msra.mxu0 0.0
    %3305 = vmatprep.subr.mxu0 0.0
    %3306 = vmatpush1.xpose.msra.mxu0 0.0
    %3307 = vmatprep.subr.mxu0 0.0
    %3308 = vmatpush1.xpose.msra.mxu0 0.0
    %3309 = vmatprep.subr.mxu0 0.0
    %3310 = vmatpush1.xpose.msra.mxu0 0.0
    %3311 = vmatprep.subr.mxu0 0.0
    %3312 = vmatpush1.xpose.msra.mxu0 0.0
    %3313 = vmatprep.subr.mxu0 0.0
    %3314 = vmatpush1.xpose.msra.mxu0 0.0
    %3315 = vmatprep.subr.mxu0 0.0
    %3316 = vmatpush1.xpose.msra.mxu0 0.0
    %3317 = vmatprep.subr.mxu0 0.0
    %3318 = vmatpush1.xpose.msra.mxu0 0.0
    %3319 = vmatprep.subr.mxu0 0.0
    %3320 = vmatpush1.xpose.msra.mxu0 0.0
    %3321 = vmatprep.subr.mxu0 0.0
    %3322 = vmatpush1.xpose.msra.mxu0 0.0
    %3323 = vmatprep.subr.mxu0 0.0
    %3324 = vmatpush1.xpose.msra.mxu0 0.0
    %3325 = vmatprep.subr.mxu0 0.0
    %3326 = vmatpush1.xpose.msra.mxu0 0.0
    %3327 = vmatprep.subr.mxu0 0.0
    %3328 = vmatpush1.xpose.msra.mxu0 0.0
    %3329 = vmatprep.subr.mxu0 0.0
    %3330 = vmatpush1.xpose.msra.mxu0 0.0
    %3331 = vmatprep.subr.mxu0 0.0
    %3332 = vmatpush1.xpose.msra.mxu0 0.0
    %3333 = vmatprep.subr.mxu0 0.0
    %3334 = vmatpush1.xpose.msra.mxu0 0.0
    %3335 = vmatprep.subr.mxu0 0.0
    %3336 = vmatpush1.xpose.msra.mxu0 0.0
    %3337 = vmatprep.subr.mxu0 0.0
    %3338 = vmatpush1.xpose.msra.mxu0 0.0
    %3339 = vmatprep.subr.mxu0 0.0
    %3340 = vmatpush1.xpose.msra.mxu0 0.0
    %3341 = vmatprep.subr.mxu0 0.0
    %3342 = vmatpush1.xpose.msra.mxu0 0.0
    %3343 = vmatprep.subr.mxu0 0.0
    %3344 = vmatpush1.xpose.msra.mxu0 0.0
    %3345 = vmatprep.mubr.f32.mxu0 0.0
    %3346 = vmatmul.mubr.f32.gmra.mrb[0].mxu0 %v3265
    %v3347 = vpop.f32.mrb[0].mxu0
    %v3348 = vadd.f32 0.0, %v3347
    %v3349 = vpop.f32.mrb[0].mxu0
    %3350 = vmatprep.mubr.f32.mxu0 0.0
    %3351 = vmatmul.mubr.f32.gmra.mrb[0].mxu0 %v3267
    %v3352 = vpop.f32.mrb[0].mxu0
    %v3353 = vadd.f32 0.0, %v3352
    %v3354 = vpop.f32.mrb[0].mxu0
    %3355 = vmatprep.mubr.f32.mxu0 0.0
    %3356 = vmatmul.mubr.f32.gmra.mrb[0].mxu0 %v3269
    %v3357 = vpop.f32.mrb[0].mxu0
    %v3358 = vadd.f32 0.0, %v3357
    %v3359 = vpop.f32.mrb[0].mxu0
    %3360 = vmatprep.mubr.f32.mxu0 0.0
    %3361 = vmatmul.mubr.f32.gmra.mrb[0].mxu0 %v3271
    %v3362 = vpop.f32.mrb[0].mxu0
    %v3363 = vadd.f32 0.0, %v3362
    %v3364 = vpop.f32.mrb[0].mxu0
    %3365 = vdwg.mxu0
    %v3366 = vmul.f32 %v3348, 0.35355338
    %v3367 = vmul.f32 %v3353, 0.35355338
    %v3368 = vmul.f32 %v3358, 0.35355338
    %v3369 = vmul.f32 %v3363, 0.35355338
    %v3370 = vadd.f32 %v3366, %v257
    %v3371 = vadd.f32 %v3367, %v258
    %v3372 = vadd.f32 %v3368, %v259
    %v3373 = vadd.f32 %v3369, %v260
    %v3374 = vsel %vm272, %v3370, -inf
    %3375 = vmax.xlane.f32.xlu0 %v3374
    %v3376 = vpop.xlane.xlu0 %3375
    %v3377 = vsel %vm272, %v3371, -inf
    %3378 = vmax.xlane.f32.xlu0 %v3377
    %v3379 = vpop.xlane.xlu0 %3378
    %v3380 = vsel %vm272, %v3372, -inf
    %3381 = vmax.xlane.f32.xlu0 %v3380
    %v3382 = vpop.xlane.xlu0 %3381
    %v3383 = vsel %vm272, %v3373, -inf
    %3384 = vmax.xlane.f32.xlu0 %v3383
    %v3385 = vpop.xlane.xlu0 %3384
    %v3386 = vsub.f32 %v3370, %v3376
    %v3387 = vsub.f32 %v3371, %v3379
    %v3388 = vsub.f32 %v3372, %v3382
    %v3389 = vsub.f32 %v3373, %v3385
    %v3390 = vmul.f32 %v3386, 1.442695
    %v3391 = vpow.pop %v3390
    %v3392 = vmul.f32 %v3387, 1.442695
    %v3393 = vpow.pop %v3392
    %v3394 = vmul.f32 %v3388, 1.442695
    %v3395 = vpow.pop %v3394
    %v3396 = vmul.f32 %v3389, 1.442695
    %v3397 = vpow.pop %v3396
    %v3398 = vsel %vm272, %v3391, 0.0
    %3399 = vadd.xlane.f32.xlu0 %v3398
    %v3400 = vpop.xlane.xlu0 %3399
    %v3401 = vsel %vm272, %v3393, 0.0
    %3402 = vadd.xlane.f32.xlu0 %v3401
    %v3403 = vpop.xlane.xlu0 %3402
    %v3404 = vsel %vm272, %v3395, 0.0
    %3405 = vadd.xlane.f32.xlu0 %v3404
    %v3406 = vpop.xlane.xlu0 %3405
    %v3407 = vsel %vm272, %v3397, 0.0
    %3408 = vadd.xlane.f32.xlu0 %v3407
    %v3409 = vpop.xlane.xlu0 %3408
    %v3410 = vrcp.pop %v3400
    %v3411 = vrcp.pop %v3403
    %v3412 = vrcp.pop %v3406
    %v3413 = vrcp.pop %v3409
    %v3414 = vmul.f32 %v3391, %v3410
    %v3415 = vmul.f32 %v3393, %v3411
    %v3416 = vmul.f32 %v3395, %v3412
    %v3417 = vmul.f32 %v3397, %v3413
    %3418 = vrot.lane.b32.xlu0 %v2369, 104
    %v3419 = vpop.permute.xlu0 %3418
    %3420 = vrot.lane.b32.xlu0 %v2374, 104
    %v3421 = vpop.permute.xlu0 %3420
    %3422 = vrot.lane.b32.xlu0 %v2379, 104
    %v3423 = vpop.permute.xlu0 %3422
    %3424 = vrot.lane.b32.xlu0 %v2384, 104
    %v3425 = vpop.permute.xlu0 %3424
    %v3431 = vsel %vm272, %v3414, 0
    %v3434 = vsel %vm272, %v3415, 0
    %v3437 = vsel %vm272, %v3416, 0
    %v3440 = vsel %vm272, %v3417, 0
    %3442 = vmatprep.subr.mxu0 0.0
    %3443 = vmatpush1.msra.mxu0 %v3419
    %3444 = vmatprep.subr.mxu0 0.0
    %3445 = vmatpush1.msra.mxu0 %v3421
    %3446 = vmatprep.subr.mxu0 0.0
    %3447 = vmatpush1.msra.mxu0 %v3423
    %3448 = vmatprep.subr.mxu0 0.0
    %3449 = vmatpush1.msra.mxu0 %v3425
    %3450 = vmatprep.subr.mxu0 0.0
    %3451 = vmatpush1.msra.mxu0 0.0
    %3452 = vmatprep.subr.mxu0 0.0
    %3453 = vmatpush1.msra.mxu0 0.0
    %3454 = vmatprep.subr.mxu0 0.0
    %3455 = vmatpush1.msra.mxu0 0.0
    %3456 = vmatprep.subr.mxu0 0.0
    %3457 = vmatpush1.msra.mxu0 0.0
    %3458 = vmatprep.subr.mxu0 0.0
    %3459 = vmatpush1.msra.mxu0 0.0
    %3460 = vmatprep.subr.mxu0 0.0
    %3461 = vmatpush1.msra.mxu0 0.0
    %3462 = vmatprep.subr.mxu0 0.0
    %3463 = vmatpush1.msra.mxu0 0.0
    %3464 = vmatprep.subr.mxu0 0.0
    %3465 = vmatpush1.msra.mxu0 0.0
    %3466 = vmatprep.subr.mxu0 0.0
    %3467 = vmatpush1.msra.mxu0 0.0
    %3468 = vmatprep.subr.mxu0 0.0
    %3469 = vmatpush1.msra.mxu0 0.0
    %3470 = vmatprep.subr.mxu0 0.0
    %3471 = vmatpush1.msra.mxu0 0.0
    %3472 = vmatprep.subr.mxu0 0.0
    %3473 = vmatpush1.msra.mxu0 0.0
    %3474 = vmatprep.subr.mxu0 0.0
    %3475 = vmatpush1.msra.mxu0 0.0
    %3476 = vmatprep.subr.mxu0 0.0
    %3477 = vmatpush1.msra.mxu0 0.0
    %3478 = vmatprep.subr.mxu0 0.0
    %3479 = vmatpush1.msra.mxu0 0.0
    %3480 = vmatprep.subr.mxu0 0.0
    %3481 = vmatpush1.msra.mxu0 0.0
    %3482 = vmatprep.subr.mxu0 0.0
    %3483 = vmatpush1.msra.mxu0 0.0
    %3484 = vmatprep.subr.mxu0 0.0
    %3485 = vmatpush1.msra.mxu0 0.0
    %3486 = vmatprep.subr.mxu0 0.0
    %3487 = vmatpush1.msra.mxu0 0.0
    %3488 = vmatprep.subr.mxu0 0.0
    %3489 = vmatpush1.msra.mxu0 0.0
    %3490 = vmatprep.subr.mxu0 0.0
    %3491 = vmatpush1.msra.mxu0 0.0
    %3492 = vmatprep.subr.mxu0 0.0
    %3493 = vmatpush1.msra.mxu0 0.0
    %3494 = vmatprep.subr.mxu0 0.0
    %3495 = vmatpush1.msra.mxu0 0.0
    %3496 = vmatprep.subr.mxu0 0.0
    %3497 = vmatpush1.msra.mxu0 0.0
    %3498 = vmatprep.subr.mxu0 0.0
    %3499 = vmatpush1.msra.mxu0 0.0
    %3500 = vmatprep.subr.mxu0 0.0
    %3501 = vmatpush1.msra.mxu0 0.0
    %3502 = vmatprep.subr.mxu0 0.0
    %3503 = vmatpush1.msra.mxu0 0.0
    %3504 = vmatprep.subr.mxu0 0.0
    %3505 = vmatpush1.msra.mxu0 0.0
    %3506 = vmatprep.mubr.f32.mxu0 0.0
    %3507 = vmatmul.mubr.f32.gmra.mrb[0].mxu0 %v3431
    %v3508 = vpop.f32.mrb[0].mxu0
    %v3509 = vadd.f32 0.0, %v3508
    %v3510 = vpop.f32.mrb[0].mxu0
    %3511 = vmatprep.mubr.f32.mxu0 0.0
    %3512 = vmatmul.mubr.f32.gmra.mrb[0].mxu0 %v3434
    %v3513 = vpop.f32.mrb[0].mxu0
    %v3514 = vadd.f32 0.0, %v3513
    %v3515 = vpop.f32.mrb[0].mxu0
    %3516 = vmatprep.mubr.f32.mxu0 0.0
    %3517 = vmatmul.mubr.f32.gmra.mrb[0].mxu0 %v3437
    %v3518 = vpop.f32.mrb[0].mxu0
    %v3519 = vadd.f32 0.0, %v3518
    %v3520 = vpop.f32.mrb[0].mxu0
    %3521 = vmatprep.mubr.f32.mxu0 0.0
    %3522 = vmatmul.mubr.f32.gmra.mrb[0].mxu0 %v3440
    %v3523 = vpop.f32.mrb[0].mxu0
    %v3524 = vadd.f32 0.0, %v3523
    %v3525 = vpop.f32.mrb[0].mxu0
    %3526 = vdwg.mxu0
    %3531 = vrot.lane.b32.xlu0 %v3509, 24
    %v3532 = vpop.permute.xlu0 %3531
    %3533 = vrot.lane.b32.xlu0 %v3514, 24
    %v3534 = vpop.permute.xlu0 %3533
    %3535 = vrot.lane.b32.xlu0 %v3519, 24
    %v3536 = vpop.permute.xlu0 %3535
    %3537 = vrot.lane.b32.xlu0 %v3524, 24
    %v3538 = vpop.permute.xlu0 %3537
    %3543 = vst.msk [vmem:[#allocation2] sm:$0xff] %vm1891, %v3532
    %3544 = vst.msk [vmem:[#allocation2 + $0x8] sm:$0xff] %vm1891, %v3534
    %3545 = vst.msk [vmem:[#allocation2 + $0x10] sm:$0xff] %vm1891, %v3536
    %3546 = vst.msk [vmem:[#allocation2 + $0x18] sm:$0xff] %vm1891, %v3538
    %v3547 = vld [vmem:[#allocation2] sm:$0xff]
    %v3548 = vld [vmem:[#allocation2 + $0x8] sm:$0xff]
    %v3549 = vld [vmem:[#allocation2 + $0x10] sm:$0xff]
    %v3550 = vld [vmem:[#allocation2 + $0x18] sm:$0xff]
    %v3551 = vld [vmem:[%s16] sm:$0xff]
    %v3552 = vld [vmem:[%s16 + $0x8] sm:$0xff]
    %v3553 = vld [vmem:[%s16 + $0x10] sm:$0xff]
    %v3554 = vld [vmem:[%s16 + $0x18] sm:$0xff]
    %v3555 = vld [vmem:[%s17] sm:$0x1]
    %v3557 = vlaneseq
    %v3558 = vshrl.u32 %v3557, 7
    %v3559 = vsub.s32 0, %v3558
    %v3560 = vrot.slane %v3555, %v3559
    %v3563 = vsel %vm272, %v3547, 0
    %v3566 = vsel %vm272, %v3548, 0
    %v3569 = vsel %vm272, %v3549, 0
    %v3572 = vsel %vm272, %v3550, 0
    %3574 = vmatprep.subr.mxu0 0.0
    %3575 = vmatpush1.msra.mxu0 %v3551
    %3576 = vmatprep.subr.mxu0 0.0
    %3577 = vmatpush1.msra.mxu0 %v3552
    %3578 = vmatprep.subr.mxu0 0.0
    %3579 = vmatpush1.msra.mxu0 %v3553
    %3580 = vmatprep.subr.mxu0 0.0
    %3581 = vmatpush1.msra.mxu0 %v3554
    %3582 = vmatprep.subr.mxu0 0.0
    %3583 = vmatpush1.msra.mxu0 0.0
    %3584 = vmatprep.subr.mxu0 0.0
    %3585 = vmatpush1.msra.mxu0 0.0
    %3586 = vmatprep.subr.mxu0 0.0
    %3587 = vmatpush1.msra.mxu0 0.0
    %3588 = vmatprep.subr.mxu0 0.0
    %3589 = vmatpush1.msra.mxu0 0.0
    %3590 = vmatprep.subr.mxu0 0.0
    %3591 = vmatpush1.msra.mxu0 0.0
    %3592 = vmatprep.subr.mxu0 0.0
    %3593 = vmatpush1.msra.mxu0 0.0
    %3594 = vmatprep.subr.mxu0 0.0
    %3595 = vmatpush1.msra.mxu0 0.0
    %3596 = vmatprep.subr.mxu0 0.0
    %3597 = vmatpush1.msra.mxu0 0.0
    %3598 = vmatprep.subr.mxu0 0.0
    %3599 = vmatpush1.msra.mxu0 0.0
    %3600 = vmatprep.subr.mxu0 0.0
    %3601 = vmatpush1.msra.mxu0 0.0
    %3602 = vmatprep.subr.mxu0 0.0
    %3603 = vmatpush1.msra.mxu0 0.0
    %3604 = vmatprep.subr.mxu0 0.0
    %3605 = vmatpush1.msra.mxu0 0.0
    %3606 = vmatprep.subr.mxu0 0.0
    %3607 = vmatpush1.msra.mxu0 0.0
    %3608 = vmatprep.subr.mxu0 0.0
    %3609 = vmatpush1.msra.mxu0 0.0
    %3610 = vmatprep.subr.mxu0 0.0
    %3611 = vmatpush1.msra.mxu0 0.0
    %3612 = vmatprep.subr.mxu0 0.0
    %3613 = vmatpush1.msra.mxu0 0.0
    %3614 = vmatprep.subr.mxu0 0.0
    %3615 = vmatpush1.msra.mxu0 0.0
    %3616 = vmatprep.subr.mxu0 0.0
    %3617 = vmatpush1.msra.mxu0 0.0
    %3618 = vmatprep.subr.mxu0 0.0
    %3619 = vmatpush1.msra.mxu0 0.0
    %3620 = vmatprep.subr.mxu0 0.0
    %3621 = vmatpush1.msra.mxu0 0.0
    %3622 = vmatprep.subr.mxu0 0.0
    %3623 = vmatpush1.msra.mxu0 0.0
    %3624 = vmatprep.subr.mxu0 0.0
    %3625 = vmatpush1.msra.mxu0 0.0
    %3626 = vmatprep.subr.mxu0 0.0
    %3627 = vmatpush1.msra.mxu0 0.0
    %3628 = vmatprep.subr.mxu0 0.0
    %3629 = vmatpush1.msra.mxu0 0.0
    %3630 = vmatprep.subr.mxu0 0.0
    %3631 = vmatpush1.msra.mxu0 0.0
    %3632 = vmatprep.subr.mxu0 0.0
    %3633 = vmatpush1.msra.mxu0 0.0
    %3634 = vmatprep.subr.mxu0 0.0
    %3635 = vmatpush1.msra.mxu0 0.0
    %3636 = vmatprep.subr.mxu0 0.0
    %3637 = vmatpush1.msra.mxu0 0.0
    %3638 = vmatprep.mubr.f32.mxu0 0.0
    %3639 = vmatmul.mubr.f32.gmra.mrb[0].mxu0 %v3563
    %v3640 = vpop.f32.mrb[0].mxu0
    %v3641 = vadd.f32 %v3560, %v3640
    %v3642 = vpop.f32.mrb[0].mxu0
    %3643 = vmatprep.mubr.f32.mxu0 0.0
    %3644 = vmatmul.mubr.f32.gmra.mrb[0].mxu0 %v3566
    %v3645 = vpop.f32.mrb[0].mxu0
    %v3646 = vadd.f32 %v3560, %v3645
    %v3647 = vpop.f32.mrb[0].mxu0
    %3648 = vmatprep.mubr.f32.mxu0 0.0
    %3649 = vmatmul.mubr.f32.gmra.mrb[0].mxu0 %v3569
    %v3650 = vpop.f32.mrb[0].mxu0
    %v3651 = vadd.f32 %v3560, %v3650
    %v3652 = vpop.f32.mrb[0].mxu0
    %3653 = vmatprep.mubr.f32.mxu0 0.0
    %3654 = vmatmul.mubr.f32.gmra.mrb[0].mxu0 %v3572
    %v3655 = vpop.f32.mrb[0].mxu0
    %v3656 = vadd.f32 %v3560, %v3655
    %v3657 = vpop.f32.mrb[0].mxu0
    %3658 = vdwg.mxu0
    %v3659 = vadd.f32 %v2083, %v3641
    %v3660 = vadd.f32 %v2084, %v3646
    %v3661 = vadd.f32 %v2085, %v3651
    %v3662 = vadd.f32 %v2086, %v3656
    %v3663 = vld [vmem:[%s20] sm:$0x1]
    %v3664 = vld [vmem:[%s21] sm:$0x1]
    %v3665 = vsel %vm272, %v3659, 0.0
    %3666 = vadd.xlane.f32.xlu0 %v3665
    %v3667 = vpop.xlane.xlu0 %3666
    %v3668 = vsel %vm272, %v3660, 0.0
    %3669 = vadd.xlane.f32.xlu0 %v3668
    %v3670 = vpop.xlane.xlu0 %3669
    %v3671 = vsel %vm272, %v3661, 0.0
    %3672 = vadd.xlane.f32.xlu0 %v3671
    %v3673 = vpop.xlane.xlu0 %3672
    %v3674 = vsel %vm272, %v3662, 0.0
    %3675 = vadd.xlane.f32.xlu0 %v3674
    %v3676 = vpop.xlane.xlu0 %3675
    %v3677 = vmul.f32 %v3667, %v2026
    %v3678 = vmul.f32 %v3670, %v2026
    %v3679 = vmul.f32 %v3673, %v2026
    %v3680 = vmul.f32 %v3676, %v2026
    %v3681 = vsub.f32 %v3659, %v3677
    %v3682 = vsub.f32 %v3660, %v3678
    %v3683 = vsub.f32 %v3661, %v3679
    %v3684 = vsub.f32 %v3662, %v3680
    %v3685 = vmul.f32 %v3681, %v3681
    %v3686 = vmul.f32 %v3682, %v3682
    %v3687 = vmul.f32 %v3683, %v3683
    %v3688 = vmul.f32 %v3684, %v3684
    %v3689 = vsel %vm272, %v3685, 0.0
    %3690 = vadd.xlane.f32.xlu0 %v3689
    %v3691 = vpop.xlane.xlu0 %3690
    %v3692 = vsel %vm272, %v3686, 0.0
    %3693 = vadd.xlane.f32.xlu0 %v3692
    %v3694 = vpop.xlane.xlu0 %3693
    %v3695 = vsel %vm272, %v3687, 0.0
    %3696 = vadd.xlane.f32.xlu0 %v3695
    %v3697 = vpop.xlane.xlu0 %3696
    %v3698 = vsel %vm272, %v3688, 0.0
    %3699 = vadd.xlane.f32.xlu0 %v3698
    %v3700 = vpop.xlane.xlu0 %3699
    %v3701 = vmul.f32 %v3691, %v2026
    %v3702 = vmul.f32 %v3694, %v2026
    %v3703 = vmul.f32 %v3697, %v2026
    %v3704 = vmul.f32 %v3700, %v2026
    %v3705 = vadd.f32 %v3701, 1e-05
    %v3706 = vadd.f32 %v3702, 1e-05
    %v3707 = vadd.f32 %v3703, 1e-05
    %v3708 = vadd.f32 %v3704, 1e-05
    %v3709 = vrsqrt.pop %v3705
    %v3710 = vrsqrt.pop %v3706
    %v3711 = vrsqrt.pop %v3707
    %v3712 = vrsqrt.pop %v3708
    %v3713 = vmul.f32 %v3681, %v3709
    %v3714 = vmul.f32 %v3682, %v3710
    %v3715 = vmul.f32 %v3683, %v3711
    %v3716 = vmul.f32 %v3684, %v3712
    %v3718 = vlaneseq
    %v3719 = vshrl.u32 %v3718, 7
    %v3720 = vsub.s32 0, %v3719
    %v3721 = vrot.slane %v3663, %v3720
    %v3723 = vmul.f32 %v3713, %v3721
    %v3724 = vmul.f32 %v3714, %v3721
    %v3725 = vmul.f32 %v3715, %v3721
    %v3726 = vmul.f32 %v3716, %v3721
    %v3728 = vlaneseq
    %v3729 = vshrl.u32 %v3728, 7
    %v3730 = vsub.s32 0, %v3729
    %v3731 = vrot.slane %v3664, %v3730
    %v3733 = vadd.f32 %v3723, %v3731
    %v3734 = vadd.f32 %v3724, %v3731
    %v3735 = vadd.f32 %v3725, %v3731
    %v3736 = vadd.f32 %v3726, %v3731
    %v3737 = vld [vmem:[%s24] sm:$0xff]
    %v3738 = vld [vmem:[%s24 + $0x8] sm:$0xff]
    %v3739 = vld [vmem:[%s24 + $0x10] sm:$0xff]
    %v3740 = vld [vmem:[%s24 + $0x18] sm:$0xff]
    %v3741 = vld [vmem:[%s25] sm:$0x1]
    %v3743 = vlaneseq
    %v3744 = vshrl.u32 %v3743, 7
    %v3745 = vsub.s32 0, %v3744
    %v3746 = vrot.slane %v3741, %v3745
    %v3749 = vsel %vm272, %v3733, 0
    %v3752 = vsel %vm272, %v3734, 0
    %v3755 = vsel %vm272, %v3735, 0
    %v3758 = vsel %vm272, %v3736, 0
    %3760 = vmatprep.subr.mxu0 0.0
    %3761 = vmatpush1.msra.mxu0 %v3737
    %3762 = vmatprep.subr.mxu0 0.0
    %3763 = vmatpush1.msra.mxu0 %v3738
    %3764 = vmatprep.subr.mxu0 0.0
    %3765 = vmatpush1.msra.mxu0 %v3739
    %3766 = vmatprep.subr.mxu0 0.0
    %3767 = vmatpush1.msra.mxu0 %v3740
    %3768 = vmatprep.subr.mxu0 0.0
    %3769 = vmatpush1.msra.mxu0 0.0
    %3770 = vmatprep.subr.mxu0 0.0
    %3771 = vmatpush1.msra.mxu0 0.0
    %3772 = vmatprep.subr.mxu0 0.0
    %3773 = vmatpush1.msra.mxu0 0.0
    %3774 = vmatprep.subr.mxu0 0.0
    %3775 = vmatpush1.msra.mxu0 0.0
    %3776 = vmatprep.subr.mxu0 0.0
    %3777 = vmatpush1.msra.mxu0 0.0
    %3778 = vmatprep.subr.mxu0 0.0
    %3779 = vmatpush1.msra.mxu0 0.0
    %3780 = vmatprep.subr.mxu0 0.0
    %3781 = vmatpush1.msra.mxu0 0.0
    %3782 = vmatprep.subr.mxu0 0.0
    %3783 = vmatpush1.msra.mxu0 0.0
    %3784 = vmatprep.subr.mxu0 0.0
    %3785 = vmatpush1.msra.mxu0 0.0
    %3786 = vmatprep.subr.mxu0 0.0
    %3787 = vmatpush1.msra.mxu0 0.0
    %3788 = vmatprep.subr.mxu0 0.0
    %3789 = vmatpush1.msra.mxu0 0.0
    %3790 = vmatprep.subr.mxu0 0.0
    %3791 = vmatpush1.msra.mxu0 0.0
    %3792 = vmatprep.subr.mxu0 0.0
    %3793 = vmatpush1.msra.mxu0 0.0
    %3794 = vmatprep.subr.mxu0 0.0
    %3795 = vmatpush1.msra.mxu0 0.0
    %3796 = vmatprep.subr.mxu0 0.0
    %3797 = vmatpush1.msra.mxu0 0.0
    %3798 = vmatprep.subr.mxu0 0.0
    %3799 = vmatpush1.msra.mxu0 0.0
    %3800 = vmatprep.subr.mxu0 0.0
    %3801 = vmatpush1.msra.mxu0 0.0
    %3802 = vmatprep.subr.mxu0 0.0
    %3803 = vmatpush1.msra.mxu0 0.0
    %3804 = vmatprep.subr.mxu0 0.0
    %3805 = vmatpush1.msra.mxu0 0.0
    %3806 = vmatprep.subr.mxu0 0.0
    %3807 = vmatpush1.msra.mxu0 0.0
    %3808 = vmatprep.subr.mxu0 0.0
    %3809 = vmatpush1.msra.mxu0 0.0
    %3810 = vmatprep.subr.mxu0 0.0
    %3811 = vmatpush1.msra.mxu0 0.0
    %3812 = vmatprep.subr.mxu0 0.0
    %3813 = vmatpush1.msra.mxu0 0.0
    %3814 = vmatprep.subr.mxu0 0.0
    %3815 = vmatpush1.msra.mxu0 0.0
    %3816 = vmatprep.subr.mxu0 0.0
    %3817 = vmatpush1.msra.mxu0 0.0
    %3818 = vmatprep.subr.mxu0 0.0
    %3819 = vmatpush1.msra.mxu0 0.0
    %3820 = vmatprep.subr.mxu0 0.0
    %3821 = vmatpush1.msra.mxu0 0.0
    %3822 = vmatprep.subr.mxu0 0.0
    %3823 = vmatpush1.msra.mxu0 0.0
    %3824 = vmatprep.mubr.f32.mxu0 0.0
    %3825 = vmatmul.mubr.f32.gmra.mrb[0].mxu0 %v3749
    %v3826 = vpop.f32.mrb[0].mxu0
    %v3827 = vadd.f32 %v3746, %v3826
    %v3828 = vpop.f32.mrb[0].mxu0
    %3829 = vmatprep.mubr.f32.mxu0 0.0
    %3830 = vmatmul.mubr.f32.gmra.mrb[0].mxu0 %v3752
    %v3831 = vpop.f32.mrb[0].mxu0
    %v3832 = vadd.f32 %v3746, %v3831
    %v3833 = vpop.f32.mrb[0].mxu0
    %3834 = vmatprep.mubr.f32.mxu0 0.0
    %3835 = vmatmul.mubr.f32.gmra.mrb[0].mxu0 %v3755
    %v3836 = vpop.f32.mrb[0].mxu0
    %v3837 = vadd.f32 %v3746, %v3836
    %v3838 = vpop.f32.mrb[0].mxu0
    %3839 = vmatprep.mubr.f32.mxu0 0.0
    %3840 = vmatmul.mubr.f32.gmra.mrb[0].mxu0 %v3758
    %v3841 = vpop.f32.mrb[0].mxu0
    %v3842 = vadd.f32 %v3746, %v3841
    %v3843 = vpop.f32.mrb[0].mxu0
    %3844 = vdwg.mxu0
    %v3845 = vmul.f32 %v3827, 0.5
    %v3846 = vmul.f32 %v3832, 0.5
    %v3847 = vmul.f32 %v3837, 0.5
    %v3848 = vmul.f32 %v3842, 0.5
    %v3849 = vmul.f32 %v3827, 0.70710677
    %v3850 = vmul.f32 %v3832, 0.70710677
    %v3851 = vmul.f32 %v3837, 0.70710677
    %v3852 = vmul.f32 %v3842, 0.70710677
    %v3853 = vand.u32 2147483647, %v3849
    %v3854 = vand.u32 2147483647, %v3850
    %v3855 = vand.u32 2147483647, %v3851
    %v3856 = vand.u32 2147483647, %v3852
    %v3857 = vmul.f32 %v3853, 0.3275911
    %v3858 = vmul.f32 %v3854, 0.3275911
    %v3859 = vmul.f32 %v3855, 0.3275911
    %v3860 = vmul.f32 %v3856, 0.3275911
    %v3861 = vadd.f32 %v3857, 1.0
    %v3862 = vadd.f32 %v3858, 1.0
    %v3863 = vadd.f32 %v3859, 1.0
    %v3864 = vadd.f32 %v3860, 1.0
    %v3865 = vrcp.pop %v3861
    %v3866 = vrcp.pop %v3862
    %v3867 = vrcp.pop %v3863
    %v3868 = vrcp.pop %v3864
    %v3869 = vmul.f32 %v3865, 1.0614054
    %v3870 = vmul.f32 %v3866, 1.0614054
    %v3871 = vmul.f32 %v3867, 1.0614054
    %v3872 = vmul.f32 %v3868, 1.0614054
    %v3873 = vadd.f32 %v3869, -1.4531521
    %v3874 = vadd.f32 %v3870, -1.4531521
    %v3875 = vadd.f32 %v3871, -1.4531521
    %v3876 = vadd.f32 %v3872, -1.4531521
    %v3877 = vmul.f32 %v3873, %v3865
    %v3878 = vmul.f32 %v3874, %v3866
    %v3879 = vmul.f32 %v3875, %v3867
    %v3880 = vmul.f32 %v3876, %v3868
    %v3881 = vadd.f32 %v3877, 1.4214138
    %v3882 = vadd.f32 %v3878, 1.4214138
    %v3883 = vadd.f32 %v3879, 1.4214138
    %v3884 = vadd.f32 %v3880, 1.4214138
    %v3885 = vmul.f32 %v3881, %v3865
    %v3886 = vmul.f32 %v3882, %v3866
    %v3887 = vmul.f32 %v3883, %v3867
    %v3888 = vmul.f32 %v3884, %v3868
    %v3889 = vadd.f32 %v3885, -0.28449672
    %v3890 = vadd.f32 %v3886, -0.28449672
    %v3891 = vadd.f32 %v3887, -0.28449672
    %v3892 = vadd.f32 %v3888, -0.28449672
    %v3893 = vmul.f32 %v3889, %v3865
    %v3894 = vmul.f32 %v3890, %v3866
    %v3895 = vmul.f32 %v3891, %v3867
    %v3896 = vmul.f32 %v3892, %v3868
    %v3897 = vadd.f32 %v3893, 0.2548296
    %v3898 = vadd.f32 %v3894, 0.2548296
    %v3899 = vadd.f32 %v3895, 0.2548296
    %v3900 = vadd.f32 %v3896, 0.2548296
    %v3901 = vmul.f32 %v3897, %v3865
    %v3902 = vmul.f32 %v3898, %v3866
    %v3903 = vmul.f32 %v3899, %v3867
    %v3904 = vmul.f32 %v3900, %v3868
    %v3905 = vsub.f32 0.0, %v3853
    %v3906 = vsub.f32 0.0, %v3854
    %v3907 = vsub.f32 0.0, %v3855
    %v3908 = vsub.f32 0.0, %v3856
    %v3909 = vmul.f32 %v3905, %v3853
    %v3910 = vmul.f32 %v3906, %v3854
    %v3911 = vmul.f32 %v3907, %v3855
    %v3912 = vmul.f32 %v3908, %v3856
    %v3913 = vmul.f32 %v3909, 1.442695
    %v3914 = vpow.pop %v3913
    %v3915 = vmul.f32 %v3910, 1.442695
    %v3916 = vpow.pop %v3915
    %v3917 = vmul.f32 %v3911, 1.442695
    %v3918 = vpow.pop %v3917
    %v3919 = vmul.f32 %v3912, 1.442695
    %v3920 = vpow.pop %v3919
    %v3921 = vmul.f32 %v3901, %v3914
    %v3922 = vmul.f32 %v3902, %v3916
    %v3923 = vmul.f32 %v3903, %v3918
    %v3924 = vmul.f32 %v3904, %v3920
    %v3925 = vsub.f32 1.0, %v3921
    %v3926 = vsub.f32 1.0, %v3922
    %v3927 = vsub.f32 1.0, %v3923
    %v3928 = vsub.f32 1.0, %v3924
    %vm3929 = vcmp.ge.f32.partialorder %v3849, 0.0
    %vm3930 = vcmp.ge.f32.partialorder %v3850, 0.0
    %vm3931 = vcmp.ge.f32.partialorder %v3851, 0.0
    %vm3932 = vcmp.ge.f32.partialorder %v3852, 0.0
    %v3933 = vsub.f32 0.0, %v3925
    %v3934 = vsub.f32 0.0, %v3926
    %v3935 = vsub.f32 0.0, %v3927
    %v3936 = vsub.f32 0.0, %v3928
    %v3937 = vsel %vm3929, %v3925, %v3933
    %v3938 = vsel %vm3930, %v3926, %v3934
    %v3939 = vsel %vm3931, %v3927, %v3935
    %v3940 = vsel %vm3932, %v3928, %v3936
    %v3941 = vadd.f32 %v3937, 1.0
    %v3942 = vadd.f32 %v3938, 1.0
    %v3943 = vadd.f32 %v3939, 1.0
    %v3944 = vadd.f32 %v3940, 1.0
    %v3945 = vmul.f32 %v3845, %v3941
    %v3946 = vmul.f32 %v3846, %v3942
    %v3947 = vmul.f32 %v3847, %v3943
    %v3948 = vmul.f32 %v3848, %v3944
    %v3949 = vld [vmem:[%s26] sm:$0xff]
    %v3950 = vld [vmem:[%s26 + $0x8] sm:$0xff]
    %v3951 = vld [vmem:[%s26 + $0x10] sm:$0xff]
    %v3952 = vld [vmem:[%s26 + $0x18] sm:$0xff]
    %v3953 = vld [vmem:[%s26 + $0x20] sm:$0xff]
    %v3954 = vld [vmem:[%s26 + $0x28] sm:$0xff]
    %v3955 = vld [vmem:[%s26 + $0x30] sm:$0xff]
    %v3956 = vld [vmem:[%s26 + $0x38] sm:$0xff]
    %v3957 = vld [vmem:[%s26 + $0x40] sm:$0xff]
    %v3958 = vld [vmem:[%s26 + $0x48] sm:$0xff]
    %v3959 = vld [vmem:[%s26 + $0x50] sm:$0xff]
    %v3960 = vld [vmem:[%s26 + $0x58] sm:$0xff]
    %v3961 = vld [vmem:[%s26 + $0x60] sm:$0xff]
    %v3962 = vld [vmem:[%s26 + $0x68] sm:$0xff]
    %v3963 = vld [vmem:[%s26 + $0x70] sm:$0xff]
    %v3964 = vld [vmem:[%s26 + $0x78] sm:$0xff]
    %v3965 = vld [vmem:[%s27] sm:$0x1]
    %v3967 = vlaneseq
    %v3968 = vshrl.u32 %v3967, 7
    %v3969 = vsub.s32 0, %v3968
    %v3970 = vrot.slane %v3965, %v3969
    %3972 = vmatprep.subr.mxu0 0.0
    %3973 = vmatpush1.msra.mxu0 %v3949
    %3974 = vmatprep.subr.mxu0 0.0
    %3975 = vmatpush1.msra.mxu0 %v3950
    %3976 = vmatprep.subr.mxu0 0.0
    %3977 = vmatpush1.msra.mxu0 %v3951
    %3978 = vmatprep.subr.mxu0 0.0
    %3979 = vmatpush1.msra.mxu0 %v3952
    %3980 = vmatprep.subr.mxu0 0.0
    %3981 = vmatpush1.msra.mxu0 %v3953
    %3982 = vmatprep.subr.mxu0 0.0
    %3983 = vmatpush1.msra.mxu0 %v3954
    %3984 = vmatprep.subr.mxu0 0.0
    %3985 = vmatpush1.msra.mxu0 %v3955
    %3986 = vmatprep.subr.mxu0 0.0
    %3987 = vmatpush1.msra.mxu0 %v3956
    %3988 = vmatprep.subr.mxu0 0.0
    %3989 = vmatpush1.msra.mxu0 %v3957
    %3990 = vmatprep.subr.mxu0 0.0
    %3991 = vmatpush1.msra.mxu0 %v3958
    %3992 = vmatprep.subr.mxu0 0.0
    %3993 = vmatpush1.msra.mxu0 %v3959
    %3994 = vmatprep.subr.mxu0 0.0
    %3995 = vmatpush1.msra.mxu0 %v3960
    %3996 = vmatprep.subr.mxu0 0.0
    %3997 = vmatpush1.msra.mxu0 %v3961
    %3998 = vmatprep.subr.mxu0 0.0
    %3999 = vmatpush1.msra.mxu0 %v3962
    %4000 = vmatprep.subr.mxu0 0.0
    %4001 = vmatpush1.msra.mxu0 %v3963
    %4002 = vmatprep.subr.mxu0 0.0
    %4003 = vmatpush1.msra.mxu0 %v3964
    %4004 = vmatprep.subr.mxu0 0.0
    %4005 = vmatpush1.msra.mxu0 0.0
    %4006 = vmatprep.subr.mxu0 0.0
    %4007 = vmatpush1.msra.mxu0 0.0
    %4008 = vmatprep.subr.mxu0 0.0
    %4009 = vmatpush1.msra.mxu0 0.0
    %4010 = vmatprep.subr.mxu0 0.0
    %4011 = vmatpush1.msra.mxu0 0.0
    %4012 = vmatprep.subr.mxu0 0.0
    %4013 = vmatpush1.msra.mxu0 0.0
    %4014 = vmatprep.subr.mxu0 0.0
    %4015 = vmatpush1.msra.mxu0 0.0
    %4016 = vmatprep.subr.mxu0 0.0
    %4017 = vmatpush1.msra.mxu0 0.0
    %4018 = vmatprep.subr.mxu0 0.0
    %4019 = vmatpush1.msra.mxu0 0.0
    %4020 = vmatprep.subr.mxu0 0.0
    %4021 = vmatpush1.msra.mxu0 0.0
    %4022 = vmatprep.subr.mxu0 0.0
    %4023 = vmatpush1.msra.mxu0 0.0
    %4024 = vmatprep.subr.mxu0 0.0
    %4025 = vmatpush1.msra.mxu0 0.0
    %4026 = vmatprep.subr.mxu0 0.0
    %4027 = vmatpush1.msra.mxu0 0.0
    %4028 = vmatprep.subr.mxu0 0.0
    %4029 = vmatpush1.msra.mxu0 0.0
    %4030 = vmatprep.subr.mxu0 0.0
    %4031 = vmatpush1.msra.mxu0 0.0
    %4032 = vmatprep.subr.mxu0 0.0
    %4033 = vmatpush1.msra.mxu0 0.0
    %4034 = vmatprep.subr.mxu0 0.0
    %4035 = vmatpush1.msra.mxu0 0.0
    %4036 = vmatprep.mubr.f32.mxu0 0.0
    %4037 = vmatmul.mubr.f32.gmra.mrb[0].mxu0 %v3945
    %v4038 = vpop.f32.mrb[0].mxu0
    %v4039 = vadd.f32 %v3970, %v4038
    %v4040 = vpop.f32.mrb[0].mxu0
    %4041 = vmatprep.mubr.f32.mxu0 0.0
    %4042 = vmatmul.mubr.f32.gmra.mrb[0].mxu0 %v3946
    %v4043 = vpop.f32.mrb[0].mxu0
    %v4044 = vadd.f32 %v3970, %v4043
    %v4045 = vpop.f32.mrb[0].mxu0
    %4046 = vmatprep.mubr.f32.mxu0 0.0
    %4047 = vmatmul.mubr.f32.gmra.mrb[0].mxu0 %v3947
    %v4048 = vpop.f32.mrb[0].mxu0
    %v4049 = vadd.f32 %v3970, %v4048
    %v4050 = vpop.f32.mrb[0].mxu0
    %4051 = vmatprep.mubr.f32.mxu0 0.0
    %4052 = vmatmul.mubr.f32.gmra.mrb[0].mxu0 %v3948
    %v4053 = vpop.f32.mrb[0].mxu0
    %v4054 = vadd.f32 %v3970, %v4053
    %v4055 = vpop.f32.mrb[0].mxu0
    %4056 = vdwg.mxu0
    %v4057 = vadd.f32 %v3733, %v4039
    %v4058 = vadd.f32 %v3734, %v4044
    %v4059 = vadd.f32 %v3735, %v4049
    %v4060 = vadd.f32 %v3736, %v4054
    %v4061 = vld [vmem:[%s22] sm:$0x1]
    %v4062 = vld [vmem:[%s23] sm:$0x1]
    %v4063 = vsel %vm272, %v4057, 0.0
    %4064 = vadd.xlane.f32.xlu0 %v4063
    %v4065 = vpop.xlane.xlu0 %4064
    %v4066 = vsel %vm272, %v4058, 0.0
    %4067 = vadd.xlane.f32.xlu0 %v4066
    %v4068 = vpop.xlane.xlu0 %4067
    %v4069 = vsel %vm272, %v4059, 0.0
    %4070 = vadd.xlane.f32.xlu0 %v4069
    %v4071 = vpop.xlane.xlu0 %4070
    %v4072 = vsel %vm272, %v4060, 0.0
    %4073 = vadd.xlane.f32.xlu0 %v4072
    %v4074 = vpop.xlane.xlu0 %4073
    %v4075 = vmul.f32 %v4065, %v2026
    %v4076 = vmul.f32 %v4068, %v2026
    %v4077 = vmul.f32 %v4071, %v2026
    %v4078 = vmul.f32 %v4074, %v2026
    %v4079 = vsub.f32 %v4057, %v4075
    %v4080 = vsub.f32 %v4058, %v4076
    %v4081 = vsub.f32 %v4059, %v4077
    %v4082 = vsub.f32 %v4060, %v4078
    %v4083 = vmul.f32 %v4079, %v4079
    %v4084 = vmul.f32 %v4080, %v4080
    %v4085 = vmul.f32 %v4081, %v4081
    %v4086 = vmul.f32 %v4082, %v4082
    %v4087 = vsel %vm272, %v4083, 0.0
    %4088 = vadd.xlane.f32.xlu0 %v4087
    %v4089 = vpop.xlane.xlu0 %4088
    %v4090 = vsel %vm272, %v4084, 0.0
    %4091 = vadd.xlane.f32.xlu0 %v4090
    %v4092 = vpop.xlane.xlu0 %4091
    %v4093 = vsel %vm272, %v4085, 0.0
    %4094 = vadd.xlane.f32.xlu0 %v4093
    %v4095 = vpop.xlane.xlu0 %4094
    %v4096 = vsel %vm272, %v4086, 0.0
    %4097 = vadd.xlane.f32.xlu0 %v4096
    %v4098 = vpop.xlane.xlu0 %4097
    %v4099 = vmul.f32 %v4089, %v2026
    %v4100 = vmul.f32 %v4092, %v2026
    %v4101 = vmul.f32 %v4095, %v2026
    %v4102 = vmul.f32 %v4098, %v2026
    %v4103 = vadd.f32 %v4099, 1e-05
    %v4104 = vadd.f32 %v4100, 1e-05
    %v4105 = vadd.f32 %v4101, 1e-05
    %v4106 = vadd.f32 %v4102, 1e-05
    %v4107 = vrsqrt.pop %v4103
    %v4108 = vrsqrt.pop %v4104
    %v4109 = vrsqrt.pop %v4105
    %v4110 = vrsqrt.pop %v4106
    %v4111 = vmul.f32 %v4079, %v4107
    %v4112 = vmul.f32 %v4080, %v4108
    %v4113 = vmul.f32 %v4081, %v4109
    %v4114 = vmul.f32 %v4082, %v4110
    %v4116 = vlaneseq
    %v4117 = vshrl.u32 %v4116, 7
    %v4118 = vsub.s32 0, %v4117
    %v4119 = vrot.slane %v4061, %v4118
    %v4121 = vmul.f32 %v4111, %v4119
    %v4122 = vmul.f32 %v4112, %v4119
    %v4123 = vmul.f32 %v4113, %v4119
    %v4124 = vmul.f32 %v4114, %v4119
    %v4126 = vlaneseq
    %v4127 = vshrl.u32 %v4126, 7
    %v4128 = vsub.s32 0, %v4127
    %v4129 = vrot.slane %v4062, %v4128
    %v4131 = vadd.f32 %v4121, %v4129
    %v4132 = vadd.f32 %v4122, %v4129
    %v4133 = vadd.f32 %v4123, %v4129
    %v4134 = vadd.f32 %v4124, %v4129
    %4135 = vst.msk [vmem:[#allocation3] sm:$0xff] %vm272, %v4131
    %4136 = vst.msk [vmem:[#allocation3 + $0x8] sm:$0xff] %vm272, %v4132
    %4137 = vst.msk [vmem:[#allocation3 + $0x10] sm:$0xff] %vm272, %v4133
    %4138 = vst.msk [vmem:[#allocation3 + $0x18] sm:$0xff] %vm272, %v4134
    // Predicated region
    $region114: #{tpu_custom_call.1} parent=1 // pred_check
      _
    $region115: #{tpu_custom_call.1} parent=1 // pred_check_branch
      %4140 = sbr.rel (0) target = $region117
    $region116: #{tpu_custom_call.1} parent=1 // pred_region
      %s4142 = ssub.s32 512, 512
      %4143 = vsyncadd [#allocation4], %s4142
      %s4144 = sshll.u32 [#allocation3], 4
      %s4145 = int_to_ptr.vmem [resolvable:$true] %s4144
      %4150 = dma.vmem_to_hbm [thread:$0]  %s4145, 512, %s28, [#allocation4], 128, 128, 8
    $region117: #{tpu_custom_call.1} parent=1 // pred_fallthru
      _
    // Predicated region
    $region118: #{tpu_custom_call.1} parent=1 // pred_check
      _
    $region119: #{tpu_custom_call.1} parent=1 // pred_check_branch
      %4152 = sbr.rel (0) target = $region121
    $region120: #{tpu_custom_call.1} parent=1 // pred_region
      %4153 = dma.done [#allocation4], 512
    $region121: #{tpu_custom_call.1} parent=1 // pred_fallthru
      _
    %4154 = vsyncpa [#allocation4], 1

// kernel: tpu_custom_call.1
$region0: #{tpu_custom_call.1}
  #allocation0 [shape = 'u32[]', space=smem, size = 0x4, offset = 0x4, fixed_abs, tag = 'smem constant byte address 0x4 - core index']
  #allocation1 [shape = 'u32[144,128]{1,0:T(1,128)}', space=vmem, size = 0x12000, scoped, tag = 'internal scratch']
  #allocation2 [shape = 'f32[32,32]{1,0:T(8,128)}', space=vmem, size = 0x4000, scoped, tag = 'scratch operand']
  %s0 = inlined_call_operand.vmem [shape: f32[4,8,32], index: 0, kind: input, shape index: {}]
  %s1 = inlined_call_operand.vmem [shape: f32[4,16,48], index: 1, kind: input, shape index: {}]
  %s2 = inlined_call_operand.vmem [shape: f32[32,32], index: 2, kind: input, shape index: {}]
  %s3 = inlined_call_operand.vmem [shape: f32[1,32], index: 3, kind: input, shape index: {}]
  %s4 = inlined_call_operand.vmem [shape: f32[48,32], index: 4, kind: input, shape index: {}]
  %s5 = inlined_call_operand.vmem [shape: f32[1,32], index: 5, kind: input, shape index: {}]
  %s6 = inlined_call_operand.vmem [shape: f32[48,32], index: 6, kind: input, shape index: {}]
  %s7 = inlined_call_operand.vmem [shape: f32[1,32], index: 7, kind: input, shape index: {}]
  %s8 = inlined_call_operand.vmem [shape: f32[32,32], index: 8, kind: input, shape index: {}]
  %s9 = inlined_call_operand.vmem [shape: f32[1,32], index: 9, kind: input, shape index: {}]
  %s10 = inlined_call_operand.vmem [shape: f32[32,32], index: 10, kind: input, shape index: {}]
  %s11 = inlined_call_operand.vmem [shape: f32[1,32], index: 11, kind: input, shape index: {}]
  %s12 = inlined_call_operand.vmem [shape: f32[32,32], index: 12, kind: input, shape index: {}]
  %s13 = inlined_call_operand.vmem [shape: f32[1,32], index: 13, kind: input, shape index: {}]
  %s14 = inlined_call_operand.vmem [shape: f32[32,32], index: 14, kind: input, shape index: {}]
  %s15 = inlined_call_operand.vmem [shape: f32[1,32], index: 15, kind: input, shape index: {}]
  %s16 = inlined_call_operand.vmem [shape: f32[32,32], index: 16, kind: input, shape index: {}]
  %s17 = inlined_call_operand.vmem [shape: f32[1,32], index: 17, kind: input, shape index: {}]
  %s18 = inlined_call_operand.vmem [shape: f32[1,32], index: 18, kind: input, shape index: {}]
  %s19 = inlined_call_operand.vmem [shape: f32[1,32], index: 19, kind: input, shape index: {}]
  %s20 = inlined_call_operand.vmem [shape: f32[1,32], index: 20, kind: input, shape index: {}]
  %s21 = inlined_call_operand.vmem [shape: f32[1,32], index: 21, kind: input, shape index: {}]
  %s22 = inlined_call_operand.vmem [shape: f32[1,32], index: 22, kind: input, shape index: {}]
  %s23 = inlined_call_operand.vmem [shape: f32[1,32], index: 23, kind: input, shape index: {}]
  %s24 = inlined_call_operand.vmem [shape: f32[32,128], index: 24, kind: input, shape index: {}]
  %s25 = inlined_call_operand.vmem [shape: f32[1,128], index: 25, kind: input, shape index: {}]
  %s26 = inlined_call_operand.vmem [shape: f32[128,32], index: 26, kind: input, shape index: {}]
  %s27 = inlined_call_operand.vmem [shape: f32[1,32], index: 27, kind: input, shape index: {}]
  %s28 = inlined_call_operand.hbm [shape: f32[4,8,32], index: 28, kind: output, shape index: {}]
  %s29 = sld [smem:[#allocation0]]
  $region122: #{tpu_custom_call.1} parent=0
    _
  %s31 = ssub.s32 1, %s29
  %s32 = scalar_select 0, %s31, %s29
  $region1: #{tpu_custom_call.1} parent=0
    #allocation3 [shape = 'u8[16384]{0}', space=vmem, size = 0x4000, scoped, tag = 'output window, operand 0, single buffered']
    #allocation4 [shape = 's32[1]{0}', space=sflag, size = 0x4, scoped, tag = 'scoped memory for tpu_custom_call.1']
    %33 = vsyncpa [#allocation4], 0
    // Predicated region
    $region2: #{tpu_custom_call.1} parent=1 // pred_check
      _
    $region3: #{tpu_custom_call.1} parent=1 // pred_check_branch
      %35 = sbr.rel (0) target = $region5
    $region4: #{tpu_custom_call.1} parent=1 // pred_region
      _
    $region5: #{tpu_custom_call.1} parent=1 // pred_fallthru
      _
    // Predicated region
    $region6: #{tpu_custom_call.1} parent=1 // pred_check
      _
    $region7: #{tpu_custom_call.1} parent=1 // pred_check_branch
      %37 = sbr.rel (0) target = $region9
    $region8: #{tpu_custom_call.1} parent=1 // pred_region
      _
    $region9: #{tpu_custom_call.1} parent=1 // pred_fallthru
      _
    // Predicated region
    $region10: #{tpu_custom_call.1} parent=1 // pred_check
      _
    $region11: #{tpu_custom_call.1} parent=1 // pred_check_branch
      %39 = sbr.rel (0) target = $region13
    $region12: #{tpu_custom_call.1} parent=1 // pred_region
      _
    $region13: #{tpu_custom_call.1} parent=1 // pred_fallthru
      _
    // Predicated region
    $region14: #{tpu_custom_call.1} parent=1 // pred_check
      _
    $region15: #{tpu_custom_call.1} parent=1 // pred_check_branch
      %41 = sbr.rel (0) target = $region17
    $region16: #{tpu_custom_call.1} parent=1 // pred_region
      _
    $region17: #{tpu_custom_call.1} parent=1 // pred_fallthru
      _
    // Predicated region
    $region18: #{tpu_custom_call.1} parent=1 // pred_check
      _
    $region19: #{tpu_custom_call.1} parent=1 // pred_check_branch
      %43 = sbr.rel (0) target = $region21
    $region20: #{tpu_custom_call.1} parent=1 // pred_region
      _
    $region21: #{tpu_custom_call.1} parent=1 // pred_fallthru
      _
    // Predicated region
    $region22: #{tpu_custom_call.1} parent=1 // pred_check
      _
    $region23: #{tpu_custom_call.1} parent=1 // pred_check_branch
      %45 = sbr.rel (0) target = $region25
    $region24: #{tpu_custom_call.1} parent=1 // pred_region
      _
    $region25: #{tpu_custom_call.1} parent=1 // pred_fallthru
      _
    // Predicated region
    $region26: #{tpu_custom_call.1} parent=1 // pred_check
      _
    $region27: #{tpu_custom_call.1} parent=1 // pred_check_branch
      %47 = sbr.rel (0) target = $region29
    $region28: #{tpu_custom_call.1} parent=1 // pred_region
      _
    $region29: #{tpu_custom_call.1} parent=1 // pred_fallthru
      _
    // Predicated region
    $region30: #{tpu_custom_call.1} parent=1 // pred_check
      _
    $region31: #{tpu_custom_call.1} parent=1 // pred_check_branch
      %49 = sbr.rel (0) target = $region33
    $region32: #{tpu_custom_call.1} parent=1 // pred_region
      _
    $region33: #{tpu_custom_call.1} parent=1 // pred_fallthru
      _
    // Predicated region
    $region34: #{tpu_custom_call.1} parent=1 // pred_check
      _
    $region35: #{tpu_custom_call.1} parent=1 // pred_check_branch
      %51 = sbr.rel (0) target = $region37
    $region36: #{tpu_custom_call.1} parent=1 // pred_region
      _
    $region37: #{tpu_custom_call.1} parent=1 // pred_fallthru
      _
    // Predicated region
    $region38: #{tpu_custom_call.1} parent=1 // pred_check
      _
    $region39: #{tpu_custom_call.1} parent=1 // pred_check_branch
      %53 = sbr.rel (0) target = $region41
    $region40: #{tpu_custom_call.1} parent=1 // pred_region
      _
    $region41: #{tpu_custom_call.1} parent=1 // pred_fallthru
      _
    // Predicated region
    $region42: #{tpu_custom_call.1} parent=1 // pred_check
      _
    $region43: #{tpu_custom_call.1} parent=1 // pred_check_branch
      %55 = sbr.rel (0) target = $region45
    $region44: #{tpu_custom_call.1} parent=1 // pred_region
      _
    $region45: #{tpu_custom_call.1} parent=1 // pred_fallthru
      _
    // Predicated region
    $region46: #{tpu_custom_call.1} parent=1 // pred_check
      _
    $region47: #{tpu_custom_call.1} parent=1 // pred_check_branch
      %57 = sbr.rel (0) target = $region49
    $region48: #{tpu_custom_call.1} parent=1 // pred_region
      _
    $region49: #{tpu_custom_call.1} parent=1 // pred_fallthru
      _
    // Predicated region
    $region50: #{tpu_custom_call.1} parent=1 // pred_check
      _
    $region51: #{tpu_custom_call.1} parent=1 // pred_check_branch
      %59 = sbr.rel (0) target = $region53
    $region52: #{tpu_custom_call.1} parent=1 // pred_region
      _
    $region53: #{tpu_custom_call.1} parent=1 // pred_fallthru
      _
    // Predicated region
    $region54: #{tpu_custom_call.1} parent=1 // pred_check
      _
    $region55: #{tpu_custom_call.1} parent=1 // pred_check_branch
      %61 = sbr.rel (0) target = $region57
    $region56: #{tpu_custom_call.1} parent=1 // pred_region
      _
    $region57: #{tpu_custom_call.1} parent=1 // pred_fallthru
      _
    // Predicated region
    $region58: #{tpu_custom_call.1} parent=1 // pred_check
      _
    $region59: #{tpu_custom_call.1} parent=1 // pred_check_branch
      %63 = sbr.rel (0) target = $region61
    $region60: #{tpu_custom_call.1} parent=1 // pred_region
      _
    $region61: #{tpu_custom_call.1} parent=1 // pred_fallthru
      _
    // Predicated region
    $region62: #{tpu_custom_call.1} parent=1 // pred_check
      _
    $region63: #{tpu_custom_call.1} parent=1 // pred_check_branch
      %65 = sbr.rel (0) target = $region65
    $region64: #{tpu_custom_call.1} parent=1 // pred_region
      _
    $region65: #{tpu_custom_call.1} parent=1 // pred_fallthru
      _
    // Predicated region
    $region66: #{tpu_custom_call.1} parent=1 // pred_check
      _
    $region67: #{tpu_custom_call.1} parent=1 // pred_check_branch
      %67 = sbr.rel (0) target = $region69
    $region68: #{tpu_custom_call.1} parent=1 // pred_region
      _
    $region69: #{tpu_custom_call.1} parent=1 // pred_fallthru
      _
    // Predicated region
    $region70: #{tpu_custom_call.1} parent=1 // pred_check
      _
    $region71: #{tpu_custom_call.1} parent=1 // pred_check_branch
      %69 = sbr.rel (0) target = $region73
    $region72: #{tpu_custom_call.1} parent=1 // pred_region
      _
    $region73: #{tpu_custom_call.1} parent=1 // pred_fallthru
      _
    // Predicated region
    $region74: #{tpu_custom_call.1} parent=1 // pred_check
      _
    $region75: #{tpu_custom_call.1} parent=1 // pred_check_branch
      %71 = sbr.rel (0) target = $region77
    $region76: #{tpu_custom_call.1} parent=1 // pred_region
      _
    $region77: #{tpu_custom_call.1} parent=1 // pred_fallthru
      _
    // Predicated region
    $region78: #{tpu_custom_call.1} parent=1 // pred_check
      _
    $region79: #{tpu_custom_call.1} parent=1 // pred_check_branch
      %73 = sbr.rel (0) target = $region81
    $region80: #{tpu_custom_call.1} parent=1 // pred_region
      _
    $region81: #{tpu_custom_call.1} parent=1 // pred_fallthru
      _
    // Predicated region
    $region82: #{tpu_custom_call.1} parent=1 // pred_check
      _
    $region83: #{tpu_custom_call.1} parent=1 // pred_check_branch
      %75 = sbr.rel (0) target = $region85
    $region84: #{tpu_custom_call.1} parent=1 // pred_region
      _
    $region85: #{tpu_custom_call.1} parent=1 // pred_fallthru
      _
    // Predicated region
    $region86: #{tpu_custom_call.1} parent=1 // pred_check
      _
    $region87: #{tpu_custom_call.1} parent=1 // pred_check_branch
      %77 = sbr.rel (0) target = $region89
    $region88: #{tpu_custom_call.1} parent=1 // pred_region
      _
    $region89: #{tpu_custom_call.1} parent=1 // pred_fallthru
      _
    // Predicated region
    $region90: #{tpu_custom_call.1} parent=1 // pred_check
      _
    $region91: #{tpu_custom_call.1} parent=1 // pred_check_branch
      %79 = sbr.rel (0) target = $region93
    $region92: #{tpu_custom_call.1} parent=1 // pred_region
      _
    $region93: #{tpu_custom_call.1} parent=1 // pred_fallthru
      _
    // Predicated region
    $region94: #{tpu_custom_call.1} parent=1 // pred_check
      _
    $region95: #{tpu_custom_call.1} parent=1 // pred_check_branch
      %81 = sbr.rel (0) target = $region97
    $region96: #{tpu_custom_call.1} parent=1 // pred_region
      _
    $region97: #{tpu_custom_call.1} parent=1 // pred_fallthru
      _
    // Predicated region
    $region98: #{tpu_custom_call.1} parent=1 // pred_check
      _
    $region99: #{tpu_custom_call.1} parent=1 // pred_check_branch
      %83 = sbr.rel (0) target = $region101
    $region100: #{tpu_custom_call.1} parent=1 // pred_region
      _
    $region101: #{tpu_custom_call.1} parent=1 // pred_fallthru
      _
    // Predicated region
    $region102: #{tpu_custom_call.1} parent=1 // pred_check
      _
    $region103: #{tpu_custom_call.1} parent=1 // pred_check_branch
      %85 = sbr.rel (0) target = $region105
    $region104: #{tpu_custom_call.1} parent=1 // pred_region
      _
    $region105: #{tpu_custom_call.1} parent=1 // pred_fallthru
      _
    // Predicated region
    $region106: #{tpu_custom_call.1} parent=1 // pred_check
      _
    $region107: #{tpu_custom_call.1} parent=1 // pred_check_branch
      %87 = sbr.rel (0) target = $region109
    $region108: #{tpu_custom_call.1} parent=1 // pred_region
      _
    $region109: #{tpu_custom_call.1} parent=1 // pred_fallthru
      _
    // Predicated region
    $region110: #{tpu_custom_call.1} parent=1 // pred_check
      _
    $region111: #{tpu_custom_call.1} parent=1 // pred_check_branch
      %89 = sbr.rel (0) target = $region113
    $region112: #{tpu_custom_call.1} parent=1 // pred_region
      _
    $region113: #{tpu_custom_call.1} parent=1 // pred_fallthru
      _
    %v90 = vld [vmem:[%s0] sm:$0xff]
    %v91 = vld [vmem:[%s0 + $0x8] sm:$0xff]
    %v92 = vld [vmem:[%s0 + $0x10] sm:$0xff]
    %v93 = vld [vmem:[%s0 + $0x18] sm:$0xff]
    %v94 = vld [vmem:[%s1] sm:$0xff]
    %v95 = vld [vmem:[%s1 + $0x8] sm:$0xff]
    %v96 = vld [vmem:[%s1 + $0x10] sm:$0xff]
    %v97 = vld [vmem:[%s1 + $0x18] sm:$0xff]
    %v98 = vld [vmem:[%s1 + $0x20] sm:$0xff]
    %v99 = vld [vmem:[%s1 + $0x28] sm:$0xff]
    %v100 = vld [vmem:[%s1 + $0x30] sm:$0xff]
    %v101 = vld [vmem:[%s1 + $0x38] sm:$0xff]
    %v102 = vlaneseq
    %v103 = vshrl.u32 %v102, 7
    %v104 = vadd.s32 %v103, 8
    %v105 = vadd.s32 %v103, 16
    %v106 = vadd.s32 %v103, 24
    %v107 = vlaneseq
    %v108 = vand.u32 %v107, 127
    %vm109 = vcmp.ge.s32.totalorder %v103, 0
    %vm110 = vcmp.ge.s32.totalorder %v104, 0
    %vm111 = vcmp.ge.s32.totalorder %v105, 0
    %vm112 = vcmp.ge.s32.totalorder %v106, 0
    %vm113 = vcmp.lt.s32.totalorder %v103, 8
    %vm114 = vcmp.lt.s32.totalorder %v104, 8
    %vm115 = vcmp.lt.s32.totalorder %v105, 8
    %vm116 = vcmp.lt.s32.totalorder %v106, 8
    %vm117 = vmand %vm109, %vm113
    %vm118 = vmand %vm110, %vm114
    %vm119 = vmand %vm111, %vm115
    %vm120 = vmand %vm112, %vm116
    %vm121 = vcmp.ge.s32.totalorder %v108, 0
    %vm122 = vmand %vm117, %vm121
    %vm123 = vmand %vm118, %vm121
    %vm124 = vmand %vm119, %vm121
    %vm125 = vmand %vm120, %vm121
    %vm126 = vcmp.lt.s32.totalorder %v108, 16
    %vm127 = vmand %vm122, %vm126
    %vm128 = vmand %vm123, %vm126
    %vm129 = vmand %vm124, %vm126
    %vm130 = vmand %vm125, %vm126
    %vm131 = vcmp.ge.s32.totalorder %v103, 8
    %vm132 = vcmp.ge.s32.totalorder %v104, 8
    %vm133 = vcmp.ge.s32.totalorder %v105, 8
    %vm134 = vcmp.ge.s32.totalorder %v106, 8
    %vm135 = vcmp.lt.s32.totalorder %v103, 16
    %vm136 = vcmp.lt.s32.totalorder %v104, 16
    %vm137 = vcmp.lt.s32.totalorder %v105, 16
    %vm138 = vcmp.lt.s32.totalorder %v106, 16
    %vm139 = vmand %vm131, %vm135
    %vm140 = vmand %vm132, %vm136
    %vm141 = vmand %vm133, %vm137
    %vm142 = vmand %vm134, %vm138
    %vm143 = vcmp.ge.s32.totalorder %v108, 16
    %vm144 = vmand %vm139, %vm143
    %vm145 = vmand %vm140, %vm143
    %vm146 = vmand %vm141, %vm143
    %vm147 = vmand %vm142, %vm143
    %vm148 = vcmp.lt.s32.totalorder %v108, 32
    %vm149 = vmand %vm144, %vm148
    %vm150 = vmand %vm145, %vm148
    %vm151 = vmand %vm146, %vm148
    %vm152 = vmand %vm147, %vm148
    %vm153 = vmor %vm127, %vm149
    %vm154 = vmor %vm128, %vm150
    %vm155 = vmor %vm129, %vm151
    %vm156 = vmor %vm130, %vm152
    %vm157 = vcmp.ge.s32.totalorder %v103, 16
    %vm158 = vcmp.ge.s32.totalorder %v104, 16
    %vm159 = vcmp.ge.s32.totalorder %v105, 16
    %vm160 = vcmp.ge.s32.totalorder %v106, 16
    %vm161 = vcmp.lt.s32.totalorder %v103, 24
    %vm162 = vcmp.lt.s32.totalorder %v104, 24
    %vm163 = vcmp.lt.s32.totalorder %v105, 24
    %vm164 = vcmp.lt.s32.totalorder %v106, 24
    %vm165 = vmand %vm157, %vm161
    %vm166 = vmand %vm158, %vm162
    %vm167 = vmand %vm159, %vm163
    %vm168 = vmand %vm160, %vm164
    %vm169 = vcmp.ge.s32.totalorder %v108, 32
    %vm170 = vmand %vm165, %vm169
    %vm171 = vmand %vm166, %vm169
    %vm172 = vmand %vm167, %vm169
    %vm173 = vmand %vm168, %vm169
    %vm174 = vcmp.lt.s32.totalorder %v108, 48
    %vm175 = vmand %vm170, %vm174
    %vm176 = vmand %vm171, %vm174
    %vm177 = vmand %vm172, %vm174
    %vm178 = vmand %vm173, %vm174
    %vm179 = vmor %vm153, %vm175
    %vm180 = vmor %vm154, %vm176
    %vm181 = vmor %vm155, %vm177
    %vm182 = vmor %vm156, %vm178
    %vm183 = vcmp.ge.s32.totalorder %v103, 24
    %vm184 = vcmp.ge.s32.totalorder %v104, 24
    %vm185 = vcmp.ge.s32.totalorder %v105, 24
    %vm186 = vcmp.ge.s32.totalorder %v106, 24
    %vm187 = vcmp.lt.s32.totalorder %v103, 32
    %vm188 = vcmp.lt.s32.totalorder %v104, 32
    %vm189 = vcmp.lt.s32.totalorder %v105, 32
    %vm190 = vcmp.lt.s32.totalorder %v106, 32
    %vm191 = vmand %vm183, %vm187
    %vm192 = vmand %vm184, %vm188
    %vm193 = vmand %vm185, %vm189
    %vm194 = vmand %vm186, %vm190
    %vm195 = vcmp.ge.s32.totalorder %v108, 48
    %vm196 = vmand %vm191, %vm195
    %vm197 = vmand %vm192, %vm195
    %vm198 = vmand %vm193, %vm195
    %vm199 = vmand %vm194, %vm195
    %vm200 = vcmp.lt.s32.totalorder %v108, 64
    %vm201 = vmand %vm196, %vm200
    %vm202 = vmand %vm197, %vm200
    %vm203 = vmand %vm198, %vm200
    %vm204 = vmand %vm199, %vm200
    %vm205 = vmor %vm179, %vm201
    %vm206 = vmor %vm180, %vm202
    %vm207 = vmor %vm181, %vm203
    %vm208 = vmor %vm182, %vm204
    %v209 = vsel %vm205, 0.0, -1e+30
    %v210 = vsel %vm206, 0.0, -1e+30
    %v211 = vsel %vm207, 0.0, -1e+30
    %v212 = vsel %vm208, 0.0, -1e+30
    %vm213 = vcmp.lt.s32.totalorder %v108, 8
    %vm214 = vmand %vm122, %vm213
    %vm215 = vmand %vm123, %vm213
    %vm216 = vmand %vm124, %vm213
    %vm217 = vmand %vm125, %vm213
    %vm218 = vcmp.ge.s32.totalorder %v108, 8
    %vm219 = vmand %vm139, %vm218
    %vm220 = vmand %vm140, %vm218
    %vm221 = vmand %vm141, %vm218
    %vm222 = vmand %vm142, %vm218
    %vm223 = vmand %vm219, %vm126
    %vm224 = vmand %vm220, %vm126
    %vm225 = vmand %vm221, %vm126
    %vm226 = vmand %vm222, %vm126
    %vm227 = vmor %vm214, %vm223
    %vm228 = vmor %vm215, %vm224
    %vm229 = vmor %vm216, %vm225
    %vm230 = vmor %vm217, %vm226
    %vm231 = vmand %vm165, %vm143
    %vm232 = vmand %vm166, %vm143
    %vm233 = vmand %vm167, %vm143
    %vm234 = vmand %vm168, %vm143
    %vm235 = vcmp.lt.s32.totalorder %v108, 24
    %vm236 = vmand %vm231, %vm235
    %vm237 = vmand %vm232, %vm235
    %vm238 = vmand %vm233, %vm235
    %vm239 = vmand %vm234, %vm235
    %vm240 = vmor %vm227, %vm236
    %vm241 = vmor %vm228, %vm237
    %vm242 = vmor %vm229, %vm238
    %vm243 = vmor %vm230, %vm239
    %vm244 = vcmp.ge.s32.totalorder %v108, 24
    %vm245 = vmand %vm191, %vm244
    %vm246 = vmand %vm192, %vm244
    %vm247 = vmand %vm193, %vm244
    %vm248 = vmand %vm194, %vm244
    %vm249 = vmand %vm245, %vm148
    %vm250 = vmand %vm246, %vm148
    %vm251 = vmand %vm247, %vm148
    %vm252 = vmand %vm248, %vm148
    %vm253 = vmor %vm240, %vm249
    %vm254 = vmor %vm241, %vm250
    %vm255 = vmor %vm242, %vm251
    %vm256 = vmor %vm243, %vm252
    %v257 = vsel %vm253, 0.0, -1e+30
    %v258 = vsel %vm254, 0.0, -1e+30
    %v259 = vsel %vm255, 0.0, -1e+30
    %v260 = vsel %vm256, 0.0, -1e+30
    %v261 = vld [vmem:[%s2] sm:$0xff]
    %v262 = vld [vmem:[%s2 + $0x8] sm:$0xff]
    %v263 = vld [vmem:[%s2 + $0x10] sm:$0xff]
    %v264 = vld [vmem:[%s2 + $0x18] sm:$0xff]
    %v265 = vld [vmem:[%s3] sm:$0x1]
    %v267 = vlaneseq
    %v268 = vshrl.u32 %v267, 7
    %v269 = vsub.s32 0, %v268
    %v270 = vrot.slane %v265, %v269
    %vm272 = vcmask 261120
    %v274 = vsel %vm272, %v90, 0
    %v277 = vsel %vm272, %v91, 0
    %v280 = vsel %vm272, %v92, 0
    %v283 = vsel %vm272, %v93, 0
    %285 = vmatprep.subr.mxu0 0.0
    %286 = vmatpush1.msra.mxu0 %v261
    %287 = vmatprep.subr.mxu0 0.0
    %288 = vmatpush1.msra.mxu0 %v262
    %289 = vmatprep.subr.mxu0 0.0
    %290 = vmatpush1.msra.mxu0 %v263
    %291 = vmatprep.subr.mxu0 0.0
    %292 = vmatpush1.msra.mxu0 %v264
    %293 = vmatprep.subr.mxu0 0.0
    %294 = vmatpush1.msra.mxu0 0.0
    %295 = vmatprep.subr.mxu0 0.0
    %296 = vmatpush1.msra.mxu0 0.0
    %297 = vmatprep.subr.mxu0 0.0
    %298 = vmatpush1.msra.mxu0 0.0
    %299 = vmatprep.subr.mxu0 0.0
    %300 = vmatpush1.msra.mxu0 0.0
    %301 = vmatprep.subr.mxu0 0.0
    %302 = vmatpush1.msra.mxu0 0.0
    %303 = vmatprep.subr.mxu0 0.0
    %304 = vmatpush1.msra.mxu0 0.0
    %305 = vmatprep.subr.mxu0 0.0
    %306 = vmatpush1.msra.mxu0 0.0
    %307 = vmatprep.subr.mxu0 0.0
    %308 = vmatpush1.msra.mxu0 0.0
    %309 = vmatprep.subr.mxu0 0.0
    %310 = vmatpush1.msra.mxu0 0.0
    %311 = vmatprep.subr.mxu0 0.0
    %312 = vmatpush1.msra.mxu0 0.0
    %313 = vmatprep.subr.mxu0 0.0
    %314 = vmatpush1.msra.mxu0 0.0
    %315 = vmatprep.subr.mxu0 0.0
    %316 = vmatpush1.msra.mxu0 0.0
    %317 = vmatprep.subr.mxu0 0.0
    %318 = vmatpush1.msra.mxu0 0.0
    %319 = vmatprep.subr.mxu0 0.0
    %320 = vmatpush1.msra.mxu0 0.0
    %321 = vmatprep.subr.mxu0 0.0
    %322 = vmatpush1.msra.mxu0 0.0
    %323 = vmatprep.subr.mxu0 0.0
    %324 = vmatpush1.msra.mxu0 0.0
    %325 = vmatprep.subr.mxu0 0.0
    %326 = vmatpush1.msra.mxu0 0.0
    %327 = vmatprep.subr.mxu0 0.0
    %328 = vmatpush1.msra.mxu0 0.0
    %329 = vmatprep.subr.mxu0 0.0
    %330 = vmatpush1.msra.mxu0 0.0
    %331 = vmatprep.subr.mxu0 0.0
    %332 = vmatpush1.msra.mxu0 0.0
    %333 = vmatprep.subr.mxu0 0.0
    %334 = vmatpush1.msra.mxu0 0.0
    %335 = vmatprep.subr.mxu0 0.0
    %336 = vmatpush1.msra.mxu0 0.0
    %337 = vmatprep.subr.mxu0 0.0
    %338 = vmatpush1.msra.mxu0 0.0
    %339 = vmatprep.subr.mxu0 0.0
    %340 = vmatpush1.msra.mxu0 0.0
    %341 = vmatprep.subr.mxu0 0.0
    %342 = vmatpush1.msra.mxu0 0.0
    %343 = vmatprep.subr.mxu0 0.0
    %344 = vmatpush1.msra.mxu0 0.0
    %345 = vmatprep.subr.mxu0 0.0
    %346 = vmatpush1.msra.mxu0 0.0
    %347 = vmatprep.subr.mxu0 0.0
    %348 = vmatpush1.msra.mxu0 0.0
    %349 = vmatprep.mubr.f32.mxu0 0.0
    %350 = vmatmul.mubr.f32.gmra.mrb[0].mxu0 %v274
    %v351 = vpop.f32.mrb[0].mxu0
    %v352 = vadd.f32 %v270, %v351
    %v353 = vpop.f32.mrb[0].mxu0
    %354 = vmatprep.mubr.f32.mxu0 0.0
    %355 = vmatmul.mubr.f32.gmra.mrb[0].mxu0 %v277
    %v356 = vpop.f32.mrb[0].mxu0
    %v357 = vadd.f32 %v270, %v356
    %v358 = vpop.f32.mrb[0].mxu0
    %359 = vmatprep.mubr.f32.mxu0 0.0
    %360 = vmatmul.mubr.f32.gmra.mrb[0].mxu0 %v280
    %v361 = vpop.f32.mrb[0].mxu0
    %v362 = vadd.f32 %v270, %v361
    %v363 = vpop.f32.mrb[0].mxu0
    %364 = vmatprep.mubr.f32.mxu0 0.0
    %365 = vmatmul.mubr.f32.gmra.mrb[0].mxu0 %v283
    %v366 = vpop.f32.mrb[0].mxu0
    %v367 = vadd.f32 %v270, %v366
    %v368 = vpop.f32.mrb[0].mxu0
    %369 = vdwg.mxu0
    %v370 = vld [vmem:[%s4] sm:$0xff]
    %v371 = vld [vmem:[%s4 + $0x8] sm:$0xff]
    %v372 = vld [vmem:[%s4 + $0x10] sm:$0xff]
    %v373 = vld [vmem:[%s4 + $0x18] sm:$0xff]
    %v374 = vld [vmem:[%s4 + $0x20] sm:$0xff]
    %v375 = vld [vmem:[%s4 + $0x28] sm:$0xff]
    %v376 = vld [vmem:[%s5] sm:$0x1]
    %v378 = vlaneseq
    %v379 = vshrl.u32 %v378, 7
    %v380 = vsub.s32 0, %v379
    %v381 = vrot.slane %v376, %v380
    %vm383 = vcmask 392192
    %v385 = vsel %vm383, %v94, 0
    %v388 = vsel %vm383, %v95, 0
    %v391 = vsel %vm383, %v96, 0
    %v394 = vsel %vm383, %v97, 0
    %v397 = vsel %vm383, %v98, 0
    %v400 = vsel %vm383, %v99, 0
    %v403 = vsel %vm383, %v100, 0
    %v406 = vsel %vm383, %v101, 0
    %408 = vmatprep.subr.mxu0 0.0
    %409 = vmatpush1.msra.mxu0 %v370
    %410 = vmatprep.subr.mxu0 0.0
    %411 = vmatpush1.msra.mxu0 %v371
    %412 = vmatprep.subr.mxu0 0.0
    %413 = vmatpush1.msra.mxu0 %v372
    %414 = vmatprep.subr.mxu0 0.0
    %415 = vmatpush1.msra.mxu0 %v373
    %416 = vmatprep.subr.mxu0 0.0
    %417 = vmatpush1.msra.mxu0 %v374
    %418 = vmatprep.subr.mxu0 0.0
    %419 = vmatpush1.msra.mxu0 %v375
    %420 = vmatprep.subr.mxu0 0.0
    %421 = vmatpush1.msra.mxu0 0.0
    %422 = vmatprep.subr.mxu0 0.0
    %423 = vmatpush1.msra.mxu0 0.0
    %424 = vmatprep.subr.mxu0 0.0
    %425 = vmatpush1.msra.mxu0 0.0
    %426 = vmatprep.subr.mxu0 0.0
    %427 = vmatpush1.msra.mxu0 0.0
    %428 = vmatprep.subr.mxu0 0.0
    %429 = vmatpush1.msra.mxu0 0.0
    %430 = vmatprep.subr.mxu0 0.0
    %431 = vmatpush1.msra.mxu0 0.0
    %432 = vmatprep.subr.mxu0 0.0
    %433 = vmatpush1.msra.mxu0 0.0
    %434 = vmatprep.subr.mxu0 0.0
    %435 = vmatpush1.msra.mxu0 0.0
    %436 = vmatprep.subr.mxu0 0.0
    %437 = vmatpush1.msra.mxu0 0.0
    %438 = vmatprep.subr.mxu0 0.0
    %439 = vmatpush1.msra.mxu0 0.0
    %440 = vmatprep.subr.mxu0 0.0
    %441 = vmatpush1.msra.mxu0 0.0
    %442 = vmatprep.subr.mxu0 0.0
    %443 = vmatpush1.msra.mxu0 0.0
    %444 = vmatprep.subr.mxu0 0.0
    %445 = vmatpush1.msra.mxu0 0.0
    %446 = vmatprep.subr.mxu0 0.0
    %447 = vmatpush1.msra.mxu0 0.0
    %448 = vmatprep.subr.mxu0 0.0
    %449 = vmatpush1.msra.mxu0 0.0
    %450 = vmatprep.subr.mxu0 0.0
    %451 = vmatpush1.msra.mxu0 0.0
    %452 = vmatprep.subr.mxu0 0.0
    %453 = vmatpush1.msra.mxu0 0.0
    %454 = vmatprep.subr.mxu0 0.0
    %455 = vmatpush1.msra.mxu0 0.0
    %456 = vmatprep.subr.mxu0 0.0
    %457 = vmatpush1.msra.mxu0 0.0
    %458 = vmatprep.subr.mxu0 0.0
    %459 = vmatpush1.msra.mxu0 0.0
    %460 = vmatprep.subr.mxu0 0.0
    %461 = vmatpush1.msra.mxu0 0.0
    %462 = vmatprep.subr.mxu0 0.0
    %463 = vmatpush1.msra.mxu0 0.0
    %464 = vmatprep.subr.mxu0 0.0
    %465 = vmatpush1.msra.mxu0 0.0
    %466 = vmatprep.subr.mxu0 0.0
    %467 = vmatpush1.msra.mxu0 0.0
    %468 = vmatprep.subr.mxu0 0.0
    %469 = vmatpush1.msra.mxu0 0.0
    %470 = vmatprep.subr.mxu0 0.0
    %471 = vmatpush1.msra.mxu0 0.0
    %472 = vmatprep.mubr.f32.mxu0 0.0
    %473 = vmatmul.mubr.f32.gmra.mrb[0].mxu0 %v385
    %v474 = vpop.f32.mrb[0].mxu0
    %v475 = vadd.f32 %v381, %v474
    %v476 = vpop.f32.mrb[0].mxu0
    %477 = vmatprep.mubr.f32.mxu0 0.0
    %478 = vmatmul.mubr.f32.gmra.mrb[0].mxu0 %v388
    %v479 = vpop.f32.mrb[0].mxu0
    %v480 = vadd.f32 %v381, %v479
    %v481 = vpop.f32.mrb[0].mxu0
    %482 = vmatprep.mubr.f32.mxu0 0.0
    %483 = vmatmul.mubr.f32.gmra.mrb[0].mxu0 %v391
    %v484 = vpop.f32.mrb[0].mxu0
    %v485 = vadd.f32 %v381, %v484
    %v486 = vpop.f32.mrb[0].mxu0
    %487 = vmatprep.mubr.f32.mxu0 0.0
    %488 = vmatmul.mubr.f32.gmra.mrb[0].mxu0 %v394
    %v489 = vpop.f32.mrb[0].mxu0
    %v490 = vadd.f32 %v381, %v489
    %v491 = vpop.f32.mrb[0].mxu0
    %492 = vmatprep.mubr.f32.mxu0 0.0
    %493 = vmatmul.mubr.f32.gmra.mrb[0].mxu0 %v397
    %v494 = vpop.f32.mrb[0].mxu0
    %v495 = vadd.f32 %v381, %v494
    %v496 = vpop.f32.mrb[0].mxu0
    %497 = vmatprep.mubr.f32.mxu0 0.0
    %498 = vmatmul.mubr.f32.gmra.mrb[0].mxu0 %v400
    %v499 = vpop.f32.mrb[0].mxu0
    %v500 = vadd.f32 %v381, %v499
    %v501 = vpop.f32.mrb[0].mxu0
    %502 = vmatprep.mubr.f32.mxu0 0.0
    %503 = vmatmul.mubr.f32.gmra.mrb[0].mxu0 %v403
    %v504 = vpop.f32.mrb[0].mxu0
    %v505 = vadd.f32 %v381, %v504
    %v506 = vpop.f32.mrb[0].mxu0
    %507 = vmatprep.mubr.f32.mxu0 0.0
    %508 = vmatmul.mubr.f32.gmra.mrb[0].mxu0 %v406
    %v509 = vpop.f32.mrb[0].mxu0
    %v510 = vadd.f32 %v381, %v509
    %v511 = vpop.f32.mrb[0].mxu0
    %512 = vdwg.mxu0
    %v513 = vld [vmem:[%s6] sm:$0xff]
    %v514 = vld [vmem:[%s6 + $0x8] sm:$0xff]
    %v515 = vld [vmem:[%s6 + $0x10] sm:$0xff]
    %v516 = vld [vmem:[%s6 + $0x18] sm:$0xff]
    %v517 = vld [vmem:[%s6 + $0x20] sm:$0xff]
    %v518 = vld [vmem:[%s6 + $0x28] sm:$0xff]
    %v519 = vld [vmem:[%s7] sm:$0x1]
    %v521 = vlaneseq
    %v522 = vshrl.u32 %v521, 7
    %v523 = vsub.s32 0, %v522
    %v524 = vrot.slane %v519, %v523
    %526 = vmatprep.subr.mxu0 0.0
    %527 = vmatpush1.msra.mxu0 %v513
    %528 = vmatprep.subr.mxu0 0.0
    %529 = vmatpush1.msra.mxu0 %v514
    %530 = vmatprep.subr.mxu0 0.0
    %531 = vmatpush1.msra.mxu0 %v515
    %532 = vmatprep.subr.mxu0 0.0
    %533 = vmatpush1.msra.mxu0 %v516
    %534 = vmatprep.subr.mxu0 0.0
    %535 = vmatpush1.msra.mxu0 %v517
    %536 = vmatprep.subr.mxu0 0.0
    %537 = vmatpush1.msra.mxu0 %v518
    %538 = vmatprep.subr.mxu0 0.0
    %539 = vmatpush1.msra.mxu0 0.0
    %540 = vmatprep.subr.mxu0 0.0
    %541 = vmatpush1.msra.mxu0 0.0
    %542 = vmatprep.subr.mxu0 0.0
    %543 = vmatpush1.msra.mxu0 0.0
    %544 = vmatprep.subr.mxu0 0.0
    %545 = vmatpush1.msra.mxu0 0.0
    %546 = vmatprep.subr.mxu0 0.0
    %547 = vmatpush1.msra.mxu0 0.0
    %548 = vmatprep.subr.mxu0 0.0
    %549 = vmatpush1.msra.mxu0 0.0
    %550 = vmatprep.subr.mxu0 0.0
    %551 = vmatpush1.msra.mxu0 0.0
    %552 = vmatprep.subr.mxu0 0.0
    %553 = vmatpush1.msra.mxu0 0.0
    %554 = vmatprep.subr.mxu0 0.0
    %555 = vmatpush1.msra.mxu0 0.0
    %556 = vmatprep.subr.mxu0 0.0
    %557 = vmatpush1.msra.mxu0 0.0
    %558 = vmatprep.subr.mxu0 0.0
    %559 = vmatpush1.msra.mxu0 0.0
    %560 = vmatprep.subr.mxu0 0.0
    %561 = vmatpush1.msra.mxu0 0.0
    %562 = vmatprep.subr.mxu0 0.0
    %563 = vmatpush1.msra.mxu0 0.0
    %564 = vmatprep.subr.mxu0 0.0
    %565 = vmatpush1.msra.mxu0 0.0
    %566 = vmatprep.subr.mxu0 0.0
    %567 = vmatpush1.msra.mxu0 0.0
    %568 = vmatprep.subr.mxu0 0.0
    %569 = vmatpush1.msra.mxu0 0.0
    %570 = vmatprep.subr.mxu0 0.0
    %571 = vmatpush1.msra.mxu0 0.0
    %572 = vmatprep.subr.mxu0 0.0
    %573 = vmatpush1.msra.mxu0 0.0
    %574 = vmatprep.subr.mxu0 0.0
    %575 = vmatpush1.msra.mxu0 0.0
    %576 = vmatprep.subr.mxu0 0.0
    %577 = vmatpush1.msra.mxu0 0.0
    %578 = vmatprep.subr.mxu0 0.0
    %579 = vmatpush1.msra.mxu0 0.0
    %580 = vmatprep.subr.mxu0 0.0
    %581 = vmatpush1.msra.mxu0 0.0
    %582 = vmatprep.subr.mxu0 0.0
    %583 = vmatpush1.msra.mxu0 0.0
    %584 = vmatprep.subr.mxu0 0.0
    %585 = vmatpush1.msra.mxu0 0.0
    %586 = vmatprep.subr.mxu0 0.0
    %587 = vmatpush1.msra.mxu0 0.0
    %588 = vmatprep.subr.mxu0 0.0
    %589 = vmatpush1.msra.mxu0 0.0
    %590 = vmatprep.mubr.f32.mxu0 0.0
    %591 = vmatmul.mubr.f32.gmra.mrb[0].mxu0 %v385
    %v592 = vpop.f32.mrb[0].mxu0
    %v593 = vadd.f32 %v524, %v592
    %v594 = vpop.f32.mrb[0].mxu0
    %595 = vmatprep.mubr.f32.mxu0 0.0
    %596 = vmatmul.mubr.f32.gmra.mrb[0].mxu0 %v388
    %v597 = vpop.f32.mrb[0].mxu0
    %v598 = vadd.f32 %v524, %v597
    %v599 = vpop.f32.mrb[0].mxu0
    %600 = vmatprep.mubr.f32.mxu0 0.0
    %601 = vmatmul.mubr.f32.gmra.mrb[0].mxu0 %v391
    %v602 = vpop.f32.mrb[0].mxu0
    %v603 = vadd.f32 %v524, %v602
    %v604 = vpop.f32.mrb[0].mxu0
    %605 = vmatprep.mubr.f32.mxu0 0.0
    %606 = vmatmul.mubr.f32.gmra.mrb[0].mxu0 %v394
    %v607 = vpop.f32.mrb[0].mxu0
    %v608 = vadd.f32 %v524, %v607
    %v609 = vpop.f32.mrb[0].mxu0
    %610 = vmatprep.mubr.f32.mxu0 0.0
    %611 = vmatmul.mubr.f32.gmra.mrb[0].mxu0 %v397
    %v612 = vpop.f32.mrb[0].mxu0
    %v613 = vadd.f32 %v524, %v612
    %v614 = vpop.f32.mrb[0].mxu0
    %615 = vmatprep.mubr.f32.mxu0 0.0
    %616 = vmatmul.mubr.f32.gmra.mrb[0].mxu0 %v400
    %v617 = vpop.f32.mrb[0].mxu0
    %v618 = vadd.f32 %v524, %v617
    %v619 = vpop.f32.mrb[0].mxu0
    %620 = vmatprep.mubr.f32.mxu0 0.0
    %621 = vmatmul.mubr.f32.gmra.mrb[0].mxu0 %v403
    %v622 = vpop.f32.mrb[0].mxu0
    %v623 = vadd.f32 %v524, %v622
    %v624 = vpop.f32.mrb[0].mxu0
    %625 = vmatprep.mubr.f32.mxu0 0.0
    %626 = vmatmul.mubr.f32.gmra.mrb[0].mxu0 %v406
    %v627 = vpop.f32.mrb[0].mxu0
    %v628 = vadd.f32 %v524, %v627
    %v629 = vpop.f32.mrb[0].mxu0
    %630 = vdwg.mxu0
    %vm631 = vcmask 64512
    %v633 = vsel %vm631, %v352, 0
    %v636 = vsel %vm631, %v357, 0
    %v639 = vsel %vm631, %v362, 0
    %v642 = vsel %vm631, %v367, 0
    %v645 = vsel %vm631, %v475, 0
    %v648 = vsel %vm631, %v480, 0
    %v651 = vsel %vm631, %v485, 0
    %v654 = vsel %vm631, %v490, 0
    %v657 = vsel %vm631, %v495, 0
    %v660 = vsel %vm631, %v500, 0
    %v663 = vsel %vm631, %v505, 0
    %v666 = vsel %vm631, %v510, 0
    %668 = vmatprep.subr.mxu0 0.0
    %669 = vmatpush1.xpose.msra.mxu0 %v645
    %670 = vmatprep.subr.mxu0 0.0
    %671 = vmatpush1.xpose.msra.mxu0 %v648
    %672 = vmatprep.subr.mxu0 0.0
    %673 = vmatpush1.xpose.msra.mxu0 %v651
    %674 = vmatprep.subr.mxu0 0.0
    %675 = vmatpush1.xpose.msra.mxu0 %v654
    %676 = vmatprep.subr.mxu0 0.0
    %677 = vmatpush1.xpose.msra.mxu0 %v657
    %678 = vmatprep.subr.mxu0 0.0
    %679 = vmatpush1.xpose.msra.mxu0 %v660
    %680 = vmatprep.subr.mxu0 0.0
    %681 = vmatpush1.xpose.msra.mxu0 %v663
    %682 = vmatprep.subr.mxu0 0.0
    %683 = vmatpush1.xpose.msra.mxu0 %v666
    %684 = vmatprep.subr.mxu0 0.0
    %685 = vmatpush1.xpose.msra.mxu0 0.0
    %686 = vmatprep.subr.mxu0 0.0
    %687 = vmatpush1.xpose.msra.mxu0 0.0
    %688 = vmatprep.subr.mxu0 0.0
    %689 = vmatpush1.xpose.msra.mxu0 0.0
    %690 = vmatprep.subr.mxu0 0.0
    %691 = vmatpush1.xpose.msra.mxu0 0.0
    %692 = vmatprep.subr.mxu0 0.0
    %693 = vmatpush1.xpose.msra.mxu0 0.0
    %694 = vmatprep.subr.mxu0 0.0
    %695 = vmatpush1.xpose.msra.mxu0 0.0
    %696 = vmatprep.subr.mxu0 0.0
    %697 = vmatpush1.xpose.msra.mxu0 0.0
    %698 = vmatprep.subr.mxu0 0.0
    %699 = vmatpush1.xpose.msra.mxu0 0.0
    %700 = vmatprep.subr.mxu0 0.0
    %701 = vmatpush1.xpose.msra.mxu0 0.0
    %702 = vmatprep.subr.mxu0 0.0
    %703 = vmatpush1.xpose.msra.mxu0 0.0
    %704 = vmatprep.subr.mxu0 0.0
    %705 = vmatpush1.xpose.msra.mxu0 0.0
    %706 = vmatprep.subr.mxu0 0.0
    %707 = vmatpush1.xpose.msra.mxu0 0.0
    %708 = vmatprep.subr.mxu0 0.0
    %709 = vmatpush1.xpose.msra.mxu0 0.0
    %710 = vmatprep.subr.mxu0 0.0
    %711 = vmatpush1.xpose.msra.mxu0 0.0
    %712 = vmatprep.subr.mxu0 0.0
    %713 = vmatpush1.xpose.msra.mxu0 0.0
    %714 = vmatprep.subr.mxu0 0.0
    %715 = vmatpush1.xpose.msra.mxu0 0.0
    %716 = vmatprep.subr.mxu0 0.0
    %717 = vmatpush1.xpose.msra.mxu0 0.0
    %718 = vmatprep.subr.mxu0 0.0
    %719 = vmatpush1.xpose.msra.mxu0 0.0
    %720 = vmatprep.subr.mxu0 0.0
    %721 = vmatpush1.xpose.msra.mxu0 0.0
    %722 = vmatprep.subr.mxu0 0.0
    %723 = vmatpush1.xpose.msra.mxu0 0.0
    %724 = vmatprep.subr.mxu0 0.0
    %725 = vmatpush1.xpose.msra.mxu0 0.0
    %726 = vmatprep.subr.mxu0 0.0
    %727 = vmatpush1.xpose.msra.mxu0 0.0
    %728 = vmatprep.subr.mxu0 0.0
    %729 = vmatpush1.xpose.msra.mxu0 0.0
    %730 = vmatprep.subr.mxu0 0.0
    %731 = vmatpush1.xpose.msra.mxu0 0.0
    %732 = vmatprep.mubr.f32.mxu0 0.0
    %733 = vmatmul.mubr.f32.gmra.mrb[0].mxu0 %v633
    %v734 = vpop.f32.mrb[0].mxu0
    %v735 = vadd.f32 0.0, %v734
    %v736 = vpop.f32.mrb[0].mxu0
    %737 = vmatprep.mubr.f32.mxu0 0.0
    %738 = vmatmul.mubr.f32.gmra.mrb[0].mxu0 %v636
    %v739 = vpop.f32.mrb[0].mxu0
    %v740 = vadd.f32 0.0, %v739
    %v741 = vpop.f32.mrb[0].mxu0
    %742 = vmatprep.mubr.f32.mxu0 0.0
    %743 = vmatmul.mubr.f32.gmra.mrb[0].mxu0 %v639
    %v744 = vpop.f32.mrb[0].mxu0
    %v745 = vadd.f32 0.0, %v744
    %v746 = vpop.f32.mrb[0].mxu0
    %747 = vmatprep.mubr.f32.mxu0 0.0
    %748 = vmatmul.mubr.f32.gmra.mrb[0].mxu0 %v642
    %v749 = vpop.f32.mrb[0].mxu0
    %v750 = vadd.f32 0.0, %v749
    %v751 = vpop.f32.mrb[0].mxu0
    %752 = vdwg.mxu0
    %v753 = vmul.f32 %v735, 0.35355338
    %v754 = vmul.f32 %v740, 0.35355338
    %v755 = vmul.f32 %v745, 0.35355338
    %v756 = vmul.f32 %v750, 0.35355338
    %v757 = vadd.f32 %v753, %v209
    %v758 = vadd.f32 %v754, %v210
    %v759 = vadd.f32 %v755, %v211
    %v760 = vadd.f32 %v756, %v212
    %vm761 = vcmask 523264
    %v762 = vsel %vm761, %v757, -inf
    %763 = vmax.xlane.f32.xlu0 %v762
    %v764 = vpop.xlane.xlu0 %763
    %v765 = vsel %vm761, %v758, -inf
    %766 = vmax.xlane.f32.xlu0 %v765
    %v767 = vpop.xlane.xlu0 %766
    %v768 = vsel %vm761, %v759, -inf
    %769 = vmax.xlane.f32.xlu0 %v768
    %v770 = vpop.xlane.xlu0 %769
    %v771 = vsel %vm761, %v760, -inf
    %772 = vmax.xlane.f32.xlu0 %v771
    %v773 = vpop.xlane.xlu0 %772
    %v774 = vsub.f32 %v757, %v764
    %v775 = vsub.f32 %v758, %v767
    %v776 = vsub.f32 %v759, %v770
    %v777 = vsub.f32 %v760, %v773
    %v778 = vmul.f32 %v774, 1.442695
    %v779 = vpow.pop %v778
    %v780 = vmul.f32 %v775, 1.442695
    %v781 = vpow.pop %v780
    %v782 = vmul.f32 %v776, 1.442695
    %v783 = vpow.pop %v782
    %v784 = vmul.f32 %v777, 1.442695
    %v785 = vpow.pop %v784
    %v786 = vsel %vm761, %v779, 0.0
    %787 = vadd.xlane.f32.xlu0 %v786
    %v788 = vpop.xlane.xlu0 %787
    %v789 = vsel %vm761, %v781, 0.0
    %790 = vadd.xlane.f32.xlu0 %v789
    %v791 = vpop.xlane.xlu0 %790
    %v792 = vsel %vm761, %v783, 0.0
    %793 = vadd.xlane.f32.xlu0 %v792
    %v794 = vpop.xlane.xlu0 %793
    %v795 = vsel %vm761, %v785, 0.0
    %796 = vadd.xlane.f32.xlu0 %v795
    %v797 = vpop.xlane.xlu0 %796
    %v798 = vrcp.pop %v788
    %v799 = vrcp.pop %v791
    %v800 = vrcp.pop %v794
    %v801 = vrcp.pop %v797
    %v802 = vmul.f32 %v779, %v798
    %v803 = vmul.f32 %v781, %v799
    %v804 = vmul.f32 %v783, %v800
    %v805 = vmul.f32 %v785, %v801
    %v807 = vsel %vm761, %v802, 0
    %v810 = vsel %vm761, %v803, 0
    %v813 = vsel %vm761, %v804, 0
    %v816 = vsel %vm761, %v805, 0
    %818 = vmatprep.subr.mxu0 0.0
    %819 = vmatpush1.msra.mxu0 %v593
    %820 = vmatprep.subr.mxu0 0.0
    %821 = vmatpush1.msra.mxu0 %v598
    %822 = vmatprep.subr.mxu0 0.0
    %823 = vmatpush1.msra.mxu0 %v603
    %824 = vmatprep.subr.mxu0 0.0
    %825 = vmatpush1.msra.mxu0 %v608
    %826 = vmatprep.subr.mxu0 0.0
    %827 = vmatpush1.msra.mxu0 %v613
    %828 = vmatprep.subr.mxu0 0.0
    %829 = vmatpush1.msra.mxu0 %v618
    %830 = vmatprep.subr.mxu0 0.0
    %831 = vmatpush1.msra.mxu0 %v623
    %832 = vmatprep.subr.mxu0 0.0
    %833 = vmatpush1.msra.mxu0 %v628
    %834 = vmatprep.subr.mxu0 0.0
    %835 = vmatpush1.msra.mxu0 0.0
    %836 = vmatprep.subr.mxu0 0.0
    %837 = vmatpush1.msra.mxu0 0.0
    %838 = vmatprep.subr.mxu0 0.0
    %839 = vmatpush1.msra.mxu0 0.0
    %840 = vmatprep.subr.mxu0 0.0
    %841 = vmatpush1.msra.mxu0 0.0
    %842 = vmatprep.subr.mxu0 0.0
    %843 = vmatpush1.msra.mxu0 0.0
    %844 = vmatprep.subr.mxu0 0.0
    %845 = vmatpush1.msra.mxu0 0.0
    %846 = vmatprep.subr.mxu0 0.0
    %847 = vmatpush1.msra.mxu0 0.0
    %848 = vmatprep.subr.mxu0 0.0
    %849 = vmatpush1.msra.mxu0 0.0
    %850 = vmatprep.subr.mxu0 0.0
    %851 = vmatpush1.msra.mxu0 0.0
    %852 = vmatprep.subr.mxu0 0.0
    %853 = vmatpush1.msra.mxu0 0.0
    %854 = vmatprep.subr.mxu0 0.0
    %855 = vmatpush1.msra.mxu0 0.0
    %856 = vmatprep.subr.mxu0 0.0
    %857 = vmatpush1.msra.mxu0 0.0
    %858 = vmatprep.subr.mxu0 0.0
    %859 = vmatpush1.msra.mxu0 0.0
    %860 = vmatprep.subr.mxu0 0.0
    %861 = vmatpush1.msra.mxu0 0.0
    %862 = vmatprep.subr.mxu0 0.0
    %863 = vmatpush1.msra.mxu0 0.0
    %864 = vmatprep.subr.mxu0 0.0
    %865 = vmatpush1.msra.mxu0 0.0
    %866 = vmatprep.subr.mxu0 0.0
    %867 = vmatpush1.msra.mxu0 0.0
    %868 = vmatprep.subr.mxu0 0.0
    %869 = vmatpush1.msra.mxu0 0.0
    %870 = vmatprep.subr.mxu0 0.0
    %871 = vmatpush1.msra.mxu0 0.0
    %872 = vmatprep.subr.mxu0 0.0
    %873 = vmatpush1.msra.mxu0 0.0
    %874 = vmatprep.subr.mxu0 0.0
    %875 = vmatpush1.msra.mxu0 0.0
    %876 = vmatprep.subr.mxu0 0.0
    %877 = vmatpush1.msra.mxu0 0.0
    %878 = vmatprep.subr.mxu0 0.0
    %879 = vmatpush1.msra.mxu0 0.0
    %880 = vmatprep.subr.mxu0 0.0
    %881 = vmatpush1.msra.mxu0 0.0
    %882 = vmatprep.mubr.f32.mxu0 0.0
    %883 = vmatmul.mubr.f32.gmra.mrb[0].mxu0 %v807
    %v884 = vpop.f32.mrb[0].mxu0
    %v885 = vadd.f32 0.0, %v884
    %v886 = vpop.f32.mrb[0].mxu0
    %887 = vmatprep.mubr.f32.mxu0 0.0
    %888 = vmatmul.mubr.f32.gmra.mrb[0].mxu0 %v810
    %v889 = vpop.f32.mrb[0].mxu0
    %v890 = vadd.f32 0.0, %v889
    %v891 = vpop.f32.mrb[0].mxu0
    %892 = vmatprep.mubr.f32.mxu0 0.0
    %893 = vmatmul.mubr.f32.gmra.mrb[0].mxu0 %v813
    %v894 = vpop.f32.mrb[0].mxu0
    %v895 = vadd.f32 0.0, %v894
    %v896 = vpop.f32.mrb[0].mxu0
    %897 = vmatprep.mubr.f32.mxu0 0.0
    %898 = vmatmul.mubr.f32.gmra.mrb[0].mxu0 %v816
    %v899 = vpop.f32.mrb[0].mxu0
    %v900 = vadd.f32 0.0, %v899
    %v901 = vpop.f32.mrb[0].mxu0
    %902 = vdwg.mxu0
    %903 = vst.msk [vmem:[#allocation2] sm:$0xff] %vm631, %v885
    %904 = vst.msk [vmem:[#allocation2 + $0x8] sm:$0xff] %vm631, %v890
    %905 = vst.msk [vmem:[#allocation2 + $0x10] sm:$0xff] %vm631, %v895
    %906 = vst.msk [vmem:[#allocation2 + $0x18] sm:$0xff] %vm631, %v900
    %907 = vrot.lane.b32.xlu0 %v352, 120
    %v908 = vpop.permute.xlu0 %907
    %909 = vrot.lane.b32.xlu0 %v357, 120
    %v910 = vpop.permute.xlu0 %909
    %911 = vrot.lane.b32.xlu0 %v362, 120
    %v912 = vpop.permute.xlu0 %911
    %913 = vrot.lane.b32.xlu0 %v367, 120
    %v914 = vpop.permute.xlu0 %913
    %915 = vrot.lane.b32.xlu0 %v475, 120
    %v916 = vpop.permute.xlu0 %915
    %917 = vrot.lane.b32.xlu0 %v480, 120
    %v918 = vpop.permute.xlu0 %917
    %919 = vrot.lane.b32.xlu0 %v485, 120
    %v920 = vpop.permute.xlu0 %919
    %921 = vrot.lane.b32.xlu0 %v490, 120
    %v922 = vpop.permute.xlu0 %921
    %923 = vrot.lane.b32.xlu0 %v495, 120
    %v924 = vpop.permute.xlu0 %923
    %925 = vrot.lane.b32.xlu0 %v500, 120
    %v926 = vpop.permute.xlu0 %925
    %927 = vrot.lane.b32.xlu0 %v505, 120
    %v928 = vpop.permute.xlu0 %927
    %929 = vrot.lane.b32.xlu0 %v510, 120
    %v930 = vpop.permute.xlu0 %929
    %v931 = vsel %vm631, %v908, 0
    %v933 = vsel %vm631, %v910, 0
    %v935 = vsel %vm631, %v912, 0
    %v937 = vsel %vm631, %v914, 0
    %v939 = vsel %vm631, %v916, 0
    %v941 = vsel %vm631, %v918, 0
    %v943 = vsel %vm631, %v920, 0
    %v945 = vsel %vm631, %v922, 0
    %v947 = vsel %vm631, %v924, 0
    %v949 = vsel %vm631, %v926, 0
    %v951 = vsel %vm631, %v928, 0
    %v953 = vsel %vm631, %v930, 0
    %955 = vmatprep.subr.mxu0 0.0
    %956 = vmatpush1.xpose.msra.mxu0 %v939
    %957 = vmatprep.subr.mxu0 0.0
    %958 = vmatpush1.xpose.msra.mxu0 %v941
    %959 = vmatprep.subr.mxu0 0.0
    %960 = vmatpush1.xpose.msra.mxu0 %v943
    %961 = vmatprep.subr.mxu0 0.0
    %962 = vmatpush1.xpose.msra.mxu0 %v945
    %963 = vmatprep.subr.mxu0 0.0
    %964 = vmatpush1.xpose.msra.mxu0 %v947
    %965 = vmatprep.subr.mxu0 0.0
    %966 = vmatpush1.xpose.msra.mxu0 %v949
    %967 = vmatprep.subr.mxu0 0.0
    %968 = vmatpush1.xpose.msra.mxu0 %v951
    %969 = vmatprep.subr.mxu0 0.0
    %970 = vmatpush1.xpose.msra.mxu0 %v953
    %971 = vmatprep.subr.mxu0 0.0
    %972 = vmatpush1.xpose.msra.mxu0 0.0
    %973 = vmatprep.subr.mxu0 0.0
    %974 = vmatpush1.xpose.msra.mxu0 0.0
    %975 = vmatprep.subr.mxu0 0.0
    %976 = vmatpush1.xpose.msra.mxu0 0.0
    %977 = vmatprep.subr.mxu0 0.0
    %978 = vmatpush1.xpose.msra.mxu0 0.0
    %979 = vmatprep.subr.mxu0 0.0
    %980 = vmatpush1.xpose.msra.mxu0 0.0
    %981 = vmatprep.subr.mxu0 0.0
    %982 = vmatpush1.xpose.msra.mxu0 0.0
    %983 = vmatprep.subr.mxu0 0.0
    %984 = vmatpush1.xpose.msra.mxu0 0.0
    %985 = vmatprep.subr.mxu0 0.0
    %986 = vmatpush1.xpose.msra.mxu0 0.0
    %987 = vmatprep.subr.mxu0 0.0
    %988 = vmatpush1.xpose.msra.mxu0 0.0
    %989 = vmatprep.subr.mxu0 0.0
    %990 = vmatpush1.xpose.msra.mxu0 0.0
    %991 = vmatprep.subr.mxu0 0.0
    %992 = vmatpush1.xpose.msra.mxu0 0.0
    %993 = vmatprep.subr.mxu0 0.0
    %994 = vmatpush1.xpose.msra.mxu0 0.0
    %995 = vmatprep.subr.mxu0 0.0
    %996 = vmatpush1.xpose.msra.mxu0 0.0
    %997 = vmatprep.subr.mxu0 0.0
    %998 = vmatpush1.xpose.msra.mxu0 0.0
    %999 = vmatprep.subr.mxu0 0.0
    %1000 = vmatpush1.xpose.msra.mxu0 0.0
    %1001 = vmatprep.subr.mxu0 0.0
    %1002 = vmatpush1.xpose.msra.mxu0 0.0
    %1003 = vmatprep.subr.mxu0 0.0
    %1004 = vmatpush1.xpose.msra.mxu0 0.0
    %1005 = vmatprep.subr.mxu0 0.0
    %1006 = vmatpush1.xpose.msra.mxu0 0.0
    %1007 = vmatprep.subr.mxu0 0.0
    %1008 = vmatpush1.xpose.msra.mxu0 0.0
    %1009 = vmatprep.subr.mxu0 0.0
    %1010 = vmatpush1.xpose.msra.mxu0 0.0
    %1011 = vmatprep.subr.mxu0 0.0
    %1012 = vmatpush1.xpose.msra.mxu0 0.0
    %1013 = vmatprep.subr.mxu0 0.0
    %1014 = vmatpush1.xpose.msra.mxu0 0.0
    %1015 = vmatprep.subr.mxu0 0.0
    %1016 = vmatpush1.xpose.msra.mxu0 0.0
    %1017 = vmatprep.subr.mxu0 0.0
    %1018 = vmatpush1.xpose.msra.mxu0 0.0
    %1019 = vmatprep.mubr.f32.mxu0 0.0
    %1020 = vmatmul.mubr.f32.gmra.mrb[0].mxu0 %v931
    %v1021 = vpop.f32.mrb[0].mxu0
    %v1022 = vadd.f32 0.0, %v1021
    %v1023 = vpop.f32.mrb[0].mxu0
    %1024 = vmatprep.mubr.f32.mxu0 0.0
    %1025 = vmatmul.mubr.f32.gmra.mrb[0].mxu0 %v933
    %v1026 = vpop.f32.mrb[0].mxu0
    %v1027 = vadd.f32 0.0, %v1026
    %v1028 = vpop.f32.mrb[0].mxu0
    %1029 = vmatprep.mubr.f32.mxu0 0.0
    %1030 = vmatmul.mubr.f32.gmra.mrb[0].mxu0 %v935
    %v1031 = vpop.f32.mrb[0].mxu0
    %v1032 = vadd.f32 0.0, %v1031
    %v1033 = vpop.f32.mrb[0].mxu0
    %1034 = vmatprep.mubr.f32.mxu0 0.0
    %1035 = vmatmul.mubr.f32.gmra.mrb[0].mxu0 %v937
    %v1036 = vpop.f32.mrb[0].mxu0
    %v1037 = vadd.f32 0.0, %v1036
    %v1038 = vpop.f32.mrb[0].mxu0
    %1039 = vdwg.mxu0
    %v1040 = vmul.f32 %v1022, 0.35355338
    %v1041 = vmul.f32 %v1027, 0.35355338
    %v1042 = vmul.f32 %v1032, 0.35355338
    %v1043 = vmul.f32 %v1037, 0.35355338
    %v1044 = vadd.f32 %v1040, %v209
    %v1045 = vadd.f32 %v1041, %v210
    %v1046 = vadd.f32 %v1042, %v211
    %v1047 = vadd.f32 %v1043, %v212
    %v1048 = vsel %vm761, %v1044, -inf
    %1049 = vmax.xlane.f32.xlu0 %v1048
    %v1050 = vpop.xlane.xlu0 %1049
    %v1051 = vsel %vm761, %v1045, -inf
    %1052 = vmax.xlane.f32.xlu0 %v1051
    %v1053 = vpop.xlane.xlu0 %1052
    %v1054 = vsel %vm761, %v1046, -inf
    %1055 = vmax.xlane.f32.xlu0 %v1054
    %v1056 = vpop.xlane.xlu0 %1055
    %v1057 = vsel %vm761, %v1047, -inf
    %1058 = vmax.xlane.f32.xlu0 %v1057
    %v1059 = vpop.xlane.xlu0 %1058
    %v1060 = vsub.f32 %v1044, %v1050
    %v1061 = vsub.f32 %v1045, %v1053
    %v1062 = vsub.f32 %v1046, %v1056
    %v1063 = vsub.f32 %v1047, %v1059
    %v1064 = vmul.f32 %v1060, 1.442695
    %v1065 = vpow.pop %v1064
    %v1066 = vmul.f32 %v1061, 1.442695
    %v1067 = vpow.pop %v1066
    %v1068 = vmul.f32 %v1062, 1.442695
    %v1069 = vpow.pop %v1068
    %v1070 = vmul.f32 %v1063, 1.442695
    %v1071 = vpow.pop %v1070
    %v1072 = vsel %vm761, %v1065, 0.0
    %1073 = vadd.xlane.f32.xlu0 %v1072
    %v1074 = vpop.xlane.xlu0 %1073
    %v1075 = vsel %vm761, %v1067, 0.0
    %1076 = vadd.xlane.f32.xlu0 %v1075
    %v1077 = vpop.xlane.xlu0 %1076
    %v1078 = vsel %vm761, %v1069, 0.0
    %1079 = vadd.xlane.f32.xlu0 %v1078
    %v1080 = vpop.xlane.xlu0 %1079
    %v1081 = vsel %vm761, %v1071, 0.0
    %1082 = vadd.xlane.f32.xlu0 %v1081
    %v1083 = vpop.xlane.xlu0 %1082
    %v1084 = vrcp.pop %v1074
    %v1085 = vrcp.pop %v1077
    %v1086 = vrcp.pop %v1080
    %v1087 = vrcp.pop %v1083
    %v1088 = vmul.f32 %v1065, %v1084
    %v1089 = vmul.f32 %v1067, %v1085
    %v1090 = vmul.f32 %v1069, %v1086
    %v1091 = vmul.f32 %v1071, %v1087
    %1100 = vrot.lane.b32.xlu0 %v593, 120
    %v1101 = vpop.permute.xlu0 %1100
    %1102 = vrot.lane.b32.xlu0 %v598, 120
    %v1103 = vpop.permute.xlu0 %1102
    %1104 = vrot.lane.b32.xlu0 %v603, 120
    %v1105 = vpop.permute.xlu0 %1104
    %1106 = vrot.lane.b32.xlu0 %v608, 120
    %v1107 = vpop.permute.xlu0 %1106
    %1108 = vrot.lane.b32.xlu0 %v613, 120
    %v1109 = vpop.permute.xlu0 %1108
    %1110 = vrot.lane.b32.xlu0 %v618, 120
    %v1111 = vpop.permute.xlu0 %1110
    %1112 = vrot.lane.b32.xlu0 %v623, 120
    %v1113 = vpop.permute.xlu0 %1112
    %1114 = vrot.lane.b32.xlu0 %v628, 120
    %v1115 = vpop.permute.xlu0 %1114
    %v1125 = vsel %vm761, %v1088, 0
    %v1128 = vsel %vm761, %v1089, 0
    %v1131 = vsel %vm761, %v1090, 0
    %v1134 = vsel %vm761, %v1091, 0
    %1136 = vmatprep.subr.mxu0 0.0
    %1137 = vmatpush1.msra.mxu0 %v1101
    %1138 = vmatprep.subr.mxu0 0.0
    %1139 = vmatpush1.msra.mxu0 %v1103
    %1140 = vmatprep.subr.mxu0 0.0
    %1141 = vmatpush1.msra.mxu0 %v1105
    %1142 = vmatprep.subr.mxu0 0.0
    %1143 = vmatpush1.msra.mxu0 %v1107
    %1144 = vmatprep.subr.mxu0 0.0
    %1145 = vmatpush1.msra.mxu0 %v1109
    %1146 = vmatprep.subr.mxu0 0.0
    %1147 = vmatpush1.msra.mxu0 %v1111
    %1148 = vmatprep.subr.mxu0 0.0
    %1149 = vmatpush1.msra.mxu0 %v1113
    %1150 = vmatprep.subr.mxu0 0.0
    %1151 = vmatpush1.msra.mxu0 %v1115
    %1152 = vmatprep.subr.mxu0 0.0
    %1153 = vmatpush1.msra.mxu0 0.0
    %1154 = vmatprep.subr.mxu0 0.0
    %1155 = vmatpush1.msra.mxu0 0.0
    %1156 = vmatprep.subr.mxu0 0.0
    %1157 = vmatpush1.msra.mxu0 0.0
    %1158 = vmatprep.subr.mxu0 0.0
    %1159 = vmatpush1.msra.mxu0 0.0
    %1160 = vmatprep.subr.mxu0 0.0
    %1161 = vmatpush1.msra.mxu0 0.0
    %1162 = vmatprep.subr.mxu0 0.0
    %1163 = vmatpush1.msra.mxu0 0.0
    %1164 = vmatprep.subr.mxu0 0.0
    %1165 = vmatpush1.msra.mxu0 0.0
    %1166 = vmatprep.subr.mxu0 0.0
    %1167 = vmatpush1.msra.mxu0 0.0
    %1168 = vmatprep.subr.mxu0 0.0
    %1169 = vmatpush1.msra.mxu0 0.0
    %1170 = vmatprep.subr.mxu0 0.0
    %1171 = vmatpush1.msra.mxu0 0.0
    %1172 = vmatprep.subr.mxu0 0.0
    %1173 = vmatpush1.msra.mxu0 0.0
    %1174 = vmatprep.subr.mxu0 0.0
    %1175 = vmatpush1.msra.mxu0 0.0
    %1176 = vmatprep.subr.mxu0 0.0
    %1177 = vmatpush1.msra.mxu0 0.0
    %1178 = vmatprep.subr.mxu0 0.0
    %1179 = vmatpush1.msra.mxu0 0.0
    %1180 = vmatprep.subr.mxu0 0.0
    %1181 = vmatpush1.msra.mxu0 0.0
    %1182 = vmatprep.subr.mxu0 0.0
    %1183 = vmatpush1.msra.mxu0 0.0
    %1184 = vmatprep.subr.mxu0 0.0
    %1185 = vmatpush1.msra.mxu0 0.0
    %1186 = vmatprep.subr.mxu0 0.0
    %1187 = vmatpush1.msra.mxu0 0.0
    %1188 = vmatprep.subr.mxu0 0.0
    %1189 = vmatpush1.msra.mxu0 0.0
    %1190 = vmatprep.subr.mxu0 0.0
    %1191 = vmatpush1.msra.mxu0 0.0
    %1192 = vmatprep.subr.mxu0 0.0
    %1193 = vmatpush1.msra.mxu0 0.0
    %1194 = vmatprep.subr.mxu0 0.0
    %1195 = vmatpush1.msra.mxu0 0.0
    %1196 = vmatprep.subr.mxu0 0.0
    %1197 = vmatpush1.msra.mxu0 0.0
    %1198 = vmatprep.subr.mxu0 0.0
    %1199 = vmatpush1.msra.mxu0 0.0
    %1200 = vmatprep.mubr.f32.mxu0 0.0
    %1201 = vmatmul.mubr.f32.gmra.mrb[0].mxu0 %v1125
    %v1202 = vpop.f32.mrb[0].mxu0
    %v1203 = vadd.f32 0.0, %v1202
    %v1204 = vpop.f32.mrb[0].mxu0
    %1205 = vmatprep.mubr.f32.mxu0 0.0
    %1206 = vmatmul.mubr.f32.gmra.mrb[0].mxu0 %v1128
    %v1207 = vpop.f32.mrb[0].mxu0
    %v1208 = vadd.f32 0.0, %v1207
    %v1209 = vpop.f32.mrb[0].mxu0
    %1210 = vmatprep.mubr.f32.mxu0 0.0
    %1211 = vmatmul.mubr.f32.gmra.mrb[0].mxu0 %v1131
    %v1212 = vpop.f32.mrb[0].mxu0
    %v1213 = vadd.f32 0.0, %v1212
    %v1214 = vpop.f32.mrb[0].mxu0
    %1215 = vmatprep.mubr.f32.mxu0 0.0
    %1216 = vmatmul.mubr.f32.gmra.mrb[0].mxu0 %v1134
    %v1217 = vpop.f32.mrb[0].mxu0
    %v1218 = vadd.f32 0.0, %v1217
    %v1219 = vpop.f32.mrb[0].mxu0
    %1220 = vdwg.mxu0
    %1225 = vrot.lane.b32.xlu0 %v1203, 8
    %v1226 = vpop.permute.xlu0 %1225
    %1227 = vrot.lane.b32.xlu0 %v1208, 8
    %v1228 = vpop.permute.xlu0 %1227
    %1229 = vrot.lane.b32.xlu0 %v1213, 8
    %v1230 = vpop.permute.xlu0 %1229
    %1231 = vrot.lane.b32.xlu0 %v1218, 8
    %v1232 = vpop.permute.xlu0 %1231
    %vm1237 = vcmask 130112
    %1238 = vst.msk [vmem:[#allocation2] sm:$0xff] %vm1237, %v1226
    %1239 = vst.msk [vmem:[#allocation2 + $0x8] sm:$0xff] %vm1237, %v1228
    %1240 = vst.msk [vmem:[#allocation2 + $0x10] sm:$0xff] %vm1237, %v1230
    %1241 = vst.msk [vmem:[#allocation2 + $0x18] sm:$0xff] %vm1237, %v1232
    %1242 = vrot.lane.b32.xlu0 %v352, 112
    %v1243 = vpop.permute.xlu0 %1242
    %1244 = vrot.lane.b32.xlu0 %v357, 112
    %v1245 = vpop.permute.xlu0 %1244
    %1246 = vrot.lane.b32.xlu0 %v362, 112
    %v1247 = vpop.permute.xlu0 %1246
    %1248 = vrot.lane.b32.xlu0 %v367, 112
    %v1249 = vpop.permute.xlu0 %1248
    %1250 = vrot.lane.b32.xlu0 %v475, 112
    %v1251 = vpop.permute.xlu0 %1250
    %1252 = vrot.lane.b32.xlu0 %v480, 112
    %v1253 = vpop.permute.xlu0 %1252
    %1254 = vrot.lane.b32.xlu0 %v485, 112
    %v1255 = vpop.permute.xlu0 %1254
    %1256 = vrot.lane.b32.xlu0 %v490, 112
    %v1257 = vpop.permute.xlu0 %1256
    %1258 = vrot.lane.b32.xlu0 %v495, 112
    %v1259 = vpop.permute.xlu0 %1258
    %1260 = vrot.lane.b32.xlu0 %v500, 112
    %v1261 = vpop.permute.xlu0 %1260
    %1262 = vrot.lane.b32.xlu0 %v505, 112
    %v1263 = vpop.permute.xlu0 %1262
    %1264 = vrot.lane.b32.xlu0 %v510, 112
    %v1265 = vpop.permute.xlu0 %1264
    %v1266 = vsel %vm631, %v1243, 0
    %v1268 = vsel %vm631, %v1245, 0
    %v1270 = vsel %vm631, %v1247, 0
    %v1272 = vsel %vm631, %v1249, 0
    %v1274 = vsel %vm631, %v1251, 0
    %v1276 = vsel %vm631, %v1253, 0
    %v1278 = vsel %vm631, %v1255, 0
    %v1280 = vsel %vm631, %v1257, 0
    %v1282 = vsel %vm631, %v1259, 0
    %v1284 = vsel %vm631, %v1261, 0
    %v1286 = vsel %vm631, %v1263, 0
    %v1288 = vsel %vm631, %v1265, 0
    %1290 = vmatprep.subr.mxu0 0.0
    %1291 = vmatpush1.xpose.msra.mxu0 %v1274
    %1292 = vmatprep.subr.mxu0 0.0
    %1293 = vmatpush1.xpose.msra.mxu0 %v1276
    %1294 = vmatprep.subr.mxu0 0.0
    %1295 = vmatpush1.xpose.msra.mxu0 %v1278
    %1296 = vmatprep.subr.mxu0 0.0
    %1297 = vmatpush1.xpose.msra.mxu0 %v1280
    %1298 = vmatprep.subr.mxu0 0.0
    %1299 = vmatpush1.xpose.msra.mxu0 %v1282
    %1300 = vmatprep.subr.mxu0 0.0
    %1301 = vmatpush1.xpose.msra.mxu0 %v1284
    %1302 = vmatprep.subr.mxu0 0.0
    %1303 = vmatpush1.xpose.msra.mxu0 %v1286
    %1304 = vmatprep.subr.mxu0 0.0
    %1305 = vmatpush1.xpose.msra.mxu0 %v1288
    %1306 = vmatprep.subr.mxu0 0.0
    %1307 = vmatpush1.xpose.msra.mxu0 0.0
    %1308 = vmatprep.subr.mxu0 0.0
    %1309 = vmatpush1.xpose.msra.mxu0 0.0
    %1310 = vmatprep.subr.mxu0 0.0
    %1311 = vmatpush1.xpose.msra.mxu0 0.0
    %1312 = vmatprep.subr.mxu0 0.0
    %1313 = vmatpush1.xpose.msra.mxu0 0.0
    %1314 = vmatprep.subr.mxu0 0.0
    %1315 = vmatpush1.xpose.msra.mxu0 0.0
    %1316 = vmatprep.subr.mxu0 0.0
    %1317 = vmatpush1.xpose.msra.mxu0 0.0
    %1318 = vmatprep.subr.mxu0 0.0
    %1319 = vmatpush1.xpose.msra.mxu0 0.0
    %1320 = vmatprep.subr.mxu0 0.0
    %1321 = vmatpush1.xpose.msra.mxu0 0.0
    %1322 = vmatprep.subr.mxu0 0.0
    %1323 = vmatpush1.xpose.msra.mxu0 0.0
    %1324 = vmatprep.subr.mxu0 0.0
    %1325 = vmatpush1.xpose.msra.mxu0 0.0
    %1326 = vmatprep.subr.mxu0 0.0
    %1327 = vmatpush1.xpose.msra.mxu0 0.0
    %1328 = vmatprep.subr.mxu0 0.0
    %1329 = vmatpush1.xpose.msra.mxu0 0.0
    %1330 = vmatprep.subr.mxu0 0.0
    %1331 = vmatpush1.xpose.msra.mxu0 0.0
    %1332 = vmatprep.subr.mxu0 0.0
    %1333 = vmatpush1.xpose.msra.mxu0 0.0
    %1334 = vmatprep.subr.mxu0 0.0
    %1335 = vmatpush1.xpose.msra.mxu0 0.0
    %1336 = vmatprep.subr.mxu0 0.0
    %1337 = vmatpush1.xpose.msra.mxu0 0.0
    %1338 = vmatprep.subr.mxu0 0.0
    %1339 = vmatpush1.xpose.msra.mxu0 0.0
    %1340 = vmatprep.subr.mxu0 0.0
    %1341 = vmatpush1.xpose.msra.mxu0 0.0
    %1342 = vmatprep.subr.mxu0 0.0
    %1343 = vmatpush1.xpose.msra.mxu0 0.0
    %1344 = vmatprep.subr.mxu0 0.0
    %1345 = vmatpush1.xpose.msra.mxu0 0.0
    %1346 = vmatprep.subr.mxu0 0.0
    %1347 = vmatpush1.xpose.msra.mxu0 0.0
    %1348 = vmatprep.subr.mxu0 0.0
    %1349 = vmatpush1.xpose.msra.mxu0 0.0
    %1350 = vmatprep.subr.mxu0 0.0
    %1351 = vmatpush1.xpose.msra.mxu0 0.0
    %1352 = vmatprep.subr.mxu0 0.0
    %1353 = vmatpush1.xpose.msra.mxu0 0.0
    %1354 = vmatprep.mubr.f32.mxu0 0.0
    %1355 = vmatmul.mubr.f32.gmra.mrb[0].mxu0 %v1266
    %v1356 = vpop.f32.mrb[0].mxu0
    %v1357 = vadd.f32 0.0, %v1356
    %v1358 = vpop.f32.mrb[0].mxu0
    %1359 = vmatprep.mubr.f32.mxu0 0.0
    %1360 = vmatmul.mubr.f32.gmra.mrb[0].mxu0 %v1268
    %v1361 = vpop.f32.mrb[0].mxu0
    %v1362 = vadd.f32 0.0, %v1361
    %v1363 = vpop.f32.mrb[0].mxu0
    %1364 = vmatprep.mubr.f32.mxu0 0.0
    %1365 = vmatmul.mubr.f32.gmra.mrb[0].mxu0 %v1270
    %v1366 = vpop.f32.mrb[0].mxu0
    %v1367 = vadd.f32 0.0, %v1366
    %v1368 = vpop.f32.mrb[0].mxu0
    %1369 = vmatprep.mubr.f32.mxu0 0.0
    %1370 = vmatmul.mubr.f32.gmra.mrb[0].mxu0 %v1272
    %v1371 = vpop.f32.mrb[0].mxu0
    %v1372 = vadd.f32 0.0, %v1371
    %v1373 = vpop.f32.mrb[0].mxu0
    %1374 = vdwg.mxu0
    %v1375 = vmul.f32 %v1357, 0.35355338
    %v1376 = vmul.f32 %v1362, 0.35355338
    %v1377 = vmul.f32 %v1367, 0.35355338
    %v1378 = vmul.f32 %v1372, 0.35355338
    %v1379 = vadd.f32 %v1375, %v209
    %v1380 = vadd.f32 %v1376, %v210
    %v1381 = vadd.f32 %v1377, %v211
    %v1382 = vadd.f32 %v1378, %v212
    %v1383 = vsel %vm761, %v1379, -inf
    %1384 = vmax.xlane.f32.xlu0 %v1383
    %v1385 = vpop.xlane.xlu0 %1384
    %v1386 = vsel %vm761, %v1380, -inf
    %1387 = vmax.xlane.f32.xlu0 %v1386
    %v1388 = vpop.xlane.xlu0 %1387
    %v1389 = vsel %vm761, %v1381, -inf
    %1390 = vmax.xlane.f32.xlu0 %v1389
    %v1391 = vpop.xlane.xlu0 %1390
    %v1392 = vsel %vm761, %v1382, -inf
    %1393 = vmax.xlane.f32.xlu0 %v1392
    %v1394 = vpop.xlane.xlu0 %1393
    %v1395 = vsub.f32 %v1379, %v1385
    %v1396 = vsub.f32 %v1380, %v1388
    %v1397 = vsub.f32 %v1381, %v1391
    %v1398 = vsub.f32 %v1382, %v1394
    %v1399 = vmul.f32 %v1395, 1.442695
    %v1400 = vpow.pop %v1399
    %v1401 = vmul.f32 %v1396, 1.442695
    %v1402 = vpow.pop %v1401
    %v1403 = vmul.f32 %v1397, 1.442695
    %v1404 = vpow.pop %v1403
    %v1405 = vmul.f32 %v1398, 1.442695
    %v1406 = vpow.pop %v1405
    %v1407 = vsel %vm761, %v1400, 0.0
    %1408 = vadd.xlane.f32.xlu0 %v1407
    %v1409 = vpop.xlane.xlu0 %1408
    %v1410 = vsel %vm761, %v1402, 0.0
    %1411 = vadd.xlane.f32.xlu0 %v1410
    %v1412 = vpop.xlane.xlu0 %1411
    %v1413 = vsel %vm761, %v1404, 0.0
    %1414 = vadd.xlane.f32.xlu0 %v1413
    %v1415 = vpop.xlane.xlu0 %1414
    %v1416 = vsel %vm761, %v1406, 0.0
    %1417 = vadd.xlane.f32.xlu0 %v1416
    %v1418 = vpop.xlane.xlu0 %1417
    %v1419 = vrcp.pop %v1409
    %v1420 = vrcp.pop %v1412
    %v1421 = vrcp.pop %v1415
    %v1422 = vrcp.pop %v1418
    %v1423 = vmul.f32 %v1400, %v1419
    %v1424 = vmul.f32 %v1402, %v1420
    %v1425 = vmul.f32 %v1404, %v1421
    %v1426 = vmul.f32 %v1406, %v1422
    %1427 = vrot.lane.b32.xlu0 %v593, 112
    %v1428 = vpop.permute.xlu0 %1427
    %1429 = vrot.lane.b32.xlu0 %v598, 112
    %v1430 = vpop.permute.xlu0 %1429
    %1431 = vrot.lane.b32.xlu0 %v603, 112
    %v1432 = vpop.permute.xlu0 %1431
    %1433 = vrot.lane.b32.xlu0 %v608, 112
    %v1434 = vpop.permute.xlu0 %1433
    %1435 = vrot.lane.b32.xlu0 %v613, 112
    %v1436 = vpop.permute.xlu0 %1435
    %1437 = vrot.lane.b32.xlu0 %v618, 112
    %v1438 = vpop.permute.xlu0 %1437
    %1439 = vrot.lane.b32.xlu0 %v623, 112
    %v1440 = vpop.permute.xlu0 %1439
    %1441 = vrot.lane.b32.xlu0 %v628, 112
    %v1442 = vpop.permute.xlu0 %1441
    %v1452 = vsel %vm761, %v1423, 0
    %v1455 = vsel %vm761, %v1424, 0
    %v1458 = vsel %vm761, %v1425, 0
    %v1461 = vsel %vm761, %v1426, 0
    %1463 = vmatprep.subr.mxu0 0.0
    %1464 = vmatpush1.msra.mxu0 %v1428
    %1465 = vmatprep.subr.mxu0 0.0
    %1466 = vmatpush1.msra.mxu0 %v1430
    %1467 = vmatprep.subr.mxu0 0.0
    %1468 = vmatpush1.msra.mxu0 %v1432
    %1469 = vmatprep.subr.mxu0 0.0
    %1470 = vmatpush1.msra.mxu0 %v1434
    %1471 = vmatprep.subr.mxu0 0.0
    %1472 = vmatpush1.msra.mxu0 %v1436
    %1473 = vmatprep.subr.mxu0 0.0
    %1474 = vmatpush1.msra.mxu0 %v1438
    %1475 = vmatprep.subr.mxu0 0.0
    %1476 = vmatpush1.msra.mxu0 %v1440
    %1477 = vmatprep.subr.mxu0 0.0
    %1478 = vmatpush1.msra.mxu0 %v1442
    %1479 = vmatprep.subr.mxu0 0.0
    %1480 = vmatpush1.msra.mxu0 0.0
    %1481 = vmatprep.subr.mxu0 0.0
    %1482 = vmatpush1.msra.mxu0 0.0
    %1483 = vmatprep.subr.mxu0 0.0
    %1484 = vmatpush1.msra.mxu0 0.0
    %1485 = vmatprep.subr.mxu0 0.0
    %1486 = vmatpush1.msra.mxu0 0.0
    %1487 = vmatprep.subr.mxu0 0.0
    %1488 = vmatpush1.msra.mxu0 0.0
    %1489 = vmatprep.subr.mxu0 0.0
    %1490 = vmatpush1.msra.mxu0 0.0
    %1491 = vmatprep.subr.mxu0 0.0
    %1492 = vmatpush1.msra.mxu0 0.0
    %1493 = vmatprep.subr.mxu0 0.0
    %1494 = vmatpush1.msra.mxu0 0.0
    %1495 = vmatprep.subr.mxu0 0.0
    %1496 = vmatpush1.msra.mxu0 0.0
    %1497 = vmatprep.subr.mxu0 0.0
    %1498 = vmatpush1.msra.mxu0 0.0
    %1499 = vmatprep.subr.mxu0 0.0
    %1500 = vmatpush1.msra.mxu0 0.0
    %1501 = vmatprep.subr.mxu0 0.0
    %1502 = vmatpush1.msra.mxu0 0.0
    %1503 = vmatprep.subr.mxu0 0.0
    %1504 = vmatpush1.msra.mxu0 0.0
    %1505 = vmatprep.subr.mxu0 0.0
    %1506 = vmatpush1.msra.mxu0 0.0
    %1507 = vmatprep.subr.mxu0 0.0
    %1508 = vmatpush1.msra.mxu0 0.0
    %1509 = vmatprep.subr.mxu0 0.0
    %1510 = vmatpush1.msra.mxu0 0.0
    %1511 = vmatprep.subr.mxu0 0.0
    %1512 = vmatpush1.msra.mxu0 0.0
    %1513 = vmatprep.subr.mxu0 0.0
    %1514 = vmatpush1.msra.mxu0 0.0
    %1515 = vmatprep.subr.mxu0 0.0
    %1516 = vmatpush1.msra.mxu0 0.0
    %1517 = vmatprep.subr.mxu0 0.0
    %1518 = vmatpush1.msra.mxu0 0.0
    %1519 = vmatprep.subr.mxu0 0.0
    %1520 = vmatpush1.msra.mxu0 0.0
    %1521 = vmatprep.subr.mxu0 0.0
    %1522 = vmatpush1.msra.mxu0 0.0
    %1523 = vmatprep.subr.mxu0 0.0
    %1524 = vmatpush1.msra.mxu0 0.0
    %1525 = vmatprep.subr.mxu0 0.0
    %1526 = vmatpush1.msra.mxu0 0.0
    %1527 = vmatprep.mubr.f32.mxu0 0.0
    %1528 = vmatmul.mubr.f32.gmra.mrb[0].mxu0 %v1452
    %v1529 = vpop.f32.mrb[0].mxu0
    %v1530 = vadd.f32 0.0, %v1529
    %v1531 = vpop.f32.mrb[0].mxu0
    %1532 = vmatprep.mubr.f32.mxu0 0.0
    %1533 = vmatmul.mubr.f32.gmra.mrb[0].mxu0 %v1455
    %v1534 = vpop.f32.mrb[0].mxu0
    %v1535 = vadd.f32 0.0, %v1534
    %v1536 = vpop.f32.mrb[0].mxu0
    %1537 = vmatprep.mubr.f32.mxu0 0.0
    %1538 = vmatmul.mubr.f32.gmra.mrb[0].mxu0 %v1458
    %v1539 = vpop.f32.mrb[0].mxu0
    %v1540 = vadd.f32 0.0, %v1539
    %v1541 = vpop.f32.mrb[0].mxu0
    %1542 = vmatprep.mubr.f32.mxu0 0.0
    %1543 = vmatmul.mubr.f32.gmra.mrb[0].mxu0 %v1461
    %v1544 = vpop.f32.mrb[0].mxu0
    %v1545 = vadd.f32 0.0, %v1544
    %v1546 = vpop.f32.mrb[0].mxu0
    %1547 = vdwg.mxu0
    %1552 = vrot.lane.b32.xlu0 %v1530, 16
    %v1553 = vpop.permute.xlu0 %1552
    %1554 = vrot.lane.b32.xlu0 %v1535, 16
    %v1555 = vpop.permute.xlu0 %1554
    %1556 = vrot.lane.b32.xlu0 %v1540, 16
    %v1557 = vpop.permute.xlu0 %1556
    %1558 = vrot.lane.b32.xlu0 %v1545, 16
    %v1559 = vpop.permute.xlu0 %1558
    %vm1564 = vcmask 195712
    %1565 = vst.msk [vmem:[#allocation2] sm:$0xff] %vm1564, %v1553
    %1566 = vst.msk [vmem:[#allocation2 + $0x8] sm:$0xff] %vm1564, %v1555
    %1567 = vst.msk [vmem:[#allocation2 + $0x10] sm:$0xff] %vm1564, %v1557
    %1568 = vst.msk [vmem:[#allocation2 + $0x18] sm:$0xff] %vm1564, %v1559
    %1569 = vrot.lane.b32.xlu0 %v352, 104
    %v1570 = vpop.permute.xlu0 %1569
    %1571 = vrot.lane.b32.xlu0 %v357, 104
    %v1572 = vpop.permute.xlu0 %1571
    %1573 = vrot.lane.b32.xlu0 %v362, 104
    %v1574 = vpop.permute.xlu0 %1573
    %1575 = vrot.lane.b32.xlu0 %v367, 104
    %v1576 = vpop.permute.xlu0 %1575
    %1577 = vrot.lane.b32.xlu0 %v475, 104
    %v1578 = vpop.permute.xlu0 %1577
    %1579 = vrot.lane.b32.xlu0 %v480, 104
    %v1580 = vpop.permute.xlu0 %1579
    %1581 = vrot.lane.b32.xlu0 %v485, 104
    %v1582 = vpop.permute.xlu0 %1581
    %1583 = vrot.lane.b32.xlu0 %v490, 104
    %v1584 = vpop.permute.xlu0 %1583
    %1585 = vrot.lane.b32.xlu0 %v495, 104
    %v1586 = vpop.permute.xlu0 %1585
    %1587 = vrot.lane.b32.xlu0 %v500, 104
    %v1588 = vpop.permute.xlu0 %1587
    %1589 = vrot.lane.b32.xlu0 %v505, 104
    %v1590 = vpop.permute.xlu0 %1589
    %1591 = vrot.lane.b32.xlu0 %v510, 104
    %v1592 = vpop.permute.xlu0 %1591
    %v1593 = vsel %vm631, %v1570, 0
    %v1595 = vsel %vm631, %v1572, 0
    %v1597 = vsel %vm631, %v1574, 0
    %v1599 = vsel %vm631, %v1576, 0
    %v1601 = vsel %vm631, %v1578, 0
    %v1603 = vsel %vm631, %v1580, 0
    %v1605 = vsel %vm631, %v1582, 0
    %v1607 = vsel %vm631, %v1584, 0
    %v1609 = vsel %vm631, %v1586, 0
    %v1611 = vsel %vm631, %v1588, 0
    %v1613 = vsel %vm631, %v1590, 0
    %v1615 = vsel %vm631, %v1592, 0
    %1617 = vmatprep.subr.mxu0 0.0
    %1618 = vmatpush1.xpose.msra.mxu0 %v1601
    %1619 = vmatprep.subr.mxu0 0.0
    %1620 = vmatpush1.xpose.msra.mxu0 %v1603
    %1621 = vmatprep.subr.mxu0 0.0
    %1622 = vmatpush1.xpose.msra.mxu0 %v1605
    %1623 = vmatprep.subr.mxu0 0.0
    %1624 = vmatpush1.xpose.msra.mxu0 %v1607
    %1625 = vmatprep.subr.mxu0 0.0
    %1626 = vmatpush1.xpose.msra.mxu0 %v1609
    %1627 = vmatprep.subr.mxu0 0.0
    %1628 = vmatpush1.xpose.msra.mxu0 %v1611
    %1629 = vmatprep.subr.mxu0 0.0
    %1630 = vmatpush1.xpose.msra.mxu0 %v1613
    %1631 = vmatprep.subr.mxu0 0.0
    %1632 = vmatpush1.xpose.msra.mxu0 %v1615
    %1633 = vmatprep.subr.mxu0 0.0
    %1634 = vmatpush1.xpose.msra.mxu0 0.0
    %1635 = vmatprep.subr.mxu0 0.0
    %1636 = vmatpush1.xpose.msra.mxu0 0.0
    %1637 = vmatprep.subr.mxu0 0.0
    %1638 = vmatpush1.xpose.msra.mxu0 0.0
    %1639 = vmatprep.subr.mxu0 0.0
    %1640 = vmatpush1.xpose.msra.mxu0 0.0
    %1641 = vmatprep.subr.mxu0 0.0
    %1642 = vmatpush1.xpose.msra.mxu0 0.0
    %1643 = vmatprep.subr.mxu0 0.0
    %1644 = vmatpush1.xpose.msra.mxu0 0.0
    %1645 = vmatprep.subr.mxu0 0.0
    %1646 = vmatpush1.xpose.msra.mxu0 0.0
    %1647 = vmatprep.subr.mxu0 0.0
    %1648 = vmatpush1.xpose.msra.mxu0 0.0
    %1649 = vmatprep.subr.mxu0 0.0
    %1650 = vmatpush1.xpose.msra.mxu0 0.0
    %1651 = vmatprep.subr.mxu0 0.0
    %1652 = vmatpush1.xpose.msra.mxu0 0.0
    %1653 = vmatprep.subr.mxu0 0.0
    %1654 = vmatpush1.xpose.msra.mxu0 0.0
    %1655 = vmatprep.subr.mxu0 0.0
    %1656 = vmatpush1.xpose.msra.mxu0 0.0
    %1657 = vmatprep.subr.mxu0 0.0
    %1658 = vmatpush1.xpose.msra.mxu0 0.0
    %1659 = vmatprep.subr.mxu0 0.0
    %1660 = vmatpush1.xpose.msra.mxu0 0.0
    %1661 = vmatprep.subr.mxu0 0.0
    %1662 = vmatpush1.xpose.msra.mxu0 0.0
    %1663 = vmatprep.subr.mxu0 0.0
    %1664 = vmatpush1.xpose.msra.mxu0 0.0
    %1665 = vmatprep.subr.mxu0 0.0
    %1666 = vmatpush1.xpose.msra.mxu0 0.0
    %1667 = vmatprep.subr.mxu0 0.0
    %1668 = vmatpush1.xpose.msra.mxu0 0.0
    %1669 = vmatprep.subr.mxu0 0.0
    %1670 = vmatpush1.xpose.msra.mxu0 0.0
    %1671 = vmatprep.subr.mxu0 0.0
    %1672 = vmatpush1.xpose.msra.mxu0 0.0
    %1673 = vmatprep.subr.mxu0 0.0
    %1674 = vmatpush1.xpose.msra.mxu0 0.0
    %1675 = vmatprep.subr.mxu0 0.0
    %1676 = vmatpush1.xpose.msra.mxu0 0.0
    %1677 = vmatprep.subr.mxu0 0.0
    %1678 = vmatpush1.xpose.msra.mxu0 0.0
    %1679 = vmatprep.subr.mxu0 0.0
    %1680 = vmatpush1.xpose.msra.mxu0 0.0
    %1681 = vmatprep.mubr.f32.mxu0 0.0
    %1682 = vmatmul.mubr.f32.gmra.mrb[0].mxu0 %v1593
    %v1683 = vpop.f32.mrb[0].mxu0
    %v1684 = vadd.f32 0.0, %v1683
    %v1685 = vpop.f32.mrb[0].mxu0
    %1686 = vmatprep.mubr.f32.mxu0 0.0
    %1687 = vmatmul.mubr.f32.gmra.mrb[0].mxu0 %v1595
    %v1688 = vpop.f32.mrb[0].mxu0
    %v1689 = vadd.f32 0.0, %v1688
    %v1690 = vpop.f32.mrb[0].mxu0
    %1691 = vmatprep.mubr.f32.mxu0 0.0
    %1692 = vmatmul.mubr.f32.gmra.mrb[0].mxu0 %v1597
    %v1693 = vpop.f32.mrb[0].mxu0
    %v1694 = vadd.f32 0.0, %v1693
    %v1695 = vpop.f32.mrb[0].mxu0
    %1696 = vmatprep.mubr.f32.mxu0 0.0
    %1697 = vmatmul.mubr.f32.gmra.mrb[0].mxu0 %v1599
    %v1698 = vpop.f32.mrb[0].mxu0
    %v1699 = vadd.f32 0.0, %v1698
    %v1700 = vpop.f32.mrb[0].mxu0
    %1701 = vdwg.mxu0
    %v1702 = vmul.f32 %v1684, 0.35355338
    %v1703 = vmul.f32 %v1689, 0.35355338
    %v1704 = vmul.f32 %v1694, 0.35355338
    %v1705 = vmul.f32 %v1699, 0.35355338
    %v1706 = vadd.f32 %v1702, %v209
    %v1707 = vadd.f32 %v1703, %v210
    %v1708 = vadd.f32 %v1704, %v211
    %v1709 = vadd.f32 %v1705, %v212
    %v1710 = vsel %vm761, %v1706, -inf
    %1711 = vmax.xlane.f32.xlu0 %v1710
    %v1712 = vpop.xlane.xlu0 %1711
    %v1713 = vsel %vm761, %v1707, -inf
    %1714 = vmax.xlane.f32.xlu0 %v1713
    %v1715 = vpop.xlane.xlu0 %1714
    %v1716 = vsel %vm761, %v1708, -inf
    %1717 = vmax.xlane.f32.xlu0 %v1716
    %v1718 = vpop.xlane.xlu0 %1717
    %v1719 = vsel %vm761, %v1709, -inf
    %1720 = vmax.xlane.f32.xlu0 %v1719
    %v1721 = vpop.xlane.xlu0 %1720
    %v1722 = vsub.f32 %v1706, %v1712
    %v1723 = vsub.f32 %v1707, %v1715
    %v1724 = vsub.f32 %v1708, %v1718
    %v1725 = vsub.f32 %v1709, %v1721
    %v1726 = vmul.f32 %v1722, 1.442695
    %v1727 = vpow.pop %v1726
    %v1728 = vmul.f32 %v1723, 1.442695
    %v1729 = vpow.pop %v1728
    %v1730 = vmul.f32 %v1724, 1.442695
    %v1731 = vpow.pop %v1730
    %v1732 = vmul.f32 %v1725, 1.442695
    %v1733 = vpow.pop %v1732
    %v1734 = vsel %vm761, %v1727, 0.0
    %1735 = vadd.xlane.f32.xlu0 %v1734
    %v1736 = vpop.xlane.xlu0 %1735
    %v1737 = vsel %vm761, %v1729, 0.0
    %1738 = vadd.xlane.f32.xlu0 %v1737
    %v1739 = vpop.xlane.xlu0 %1738
    %v1740 = vsel %vm761, %v1731, 0.0
    %1741 = vadd.xlane.f32.xlu0 %v1740
    %v1742 = vpop.xlane.xlu0 %1741
    %v1743 = vsel %vm761, %v1733, 0.0
    %1744 = vadd.xlane.f32.xlu0 %v1743
    %v1745 = vpop.xlane.xlu0 %1744
    %v1746 = vrcp.pop %v1736
    %v1747 = vrcp.pop %v1739
    %v1748 = vrcp.pop %v1742
    %v1749 = vrcp.pop %v1745
    %v1750 = vmul.f32 %v1727, %v1746
    %v1751 = vmul.f32 %v1729, %v1747
    %v1752 = vmul.f32 %v1731, %v1748
    %v1753 = vmul.f32 %v1733, %v1749
    %1754 = vrot.lane.b32.xlu0 %v593, 104
    %v1755 = vpop.permute.xlu0 %1754
    %1756 = vrot.lane.b32.xlu0 %v598, 104
    %v1757 = vpop.permute.xlu0 %1756
    %1758 = vrot.lane.b32.xlu0 %v603, 104
    %v1759 = vpop.permute.xlu0 %1758
    %1760 = vrot.lane.b32.xlu0 %v608, 104
    %v1761 = vpop.permute.xlu0 %1760
    %1762 = vrot.lane.b32.xlu0 %v613, 104
    %v1763 = vpop.permute.xlu0 %1762
    %1764 = vrot.lane.b32.xlu0 %v618, 104
    %v1765 = vpop.permute.xlu0 %1764
    %1766 = vrot.lane.b32.xlu0 %v623, 104
    %v1767 = vpop.permute.xlu0 %1766
    %1768 = vrot.lane.b32.xlu0 %v628, 104
    %v1769 = vpop.permute.xlu0 %1768
    %v1779 = vsel %vm761, %v1750, 0
    %v1782 = vsel %vm761, %v1751, 0
    %v1785 = vsel %vm761, %v1752, 0
    %v1788 = vsel %vm761, %v1753, 0
    %1790 = vmatprep.subr.mxu0 0.0
    %1791 = vmatpush1.msra.mxu0 %v1755
    %1792 = vmatprep.subr.mxu0 0.0
    %1793 = vmatpush1.msra.mxu0 %v1757
    %1794 = vmatprep.subr.mxu0 0.0
    %1795 = vmatpush1.msra.mxu0 %v1759
    %1796 = vmatprep.subr.mxu0 0.0
    %1797 = vmatpush1.msra.mxu0 %v1761
    %1798 = vmatprep.subr.mxu0 0.0
    %1799 = vmatpush1.msra.mxu0 %v1763
    %1800 = vmatprep.subr.mxu0 0.0
    %1801 = vmatpush1.msra.mxu0 %v1765
    %1802 = vmatprep.subr.mxu0 0.0
    %1803 = vmatpush1.msra.mxu0 %v1767
    %1804 = vmatprep.subr.mxu0 0.0
    %1805 = vmatpush1.msra.mxu0 %v1769
    %1806 = vmatprep.subr.mxu0 0.0
    %1807 = vmatpush1.msra.mxu0 0.0
    %1808 = vmatprep.subr.mxu0 0.0
    %1809 = vmatpush1.msra.mxu0 0.0
    %1810 = vmatprep.subr.mxu0 0.0
    %1811 = vmatpush1.msra.mxu0 0.0
    %1812 = vmatprep.subr.mxu0 0.0
    %1813 = vmatpush1.msra.mxu0 0.0
    %1814 = vmatprep.subr.mxu0 0.0
    %1815 = vmatpush1.msra.mxu0 0.0
    %1816 = vmatprep.subr.mxu0 0.0
    %1817 = vmatpush1.msra.mxu0 0.0
    %1818 = vmatprep.subr.mxu0 0.0
    %1819 = vmatpush1.msra.mxu0 0.0
    %1820 = vmatprep.subr.mxu0 0.0
    %1821 = vmatpush1.msra.mxu0 0.0
    %1822 = vmatprep.subr.mxu0 0.0
    %1823 = vmatpush1.msra.mxu0 0.0
    %1824 = vmatprep.subr.mxu0 0.0
    %1825 = vmatpush1.msra.mxu0 0.0
    %1826 = vmatprep.subr.mxu0 0.0
    %1827 = vmatpush1.msra.mxu0 0.0
    %1828 = vmatprep.subr.mxu0 0.0
    %1829 = vmatpush1.msra.mxu0 0.0
    %1830 = vmatprep.subr.mxu0 0.0
    %1831 = vmatpush1.msra.mxu0 0.0
    %1832 = vmatprep.subr.mxu0 0.0
    %1833 = vmatpush1.msra.mxu0 0.0
    %1834 = vmatprep.subr.mxu0 0.0
    %1835 = vmatpush1.msra.mxu0 0.0
    %1836 = vmatprep.subr.mxu0 0.0
    %1837 = vmatpush1.msra.mxu0 0.0
    %1838 = vmatprep.subr.mxu0 0.0
    %1839 = vmatpush1.msra.mxu0 0.0
    %1840 = vmatprep.subr.mxu0 0.0
    %1841 = vmatpush1.msra.mxu0 0.0
    %1842 = vmatprep.subr.mxu0 0.0
    %1843 = vmatpush1.msra.mxu0 0.0
    %1844 = vmatprep.subr.mxu0 0.0
    %1845 = vmatpush1.msra.mxu0 0.0
    %1846 = vmatprep.subr.mxu0 0.0
    %1847 = vmatpush1.msra.mxu0 0.0
    %1848 = vmatprep.subr.mxu0 0.0
    %1849 = vmatpush1.msra.mxu0 0.0
    %1850 = vmatprep.subr.mxu0 0.0
    %1851 = vmatpush1.msra.mxu0 0.0
    %1852 = vmatprep.subr.mxu0 0.0
    %1853 = vmatpush1.msra.mxu0 0.0
    %1854 = vmatprep.mubr.f32.mxu0 0.0
    %1855 = vmatmul.mubr.f32.gmra.mrb[0].mxu0 %v1779
    %v1856 = vpop.f32.mrb[0].mxu0
    %v1857 = vadd.f32 0.0, %v1856
    %v1858 = vpop.f32.mrb[0].mxu0
    %1859 = vmatprep.mubr.f32.mxu0 0.0
    %1860 = vmatmul.mubr.f32.gmra.mrb[0].mxu0 %v1782
    %v1861 = vpop.f32.mrb[0].mxu0
    %v1862 = vadd.f32 0.0, %v1861
    %v1863 = vpop.f32.mrb[0].mxu0
    %1864 = vmatprep.mubr.f32.mxu0 0.0
    %1865 = vmatmul.mubr.f32.gmra.mrb[0].mxu0 %v1785
    %v1866 = vpop.f32.mrb[0].mxu0
    %v1867 = vadd.f32 0.0, %v1866
    %v1868 = vpop.f32.mrb[0].mxu0
    %1869 = vmatprep.mubr.f32.mxu0 0.0
    %1870 = vmatmul.mubr.f32.gmra.mrb[0].mxu0 %v1788
    %v1871 = vpop.f32.mrb[0].mxu0
    %v1872 = vadd.f32 0.0, %v1871
    %v1873 = vpop.f32.mrb[0].mxu0
    %1874 = vdwg.mxu0
    %1879 = vrot.lane.b32.xlu0 %v1857, 24
    %v1880 = vpop.permute.xlu0 %1879
    %1881 = vrot.lane.b32.xlu0 %v1862, 24
    %v1882 = vpop.permute.xlu0 %1881
    %1883 = vrot.lane.b32.xlu0 %v1867, 24
    %v1884 = vpop.permute.xlu0 %1883
    %1885 = vrot.lane.b32.xlu0 %v1872, 24
    %v1886 = vpop.permute.xlu0 %1885
    %vm1891 = vcmask 261312
    %1892 = vst.msk [vmem:[#allocation2] sm:$0xff] %vm1891, %v1880
    %1893 = vst.msk [vmem:[#allocation2 + $0x8] sm:$0xff] %vm1891, %v1882
    %1894 = vst.msk [vmem:[#allocation2 + $0x10] sm:$0xff] %vm1891, %v1884
    %1895 = vst.msk [vmem:[#allocation2 + $0x18] sm:$0xff] %vm1891, %v1886
    %v1896 = vld [vmem:[#allocation2] sm:$0xff]
    %v1897 = vld [vmem:[#allocation2 + $0x8] sm:$0xff]
    %v1898 = vld [vmem:[#allocation2 + $0x10] sm:$0xff]
    %v1899 = vld [vmem:[#allocation2 + $0x18] sm:$0xff]
    %v1900 = vld [vmem:[%s8] sm:$0xff]
    %v1901 = vld [vmem:[%s8 + $0x8] sm:$0xff]
    %v1902 = vld [vmem:[%s8 + $0x10] sm:$0xff]
    %v1903 = vld [vmem:[%s8 + $0x18] sm:$0xff]
    %v1904 = vld [vmem:[%s9] sm:$0x1]
    %v1906 = vlaneseq
    %v1907 = vshrl.u32 %v1906, 7
    %v1908 = vsub.s32 0, %v1907
    %v1909 = vrot.slane %v1904, %v1908
    %v1912 = vsel %vm272, %v1896, 0
    %v1915 = vsel %vm272, %v1897, 0
    %v1918 = vsel %vm272, %v1898, 0
    %v1921 = vsel %vm272, %v1899, 0
    %1923 = vmatprep.subr.mxu0 0.0
    %1924 = vmatpush1.msra.mxu0 %v1900
    %1925 = vmatprep.subr.mxu0 0.0
    %1926 = vmatpush1.msra.mxu0 %v1901
    %1927 = vmatprep.subr.mxu0 0.0
    %1928 = vmatpush1.msra.mxu0 %v1902
    %1929 = vmatprep.subr.mxu0 0.0
    %1930 = vmatpush1.msra.mxu0 %v1903
    %1931 = vmatprep.subr.mxu0 0.0
    %1932 = vmatpush1.msra.mxu0 0.0
    %1933 = vmatprep.subr.mxu0 0.0
    %1934 = vmatpush1.msra.mxu0 0.0
    %1935 = vmatprep.subr.mxu0 0.0
    %1936 = vmatpush1.msra.mxu0 0.0
    %1937 = vmatprep.subr.mxu0 0.0
    %1938 = vmatpush1.msra.mxu0 0.0
    %1939 = vmatprep.subr.mxu0 0.0
    %1940 = vmatpush1.msra.mxu0 0.0
    %1941 = vmatprep.subr.mxu0 0.0
    %1942 = vmatpush1.msra.mxu0 0.0
    %1943 = vmatprep.subr.mxu0 0.0
    %1944 = vmatpush1.msra.mxu0 0.0
    %1945 = vmatprep.subr.mxu0 0.0
    %1946 = vmatpush1.msra.mxu0 0.0
    %1947 = vmatprep.subr.mxu0 0.0
    %1948 = vmatpush1.msra.mxu0 0.0
    %1949 = vmatprep.subr.mxu0 0.0
    %1950 = vmatpush1.msra.mxu0 0.0
    %1951 = vmatprep.subr.mxu0 0.0
    %1952 = vmatpush1.msra.mxu0 0.0
    %1953 = vmatprep.subr.mxu0 0.0
    %1954 = vmatpush1.msra.mxu0 0.0
    %1955 = vmatprep.subr.mxu0 0.0
    %1956 = vmatpush1.msra.mxu0 0.0
    %1957 = vmatprep.subr.mxu0 0.0
    %1958 = vmatpush1.msra.mxu0 0.0
    %1959 = vmatprep.subr.mxu0 0.0
    %1960 = vmatpush1.msra.mxu0 0.0
    %1961 = vmatprep.subr.mxu0 0.0
    %1962 = vmatpush1.msra.mxu0 0.0
    %1963 = vmatprep.subr.mxu0 0.0
    %1964 = vmatpush1.msra.mxu0 0.0
    %1965 = vmatprep.subr.mxu0 0.0
    %1966 = vmatpush1.msra.mxu0 0.0
    %1967 = vmatprep.subr.mxu0 0.0
    %1968 = vmatpush1.msra.mxu0 0.0
    %1969 = vmatprep.subr.mxu0 0.0
    %1970 = vmatpush1.msra.mxu0 0.0
    %1971 = vmatprep.subr.mxu0 0.0
    %1972 = vmatpush1.msra.mxu0 0.0
    %1973 = vmatprep.subr.mxu0 0.0
    %1974 = vmatpush1.msra.mxu0 0.0
    %1975 = vmatprep.subr.mxu0 0.0
    %1976 = vmatpush1.msra.mxu0 0.0
    %1977 = vmatprep.subr.mxu0 0.0
    %1978 = vmatpush1.msra.mxu0 0.0
    %1979 = vmatprep.subr.mxu0 0.0
    %1980 = vmatpush1.msra.mxu0 0.0
    %1981 = vmatprep.subr.mxu0 0.0
    %1982 = vmatpush1.msra.mxu0 0.0
    %1983 = vmatprep.subr.mxu0 0.0
    %1984 = vmatpush1.msra.mxu0 0.0
    %1985 = vmatprep.subr.mxu0 0.0
    %1986 = vmatpush1.msra.mxu0 0.0
    %1987 = vmatprep.mubr.f32.mxu0 0.0
    %1988 = vmatmul.mubr.f32.gmra.mrb[0].mxu0 %v1912
    %v1989 = vpop.f32.mrb[0].mxu0
    %v1990 = vadd.f32 %v1909, %v1989
    %v1991 = vpop.f32.mrb[0].mxu0
    %1992 = vmatprep.mubr.f32.mxu0 0.0
    %1993 = vmatmul.mubr.f32.gmra.mrb[0].mxu0 %v1915
    %v1994 = vpop.f32.mrb[0].mxu0
    %v1995 = vadd.f32 %v1909, %v1994
    %v1996 = vpop.f32.mrb[0].mxu0
    %1997 = vmatprep.mubr.f32.mxu0 0.0
    %1998 = vmatmul.mubr.f32.gmra.mrb[0].mxu0 %v1918
    %v1999 = vpop.f32.mrb[0].mxu0
    %v2000 = vadd.f32 %v1909, %v1999
    %v2001 = vpop.f32.mrb[0].mxu0
    %2002 = vmatprep.mubr.f32.mxu0 0.0
    %2003 = vmatmul.mubr.f32.gmra.mrb[0].mxu0 %v1921
    %v2004 = vpop.f32.mrb[0].mxu0
    %v2005 = vadd.f32 %v1909, %v2004
    %v2006 = vpop.f32.mrb[0].mxu0
    %2007 = vdwg.mxu0
    %v2008 = vadd.f32 %v90, %v1990
    %v2009 = vadd.f32 %v91, %v1995
    %v2010 = vadd.f32 %v92, %v2000
    %v2011 = vadd.f32 %v93, %v2005
    %v2012 = vld [vmem:[%s18] sm:$0x1]
    %v2013 = vld [vmem:[%s19] sm:$0x1]
    %v2014 = vsel %vm272, %v2008, 0.0
    %2015 = vadd.xlane.f32.xlu0 %v2014
    %v2016 = vpop.xlane.xlu0 %2015
    %v2017 = vsel %vm272, %v2009, 0.0
    %2018 = vadd.xlane.f32.xlu0 %v2017
    %v2019 = vpop.xlane.xlu0 %2018
    %v2020 = vsel %vm272, %v2010, 0.0
    %2021 = vadd.xlane.f32.xlu0 %v2020
    %v2022 = vpop.xlane.xlu0 %2021
    %v2023 = vsel %vm272, %v2011, 0.0
    %2024 = vadd.xlane.f32.xlu0 %v2023
    %v2025 = vpop.xlane.xlu0 %2024
    %v2026 = vrcp.pop 32.0
    %v2027 = vmul.f32 %v2016, %v2026
    %v2028 = vmul.f32 %v2019, %v2026
    %v2029 = vmul.f32 %v2022, %v2026
    %v2030 = vmul.f32 %v2025, %v2026
    %v2031 = vsub.f32 %v2008, %v2027
    %v2032 = vsub.f32 %v2009, %v2028
    %v2033 = vsub.f32 %v2010, %v2029
    %v2034 = vsub.f32 %v2011, %v2030
    %v2035 = vmul.f32 %v2031, %v2031
    %v2036 = vmul.f32 %v2032, %v2032
    %v2037 = vmul.f32 %v2033, %v2033
    %v2038 = vmul.f32 %v2034, %v2034
    %v2039 = vsel %vm272, %v2035, 0.0
    %2040 = vadd.xlane.f32.xlu0 %v2039
    %v2041 = vpop.xlane.xlu0 %2040
    %v2042 = vsel %vm272, %v2036, 0.0
    %2043 = vadd.xlane.f32.xlu0 %v2042
    %v2044 = vpop.xlane.xlu0 %2043
    %v2045 = vsel %vm272, %v2037, 0.0
    %2046 = vadd.xlane.f32.xlu0 %v2045
    %v2047 = vpop.xlane.xlu0 %2046
    %v2048 = vsel %vm272, %v2038, 0.0
    %2049 = vadd.xlane.f32.xlu0 %v2048
    %v2050 = vpop.xlane.xlu0 %2049
    %v2051 = vmul.f32 %v2041, %v2026
    %v2052 = vmul.f32 %v2044, %v2026
    %v2053 = vmul.f32 %v2047, %v2026
    %v2054 = vmul.f32 %v2050, %v2026
    %v2055 = vadd.f32 %v2051, 1e-05
    %v2056 = vadd.f32 %v2052, 1e-05
    %v2057 = vadd.f32 %v2053, 1e-05
    %v2058 = vadd.f32 %v2054, 1e-05
    %v2059 = vrsqrt.pop %v2055
    %v2060 = vrsqrt.pop %v2056
    %v2061 = vrsqrt.pop %v2057
    %v2062 = vrsqrt.pop %v2058
    %v2063 = vmul.f32 %v2031, %v2059
    %v2064 = vmul.f32 %v2032, %v2060
    %v2065 = vmul.f32 %v2033, %v2061
    %v2066 = vmul.f32 %v2034, %v2062
    %v2068 = vlaneseq
    %v2069 = vshrl.u32 %v2068, 7
    %v2070 = vsub.s32 0, %v2069
    %v2071 = vrot.slane %v2012, %v2070
    %v2073 = vmul.f32 %v2063, %v2071
    %v2074 = vmul.f32 %v2064, %v2071
    %v2075 = vmul.f32 %v2065, %v2071
    %v2076 = vmul.f32 %v2066, %v2071
    %v2078 = vlaneseq
    %v2079 = vshrl.u32 %v2078, 7
    %v2080 = vsub.s32 0, %v2079
    %v2081 = vrot.slane %v2013, %v2080
    %v2083 = vadd.f32 %v2073, %v2081
    %v2084 = vadd.f32 %v2074, %v2081
    %v2085 = vadd.f32 %v2075, %v2081
    %v2086 = vadd.f32 %v2076, %v2081
    %v2087 = vld [vmem:[%s10] sm:$0xff]
    %v2088 = vld [vmem:[%s10 + $0x8] sm:$0xff]
    %v2089 = vld [vmem:[%s10 + $0x10] sm:$0xff]
    %v2090 = vld [vmem:[%s10 + $0x18] sm:$0xff]
    %v2091 = vld [vmem:[%s11] sm:$0x1]
    %v2093 = vlaneseq
    %v2094 = vshrl.u32 %v2093, 7
    %v2095 = vsub.s32 0, %v2094
    %v2096 = vrot.slane %v2091, %v2095
    %v2099 = vsel %vm272, %v2083, 0
    %v2102 = vsel %vm272, %v2084, 0
    %v2105 = vsel %vm272, %v2085, 0
    %v2108 = vsel %vm272, %v2086, 0
    %2110 = vmatprep.subr.mxu0 0.0
    %2111 = vmatpush1.msra.mxu0 %v2087
    %2112 = vmatprep.subr.mxu0 0.0
    %2113 = vmatpush1.msra.mxu0 %v2088
    %2114 = vmatprep.subr.mxu0 0.0
    %2115 = vmatpush1.msra.mxu0 %v2089
    %2116 = vmatprep.subr.mxu0 0.0
    %2117 = vmatpush1.msra.mxu0 %v2090
    %2118 = vmatprep.subr.mxu0 0.0
    %2119 = vmatpush1.msra.mxu0 0.0
    %2120 = vmatprep.subr.mxu0 0.0
    %2121 = vmatpush1.msra.mxu0 0.0
    %2122 = vmatprep.subr.mxu0 0.0
    %2123 = vmatpush1.msra.mxu0 0.0
    %2124 = vmatprep.subr.mxu0 0.0
    %2125 = vmatpush1.msra.mxu0 0.0
    %2126 = vmatprep.subr.mxu0 0.0
    %2127 = vmatpush1.msra.mxu0 0.0
    %2128 = vmatprep.subr.mxu0 0.0
    %2129 = vmatpush1.msra.mxu0 0.0
    %2130 = vmatprep.subr.mxu0 0.0
    %2131 = vmatpush1.msra.mxu0 0.0
    %2132 = vmatprep.subr.mxu0 0.0
    %2133 = vmatpush1.msra.mxu0 0.0
    %2134 = vmatprep.subr.mxu0 0.0
    %2135 = vmatpush1.msra.mxu0 0.0
    %2136 = vmatprep.subr.mxu0 0.0
    %2137 = vmatpush1.msra.mxu0 0.0
    %2138 = vmatprep.subr.mxu0 0.0
    %2139 = vmatpush1.msra.mxu0 0.0
    %2140 = vmatprep.subr.mxu0 0.0
    %2141 = vmatpush1.msra.mxu0 0.0
    %2142 = vmatprep.subr.mxu0 0.0
    %2143 = vmatpush1.msra.mxu0 0.0
    %2144 = vmatprep.subr.mxu0 0.0
    %2145 = vmatpush1.msra.mxu0 0.0
    %2146 = vmatprep.subr.mxu0 0.0
    %2147 = vmatpush1.msra.mxu0 0.0
    %2148 = vmatprep.subr.mxu0 0.0
    %2149 = vmatpush1.msra.mxu0 0.0
    %2150 = vmatprep.subr.mxu0 0.0
    %2151 = vmatpush1.msra.mxu0 0.0
    %2152 = vmatprep.subr.mxu0 0.0
    %2153 = vmatpush1.msra.mxu0 0.0
    %2154 = vmatprep.subr.mxu0 0.0
    %2155 = vmatpush1.msra.mxu0 0.0
    %2156 = vmatprep.subr.mxu0 0.0
    %2157 = vmatpush1.msra.mxu0 0.0
    %2158 = vmatprep.subr.mxu0 0.0
    %2159 = vmatpush1.msra.mxu0 0.0
    %2160 = vmatprep.subr.mxu0 0.0
    %2161 = vmatpush1.msra.mxu0 0.0
    %2162 = vmatprep.subr.mxu0 0.0
    %2163 = vmatpush1.msra.mxu0 0.0
    %2164 = vmatprep.subr.mxu0 0.0
    %2165 = vmatpush1.msra.mxu0 0.0
    %2166 = vmatprep.subr.mxu0 0.0
    %2167 = vmatpush1.msra.mxu0 0.0
    %2168 = vmatprep.subr.mxu0 0.0
    %2169 = vmatpush1.msra.mxu0 0.0
    %2170 = vmatprep.subr.mxu0 0.0
    %2171 = vmatpush1.msra.mxu0 0.0
    %2172 = vmatprep.subr.mxu0 0.0
    %2173 = vmatpush1.msra.mxu0 0.0
    %2174 = vmatprep.mubr.f32.mxu0 0.0
    %2175 = vmatmul.mubr.f32.gmra.mrb[0].mxu0 %v2099
    %v2176 = vpop.f32.mrb[0].mxu0
    %v2177 = vadd.f32 %v2096, %v2176
    %v2178 = vpop.f32.mrb[0].mxu0
    %2179 = vmatprep.mubr.f32.mxu0 0.0
    %2180 = vmatmul.mubr.f32.gmra.mrb[0].mxu0 %v2102
    %v2181 = vpop.f32.mrb[0].mxu0
    %v2182 = vadd.f32 %v2096, %v2181
    %v2183 = vpop.f32.mrb[0].mxu0
    %2184 = vmatprep.mubr.f32.mxu0 0.0
    %2185 = vmatmul.mubr.f32.gmra.mrb[0].mxu0 %v2105
    %v2186 = vpop.f32.mrb[0].mxu0
    %v2187 = vadd.f32 %v2096, %v2186
    %v2188 = vpop.f32.mrb[0].mxu0
    %2189 = vmatprep.mubr.f32.mxu0 0.0
    %2190 = vmatmul.mubr.f32.gmra.mrb[0].mxu0 %v2108
    %v2191 = vpop.f32.mrb[0].mxu0
    %v2192 = vadd.f32 %v2096, %v2191
    %v2193 = vpop.f32.mrb[0].mxu0
    %2194 = vdwg.mxu0
    %v2195 = vld [vmem:[%s12] sm:$0xff]
    %v2196 = vld [vmem:[%s12 + $0x8] sm:$0xff]
    %v2197 = vld [vmem:[%s12 + $0x10] sm:$0xff]
    %v2198 = vld [vmem:[%s12 + $0x18] sm:$0xff]
    %v2199 = vld [vmem:[%s13] sm:$0x1]
    %v2201 = vlaneseq
    %v2202 = vshrl.u32 %v2201, 7
    %v2203 = vsub.s32 0, %v2202
    %v2204 = vrot.slane %v2199, %v2203
    %2206 = vmatprep.subr.mxu0 0.0
    %2207 = vmatpush1.msra.mxu0 %v2195
    %2208 = vmatprep.subr.mxu0 0.0
    %2209 = vmatpush1.msra.mxu0 %v2196
    %2210 = vmatprep.subr.mxu0 0.0
    %2211 = vmatpush1.msra.mxu0 %v2197
    %2212 = vmatprep.subr.mxu0 0.0
    %2213 = vmatpush1.msra.mxu0 %v2198
    %2214 = vmatprep.subr.mxu0 0.0
    %2215 = vmatpush1.msra.mxu0 0.0
    %2216 = vmatprep.subr.mxu0 0.0
    %2217 = vmatpush1.msra.mxu0 0.0
    %2218 = vmatprep.subr.mxu0 0.0
    %2219 = vmatpush1.msra.mxu0 0.0
    %2220 = vmatprep.subr.mxu0 0.0
    %2221 = vmatpush1.msra.mxu0 0.0
    %2222 = vmatprep.subr.mxu0 0.0
    %2223 = vmatpush1.msra.mxu0 0.0
    %2224 = vmatprep.subr.mxu0 0.0
    %2225 = vmatpush1.msra.mxu0 0.0
    %2226 = vmatprep.subr.mxu0 0.0
    %2227 = vmatpush1.msra.mxu0 0.0
    %2228 = vmatprep.subr.mxu0 0.0
    %2229 = vmatpush1.msra.mxu0 0.0
    %2230 = vmatprep.subr.mxu0 0.0
    %2231 = vmatpush1.msra.mxu0 0.0
    %2232 = vmatprep.subr.mxu0 0.0
    %2233 = vmatpush1.msra.mxu0 0.0
    %2234 = vmatprep.subr.mxu0 0.0
    %2235 = vmatpush1.msra.mxu0 0.0
    %2236 = vmatprep.subr.mxu0 0.0
    %2237 = vmatpush1.msra.mxu0 0.0
    %2238 = vmatprep.subr.mxu0 0.0
    %2239 = vmatpush1.msra.mxu0 0.0
    %2240 = vmatprep.subr.mxu0 0.0
    %2241 = vmatpush1.msra.mxu0 0.0
    %2242 = vmatprep.subr.mxu0 0.0
    %2243 = vmatpush1.msra.mxu0 0.0
    %2244 = vmatprep.subr.mxu0 0.0
    %2245 = vmatpush1.msra.mxu0 0.0
    %2246 = vmatprep.subr.mxu0 0.0
    %2247 = vmatpush1.msra.mxu0 0.0
    %2248 = vmatprep.subr.mxu0 0.0
    %2249 = vmatpush1.msra.mxu0 0.0
    %2250 = vmatprep.subr.mxu0 0.0
    %2251 = vmatpush1.msra.mxu0 0.0
    %2252 = vmatprep.subr.mxu0 0.0
    %2253 = vmatpush1.msra.mxu0 0.0
    %2254 = vmatprep.subr.mxu0 0.0
    %2255 = vmatpush1.msra.mxu0 0.0
    %2256 = vmatprep.subr.mxu0 0.0
    %2257 = vmatpush1.msra.mxu0 0.0
    %2258 = vmatprep.subr.mxu0 0.0
    %2259 = vmatpush1.msra.mxu0 0.0
    %2260 = vmatprep.subr.mxu0 0.0
    %2261 = vmatpush1.msra.mxu0 0.0
    %2262 = vmatprep.subr.mxu0 0.0
    %2263 = vmatpush1.msra.mxu0 0.0
    %2264 = vmatprep.subr.mxu0 0.0
    %2265 = vmatpush1.msra.mxu0 0.0
    %2266 = vmatprep.subr.mxu0 0.0
    %2267 = vmatpush1.msra.mxu0 0.0
    %2268 = vmatprep.subr.mxu0 0.0
    %2269 = vmatpush1.msra.mxu0 0.0
    %2270 = vmatprep.mubr.f32.mxu0 0.0
    %2271 = vmatmul.mubr.f32.gmra.mrb[0].mxu0 %v2099
    %v2272 = vpop.f32.mrb[0].mxu0
    %v2273 = vadd.f32 %v2204, %v2272
    %v2274 = vpop.f32.mrb[0].mxu0
    %2275 = vmatprep.mubr.f32.mxu0 0.0
    %2276 = vmatmul.mubr.f32.gmra.mrb[0].mxu0 %v2102
    %v2277 = vpop.f32.mrb[0].mxu0
    %v2278 = vadd.f32 %v2204, %v2277
    %v2279 = vpop.f32.mrb[0].mxu0
    %2280 = vmatprep.mubr.f32.mxu0 0.0
    %2281 = vmatmul.mubr.f32.gmra.mrb[0].mxu0 %v2105
    %v2282 = vpop.f32.mrb[0].mxu0
    %v2283 = vadd.f32 %v2204, %v2282
    %v2284 = vpop.f32.mrb[0].mxu0
    %2285 = vmatprep.mubr.f32.mxu0 0.0
    %2286 = vmatmul.mubr.f32.gmra.mrb[0].mxu0 %v2108
    %v2287 = vpop.f32.mrb[0].mxu0
    %v2288 = vadd.f32 %v2204, %v2287
    %v2289 = vpop.f32.mrb[0].mxu0
    %2290 = vdwg.mxu0
    %v2291 = vld [vmem:[%s14] sm:$0xff]
    %v2292 = vld [vmem:[%s14 + $0x8] sm:$0xff]
    %v2293 = vld [vmem:[%s14 + $0x10] sm:$0xff]
    %v2294 = vld [vmem:[%s14 + $0x18] sm:$0xff]
    %v2295 = vld [vmem:[%s15] sm:$0x1]
    %v2297 = vlaneseq
    %v2298 = vshrl.u32 %v2297, 7
    %v2299 = vsub.s32 0, %v2298
    %v2300 = vrot.slane %v2295, %v2299
    %2302 = vmatprep.subr.mxu0 0.0
    %2303 = vmatpush1.msra.mxu0 %v2291
    %2304 = vmatprep.subr.mxu0 0.0
    %2305 = vmatpush1.msra.mxu0 %v2292
    %2306 = vmatprep.subr.mxu0 0.0
    %2307 = vmatpush1.msra.mxu0 %v2293
    %2308 = vmatprep.subr.mxu0 0.0
    %2309 = vmatpush1.msra.mxu0 %v2294
    %2310 = vmatprep.subr.mxu0 0.0
    %2311 = vmatpush1.msra.mxu0 0.0
    %2312 = vmatprep.subr.mxu0 0.0
    %2313 = vmatpush1.msra.mxu0 0.0
    %2314 = vmatprep.subr.mxu0 0.0
    %2315 = vmatpush1.msra.mxu0 0.0
    %2316 = vmatprep.subr.mxu0 0.0
    %2317 = vmatpush1.msra.mxu0 0.0
    %2318 = vmatprep.subr.mxu0 0.0
    %2319 = vmatpush1.msra.mxu0 0.0
    %2320 = vmatprep.subr.mxu0 0.0
    %2321 = vmatpush1.msra.mxu0 0.0
    %2322 = vmatprep.subr.mxu0 0.0
    %2323 = vmatpush1.msra.mxu0 0.0
    %2324 = vmatprep.subr.mxu0 0.0
    %2325 = vmatpush1.msra.mxu0 0.0
    %2326 = vmatprep.subr.mxu0 0.0
    %2327 = vmatpush1.msra.mxu0 0.0
    %2328 = vmatprep.subr.mxu0 0.0
    %2329 = vmatpush1.msra.mxu0 0.0
    %2330 = vmatprep.subr.mxu0 0.0
    %2331 = vmatpush1.msra.mxu0 0.0
    %2332 = vmatprep.subr.mxu0 0.0
    %2333 = vmatpush1.msra.mxu0 0.0
    %2334 = vmatprep.subr.mxu0 0.0
    %2335 = vmatpush1.msra.mxu0 0.0
    %2336 = vmatprep.subr.mxu0 0.0
    %2337 = vmatpush1.msra.mxu0 0.0
    %2338 = vmatprep.subr.mxu0 0.0
    %2339 = vmatpush1.msra.mxu0 0.0
    %2340 = vmatprep.subr.mxu0 0.0
    %2341 = vmatpush1.msra.mxu0 0.0
    %2342 = vmatprep.subr.mxu0 0.0
    %2343 = vmatpush1.msra.mxu0 0.0
    %2344 = vmatprep.subr.mxu0 0.0
    %2345 = vmatpush1.msra.mxu0 0.0
    %2346 = vmatprep.subr.mxu0 0.0
    %2347 = vmatpush1.msra.mxu0 0.0
    %2348 = vmatprep.subr.mxu0 0.0
    %2349 = vmatpush1.msra.mxu0 0.0
    %2350 = vmatprep.subr.mxu0 0.0
    %2351 = vmatpush1.msra.mxu0 0.0
    %2352 = vmatprep.subr.mxu0 0.0
    %2353 = vmatpush1.msra.mxu0 0.0
    %2354 = vmatprep.subr.mxu0 0.0
    %2355 = vmatpush1.msra.mxu0 0.0
    %2356 = vmatprep.subr.mxu0 0.0
    %2357 = vmatpush1.msra.mxu0 0.0
    %2358 = vmatprep.subr.mxu0 0.0
    %2359 = vmatpush1.msra.mxu0 0.0
    %2360 = vmatprep.subr.mxu0 0.0
    %2361 = vmatpush1.msra.mxu0 0.0
    %2362 = vmatprep.subr.mxu0 0.0
    %2363 = vmatpush1.msra.mxu0 0.0
    %2364 = vmatprep.subr.mxu0 0.0
    %2365 = vmatpush1.msra.mxu0 0.0
    %2366 = vmatprep.mubr.f32.mxu0 0.0
    %2367 = vmatmul.mubr.f32.gmra.mrb[0].mxu0 %v2099
    %v2368 = vpop.f32.mrb[0].mxu0
    %v2369 = vadd.f32 %v2300, %v2368
    %v2370 = vpop.f32.mrb[0].mxu0
    %2371 = vmatprep.mubr.f32.mxu0 0.0
    %2372 = vmatmul.mubr.f32.gmra.mrb[0].mxu0 %v2102
    %v2373 = vpop.f32.mrb[0].mxu0
    %v2374 = vadd.f32 %v2300, %v2373
    %v2375 = vpop.f32.mrb[0].mxu0
    %2376 = vmatprep.mubr.f32.mxu0 0.0
    %2377 = vmatmul.mubr.f32.gmra.mrb[0].mxu0 %v2105
    %v2378 = vpop.f32.mrb[0].mxu0
    %v2379 = vadd.f32 %v2300, %v2378
    %v2380 = vpop.f32.mrb[0].mxu0
    %2381 = vmatprep.mubr.f32.mxu0 0.0
    %2382 = vmatmul.mubr.f32.gmra.mrb[0].mxu0 %v2108
    %v2383 = vpop.f32.mrb[0].mxu0
    %v2384 = vadd.f32 %v2300, %v2383
    %v2385 = vpop.f32.mrb[0].mxu0
    %2386 = vdwg.mxu0
    %v2388 = vsel %vm631, %v2177, 0
    %v2391 = vsel %vm631, %v2182, 0
    %v2394 = vsel %vm631, %v2187, 0
    %v2397 = vsel %vm631, %v2192, 0
    %v2400 = vsel %vm631, %v2273, 0
    %v2403 = vsel %vm631, %v2278, 0
    %v2406 = vsel %vm631, %v2283, 0
    %v2409 = vsel %vm631, %v2288, 0
    %2411 = vmatprep.subr.mxu0 0.0
    %2412 = vmatpush1.xpose.msra.mxu0 %v2400
    %2413 = vmatprep.subr.mxu0 0.0
    %2414 = vmatpush1.xpose.msra.mxu0 %v2403
    %2415 = vmatprep.subr.mxu0 0.0
    %2416 = vmatpush1.xpose.msra.mxu0 %v2406
    %2417 = vmatprep.subr.mxu0 0.0
    %2418 = vmatpush1.xpose.msra.mxu0 %v2409
    %2419 = vmatprep.subr.mxu0 0.0
    %2420 = vmatpush1.xpose.msra.mxu0 0.0
    %2421 = vmatprep.subr.mxu0 0.0
    %2422 = vmatpush1.xpose.msra.mxu0 0.0
    %2423 = vmatprep.subr.mxu0 0.0
    %2424 = vmatpush1.xpose.msra.mxu0 0.0
    %2425 = vmatprep.subr.mxu0 0.0
    %2426 = vmatpush1.xpose.msra.mxu0 0.0
    %2427 = vmatprep.subr.mxu0 0.0
    %2428 = vmatpush1.xpose.msra.mxu0 0.0
    %2429 = vmatprep.subr.mxu0 0.0
    %2430 = vmatpush1.xpose.msra.mxu0 0.0
    %2431 = vmatprep.subr.mxu0 0.0
    %2432 = vmatpush1.xpose.msra.mxu0 0.0
    %2433 = vmatprep.subr.mxu0 0.0
    %2434 = vmatpush1.xpose.msra.mxu0 0.0
    %2435 = vmatprep.subr.mxu0 0.0
    %2436 = vmatpush1.xpose.msra.mxu0 0.0
    %2437 = vmatprep.subr.mxu0 0.0
    %2438 = vmatpush1.xpose.msra.mxu0 0.0
    %2439 = vmatprep.subr.mxu0 0.0
    %2440 = vmatpush1.xpose.msra.mxu0 0.0
    %2441 = vmatprep.subr.mxu0 0.0
    %2442 = vmatpush1.xpose.msra.mxu0 0.0
    %2443 = vmatprep.subr.mxu0 0.0
    %2444 = vmatpush1.xpose.msra.mxu0 0.0
    %2445 = vmatprep.subr.mxu0 0.0
    %2446 = vmatpush1.xpose.msra.mxu0 0.0
    %2447 = vmatprep.subr.mxu0 0.0
    %2448 = vmatpush1.xpose.msra.mxu0 0.0
    %2449 = vmatprep.subr.mxu0 0.0
    %2450 = vmatpush1.xpose.msra.mxu0 0.0
    %2451 = vmatprep.subr.mxu0 0.0
    %2452 = vmatpush1.xpose.msra.mxu0 0.0
    %2453 = vmatprep.subr.mxu0 0.0
    %2454 = vmatpush1.xpose.msra.mxu0 0.0
    %2455 = vmatprep.subr.mxu0 0.0
    %2456 = vmatpush1.xpose.msra.mxu0 0.0
    %2457 = vmatprep.subr.mxu0 0.0
    %2458 = vmatpush1.xpose.msra.mxu0 0.0
    %2459 = vmatprep.subr.mxu0 0.0
    %2460 = vmatpush1.xpose.msra.mxu0 0.0
    %2461 = vmatprep.subr.mxu0 0.0
    %2462 = vmatpush1.xpose.msra.mxu0 0.0
    %2463 = vmatprep.subr.mxu0 0.0
    %2464 = vmatpush1.xpose.msra.mxu0 0.0
    %2465 = vmatprep.subr.mxu0 0.0
    %2466 = vmatpush1.xpose.msra.mxu0 0.0
    %2467 = vmatprep.subr.mxu0 0.0
    %2468 = vmatpush1.xpose.msra.mxu0 0.0
    %2469 = vmatprep.subr.mxu0 0.0
    %2470 = vmatpush1.xpose.msra.mxu0 0.0
    %2471 = vmatprep.subr.mxu0 0.0
    %2472 = vmatpush1.xpose.msra.mxu0 0.0
    %2473 = vmatprep.subr.mxu0 0.0
    %2474 = vmatpush1.xpose.msra.mxu0 0.0
    %2475 = vmatprep.mubr.f32.mxu0 0.0
    %2476 = vmatmul.mubr.f32.gmra.mrb[0].mxu0 %v2388
    %v2477 = vpop.f32.mrb[0].mxu0
    %v2478 = vadd.f32 0.0, %v2477
    %v2479 = vpop.f32.mrb[0].mxu0
    %2480 = vmatprep.mubr.f32.mxu0 0.0
    %2481 = vmatmul.mubr.f32.gmra.mrb[0].mxu0 %v2391
    %v2482 = vpop.f32.mrb[0].mxu0
    %v2483 = vadd.f32 0.0, %v2482
    %v2484 = vpop.f32.mrb[0].mxu0
    %2485 = vmatprep.mubr.f32.mxu0 0.0
    %2486 = vmatmul.mubr.f32.gmra.mrb[0].mxu0 %v2394
    %v2487 = vpop.f32.mrb[0].mxu0
    %v2488 = vadd.f32 0.0, %v2487
    %v2489 = vpop.f32.mrb[0].mxu0
    %2490 = vmatprep.mubr.f32.mxu0 0.0
    %2491 = vmatmul.mubr.f32.gmra.mrb[0].mxu0 %v2397
    %v2492 = vpop.f32.mrb[0].mxu0
    %v2493 = vadd.f32 0.0, %v2492
    %v2494 = vpop.f32.mrb[0].mxu0
    %2495 = vdwg.mxu0
    %v2496 = vmul.f32 %v2478, 0.35355338
    %v2497 = vmul.f32 %v2483, 0.35355338
    %v2498 = vmul.f32 %v2488, 0.35355338
    %v2499 = vmul.f32 %v2493, 0.35355338
    %v2500 = vadd.f32 %v2496, %v257
    %v2501 = vadd.f32 %v2497, %v258
    %v2502 = vadd.f32 %v2498, %v259
    %v2503 = vadd.f32 %v2499, %v260
    %v2504 = vsel %vm272, %v2500, -inf
    %2505 = vmax.xlane.f32.xlu0 %v2504
    %v2506 = vpop.xlane.xlu0 %2505
    %v2507 = vsel %vm272, %v2501, -inf
    %2508 = vmax.xlane.f32.xlu0 %v2507
    %v2509 = vpop.xlane.xlu0 %2508
    %v2510 = vsel %vm272, %v2502, -inf
    %2511 = vmax.xlane.f32.xlu0 %v2510
    %v2512 = vpop.xlane.xlu0 %2511
    %v2513 = vsel %vm272, %v2503, -inf
    %2514 = vmax.xlane.f32.xlu0 %v2513
    %v2515 = vpop.xlane.xlu0 %2514
    %v2516 = vsub.f32 %v2500, %v2506
    %v2517 = vsub.f32 %v2501, %v2509
    %v2518 = vsub.f32 %v2502, %v2512
    %v2519 = vsub.f32 %v2503, %v2515
    %v2520 = vmul.f32 %v2516, 1.442695
    %v2521 = vpow.pop %v2520
    %v2522 = vmul.f32 %v2517, 1.442695
    %v2523 = vpow.pop %v2522
    %v2524 = vmul.f32 %v2518, 1.442695
    %v2525 = vpow.pop %v2524
    %v2526 = vmul.f32 %v2519, 1.442695
    %v2527 = vpow.pop %v2526
    %v2528 = vsel %vm272, %v2521, 0.0
    %2529 = vadd.xlane.f32.xlu0 %v2528
    %v2530 = vpop.xlane.xlu0 %2529
    %v2531 = vsel %vm272, %v2523, 0.0
    %2532 = vadd.xlane.f32.xlu0 %v2531
    %v2533 = vpop.xlane.xlu0 %2532
    %v2534 = vsel %vm272, %v2525, 0.0
    %2535 = vadd.xlane.f32.xlu0 %v2534
    %v2536 = vpop.xlane.xlu0 %2535
    %v2537 = vsel %vm272, %v2527, 0.0
    %2538 = vadd.xlane.f32.xlu0 %v2537
    %v2539 = vpop.xlane.xlu0 %2538
    %v2540 = vrcp.pop %v2530
    %v2541 = vrcp.pop %v2533
    %v2542 = vrcp.pop %v2536
    %v2543 = vrcp.pop %v2539
    %v2544 = vmul.f32 %v2521, %v2540
    %v2545 = vmul.f32 %v2523, %v2541
    %v2546 = vmul.f32 %v2525, %v2542
    %v2547 = vmul.f32 %v2527, %v2543
    %v2549 = vsel %vm272, %v2544, 0
    %v2552 = vsel %vm272, %v2545, 0
    %v2555 = vsel %vm272, %v2546, 0
    %v2558 = vsel %vm272, %v2547, 0
    %2560 = vmatprep.subr.mxu0 0.0
    %2561 = vmatpush1.msra.mxu0 %v2369
    %2562 = vmatprep.subr.mxu0 0.0
    %2563 = vmatpush1.msra.mxu0 %v2374
    %2564 = vmatprep.subr.mxu0 0.0
    %2565 = vmatpush1.msra.mxu0 %v2379
    %2566 = vmatprep.subr.mxu0 0.0
    %2567 = vmatpush1.msra.mxu0 %v2384
    %2568 = vmatprep.subr.mxu0 0.0
    %2569 = vmatpush1.msra.mxu0 0.0
    %2570 = vmatprep.subr.mxu0 0.0
    %2571 = vmatpush1.msra.mxu0 0.0
    %2572 = vmatprep.subr.mxu0 0.0
    %2573 = vmatpush1.msra.mxu0 0.0
    %2574 = vmatprep.subr.mxu0 0.0
    %2575 = vmatpush1.msra.mxu0 0.0
    %2576 = vmatprep.subr.mxu0 0.0
    %2577 = vmatpush1.msra.mxu0 0.0
    %2578 = vmatprep.subr.mxu0 0.0
    %2579 = vmatpush1.msra.mxu0 0.0
    %2580 = vmatprep.subr.mxu0 0.0
    %2581 = vmatpush1.msra.mxu0 0.0
    %2582 = vmatprep.subr.mxu0 0.0
    %2583 = vmatpush1.msra.mxu0 0.0
    %2584 = vmatprep.subr.mxu0 0.0
    %2585 = vmatpush1.msra.mxu0 0.0
    %2586 = vmatprep.subr.mxu0 0.0
    %2587 = vmatpush1.msra.mxu0 0.0
    %2588 = vmatprep.subr.mxu0 0.0
    %2589 = vmatpush1.msra.mxu0 0.0
    %2590 = vmatprep.subr.mxu0 0.0
    %2591 = vmatpush1.msra.mxu0 0.0
    %2592 = vmatprep.subr.mxu0 0.0
    %2593 = vmatpush1.msra.mxu0 0.0
    %2594 = vmatprep.subr.mxu0 0.0
    %2595 = vmatpush1.msra.mxu0 0.0
    %2596 = vmatprep.subr.mxu0 0.0
    %2597 = vmatpush1.msra.mxu0 0.0
    %2598 = vmatprep.subr.mxu0 0.0
    %2599 = vmatpush1.msra.mxu0 0.0
    %2600 = vmatprep.subr.mxu0 0.0
    %2601 = vmatpush1.msra.mxu0 0.0
    %2602 = vmatprep.subr.mxu0 0.0
    %2603 = vmatpush1.msra.mxu0 0.0
    %2604 = vmatprep.subr.mxu0 0.0
    %2605 = vmatpush1.msra.mxu0 0.0
    %2606 = vmatprep.subr.mxu0 0.0
    %2607 = vmatpush1.msra.mxu0 0.0
    %2608 = vmatprep.subr.mxu0 0.0
    %2609 = vmatpush1.msra.mxu0 0.0
    %2610 = vmatprep.subr.mxu0 0.0
    %2611 = vmatpush1.msra.mxu0 0.0
    %2612 = vmatprep.subr.mxu0 0.0
    %2613 = vmatpush1.msra.mxu0 0.0
    %2614 = vmatprep.subr.mxu0 0.0
    %2615 = vmatpush1.msra.mxu0 0.0
    %2616 = vmatprep.subr.mxu0 0.0
    %2617 = vmatpush1.msra.mxu0 0.0
    %2618 = vmatprep.subr.mxu0 0.0
    %2619 = vmatpush1.msra.mxu0 0.0
    %2620 = vmatprep.subr.mxu0 0.0
    %2621 = vmatpush1.msra.mxu0 0.0
    %2622 = vmatprep.subr.mxu0 0.0
    %2623 = vmatpush1.msra.mxu0 0.0
    %2624 = vmatprep.mubr.f32.mxu0 0.0
    %2625 = vmatmul.mubr.f32.gmra.mrb[0].mxu0 %v2549
    %v2626 = vpop.f32.mrb[0].mxu0
    %v2627 = vadd.f32 0.0, %v2626
    %v2628 = vpop.f32.mrb[0].mxu0
    %2629 = vmatprep.mubr.f32.mxu0 0.0
    %2630 = vmatmul.mubr.f32.gmra.mrb[0].mxu0 %v2552
    %v2631 = vpop.f32.mrb[0].mxu0
    %v2632 = vadd.f32 0.0, %v2631
    %v2633 = vpop.f32.mrb[0].mxu0
    %2634 = vmatprep.mubr.f32.mxu0 0.0
    %2635 = vmatmul.mubr.f32.gmra.mrb[0].mxu0 %v2555
    %v2636 = vpop.f32.mrb[0].mxu0
    %v2637 = vadd.f32 0.0, %v2636
    %v2638 = vpop.f32.mrb[0].mxu0
    %2639 = vmatprep.mubr.f32.mxu0 0.0
    %2640 = vmatmul.mubr.f32.gmra.mrb[0].mxu0 %v2558
    %v2641 = vpop.f32.mrb[0].mxu0
    %v2642 = vadd.f32 0.0, %v2641
    %v2643 = vpop.f32.mrb[0].mxu0
    %2644 = vdwg.mxu0
    %2645 = vst.msk [vmem:[#allocation2] sm:$0xff] %vm631, %v2627
    %2646 = vst.msk [vmem:[#allocation2 + $0x8] sm:$0xff] %vm631, %v2632
    %2647 = vst.msk [vmem:[#allocation2 + $0x10] sm:$0xff] %vm631, %v2637
    %2648 = vst.msk [vmem:[#allocation2 + $0x18] sm:$0xff] %vm631, %v2642
    %2649 = vrot.lane.b32.xlu0 %v2177, 120
    %v2650 = vpop.permute.xlu0 %2649
    %2651 = vrot.lane.b32.xlu0 %v2182, 120
    %v2652 = vpop.permute.xlu0 %2651
    %2653 = vrot.lane.b32.xlu0 %v2187, 120
    %v2654 = vpop.permute.xlu0 %2653
    %2655 = vrot.lane.b32.xlu0 %v2192, 120
    %v2656 = vpop.permute.xlu0 %2655
    %2657 = vrot.lane.b32.xlu0 %v2273, 120
    %v2658 = vpop.permute.xlu0 %2657
    %2659 = vrot.lane.b32.xlu0 %v2278, 120
    %v2660 = vpop.permute.xlu0 %2659
    %2661 = vrot.lane.b32.xlu0 %v2283, 120
    %v2662 = vpop.permute.xlu0 %2661
    %2663 = vrot.lane.b32.xlu0 %v2288, 120
    %v2664 = vpop.permute.xlu0 %2663
    %v2665 = vsel %vm631, %v2650, 0
    %v2667 = vsel %vm631, %v2652, 0
    %v2669 = vsel %vm631, %v2654, 0
    %v2671 = vsel %vm631, %v2656, 0
    %v2673 = vsel %vm631, %v2658, 0
    %v2675 = vsel %vm631, %v2660, 0
    %v2677 = vsel %vm631, %v2662, 0
    %v2679 = vsel %vm631, %v2664, 0
    %2681 = vmatprep.subr.mxu0 0.0
    %2682 = vmatpush1.xpose.msra.mxu0 %v2673
    %2683 = vmatprep.subr.mxu0 0.0
    %2684 = vmatpush1.xpose.msra.mxu0 %v2675
    %2685 = vmatprep.subr.mxu0 0.0
    %2686 = vmatpush1.xpose.msra.mxu0 %v2677
    %2687 = vmatprep.subr.mxu0 0.0
    %2688 = vmatpush1.xpose.msra.mxu0 %v2679
    %2689 = vmatprep.subr.mxu0 0.0
    %2690 = vmatpush1.xpose.msra.mxu0 0.0
    %2691 = vmatprep.subr.mxu0 0.0
    %2692 = vmatpush1.xpose.msra.mxu0 0.0
    %2693 = vmatprep.subr.mxu0 0.0
    %2694 = vmatpush1.xpose.msra.mxu0 0.0
    %2695 = vmatprep.subr.mxu0 0.0
    %2696 = vmatpush1.xpose.msra.mxu0 0.0
    %2697 = vmatprep.subr.mxu0 0.0
    %2698 = vmatpush1.xpose.msra.mxu0 0.0
    %2699 = vmatprep.subr.mxu0 0.0
    %2700 = vmatpush1.xpose.msra.mxu0 0.0
    %2701 = vmatprep.subr.mxu0 0.0
    %2702 = vmatpush1.xpose.msra.mxu0 0.0
    %2703 = vmatprep.subr.mxu0 0.0
    %2704 = vmatpush1.xpose.msra.mxu0 0.0
    %2705 = vmatprep.subr.mxu0 0.0
    %2706 = vmatpush1.xpose.msra.mxu0 0.0
    %2707 = vmatprep.subr.mxu0 0.0
    %2708 = vmatpush1.xpose.msra.mxu0 0.0
    %2709 = vmatprep.subr.mxu0 0.0
    %2710 = vmatpush1.xpose.msra.mxu0 0.0
    %2711 = vmatprep.subr.mxu0 0.0
    %2712 = vmatpush1.xpose.msra.mxu0 0.0
    %2713 = vmatprep.subr.mxu0 0.0
    %2714 = vmatpush1.xpose.msra.mxu0 0.0
    %2715 = vmatprep.subr.mxu0 0.0
    %2716 = vmatpush1.xpose.msra.mxu0 0.0
    %2717 = vmatprep.subr.mxu0 0.0
    %2718 = vmatpush1.xpose.msra.mxu0 0.0
    %2719 = vmatprep.subr.mxu0 0.0
    %2720 = vmatpush1.xpose.msra.mxu0 0.0
    %2721 = vmatprep.subr.mxu0 0.0
    %2722 = vmatpush1.xpose.msra.mxu0 0.0
    %2723 = vmatprep.subr.mxu0 0.0
    %2724 = vmatpush1.xpose.msra.mxu0 0.0
    %2725 = vmatprep.subr.mxu0 0.0
    %2726 = vmatpush1.xpose.msra.mxu0 0.0
    %2727 = vmatprep.subr.mxu0 0.0
    %2728 = vmatpush1.xpose.msra.mxu0 0.0
    %2729 = vmatprep.subr.mxu0 0.0
    %2730 = vmatpush1.xpose.msra.mxu0 0.0
    %2731 = vmatprep.subr.mxu0 0.0
    %2732 = vmatpush1.xpose.msra.mxu0 0.0
    %2733 = vmatprep.subr.mxu0 0.0
    %2734 = vmatpush1.xpose.msra.mxu0 0.0
    %2735 = vmatprep.subr.mxu0 0.0
    %2736 = vmatpush1.xpose.msra.mxu0 0.0
    %2737 = vmatprep.subr.mxu0 0.0
    %2738 = vmatpush1.xpose.msra.mxu0 0.0
    %2739 = vmatprep.subr.mxu0 0.0
    %2740 = vmatpush1.xpose.msra.mxu0 0.0
    %2741 = vmatprep.subr.mxu0 0.0
    %2742 = vmatpush1.xpose.msra.mxu0 0.0
    %2743 = vmatprep.subr.mxu0 0.0
    %2744 = vmatpush1.xpose.msra.mxu0 0.0
    %2745 = vmatprep.mubr.f32.mxu0 0.0
    %2746 = vmatmul.mubr.f32.gmra.mrb[0].mxu0 %v2665
    %v2747 = vpop.f32.mrb[0].mxu0
    %v2748 = vadd.f32 0.0, %v2747
    %v2749 = vpop.f32.mrb[0].mxu0
    %2750 = vmatprep.mubr.f32.mxu0 0.0
    %2751 = vmatmul.mubr.f32.gmra.mrb[0].mxu0 %v2667
    %v2752 = vpop.f32.mrb[0].mxu0
    %v2753 = vadd.f32 0.0, %v2752
    %v2754 = vpop.f32.mrb[0].mxu0
    %2755 = vmatprep.mubr.f32.mxu0 0.0
    %2756 = vmatmul.mubr.f32.gmra.mrb[0].mxu0 %v2669
    %v2757 = vpop.f32.mrb[0].mxu0
    %v2758 = vadd.f32 0.0, %v2757
    %v2759 = vpop.f32.mrb[0].mxu0
    %2760 = vmatprep.mubr.f32.mxu0 0.0
    %2761 = vmatmul.mubr.f32.gmra.mrb[0].mxu0 %v2671
    %v2762 = vpop.f32.mrb[0].mxu0
    %v2763 = vadd.f32 0.0, %v2762
    %v2764 = vpop.f32.mrb[0].mxu0
    %2765 = vdwg.mxu0
    %v2766 = vmul.f32 %v2748, 0.35355338
    %v2767 = vmul.f32 %v2753, 0.35355338
    %v2768 = vmul.f32 %v2758, 0.35355338
    %v2769 = vmul.f32 %v2763, 0.35355338
    %v2770 = vadd.f32 %v2766, %v257
    %v2771 = vadd.f32 %v2767, %v258
    %v2772 = vadd.f32 %v2768, %v259
    %v2773 = vadd.f32 %v2769, %v260
    %v2774 = vsel %vm272, %v2770, -inf
    %2775 = vmax.xlane.f32.xlu0 %v2774
    %v2776 = vpop.xlane.xlu0 %2775
    %v2777 = vsel %vm272, %v2771, -inf
    %2778 = vmax.xlane.f32.xlu0 %v2777
    %v2779 = vpop.xlane.xlu0 %2778
    %v2780 = vsel %vm272, %v2772, -inf
    %2781 = vmax.xlane.f32.xlu0 %v2780
    %v2782 = vpop.xlane.xlu0 %2781
    %v2783 = vsel %vm272, %v2773, -inf
    %2784 = vmax.xlane.f32.xlu0 %v2783
    %v2785 = vpop.xlane.xlu0 %2784
    %v2786 = vsub.f32 %v2770, %v2776
    %v2787 = vsub.f32 %v2771, %v2779
    %v2788 = vsub.f32 %v2772, %v2782
    %v2789 = vsub.f32 %v2773, %v2785
    %v2790 = vmul.f32 %v2786, 1.442695
    %v2791 = vpow.pop %v2790
    %v2792 = vmul.f32 %v2787, 1.442695
    %v2793 = vpow.pop %v2792
    %v2794 = vmul.f32 %v2788, 1.442695
    %v2795 = vpow.pop %v2794
    %v2796 = vmul.f32 %v2789, 1.442695
    %v2797 = vpow.pop %v2796
    %v2798 = vsel %vm272, %v2791, 0.0
    %2799 = vadd.xlane.f32.xlu0 %v2798
    %v2800 = vpop.xlane.xlu0 %2799
    %v2801 = vsel %vm272, %v2793, 0.0
    %2802 = vadd.xlane.f32.xlu0 %v2801
    %v2803 = vpop.xlane.xlu0 %2802
    %v2804 = vsel %vm272, %v2795, 0.0
    %2805 = vadd.xlane.f32.xlu0 %v2804
    %v2806 = vpop.xlane.xlu0 %2805
    %v2807 = vsel %vm272, %v2797, 0.0
    %2808 = vadd.xlane.f32.xlu0 %v2807
    %v2809 = vpop.xlane.xlu0 %2808
    %v2810 = vrcp.pop %v2800
    %v2811 = vrcp.pop %v2803
    %v2812 = vrcp.pop %v2806
    %v2813 = vrcp.pop %v2809
    %v2814 = vmul.f32 %v2791, %v2810
    %v2815 = vmul.f32 %v2793, %v2811
    %v2816 = vmul.f32 %v2795, %v2812
    %v2817 = vmul.f32 %v2797, %v2813
    %2822 = vrot.lane.b32.xlu0 %v2369, 120
    %v2823 = vpop.permute.xlu0 %2822
    %2824 = vrot.lane.b32.xlu0 %v2374, 120
    %v2825 = vpop.permute.xlu0 %2824
    %2826 = vrot.lane.b32.xlu0 %v2379, 120
    %v2827 = vpop.permute.xlu0 %2826
    %2828 = vrot.lane.b32.xlu0 %v2384, 120
    %v2829 = vpop.permute.xlu0 %2828
    %v2835 = vsel %vm272, %v2814, 0
    %v2838 = vsel %vm272, %v2815, 0
    %v2841 = vsel %vm272, %v2816, 0
    %v2844 = vsel %vm272, %v2817, 0
    %2846 = vmatprep.subr.mxu0 0.0
    %2847 = vmatpush1.msra.mxu0 %v2823
    %2848 = vmatprep.subr.mxu0 0.0
    %2849 = vmatpush1.msra.mxu0 %v2825
    %2850 = vmatprep.subr.mxu0 0.0
    %2851 = vmatpush1.msra.mxu0 %v2827
    %2852 = vmatprep.subr.mxu0 0.0
    %2853 = vmatpush1.msra.mxu0 %v2829
    %2854 = vmatprep.subr.mxu0 0.0
    %2855 = vmatpush1.msra.mxu0 0.0
    %2856 = vmatprep.subr.mxu0 0.0
    %2857 = vmatpush1.msra.mxu0 0.0
    %2858 = vmatprep.subr.mxu0 0.0
    %2859 = vmatpush1.msra.mxu0 0.0
    %2860 = vmatprep.subr.mxu0 0.0
    %2861 = vmatpush1.msra.mxu0 0.0
    %2862 = vmatprep.subr.mxu0 0.0
    %2863 = vmatpush1.msra.mxu0 0.0
    %2864 = vmatprep.subr.mxu0 0.0
    %2865 = vmatpush1.msra.mxu0 0.0
    %2866 = vmatprep.subr.mxu0 0.0
    %2867 = vmatpush1.msra.mxu0 0.0
    %2868 = vmatprep.subr.mxu0 0.0
    %2869 = vmatpush1.msra.mxu0 0.0
    %2870 = vmatprep.subr.mxu0 0.0
    %2871 = vmatpush1.msra.mxu0 0.0
    %2872 = vmatprep.subr.mxu0 0.0
    %2873 = vmatpush1.msra.mxu0 0.0
    %2874 = vmatprep.subr.mxu0 0.0
    %2875 = vmatpush1.msra.mxu0 0.0
    %2876 = vmatprep.subr.mxu0 0.0
    %2877 = vmatpush1.msra.mxu0 0.0
    %2878 = vmatprep.subr.mxu0 0.0
    %2879 = vmatpush1.msra.mxu0 0.0
    %2880 = vmatprep.subr.mxu0 0.0
    %2881 = vmatpush1.msra.mxu0 0.0
    %2882 = vmatprep.subr.mxu0 0.0
    %2883 = vmatpush1.msra.mxu0 0.0
    %2884 = vmatprep.subr.mxu0 0.0
    %2885 = vmatpush1.msra.mxu0 0.0
    %2886 = vmatprep.subr.mxu0 0.0
    %2887 = vmatpush1.msra.mxu0 0.0
    %2888 = vmatprep.subr.mxu0 0.0
    %2889 = vmatpush1.msra.mxu0 0.0
    %2890 = vmatprep.subr.mxu0 0.0
    %2891 = vmatpush1.msra.mxu0 0.0
    %2892 = vmatprep.subr.mxu0 0.0
    %2893 = vmatpush1.msra.mxu0 0.0
    %2894 = vmatprep.subr.mxu0 0.0
    %2895 = vmatpush1.msra.mxu0 0.0
    %2896 = vmatprep.subr.mxu0 0.0
    %2897 = vmatpush1.msra.mxu0 0.0
    %2898 = vmatprep.subr.mxu0 0.0
    %2899 = vmatpush1.msra.mxu0 0.0
    %2900 = vmatprep.subr.mxu0 0.0
    %2901 = vmatpush1.msra.mxu0 0.0
    %2902 = vmatprep.subr.mxu0 0.0
    %2903 = vmatpush1.msra.mxu0 0.0
    %2904 = vmatprep.subr.mxu0 0.0
    %2905 = vmatpush1.msra.mxu0 0.0
    %2906 = vmatprep.subr.mxu0 0.0
    %2907 = vmatpush1.msra.mxu0 0.0
    %2908 = vmatprep.subr.mxu0 0.0
    %2909 = vmatpush1.msra.mxu0 0.0
    %2910 = vmatprep.mubr.f32.mxu0 0.0
    %2911 = vmatmul.mubr.f32.gmra.mrb[0].mxu0 %v2835
    %v2912 = vpop.f32.mrb[0].mxu0
    %v2913 = vadd.f32 0.0, %v2912
    %v2914 = vpop.f32.mrb[0].mxu0
    %2915 = vmatprep.mubr.f32.mxu0 0.0
    %2916 = vmatmul.mubr.f32.gmra.mrb[0].mxu0 %v2838
    %v2917 = vpop.f32.mrb[0].mxu0
    %v2918 = vadd.f32 0.0, %v2917
    %v2919 = vpop.f32.mrb[0].mxu0
    %2920 = vmatprep.mubr.f32.mxu0 0.0
    %2921 = vmatmul.mubr.f32.gmra.mrb[0].mxu0 %v2841
    %v2922 = vpop.f32.mrb[0].mxu0
    %v2923 = vadd.f32 0.0, %v2922
    %v2924 = vpop.f32.mrb[0].mxu0
    %2925 = vmatprep.mubr.f32.mxu0 0.0
    %2926 = vmatmul.mubr.f32.gmra.mrb[0].mxu0 %v2844
    %v2927 = vpop.f32.mrb[0].mxu0
    %v2928 = vadd.f32 0.0, %v2927
    %v2929 = vpop.f32.mrb[0].mxu0
    %2930 = vdwg.mxu0
    %2935 = vrot.lane.b32.xlu0 %v2913, 8
    %v2936 = vpop.permute.xlu0 %2935
    %2937 = vrot.lane.b32.xlu0 %v2918, 8
    %v2938 = vpop.permute.xlu0 %2937
    %2939 = vrot.lane.b32.xlu0 %v2923, 8
    %v2940 = vpop.permute.xlu0 %2939
    %2941 = vrot.lane.b32.xlu0 %v2928, 8
    %v2942 = vpop.permute.xlu0 %2941
    %2947 = vst.msk [vmem:[#allocation2] sm:$0xff] %vm1237, %v2936
    %2948 = vst.msk [vmem:[#allocation2 + $0x8] sm:$0xff] %vm1237, %v2938
    %2949 = vst.msk [vmem:[#allocation2 + $0x10] sm:$0xff] %vm1237, %v2940
    %2950 = vst.msk [vmem:[#allocation2 + $0x18] sm:$0xff] %vm1237, %v2942
    %2951 = vrot.lane.b32.xlu0 %v2177, 112
    %v2952 = vpop.permute.xlu0 %2951
    %2953 = vrot.lane.b32.xlu0 %v2182, 112
    %v2954 = vpop.permute.xlu0 %2953
    %2955 = vrot.lane.b32.xlu0 %v2187, 112
    %v2956 = vpop.permute.xlu0 %2955
    %2957 = vrot.lane.b32.xlu0 %v2192, 112
    %v2958 = vpop.permute.xlu0 %2957
    %2959 = vrot.lane.b32.xlu0 %v2273, 112
    %v2960 = vpop.permute.xlu0 %2959
    %2961 = vrot.lane.b32.xlu0 %v2278, 112
    %v2962 = vpop.permute.xlu0 %2961
    %2963 = vrot.lane.b32.xlu0 %v2283, 112
    %v2964 = vpop.permute.xlu0 %2963
    %2965 = vrot.lane.b32.xlu0 %v2288, 112
    %v2966 = vpop.permute.xlu0 %2965
    %v2967 = vsel %vm631, %v2952, 0
    %v2969 = vsel %vm631, %v2954, 0
    %v2971 = vsel %vm631, %v2956, 0
    %v2973 = vsel %vm631, %v2958, 0
    %v2975 = vsel %vm631, %v2960, 0
    %v2977 = vsel %vm631, %v2962, 0
    %v2979 = vsel %vm631, %v2964, 0
    %v2981 = vsel %vm631, %v2966, 0
    %2983 = vmatprep.subr.mxu0 0.0
    %2984 = vmatpush1.xpose.msra.mxu0 %v2975
    %2985 = vmatprep.subr.mxu0 0.0
    %2986 = vmatpush1.xpose.msra.mxu0 %v2977
    %2987 = vmatprep.subr.mxu0 0.0
    %2988 = vmatpush1.xpose.msra.mxu0 %v2979
    %2989 = vmatprep.subr.mxu0 0.0
    %2990 = vmatpush1.xpose.msra.mxu0 %v2981
    %2991 = vmatprep.subr.mxu0 0.0
    %2992 = vmatpush1.xpose.msra.mxu0 0.0
    %2993 = vmatprep.subr.mxu0 0.0
    %2994 = vmatpush1.xpose.msra.mxu0 0.0
    %2995 = vmatprep.subr.mxu0 0.0
    %2996 = vmatpush1.xpose.msra.mxu0 0.0
    %2997 = vmatprep.subr.mxu0 0.0
    %2998 = vmatpush1.xpose.msra.mxu0 0.0
    %2999 = vmatprep.subr.mxu0 0.0
    %3000 = vmatpush1.xpose.msra.mxu0 0.0
    %3001 = vmatprep.subr.mxu0 0.0
    %3002 = vmatpush1.xpose.msra.mxu0 0.0
    %3003 = vmatprep.subr.mxu0 0.0
    %3004 = vmatpush1.xpose.msra.mxu0 0.0
    %3005 = vmatprep.subr.mxu0 0.0
    %3006 = vmatpush1.xpose.msra.mxu0 0.0
    %3007 = vmatprep.subr.mxu0 0.0
    %3008 = vmatpush1.xpose.msra.mxu0 0.0
    %3009 = vmatprep.subr.mxu0 0.0
    %3010 = vmatpush1.xpose.msra.mxu0 0.0
    %3011 = vmatprep.subr.mxu0 0.0
    %3012 = vmatpush1.xpose.msra.mxu0 0.0
    %3013 = vmatprep.subr.mxu0 0.0
    %3014 = vmatpush1.xpose.msra.mxu0 0.0
    %3015 = vmatprep.subr.mxu0 0.0
    %3016 = vmatpush1.xpose.msra.mxu0 0.0
    %3017 = vmatprep.subr.mxu0 0.0
    %3018 = vmatpush1.xpose.msra.mxu0 0.0
    %3019 = vmatprep.subr.mxu0 0.0
    %3020 = vmatpush1.xpose.msra.mxu0 0.0
    %3021 = vmatprep.subr.mxu0 0.0
    %3022 = vmatpush1.xpose.msra.mxu0 0.0
    %3023 = vmatprep.subr.mxu0 0.0
    %3024 = vmatpush1.xpose.msra.mxu0 0.0
    %3025 = vmatprep.subr.mxu0 0.0
    %3026 = vmatpush1.xpose.msra.mxu0 0.0
    %3027 = vmatprep.subr.mxu0 0.0
    %3028 = vmatpush1.xpose.msra.mxu0 0.0
    %3029 = vmatprep.subr.mxu0 0.0
    %3030 = vmatpush1.xpose.msra.mxu0 0.0
    %3031 = vmatprep.subr.mxu0 0.0
    %3032 = vmatpush1.xpose.msra.mxu0 0.0
    %3033 = vmatprep.subr.mxu0 0.0
    %3034 = vmatpush1.xpose.msra.mxu0 0.0
    %3035 = vmatprep.subr.mxu0 0.0
    %3036 = vmatpush1.xpose.msra.mxu0 0.0
    %3037 = vmatprep.subr.mxu0 0.0
    %3038 = vmatpush1.xpose.msra.mxu0 0.0
    %3039 = vmatprep.subr.mxu0 0.0
    %3040 = vmatpush1.xpose.msra.mxu0 0.0
    %3041 = vmatprep.subr.mxu0 0.0
    %3042 = vmatpush1.xpose.msra.mxu0 0.0
    %3043 = vmatprep.subr.mxu0 0.0
    %3044 = vmatpush1.xpose.msra.mxu0 0.0
    %3045 = vmatprep.subr.mxu0 0.0
    %3046 = vmatpush1.xpose.msra.mxu0 0.0
    %3047 = vmatprep.mubr.f32.mxu0 0.0
    %3048 = vmatmul.mubr.f32.gmra.mrb[0].mxu0 %v2967
    %v3049 = vpop.f32.mrb[0].mxu0
    %v3050 = vadd.f32 0.0, %v3049
    %v3051 = vpop.f32.mrb[0].mxu0
    %3052 = vmatprep.mubr.f32.mxu0 0.0
    %3053 = vmatmul.mubr.f32.gmra.mrb[0].mxu0 %v2969
    %v3054 = vpop.f32.mrb[0].mxu0
    %v3055 = vadd.f32 0.0, %v3054
    %v3056 = vpop.f32.mrb[0].mxu0
    %3057 = vmatprep.mubr.f32.mxu0 0.0
    %3058 = vmatmul.mubr.f32.gmra.mrb[0].mxu0 %v2971
    %v3059 = vpop.f32.mrb[0].mxu0
    %v3060 = vadd.f32 0.0, %v3059
    %v3061 = vpop.f32.mrb[0].mxu0
    %3062 = vmatprep.mubr.f32.mxu0 0.0
    %3063 = vmatmul.mubr.f32.gmra.mrb[0].mxu0 %v2973
    %v3064 = vpop.f32.mrb[0].mxu0
    %v3065 = vadd.f32 0.0, %v3064
    %v3066 = vpop.f32.mrb[0].mxu0
    %3067 = vdwg.mxu0
    %v3068 = vmul.f32 %v3050, 0.35355338
    %v3069 = vmul.f32 %v3055, 0.35355338
    %v3070 = vmul.f32 %v3060, 0.35355338
    %v3071 = vmul.f32 %v3065, 0.35355338
    %v3072 = vadd.f32 %v3068, %v257
    %v3073 = vadd.f32 %v3069, %v258
    %v3074 = vadd.f32 %v3070, %v259
    %v3075 = vadd.f32 %v3071, %v260
    %v3076 = vsel %vm272, %v3072, -inf
    %3077 = vmax.xlane.f32.xlu0 %v3076
    %v3078 = vpop.xlane.xlu0 %3077
    %v3079 = vsel %vm272, %v3073, -inf
    %3080 = vmax.xlane.f32.xlu0 %v3079
    %v3081 = vpop.xlane.xlu0 %3080
    %v3082 = vsel %vm272, %v3074, -inf
    %3083 = vmax.xlane.f32.xlu0 %v3082
    %v3084 = vpop.xlane.xlu0 %3083
    %v3085 = vsel %vm272, %v3075, -inf
    %3086 = vmax.xlane.f32.xlu0 %v3085
    %v3087 = vpop.xlane.xlu0 %3086
    %v3088 = vsub.f32 %v3072, %v3078
    %v3089 = vsub.f32 %v3073, %v3081
    %v3090 = vsub.f32 %v3074, %v3084
    %v3091 = vsub.f32 %v3075, %v3087
    %v3092 = vmul.f32 %v3088, 1.442695
    %v3093 = vpow.pop %v3092
    %v3094 = vmul.f32 %v3089, 1.442695
    %v3095 = vpow.pop %v3094
    %v3096 = vmul.f32 %v3090, 1.442695
    %v3097 = vpow.pop %v3096
    %v3098 = vmul.f32 %v3091, 1.442695
    %v3099 = vpow.pop %v3098
    %v3100 = vsel %vm272, %v3093, 0.0
    %3101 = vadd.xlane.f32.xlu0 %v3100
    %v3102 = vpop.xlane.xlu0 %3101
    %v3103 = vsel %vm272, %v3095, 0.0
    %3104 = vadd.xlane.f32.xlu0 %v3103
    %v3105 = vpop.xlane.xlu0 %3104
    %v3106 = vsel %vm272, %v3097, 0.0
    %3107 = vadd.xlane.f32.xlu0 %v3106
    %v3108 = vpop.xlane.xlu0 %3107
    %v3109 = vsel %vm272, %v3099, 0.0
    %3110 = vadd.xlane.f32.xlu0 %v3109
    %v3111 = vpop.xlane.xlu0 %3110
    %v3112 = vrcp.pop %v3102
    %v3113 = vrcp.pop %v3105
    %v3114 = vrcp.pop %v3108
    %v3115 = vrcp.pop %v3111
    %v3116 = vmul.f32 %v3093, %v3112
    %v3117 = vmul.f32 %v3095, %v3113
    %v3118 = vmul.f32 %v3097, %v3114
    %v3119 = vmul.f32 %v3099, %v3115
    %3120 = vrot.lane.b32.xlu0 %v2369, 112
    %v3121 = vpop.permute.xlu0 %3120
    %3122 = vrot.lane.b32.xlu0 %v2374, 112
    %v3123 = vpop.permute.xlu0 %3122
    %3124 = vrot.lane.b32.xlu0 %v2379, 112
    %v3125 = vpop.permute.xlu0 %3124
    %3126 = vrot.lane.b32.xlu0 %v2384, 112
    %v3127 = vpop.permute.xlu0 %3126
    %v3133 = vsel %vm272, %v3116, 0
    %v3136 = vsel %vm272, %v3117, 0
    %v3139 = vsel %vm272, %v3118, 0
    %v3142 = vsel %vm272, %v3119, 0
    %3144 = vmatprep.subr.mxu0 0.0
    %3145 = vmatpush1.msra.mxu0 %v3121
    %3146 = vmatprep.subr.mxu0 0.0
    %3147 = vmatpush1.msra.mxu0 %v3123
    %3148 = vmatprep.subr.mxu0 0.0
    %3149 = vmatpush1.msra.mxu0 %v3125
    %3150 = vmatprep.subr.mxu0 0.0
    %3151 = vmatpush1.msra.mxu0 %v3127
    %3152 = vmatprep.subr.mxu0 0.0
    %3153 = vmatpush1.msra.mxu0 0.0
    %3154 = vmatprep.subr.mxu0 0.0
    %3155 = vmatpush1.msra.mxu0 0.0
    %3156 = vmatprep.subr.mxu0 0.0
    %3157 = vmatpush1.msra.mxu0 0.0
    %3158 = vmatprep.subr.mxu0 0.0
    %3159 = vmatpush1.msra.mxu0 0.0
    %3160 = vmatprep.subr.mxu0 0.0
    %3161 = vmatpush1.msra.mxu0 0.0
    %3162 = vmatprep.subr.mxu0 0.0
    %3163 = vmatpush1.msra.mxu0 0.0
    %3164 = vmatprep.subr.mxu0 0.0
    %3165 = vmatpush1.msra.mxu0 0.0
    %3166 = vmatprep.subr.mxu0 0.0
    %3167 = vmatpush1.msra.mxu0 0.0
    %3168 = vmatprep.subr.mxu0 0.0
    %3169 = vmatpush1.msra.mxu0 0.0
    %3170 = vmatprep.subr.mxu0 0.0
    %3171 = vmatpush1.msra.mxu0 0.0
    %3172 = vmatprep.subr.mxu0 0.0
    %3173 = vmatpush1.msra.mxu0 0.0
    %3174 = vmatprep.subr.mxu0 0.0
    %3175 = vmatpush1.msra.mxu0 0.0
    %3176 = vmatprep.subr.mxu0 0.0
    %3177 = vmatpush1.msra.mxu0 0.0
    %3178 = vmatprep.subr.mxu0 0.0
    %3179 = vmatpush1.msra.mxu0 0.0
    %3180 = vmatprep.subr.mxu0 0.0
    %3181 = vmatpush1.msra.mxu0 0.0
    %3182 = vmatprep.subr.mxu0 0.0
    %3183 = vmatpush1.msra.mxu0 0.0
    %3184 = vmatprep.subr.mxu0 0.0
    %3185 = vmatpush1.msra.mxu0 0.0
    %3186 = vmatprep.subr.mxu0 0.0
    %3187 = vmatpush1.msra.mxu0 0.0
    %3188 = vmatprep.subr.mxu0 0.0
    %3189 = vmatpush1.msra.mxu0 0.0
    %3190 = vmatprep.subr.mxu0 0.0
    %3191 = vmatpush1.msra.mxu0 0.0
    %3192 = vmatprep.subr.mxu0 0.0
    %3193 = vmatpush1.msra.mxu0 0.0
    %3194 = vmatprep.subr.mxu0 0.0
    %3195 = vmatpush1.msra.mxu0 0.0
    %3196 = vmatprep.subr.mxu0 0.0
    %3197 = vmatpush1.msra.mxu0 0.0
    %3198 = vmatprep.subr.mxu0 0.0
    %3199 = vmatpush1.msra.mxu0 0.0
    %3200 = vmatprep.subr.mxu0 0.0
    %3201 = vmatpush1.msra.mxu0 0.0
    %3202 = vmatprep.subr.mxu0 0.0
    %3203 = vmatpush1.msra.mxu0 0.0
    %3204 = vmatprep.subr.mxu0 0.0
    %3205 = vmatpush1.msra.mxu0 0.0
    %3206 = vmatprep.subr.mxu0 0.0
    %3207 = vmatpush1.msra.mxu0 0.0
    %3208 = vmatprep.mubr.f32.mxu0 0.0
    %3209 = vmatmul.mubr.f32.gmra.mrb[0].mxu0 %v3133
    %v3210 = vpop.f32.mrb[0].mxu0
    %v3211 = vadd.f32 0.0, %v3210
    %v3212 = vpop.f32.mrb[0].mxu0
    %3213 = vmatprep.mubr.f32.mxu0 0.0
    %3214 = vmatmul.mubr.f32.gmra.mrb[0].mxu0 %v3136
    %v3215 = vpop.f32.mrb[0].mxu0
    %v3216 = vadd.f32 0.0, %v3215
    %v3217 = vpop.f32.mrb[0].mxu0
    %3218 = vmatprep.mubr.f32.mxu0 0.0
    %3219 = vmatmul.mubr.f32.gmra.mrb[0].mxu0 %v3139
    %v3220 = vpop.f32.mrb[0].mxu0
    %v3221 = vadd.f32 0.0, %v3220
    %v3222 = vpop.f32.mrb[0].mxu0
    %3223 = vmatprep.mubr.f32.mxu0 0.0
    %3224 = vmatmul.mubr.f32.gmra.mrb[0].mxu0 %v3142
    %v3225 = vpop.f32.mrb[0].mxu0
    %v3226 = vadd.f32 0.0, %v3225
    %v3227 = vpop.f32.mrb[0].mxu0
    %3228 = vdwg.mxu0
    %3233 = vrot.lane.b32.xlu0 %v3211, 16
    %v3234 = vpop.permute.xlu0 %3233
    %3235 = vrot.lane.b32.xlu0 %v3216, 16
    %v3236 = vpop.permute.xlu0 %3235
    %3237 = vrot.lane.b32.xlu0 %v3221, 16
    %v3238 = vpop.permute.xlu0 %3237
    %3239 = vrot.lane.b32.xlu0 %v3226, 16
    %v3240 = vpop.permute.xlu0 %3239
    %3245 = vst.msk [vmem:[#allocation2] sm:$0xff] %vm1564, %v3234
    %3246 = vst.msk [vmem:[#allocation2 + $0x8] sm:$0xff] %vm1564, %v3236
    %3247 = vst.msk [vmem:[#allocation2 + $0x10] sm:$0xff] %vm1564, %v3238
    %3248 = vst.msk [vmem:[#allocation2 + $0x18] sm:$0xff] %vm1564, %v3240
    %3249 = vrot.lane.b32.xlu0 %v2177, 104
    %v3250 = vpop.permute.xlu0 %3249
    %3251 = vrot.lane.b32.xlu0 %v2182, 104
    %v3252 = vpop.permute.xlu0 %3251
    %3253 = vrot.lane.b32.xlu0 %v2187, 104
    %v3254 = vpop.permute.xlu0 %3253
    %3255 = vrot.lane.b32.xlu0 %v2192, 104
    %v3256 = vpop.permute.xlu0 %3255
    %3257 = vrot.lane.b32.xlu0 %v2273, 104
    %v3258 = vpop.permute.xlu0 %3257
    %3259 = vrot.lane.b32.xlu0 %v2278, 104
    %v3260 = vpop.permute.xlu0 %3259
    %3261 = vrot.lane.b32.xlu0 %v2283, 104
    %v3262 = vpop.permute.xlu0 %3261
    %3263 = vrot.lane.b32.xlu0 %v2288, 104
    %v3264 = vpop.permute.xlu0 %3263
    %v3265 = vsel %vm631, %v3250, 0
    %v3267 = vsel %vm631, %v3252, 0
    %v3269 = vsel %vm631, %v3254, 0
    %v3271 = vsel %vm631, %v3256, 0
    %v3273 = vsel %vm631, %v3258, 0
    %v3275 = vsel %vm631, %v3260, 0
    %v3277 = vsel %vm631, %v3262, 0
    %v3279 = vsel %vm631, %v3264, 0
    %3281 = vmatprep.subr.mxu0 0.0
    %3282 = vmatpush1.xpose.msra.mxu0 %v3273
    %3283 = vmatprep.subr.mxu0 0.0
    %3284 = vmatpush1.xpose.msra.mxu0 %v3275
    %3285 = vmatprep.subr.mxu0 0.0
    %3286 = vmatpush1.xpose.msra.mxu0 %v3277
    %3287 = vmatprep.subr.mxu0 0.0
    %3288 = vmatpush1.xpose.msra.mxu0 %v3279
    %3289 = vmatprep.subr.mxu0 0.0
    %3290 = vmatpush1.xpose.msra.mxu0 0.0
    %3291 = vmatprep.subr.mxu0 0.0
    %3292 = vmatpush1.xpose.msra.mxu0 0.0
    %3293 = vmatprep.subr.mxu0 0.0
    %3294 = vmatpush1.xpose.msra.mxu0 0.0
    %3295 = vmatprep.subr.mxu0 0.0
    %3296 = vmatpush1.xpose.msra.mxu0 0.0
    %3297 = vmatprep.subr.mxu0 0.0
    %3298 = vmatpush1.xpose.msra.mxu0 0.0
    %3299 = vmatprep.subr.mxu0 0.0
    %3300 = vmatpush1.xpose.msra.mxu0 0.0
    %3301 = vmatprep.subr.mxu0 0.0
    %3302 = vmatpush1.xpose.msra.mxu0 0.0
    %3303 = vmatprep.subr.mxu0 0.0
    %3304 = vmatpush1.xpose.msra.mxu0 0.0
    %3305 = vmatprep.subr.mxu0 0.0
    %3306 = vmatpush1.xpose.msra.mxu0 0.0
    %3307 = vmatprep.subr.mxu0 0.0
    %3308 = vmatpush1.xpose.msra.mxu0 0.0
    %3309 = vmatprep.subr.mxu0 0.0
    %3310 = vmatpush1.xpose.msra.mxu0 0.0
    %3311 = vmatprep.subr.mxu0 0.0
    %3312 = vmatpush1.xpose.msra.mxu0 0.0
    %3313 = vmatprep.subr.mxu0 0.0
    %3314 = vmatpush1.xpose.msra.mxu0 0.0
    %3315 = vmatprep.subr.mxu0 0.0
    %3316 = vmatpush1.xpose.msra.mxu0 0.0
    %3317 = vmatprep.subr.mxu0 0.0
    %3318 = vmatpush1.xpose.msra.mxu0 0.0
    %3319 = vmatprep.subr.mxu0 0.0
    %3320 = vmatpush1.xpose.msra.mxu0 0.0
    %3321 = vmatprep.subr.mxu0 0.0
    %3322 = vmatpush1.xpose.msra.mxu0 0.0
    %3323 = vmatprep.subr.mxu0 0.0
    %3324 = vmatpush1.xpose.msra.mxu0 0.0
    %3325 = vmatprep.subr.mxu0 0.0
    %3326 = vmatpush1.xpose.msra.mxu0 0.0
    %3327 = vmatprep.subr.mxu0 0.0
    %3328 = vmatpush1.xpose.msra.mxu0 0.0
    %3329 = vmatprep.subr.mxu0 0.0
    %3330 = vmatpush1.xpose.msra.mxu0 0.0
    %3331 = vmatprep.subr.mxu0 0.0
    %3332 = vmatpush1.xpose.msra.mxu0 0.0
    %3333 = vmatprep.subr.mxu0 0.0
    %3334 = vmatpush1.xpose.msra.mxu0 0.0
    %3335 = vmatprep.subr.mxu0 0.0
    %3336 = vmatpush1.xpose.msra.mxu0 0.0
    %3337 = vmatprep.subr.mxu0 0.0
    %3338 = vmatpush1.xpose.msra.mxu0 0.0
    %3339 = vmatprep.subr.mxu0 0.0
    %3340 = vmatpush1.xpose.msra.mxu0 0.0
    %3341 = vmatprep.subr.mxu0 0.0
    %3342 = vmatpush1.xpose.msra.mxu0 0.0
    %3343 = vmatprep.subr.mxu0 0.0
    %3344 = vmatpush1.xpose.msra.mxu0 0.0
    %3345 = vmatprep.mubr.f32.mxu0 0.0
    %3346 = vmatmul.mubr.f32.gmra.mrb[0].mxu0 %v3265
    %v3347 = vpop.f32.mrb[0].mxu0
    %v3348 = vadd.f32 0.0, %v3347
    %v3349 = vpop.f32.mrb[0].mxu0
    %3350 = vmatprep.mubr.f32.mxu0 0.0
    %3351 = vmatmul.mubr.f32.gmra.mrb[0].mxu0 %v3267
    %v3352 = vpop.f32.mrb[0].mxu0
    %v3353 = vadd.f32 0.0, %v3352
    %v3354 = vpop.f32.mrb[0].mxu0
    %3355 = vmatprep.mubr.f32.mxu0 0.0
    %3356 = vmatmul.mubr.f32.gmra.mrb[0].mxu0 %v3269
    %v3357 = vpop.f32.mrb[0].mxu0
    %v3358 = vadd.f32 0.0, %v3357
    %v3359 = vpop.f32.mrb[0].mxu0
    %3360 = vmatprep.mubr.f32.mxu0 0.0
    %3361 = vmatmul.mubr.f32.gmra.mrb[0].mxu0 %v3271
    %v3362 = vpop.f32.mrb[0].mxu0
    %v3363 = vadd.f32 0.0, %v3362
    %v3364 = vpop.f32.mrb[0].mxu0
    %3365 = vdwg.mxu0
    %v3366 = vmul.f32 %v3348, 0.35355338
    %v3367 = vmul.f32 %v3353, 0.35355338
    %v3368 = vmul.f32 %v3358, 0.35355338
    %v3369 = vmul.f32 %v3363, 0.35355338
    %v3370 = vadd.f32 %v3366, %v257
    %v3371 = vadd.f32 %v3367, %v258
    %v3372 = vadd.f32 %v3368, %v259
    %v3373 = vadd.f32 %v3369, %v260
    %v3374 = vsel %vm272, %v3370, -inf
    %3375 = vmax.xlane.f32.xlu0 %v3374
    %v3376 = vpop.xlane.xlu0 %3375
    %v3377 = vsel %vm272, %v3371, -inf
    %3378 = vmax.xlane.f32.xlu0 %v3377
    %v3379 = vpop.xlane.xlu0 %3378
    %v3380 = vsel %vm272, %v3372, -inf
    %3381 = vmax.xlane.f32.xlu0 %v3380
    %v3382 = vpop.xlane.xlu0 %3381
    %v3383 = vsel %vm272, %v3373, -inf
    %3384 = vmax.xlane.f32.xlu0 %v3383
    %v3385 = vpop.xlane.xlu0 %3384
    %v3386 = vsub.f32 %v3370, %v3376
    %v3387 = vsub.f32 %v3371, %v3379
    %v3388 = vsub.f32 %v3372, %v3382
    %v3389 = vsub.f32 %v3373, %v3385
    %v3390 = vmul.f32 %v3386, 1.442695
    %v3391 = vpow.pop %v3390
    %v3392 = vmul.f32 %v3387, 1.442695
    %v3393 = vpow.pop %v3392
    %v3394 = vmul.f32 %v3388, 1.442695
    %v3395 = vpow.pop %v3394
    %v3396 = vmul.f32 %v3389, 1.442695
    %v3397 = vpow.pop %v3396
    %v3398 = vsel %vm272, %v3391, 0.0
    %3399 = vadd.xlane.f32.xlu0 %v3398
    %v3400 = vpop.xlane.xlu0 %3399
    %v3401 = vsel %vm272, %v3393, 0.0
    %3402 = vadd.xlane.f32.xlu0 %v3401
    %v3403 = vpop.xlane.xlu0 %3402
    %v3404 = vsel %vm272, %v3395, 0.0
    %3405 = vadd.xlane.f32.xlu0 %v3404
    %v3406 = vpop.xlane.xlu0 %3405
    %v3407 = vsel %vm272, %v3397, 0.0
    %3408 = vadd.xlane.f32.xlu0 %v3407
    %v3409 = vpop.xlane.xlu0 %3408
    %v3410 = vrcp.pop %v3400
    %v3411 = vrcp.pop %v3403
    %v3412 = vrcp.pop %v3406
    %v3413 = vrcp.pop %v3409
    %v3414 = vmul.f32 %v3391, %v3410
    %v3415 = vmul.f32 %v3393, %v3411
    %v3416 = vmul.f32 %v3395, %v3412
    %v3417 = vmul.f32 %v3397, %v3413
    %3418 = vrot.lane.b32.xlu0 %v2369, 104
    %v3419 = vpop.permute.xlu0 %3418
    %3420 = vrot.lane.b32.xlu0 %v2374, 104
    %v3421 = vpop.permute.xlu0 %3420
    %3422 = vrot.lane.b32.xlu0 %v2379, 104
    %v3423 = vpop.permute.xlu0 %3422
    %3424 = vrot.lane.b32.xlu0 %v2384, 104
    %v3425 = vpop.permute.xlu0 %3424
    %v3431 = vsel %vm272, %v3414, 0
    %v3434 = vsel %vm272, %v3415, 0
    %v3437 = vsel %vm272, %v3416, 0
    %v3440 = vsel %vm272, %v3417, 0
    %3442 = vmatprep.subr.mxu0 0.0
    %3443 = vmatpush1.msra.mxu0 %v3419
    %3444 = vmatprep.subr.mxu0 0.0
    %3445 = vmatpush1.msra.mxu0 %v3421
    %3446 = vmatprep.subr.mxu0 0.0
    %3447 = vmatpush1.msra.mxu0 %v3423
    %3448 = vmatprep.subr.mxu0 0.0
    %3449 = vmatpush1.msra.mxu0 %v3425
    %3450 = vmatprep.subr.mxu0 0.0
    %3451 = vmatpush1.msra.mxu0 0.0
    %3452 = vmatprep.subr.mxu0 0.0
    %3453 = vmatpush1.msra.mxu0 0.0
    %3454 = vmatprep.subr.mxu0 0.0
    %3455 = vmatpush1.msra.mxu0 0.0
    %3456 = vmatprep.subr.mxu0 0.0
    %3457 = vmatpush1.msra.mxu0 0.0
    %3458 = vmatprep.subr.mxu0 0.0
    %3459 = vmatpush1.msra.mxu0 0.0
    %3460 = vmatprep.subr.mxu0 0.0
    %3461 = vmatpush1.msra.mxu0 0.0
    %3462 = vmatprep.subr.mxu0 0.0
    %3463 = vmatpush1.msra.mxu0 0.0
    %3464 = vmatprep.subr.mxu0 0.0
    %3465 = vmatpush1.msra.mxu0 0.0
    %3466 = vmatprep.subr.mxu0 0.0
    %3467 = vmatpush1.msra.mxu0 0.0
    %3468 = vmatprep.subr.mxu0 0.0
    %3469 = vmatpush1.msra.mxu0 0.0
    %3470 = vmatprep.subr.mxu0 0.0
    %3471 = vmatpush1.msra.mxu0 0.0
    %3472 = vmatprep.subr.mxu0 0.0
    %3473 = vmatpush1.msra.mxu0 0.0
    %3474 = vmatprep.subr.mxu0 0.0
    %3475 = vmatpush1.msra.mxu0 0.0
    %3476 = vmatprep.subr.mxu0 0.0
    %3477 = vmatpush1.msra.mxu0 0.0
    %3478 = vmatprep.subr.mxu0 0.0
    %3479 = vmatpush1.msra.mxu0 0.0
    %3480 = vmatprep.subr.mxu0 0.0
    %3481 = vmatpush1.msra.mxu0 0.0
    %3482 = vmatprep.subr.mxu0 0.0
    %3483 = vmatpush1.msra.mxu0 0.0
    %3484 = vmatprep.subr.mxu0 0.0
    %3485 = vmatpush1.msra.mxu0 0.0
    %3486 = vmatprep.subr.mxu0 0.0
    %3487 = vmatpush1.msra.mxu0 0.0
    %3488 = vmatprep.subr.mxu0 0.0
    %3489 = vmatpush1.msra.mxu0 0.0
    %3490 = vmatprep.subr.mxu0 0.0
    %3491 = vmatpush1.msra.mxu0 0.0
    %3492 = vmatprep.subr.mxu0 0.0
    %3493 = vmatpush1.msra.mxu0 0.0
    %3494 = vmatprep.subr.mxu0 0.0
    %3495 = vmatpush1.msra.mxu0 0.0
    %3496 = vmatprep.subr.mxu0 0.0
    %3497 = vmatpush1.msra.mxu0 0.0
    %3498 = vmatprep.subr.mxu0 0.0
    %3499 = vmatpush1.msra.mxu0 0.0
    %3500 = vmatprep.subr.mxu0 0.0
    %3501 = vmatpush1.msra.mxu0 0.0
    %3502 = vmatprep.subr.mxu0 0.0
    %3503 = vmatpush1.msra.mxu0 0.0
    %3504 = vmatprep.subr.mxu0 0.0
    %3505 = vmatpush1.msra.mxu0 0.0
    %3506 = vmatprep.mubr.f32.mxu0 0.0
    %3507 = vmatmul.mubr.f32.gmra.mrb[0].mxu0 %v3431
    %v3508 = vpop.f32.mrb[0].mxu0
    %v3509 = vadd.f32 0.0, %v3508
    %v3510 = vpop.f32.mrb[0].mxu0
    %3511 = vmatprep.mubr.f32.mxu0 0.0
    %3512 = vmatmul.mubr.f32.gmra.mrb[0].mxu0 %v3434
    %v3513 = vpop.f32.mrb[0].mxu0
    %v3514 = vadd.f32 0.0, %v3513
    %v3515 = vpop.f32.mrb[0].mxu0
    %3516 = vmatprep.mubr.f32.mxu0 0.0
    %3517 = vmatmul.mubr.f32.gmra.mrb[0].mxu0 %v3437
    %v3518 = vpop.f32.mrb[0].mxu0
    %v3519 = vadd.f32 0.0, %v3518
    %v3520 = vpop.f32.mrb[0].mxu0
    %3521 = vmatprep.mubr.f32.mxu0 0.0
    %3522 = vmatmul.mubr.f32.gmra.mrb[0].mxu0 %v3440
    %v3523 = vpop.f32.mrb[0].mxu0
    %v3524 = vadd.f32 0.0, %v3523
    %v3525 = vpop.f32.mrb[0].mxu0
    %3526 = vdwg.mxu0
    %3531 = vrot.lane.b32.xlu0 %v3509, 24
    %v3532 = vpop.permute.xlu0 %3531
    %3533 = vrot.lane.b32.xlu0 %v3514, 24
    %v3534 = vpop.permute.xlu0 %3533
    %3535 = vrot.lane.b32.xlu0 %v3519, 24
    %v3536 = vpop.permute.xlu0 %3535
    %3537 = vrot.lane.b32.xlu0 %v3524, 24
    %v3538 = vpop.permute.xlu0 %3537
    %3543 = vst.msk [vmem:[#allocation2] sm:$0xff] %vm1891, %v3532
    %3544 = vst.msk [vmem:[#allocation2 + $0x8] sm:$0xff] %vm1891, %v3534
    %3545 = vst.msk [vmem:[#allocation2 + $0x10] sm:$0xff] %vm1891, %v3536
    %3546 = vst.msk [vmem:[#allocation2 + $0x18] sm:$0xff] %vm1891, %v3538
    %v3547 = vld [vmem:[#allocation2] sm:$0xff]
    %v3548 = vld [vmem:[#allocation2 + $0x8] sm:$0xff]
    %v3549 = vld [vmem:[#allocation2 + $0x10] sm:$0xff]
    %v3550 = vld [vmem:[#allocation2 + $0x18] sm:$0xff]
    %v3551 = vld [vmem:[%s16] sm:$0xff]
    %v3552 = vld [vmem:[%s16 + $0x8] sm:$0xff]
    %v3553 = vld [vmem:[%s16 + $0x10] sm:$0xff]
    %v3554 = vld [vmem:[%s16 + $0x18] sm:$0xff]
    %v3555 = vld [vmem:[%s17] sm:$0x1]
    %v3557 = vlaneseq
    %v3558 = vshrl.u32 %v3557, 7
    %v3559 = vsub.s32 0, %v3558
    %v3560 = vrot.slane %v3555, %v3559
    %v3563 = vsel %vm272, %v3547, 0
    %v3566 = vsel %vm272, %v3548, 0
    %v3569 = vsel %vm272, %v3549, 0
    %v3572 = vsel %vm272, %v3550, 0
    %3574 = vmatprep.subr.mxu0 0.0
    %3575 = vmatpush1.msra.mxu0 %v3551
    %3576 = vmatprep.subr.mxu0 0.0
    %3577 = vmatpush1.msra.mxu0 %v3552
    %3578 = vmatprep.subr.mxu0 0.0
    %3579 = vmatpush1.msra.mxu0 %v3553
    %3580 = vmatprep.subr.mxu0 0.0
    %3581 = vmatpush1.msra.mxu0 %v3554
    %3582 = vmatprep.subr.mxu0 0.0
    %3583 = vmatpush1.msra.mxu0 0.0
    %3584 = vmatprep.subr.mxu0 0.0
    %3585 = vmatpush1.msra.mxu0 0.0
    %3586 = vmatprep.subr.mxu0 0.0
    %3587 = vmatpush1.msra.mxu0 0.0
    %3588 = vmatprep.subr.mxu0 0.0
    %3589 = vmatpush1.msra.mxu0 0.0
    %3590 = vmatprep.subr.mxu0 0.0
    %3591 = vmatpush1.msra.mxu0 0.0
    %3592 = vmatprep.subr.mxu0 0.0
    %3593 = vmatpush1.msra.mxu0 0.0
    %3594 = vmatprep.subr.mxu0 0.0
    %3595 = vmatpush1.msra.mxu0 0.0
    %3596 = vmatprep.subr.mxu0 0.0
    %3597 = vmatpush1.msra.mxu0 0.0
    %3598 = vmatprep.subr.mxu0 0.0
    %3599 = vmatpush1.msra.mxu0 0.0
    %3600 = vmatprep.subr.mxu0 0.0
    %3601 = vmatpush1.msra.mxu0 0.0
    %3602 = vmatprep.subr.mxu0 0.0
    %3603 = vmatpush1.msra.mxu0 0.0
    %3604 = vmatprep.subr.mxu0 0.0
    %3605 = vmatpush1.msra.mxu0 0.0
    %3606 = vmatprep.subr.mxu0 0.0
    %3607 = vmatpush1.msra.mxu0 0.0
    %3608 = vmatprep.subr.mxu0 0.0
    %3609 = vmatpush1.msra.mxu0 0.0
    %3610 = vmatprep.subr.mxu0 0.0
    %3611 = vmatpush1.msra.mxu0 0.0
    %3612 = vmatprep.subr.mxu0 0.0
    %3613 = vmatpush1.msra.mxu0 0.0
    %3614 = vmatprep.subr.mxu0 0.0
    %3615 = vmatpush1.msra.mxu0 0.0
    %3616 = vmatprep.subr.mxu0 0.0
    %3617 = vmatpush1.msra.mxu0 0.0
    %3618 = vmatprep.subr.mxu0 0.0
    %3619 = vmatpush1.msra.mxu0 0.0
    %3620 = vmatprep.subr.mxu0 0.0
    %3621 = vmatpush1.msra.mxu0 0.0
    %3622 = vmatprep.subr.mxu0 0.0
    %3623 = vmatpush1.msra.mxu0 0.0
    %3624 = vmatprep.subr.mxu0 0.0
    %3625 = vmatpush1.msra.mxu0 0.0
    %3626 = vmatprep.subr.mxu0 0.0
    %3627 = vmatpush1.msra.mxu0 0.0
    %3628 = vmatprep.subr.mxu0 0.0
    %3629 = vmatpush1.msra.mxu0 0.0
    %3630 = vmatprep.subr.mxu0 0.0
    %3631 = vmatpush1.msra.mxu0 0.0
    %3632 = vmatprep.subr.mxu0 0.0
    %3633 = vmatpush1.msra.mxu0 0.0
    %3634 = vmatprep.subr.mxu0 0.0
    %3635 = vmatpush1.msra.mxu0 0.0
    %3636 = vmatprep.subr.mxu0 0.0
    %3637 = vmatpush1.msra.mxu0 0.0
    %3638 = vmatprep.mubr.f32.mxu0 0.0
    %3639 = vmatmul.mubr.f32.gmra.mrb[0].mxu0 %v3563
    %v3640 = vpop.f32.mrb[0].mxu0
    %v3641 = vadd.f32 %v3560, %v3640
    %v3642 = vpop.f32.mrb[0].mxu0
    %3643 = vmatprep.mubr.f32.mxu0 0.0
    %3644 = vmatmul.mubr.f32.gmra.mrb[0].mxu0 %v3566
    %v3645 = vpop.f32.mrb[0].mxu0
    %v3646 = vadd.f32 %v3560, %v3645
    %v3647 = vpop.f32.mrb[0].mxu0
    %3648 = vmatprep.mubr.f32.mxu0 0.0
    %3649 = vmatmul.mubr.f32.gmra.mrb[0].mxu0 %v3569
    %v3650 = vpop.f32.mrb[0].mxu0
    %v3651 = vadd.f32 %v3560, %v3650
    %v3652 = vpop.f32.mrb[0].mxu0
    %3653 = vmatprep.mubr.f32.mxu0 0.0
    %3654 = vmatmul.mubr.f32.gmra.mrb[0].mxu0 %v3572
    %v3655 = vpop.f32.mrb[0].mxu0
    %v3656 = vadd.f32 %v3560, %v3655
    %v3657 = vpop.f32.mrb[0].mxu0
    %3658 = vdwg.mxu0
    %v3659 = vadd.f32 %v2083, %v3641
    %v3660 = vadd.f32 %v2084, %v3646
    %v3661 = vadd.f32 %v2085, %v3651
    %v3662 = vadd.f32 %v2086, %v3656
    %v3663 = vld [vmem:[%s20] sm:$0x1]
    %v3664 = vld [vmem:[%s21] sm:$0x1]
    %v3665 = vsel %vm272, %v3659, 0.0
    %3666 = vadd.xlane.f32.xlu0 %v3665
    %v3667 = vpop.xlane.xlu0 %3666
    %v3668 = vsel %vm272, %v3660, 0.0
    %3669 = vadd.xlane.f32.xlu0 %v3668
    %v3670 = vpop.xlane.xlu0 %3669
    %v3671 = vsel %vm272, %v3661, 0.0
    %3672 = vadd.xlane.f32.xlu0 %v3671
    %v3673 = vpop.xlane.xlu0 %3672
    %v3674 = vsel %vm272, %v3662, 0.0
    %3675 = vadd.xlane.f32.xlu0 %v3674
    %v3676 = vpop.xlane.xlu0 %3675
    %v3677 = vmul.f32 %v3667, %v2026
    %v3678 = vmul.f32 %v3670, %v2026
    %v3679 = vmul.f32 %v3673, %v2026
    %v3680 = vmul.f32 %v3676, %v2026
    %v3681 = vsub.f32 %v3659, %v3677
    %v3682 = vsub.f32 %v3660, %v3678
    %v3683 = vsub.f32 %v3661, %v3679
    %v3684 = vsub.f32 %v3662, %v3680
    %v3685 = vmul.f32 %v3681, %v3681
    %v3686 = vmul.f32 %v3682, %v3682
    %v3687 = vmul.f32 %v3683, %v3683
    %v3688 = vmul.f32 %v3684, %v3684
    %v3689 = vsel %vm272, %v3685, 0.0
    %3690 = vadd.xlane.f32.xlu0 %v3689
    %v3691 = vpop.xlane.xlu0 %3690
    %v3692 = vsel %vm272, %v3686, 0.0
    %3693 = vadd.xlane.f32.xlu0 %v3692
    %v3694 = vpop.xlane.xlu0 %3693
    %v3695 = vsel %vm272, %v3687, 0.0
    %3696 = vadd.xlane.f32.xlu0 %v3695
    %v3697 = vpop.xlane.xlu0 %3696
    %v3698 = vsel %vm272, %v3688, 0.0
    %3699 = vadd.xlane.f32.xlu0 %v3698
    %v3700 = vpop.xlane.xlu0 %3699
    %v3701 = vmul.f32 %v3691, %v2026
    %v3702 = vmul.f32 %v3694, %v2026
    %v3703 = vmul.f32 %v3697, %v2026
    %v3704 = vmul.f32 %v3700, %v2026
    %v3705 = vadd.f32 %v3701, 1e-05
    %v3706 = vadd.f32 %v3702, 1e-05
    %v3707 = vadd.f32 %v3703, 1e-05
    %v3708 = vadd.f32 %v3704, 1e-05
    %v3709 = vrsqrt.pop %v3705
    %v3710 = vrsqrt.pop %v3706
    %v3711 = vrsqrt.pop %v3707
    %v3712 = vrsqrt.pop %v3708
    %v3713 = vmul.f32 %v3681, %v3709
    %v3714 = vmul.f32 %v3682, %v3710
    %v3715 = vmul.f32 %v3683, %v3711
    %v3716 = vmul.f32 %v3684, %v3712
    %v3718 = vlaneseq
    %v3719 = vshrl.u32 %v3718, 7
    %v3720 = vsub.s32 0, %v3719
    %v3721 = vrot.slane %v3663, %v3720
    %v3723 = vmul.f32 %v3713, %v3721
    %v3724 = vmul.f32 %v3714, %v3721
    %v3725 = vmul.f32 %v3715, %v3721
    %v3726 = vmul.f32 %v3716, %v3721
    %v3728 = vlaneseq
    %v3729 = vshrl.u32 %v3728, 7
    %v3730 = vsub.s32 0, %v3729
    %v3731 = vrot.slane %v3664, %v3730
    %v3733 = vadd.f32 %v3723, %v3731
    %v3734 = vadd.f32 %v3724, %v3731
    %v3735 = vadd.f32 %v3725, %v3731
    %v3736 = vadd.f32 %v3726, %v3731
    %v3737 = vld [vmem:[%s24] sm:$0xff]
    %v3738 = vld [vmem:[%s24 + $0x8] sm:$0xff]
    %v3739 = vld [vmem:[%s24 + $0x10] sm:$0xff]
    %v3740 = vld [vmem:[%s24 + $0x18] sm:$0xff]
    %v3741 = vld [vmem:[%s25] sm:$0x1]
    %v3743 = vlaneseq
    %v3744 = vshrl.u32 %v3743, 7
    %v3745 = vsub.s32 0, %v3744
    %v3746 = vrot.slane %v3741, %v3745
    %v3749 = vsel %vm272, %v3733, 0
    %v3752 = vsel %vm272, %v3734, 0
    %v3755 = vsel %vm272, %v3735, 0
    %v3758 = vsel %vm272, %v3736, 0
    %3760 = vmatprep.subr.mxu0 0.0
    %3761 = vmatpush1.msra.mxu0 %v3737
    %3762 = vmatprep.subr.mxu0 0.0
    %3763 = vmatpush1.msra.mxu0 %v3738
    %3764 = vmatprep.subr.mxu0 0.0
    %3765 = vmatpush1.msra.mxu0 %v3739
    %3766 = vmatprep.subr.mxu0 0.0
    %3767 = vmatpush1.msra.mxu0 %v3740
    %3768 = vmatprep.subr.mxu0 0.0
    %3769 = vmatpush1.msra.mxu0 0.0
    %3770 = vmatprep.subr.mxu0 0.0
    %3771 = vmatpush1.msra.mxu0 0.0
    %3772 = vmatprep.subr.mxu0 0.0
    %3773 = vmatpush1.msra.mxu0 0.0
    %3774 = vmatprep.subr.mxu0 0.0
    %3775 = vmatpush1.msra.mxu0 0.0
    %3776 = vmatprep.subr.mxu0 0.0
    %3777 = vmatpush1.msra.mxu0 0.0
    %3778 = vmatprep.subr.mxu0 0.0
    %3779 = vmatpush1.msra.mxu0 0.0
    %3780 = vmatprep.subr.mxu0 0.0
    %3781 = vmatpush1.msra.mxu0 0.0
    %3782 = vmatprep.subr.mxu0 0.0
    %3783 = vmatpush1.msra.mxu0 0.0
    %3784 = vmatprep.subr.mxu0 0.0
    %3785 = vmatpush1.msra.mxu0 0.0
    %3786 = vmatprep.subr.mxu0 0.0
    %3787 = vmatpush1.msra.mxu0 0.0
    %3788 = vmatprep.subr.mxu0 0.0
    %3789 = vmatpush1.msra.mxu0 0.0
    %3790 = vmatprep.subr.mxu0 0.0
    %3791 = vmatpush1.msra.mxu0 0.0
    %3792 = vmatprep.subr.mxu0 0.0
    %3793 = vmatpush1.msra.mxu0 0.0
    %3794 = vmatprep.subr.mxu0 0.0
    %3795 = vmatpush1.msra.mxu0 0.0
    %3796 = vmatprep.subr.mxu0 0.0
    %3797 = vmatpush1.msra.mxu0 0.0
    %3798 = vmatprep.subr.mxu0 0.0
    %3799 = vmatpush1.msra.mxu0 0.0
    %3800 = vmatprep.subr.mxu0 0.0
    %3801 = vmatpush1.msra.mxu0 0.0
    %3802 = vmatprep.subr.mxu0 0.0
    %3803 = vmatpush1.msra.mxu0 0.0
    %3804 = vmatprep.subr.mxu0 0.0
    %3805 = vmatpush1.msra.mxu0 0.0
    %3806 = vmatprep.subr.mxu0 0.0
    %3807 = vmatpush1.msra.mxu0 0.0
    %3808 = vmatprep.subr.mxu0 0.0
    %3809 = vmatpush1.msra.mxu0 0.0
    %3810 = vmatprep.subr.mxu0 0.0
    %3811 = vmatpush1.msra.mxu0 0.0
    %3812 = vmatprep.subr.mxu0 0.0
    %3813 = vmatpush1.msra.mxu0 0.0
    %3814 = vmatprep.subr.mxu0 0.0
    %3815 = vmatpush1.msra.mxu0 0.0
    %3816 = vmatprep.subr.mxu0 0.0
    %3817 = vmatpush1.msra.mxu0 0.0
    %3818 = vmatprep.subr.mxu0 0.0
    %3819 = vmatpush1.msra.mxu0 0.0
    %3820 = vmatprep.subr.mxu0 0.0
    %3821 = vmatpush1.msra.mxu0 0.0
    %3822 = vmatprep.subr.mxu0 0.0
    %3823 = vmatpush1.msra.mxu0 0.0
    %3824 = vmatprep.mubr.f32.mxu0 0.0
    %3825 = vmatmul.mubr.f32.gmra.mrb[0].mxu0 %v3749
    %v3826 = vpop.f32.mrb[0].mxu0
    %v3827 = vadd.f32 %v3746, %v3826
    %v3828 = vpop.f32.mrb[0].mxu0
    %3829 = vmatprep.mubr.f32.mxu0 0.0
    %3830 = vmatmul.mubr.f32.gmra.mrb[0].mxu0 %v3752
    %v3831 = vpop.f32.mrb[0].mxu0
    %v3832 = vadd.f32 %v3746, %v3831
    %v3833 = vpop.f32.mrb[0].mxu0
    %3834 = vmatprep.mubr.f32.mxu0 0.0
    %3835 = vmatmul.mubr.f32.gmra.mrb[0].mxu0 %v3755
    %v3836 = vpop.f32.mrb[0].mxu0
    %v3837 = vadd.f32 %v3746, %v3836
    %v3838 = vpop.f32.mrb[0].mxu0
    %3839 = vmatprep.mubr.f32.mxu0 0.0
    %3840 = vmatmul.mubr.f32.gmra.mrb[0].mxu0 %v3758
    %v3841 = vpop.f32.mrb[0].mxu0
    %v3842 = vadd.f32 %v3746, %v3841
    %v3843 = vpop.f32.mrb[0].mxu0
    %3844 = vdwg.mxu0
    %v3845 = vmul.f32 %v3827, 0.5
    %v3846 = vmul.f32 %v3832, 0.5
    %v3847 = vmul.f32 %v3837, 0.5
    %v3848 = vmul.f32 %v3842, 0.5
    %v3849 = vmul.f32 %v3827, 0.70710677
    %v3850 = vmul.f32 %v3832, 0.70710677
    %v3851 = vmul.f32 %v3837, 0.70710677
    %v3852 = vmul.f32 %v3842, 0.70710677
    %v3853 = vand.u32 2147483647, %v3849
    %v3854 = vand.u32 2147483647, %v3850
    %v3855 = vand.u32 2147483647, %v3851
    %v3856 = vand.u32 2147483647, %v3852
    %v3857 = vmul.f32 %v3853, 0.3275911
    %v3858 = vmul.f32 %v3854, 0.3275911
    %v3859 = vmul.f32 %v3855, 0.3275911
    %v3860 = vmul.f32 %v3856, 0.3275911
    %v3861 = vadd.f32 %v3857, 1.0
    %v3862 = vadd.f32 %v3858, 1.0
    %v3863 = vadd.f32 %v3859, 1.0
    %v3864 = vadd.f32 %v3860, 1.0
    %v3865 = vrcp.pop %v3861
    %v3866 = vrcp.pop %v3862
    %v3867 = vrcp.pop %v3863
    %v3868 = vrcp.pop %v3864
    %v3869 = vmul.f32 %v3865, 1.0614054
    %v3870 = vmul.f32 %v3866, 1.0614054
    %v3871 = vmul.f32 %v3867, 1.0614054
    %v3872 = vmul.f32 %v3868, 1.0614054
    %v3873 = vadd.f32 %v3869, -1.4531521
    %v3874 = vadd.f32 %v3870, -1.4531521
    %v3875 = vadd.f32 %v3871, -1.4531521
    %v3876 = vadd.f32 %v3872, -1.4531521
    %v3877 = vmul.f32 %v3873, %v3865
    %v3878 = vmul.f32 %v3874, %v3866
    %v3879 = vmul.f32 %v3875, %v3867
    %v3880 = vmul.f32 %v3876, %v3868
    %v3881 = vadd.f32 %v3877, 1.4214138
    %v3882 = vadd.f32 %v3878, 1.4214138
    %v3883 = vadd.f32 %v3879, 1.4214138
    %v3884 = vadd.f32 %v3880, 1.4214138
    %v3885 = vmul.f32 %v3881, %v3865
    %v3886 = vmul.f32 %v3882, %v3866
    %v3887 = vmul.f32 %v3883, %v3867
    %v3888 = vmul.f32 %v3884, %v3868
    %v3889 = vadd.f32 %v3885, -0.28449672
    %v3890 = vadd.f32 %v3886, -0.28449672
    %v3891 = vadd.f32 %v3887, -0.28449672
    %v3892 = vadd.f32 %v3888, -0.28449672
    %v3893 = vmul.f32 %v3889, %v3865
    %v3894 = vmul.f32 %v3890, %v3866
    %v3895 = vmul.f32 %v3891, %v3867
    %v3896 = vmul.f32 %v3892, %v3868
    %v3897 = vadd.f32 %v3893, 0.2548296
    %v3898 = vadd.f32 %v3894, 0.2548296
    %v3899 = vadd.f32 %v3895, 0.2548296
    %v3900 = vadd.f32 %v3896, 0.2548296
    %v3901 = vmul.f32 %v3897, %v3865
    %v3902 = vmul.f32 %v3898, %v3866
    %v3903 = vmul.f32 %v3899, %v3867
    %v3904 = vmul.f32 %v3900, %v3868
    %v3905 = vsub.f32 0.0, %v3853
    %v3906 = vsub.f32 0.0, %v3854
    %v3907 = vsub.f32 0.0, %v3855
    %v3908 = vsub.f32 0.0, %v3856
    %v3909 = vmul.f32 %v3905, %v3853
    %v3910 = vmul.f32 %v3906, %v3854
    %v3911 = vmul.f32 %v3907, %v3855
    %v3912 = vmul.f32 %v3908, %v3856
    %v3913 = vmul.f32 %v3909, 1.442695
    %v3914 = vpow.pop %v3913
    %v3915 = vmul.f32 %v3910, 1.442695
    %v3916 = vpow.pop %v3915
    %v3917 = vmul.f32 %v3911, 1.442695
    %v3918 = vpow.pop %v3917
    %v3919 = vmul.f32 %v3912, 1.442695
    %v3920 = vpow.pop %v3919
    %v3921 = vmul.f32 %v3901, %v3914
    %v3922 = vmul.f32 %v3902, %v3916
    %v3923 = vmul.f32 %v3903, %v3918
    %v3924 = vmul.f32 %v3904, %v3920
    %v3925 = vsub.f32 1.0, %v3921
    %v3926 = vsub.f32 1.0, %v3922
    %v3927 = vsub.f32 1.0, %v3923
    %v3928 = vsub.f32 1.0, %v3924
    %vm3929 = vcmp.ge.f32.partialorder %v3849, 0.0
    %vm3930 = vcmp.ge.f32.partialorder %v3850, 0.0
    %vm3931 = vcmp.ge.f32.partialorder %v3851, 0.0
    %vm3932 = vcmp.ge.f32.partialorder %v3852, 0.0
    %v3933 = vsub.f32 0.0, %v3925
    %v3934 = vsub.f32 0.0, %v3926
    %v3935 = vsub.f32 0.0, %v3927
    %v3936 = vsub.f32 0.0, %v3928
    %v3937 = vsel %vm3929, %v3925, %v3933
    %v3938 = vsel %vm3930, %v3926, %v3934
    %v3939 = vsel %vm3931, %v3927, %v3935
    %v3940 = vsel %vm3932, %v3928, %v3936
    %v3941 = vadd.f32 %v3937, 1.0
    %v3942 = vadd.f32 %v3938, 1.0
    %v3943 = vadd.f32 %v3939, 1.0
    %v3944 = vadd.f32 %v3940, 1.0
    %v3945 = vmul.f32 %v3845, %v3941
    %v3946 = vmul.f32 %v3846, %v3942
    %v3947 = vmul.f32 %v3847, %v3943
    %v3948 = vmul.f32 %v3848, %v3944
    %v3949 = vld [vmem:[%s26] sm:$0xff]
    %v3950 = vld [vmem:[%s26 + $0x8] sm:$0xff]
    %v3951 = vld [vmem:[%s26 + $0x10] sm:$0xff]
    %v3952 = vld [vmem:[%s26 + $0x18] sm:$0xff]
    %v3953 = vld [vmem:[%s26 + $0x20] sm:$0xff]
    %v3954 = vld [vmem:[%s26 + $0x28] sm:$0xff]
    %v3955 = vld [vmem:[%s26 + $0x30] sm:$0xff]
    %v3956 = vld [vmem:[%s26 + $0x38] sm:$0xff]
    %v3957 = vld [vmem:[%s26 + $0x40] sm:$0xff]
    %v3958 = vld [vmem:[%s26 + $0x48] sm:$0xff]
    %v3959 = vld [vmem:[%s26 + $0x50] sm:$0xff]
    %v3960 = vld [vmem:[%s26 + $0x58] sm:$0xff]
    %v3961 = vld [vmem:[%s26 + $0x60] sm:$0xff]
    %v3962 = vld [vmem:[%s26 + $0x68] sm:$0xff]
    %v3963 = vld [vmem:[%s26 + $0x70] sm:$0xff]
    %v3964 = vld [vmem:[%s26 + $0x78] sm:$0xff]
    %v3965 = vld [vmem:[%s27] sm:$0x1]
    %v3967 = vlaneseq
    %v3968 = vshrl.u32 %v3967, 7
    %v3969 = vsub.s32 0, %v3968
    %v3970 = vrot.slane %v3965, %v3969
    %3972 = vmatprep.subr.mxu0 0.0
    %3973 = vmatpush1.msra.mxu0 %v3949
    %3974 = vmatprep.subr.mxu0 0.0
    %3975 = vmatpush1.msra.mxu0 %v3950
    %3976 = vmatprep.subr.mxu0 0.0
    %3977 = vmatpush1.msra.mxu0 %v3951
    %3978 = vmatprep.subr.mxu0 0.0
    %3979 = vmatpush1.msra.mxu0 %v3952
    %3980 = vmatprep.subr.mxu0 0.0
    %3981 = vmatpush1.msra.mxu0 %v3953
    %3982 = vmatprep.subr.mxu0 0.0
    %3983 = vmatpush1.msra.mxu0 %v3954
    %3984 = vmatprep.subr.mxu0 0.0
    %3985 = vmatpush1.msra.mxu0 %v3955
    %3986 = vmatprep.subr.mxu0 0.0
    %3987 = vmatpush1.msra.mxu0 %v3956
    %3988 = vmatprep.subr.mxu0 0.0
    %3989 = vmatpush1.msra.mxu0 %v3957
    %3990 = vmatprep.subr.mxu0 0.0
    %3991 = vmatpush1.msra.mxu0 %v3958
    %3992 = vmatprep.subr.mxu0 0.0
    %3993 = vmatpush1.msra.mxu0 %v3959
    %3994 = vmatprep.subr.mxu0 0.0
    %3995 = vmatpush1.msra.mxu0 %v3960
    %3996 = vmatprep.subr.mxu0 0.0
    %3997 = vmatpush1.msra.mxu0 %v3961
    %3998 = vmatprep.subr.mxu0 0.0
    %3999 = vmatpush1.msra.mxu0 %v3962
    %4000 = vmatprep.subr.mxu0 0.0
    %4001 = vmatpush1.msra.mxu0 %v3963
    %4002 = vmatprep.subr.mxu0 0.0
    %4003 = vmatpush1.msra.mxu0 %v3964
    %4004 = vmatprep.subr.mxu0 0.0
    %4005 = vmatpush1.msra.mxu0 0.0
    %4006 = vmatprep.subr.mxu0 0.0
    %4007 = vmatpush1.msra.mxu0 0.0
    %4008 = vmatprep.subr.mxu0 0.0
    %4009 = vmatpush1.msra.mxu0 0.0
    %4010 = vmatprep.subr.mxu0 0.0
    %4011 = vmatpush1.msra.mxu0 0.0
    %4012 = vmatprep.subr.mxu0 0.0
    %4013 = vmatpush1.msra.mxu0 0.0
    %4014 = vmatprep.subr.mxu0 0.0
    %4015 = vmatpush1.msra.mxu0 0.0
    %4016 = vmatprep.subr.mxu0 0.0
    %4017 = vmatpush1.msra.mxu0 0.0
    %4018 = vmatprep.subr.mxu0 0.0
    %4019 = vmatpush1.msra.mxu0 0.0
    %4020 = vmatprep.subr.mxu0 0.0
    %4021 = vmatpush1.msra.mxu0 0.0
    %4022 = vmatprep.subr.mxu0 0.0
    %4023 = vmatpush1.msra.mxu0 0.0
    %4024 = vmatprep.subr.mxu0 0.0
    %4025 = vmatpush1.msra.mxu0 0.0
    %4026 = vmatprep.subr.mxu0 0.0
    %4027 = vmatpush1.msra.mxu0 0.0
    %4028 = vmatprep.subr.mxu0 0.0
    %4029 = vmatpush1.msra.mxu0 0.0
    %4030 = vmatprep.subr.mxu0 0.0
    %4031 = vmatpush1.msra.mxu0 0.0
    %4032 = vmatprep.subr.mxu0 0.0
    %4033 = vmatpush1.msra.mxu0 0.0
    %4034 = vmatprep.subr.mxu0 0.0
    %4035 = vmatpush1.msra.mxu0 0.0
    %4036 = vmatprep.mubr.f32.mxu0 0.0
    %4037 = vmatmul.mubr.f32.gmra.mrb[0].mxu0 %v3945
    %v4038 = vpop.f32.mrb[0].mxu0
    %v4039 = vadd.f32 %v3970, %v4038
    %v4040 = vpop.f32.mrb[0].mxu0
    %4041 = vmatprep.mubr.f32.mxu0 0.0
    %4042 = vmatmul.mubr.f32.gmra.mrb[0].mxu0 %v3946
    %v4043 = vpop.f32.mrb[0].mxu0
    %v4044 = vadd.f32 %v3970, %v4043
    %v4045 = vpop.f32.mrb[0].mxu0
    %4046 = vmatprep.mubr.f32.mxu0 0.0
    %4047 = vmatmul.mubr.f32.gmra.mrb[0].mxu0 %v3947
    %v4048 = vpop.f32.mrb[0].mxu0
    %v4049 = vadd.f32 %v3970, %v4048
    %v4050 = vpop.f32.mrb[0].mxu0
    %4051 = vmatprep.mubr.f32.mxu0 0.0
    %4052 = vmatmul.mubr.f32.gmra.mrb[0].mxu0 %v3948
    %v4053 = vpop.f32.mrb[0].mxu0
    %v4054 = vadd.f32 %v3970, %v4053
    %v4055 = vpop.f32.mrb[0].mxu0
    %4056 = vdwg.mxu0
    %v4057 = vadd.f32 %v3733, %v4039
    %v4058 = vadd.f32 %v3734, %v4044
    %v4059 = vadd.f32 %v3735, %v4049
    %v4060 = vadd.f32 %v3736, %v4054
    %v4061 = vld [vmem:[%s22] sm:$0x1]
    %v4062 = vld [vmem:[%s23] sm:$0x1]
    %v4063 = vsel %vm272, %v4057, 0.0
    %4064 = vadd.xlane.f32.xlu0 %v4063
    %v4065 = vpop.xlane.xlu0 %4064
    %v4066 = vsel %vm272, %v4058, 0.0
    %4067 = vadd.xlane.f32.xlu0 %v4066
    %v4068 = vpop.xlane.xlu0 %4067
    %v4069 = vsel %vm272, %v4059, 0.0
    %4070 = vadd.xlane.f32.xlu0 %v4069
    %v4071 = vpop.xlane.xlu0 %4070
    %v4072 = vsel %vm272, %v4060, 0.0
    %4073 = vadd.xlane.f32.xlu0 %v4072
    %v4074 = vpop.xlane.xlu0 %4073
    %v4075 = vmul.f32 %v4065, %v2026
    %v4076 = vmul.f32 %v4068, %v2026
    %v4077 = vmul.f32 %v4071, %v2026
    %v4078 = vmul.f32 %v4074, %v2026
    %v4079 = vsub.f32 %v4057, %v4075
    %v4080 = vsub.f32 %v4058, %v4076
    %v4081 = vsub.f32 %v4059, %v4077
    %v4082 = vsub.f32 %v4060, %v4078
    %v4083 = vmul.f32 %v4079, %v4079
    %v4084 = vmul.f32 %v4080, %v4080
    %v4085 = vmul.f32 %v4081, %v4081
    %v4086 = vmul.f32 %v4082, %v4082
    %v4087 = vsel %vm272, %v4083, 0.0
    %4088 = vadd.xlane.f32.xlu0 %v4087
    %v4089 = vpop.xlane.xlu0 %4088
    %v4090 = vsel %vm272, %v4084, 0.0
    %4091 = vadd.xlane.f32.xlu0 %v4090
    %v4092 = vpop.xlane.xlu0 %4091
    %v4093 = vsel %vm272, %v4085, 0.0
    %4094 = vadd.xlane.f32.xlu0 %v4093
    %v4095 = vpop.xlane.xlu0 %4094
    %v4096 = vsel %vm272, %v4086, 0.0
    %4097 = vadd.xlane.f32.xlu0 %v4096
    %v4098 = vpop.xlane.xlu0 %4097
    %v4099 = vmul.f32 %v4089, %v2026
    %v4100 = vmul.f32 %v4092, %v2026
    %v4101 = vmul.f32 %v4095, %v2026
    %v4102 = vmul.f32 %v4098, %v2026
    %v4103 = vadd.f32 %v4099, 1e-05
    %v4104 = vadd.f32 %v4100, 1e-05
    %v4105 = vadd.f32 %v4101, 1e-05
    %v4106 = vadd.f32 %v4102, 1e-05
    %v4107 = vrsqrt.pop %v4103
    %v4108 = vrsqrt.pop %v4104
    %v4109 = vrsqrt.pop %v4105
    %v4110 = vrsqrt.pop %v4106
    %v4111 = vmul.f32 %v4079, %v4107
    %v4112 = vmul.f32 %v4080, %v4108
    %v4113 = vmul.f32 %v4081, %v4109
    %v4114 = vmul.f32 %v4082, %v4110
    %v4116 = vlaneseq
    %v4117 = vshrl.u32 %v4116, 7
    %v4118 = vsub.s32 0, %v4117
    %v4119 = vrot.slane %v4061, %v4118
    %v4121 = vmul.f32 %v4111, %v4119
    %v4122 = vmul.f32 %v4112, %v4119
    %v4123 = vmul.f32 %v4113, %v4119
    %v4124 = vmul.f32 %v4114, %v4119
    %v4126 = vlaneseq
    %v4127 = vshrl.u32 %v4126, 7
    %v4128 = vsub.s32 0, %v4127
    %v4129 = vrot.slane %v4062, %v4128
    %v4131 = vadd.f32 %v4121, %v4129
    %v4132 = vadd.f32 %v4122, %v4129
    %v4133 = vadd.f32 %v4123, %v4129
    %v4134 = vadd.f32 %v4124, %v4129
    %4135 = vst.msk [vmem:[#allocation3] sm:$0xff] %vm272, %v4131
    %4136 = vst.msk [vmem:[#allocation3 + $0x8] sm:$0xff] %vm272, %v4132
    %4137 = vst.msk [vmem:[#allocation3 + $0x10] sm:$0xff] %vm272, %v4133
    %4138 = vst.msk [vmem:[#allocation3 + $0x18] sm:$0xff] %vm272, %v4134
    // Predicated region
    $region114: #{tpu_custom_call.1} parent=1 // pred_check
      _
    $region115: #{tpu_custom_call.1} parent=1 // pred_check_branch
      %4140 = sbr.rel (0) target = $region117
    $region116: #{tpu_custom_call.1} parent=1 // pred_region
      %s4142 = ssub.s32 512, 512
      %4143 = vsyncadd [#allocation4], %s4142
      %s4144 = sshll.u32 [#allocation3], 4
      %s4145 = int_to_ptr.vmem [resolvable:$true] %s4144
      %4150 = dma.vmem_to_hbm [thread:$0]  %s4145, 512, %s28, [#allocation4], 128, 128, 8
    $region117: #{tpu_custom_call.1} parent=1 // pred_fallthru
      _
    // Predicated region
    $region118: #{tpu_custom_call.1} parent=1 // pred_check
      _
    $region119: #{tpu_custom_call.1} parent=1 // pred_check_branch
      %4152 = sbr.rel (0) target = $region121
    $region120: #{tpu_custom_call.1} parent=1 // pred_region
      %4153 = dma.done [#allocation4], 512
    $region121: #{tpu_custom_call.1} parent=1 // pred_fallthru
      _
    %4154 = vsyncpa [#allocation4], 1

</llo_original>
